<compile_context>
chip_gen: v7x
topology: tpu7x:2x2x1
jax: 0.10.0
libtpu: 0.0.40
codegen_flags: <defaults>
</compile_context>

<pallas_src>
import functools

import jax
import jax.numpy as jnp
import numpy as np
from jax.experimental import pallas as pl
from jax.experimental.pallas import tpu as pltpu


# ----------------------------------------------------------------------------
# Model constants (match the nn.Conv1d / nn.Linear stack in S2P_State)
# ----------------------------------------------------------------------------
_CONV_SPECS = [  # (Cin, Cout, K)
    (1, 30, 13),
    (30, 30, 11),
    (30, 40, 7),
    (40, 50, 5),
    (50, 60, 5),
    (60, 60, 5),
]
# "same" padding pad = K//2 matches PyTorch only for odd K (all odd here).
assert all(k % 2 == 1 for _, _, k in _CONV_SPECS)

_HALO = 8                                      # sublane-aligned halo rows
_C_MAX = max(c for _, c, _ in _CONV_SPECS)     # 60 (conv channel max)
_HIDDEN = 1024


def _round_up(v, m):
    return ((v + m - 1) // m) * m


# ----------------------------------------------------------------------------
# Fused kernel: conv1..conv6 + fc1 + fc3 for ONE (branch, batch-tile) point
# ----------------------------------------------------------------------------
def _s2p_fused_kernel(x_ref,
                      cw1, cb1, cw2, cb2, cw3, cb3, cw4, cb4, cw5, cb5,
                      cw6, cb6, fc1w, fc1b, fc3w, fc3b,
                      out_ref, act_scr, flat_scr, *, TB, L):
    # act_scr : (TB, L + 2*_HALO, 60) f32.  Activation lives at rows [8, 8+L);
    #           halo rows stay zero -> implicit "same" padding.
    # flat_scr: (TB, L*60) f32.  fc1 input in PyTorch flatten order (folded
    #           into the fc1 weight packing as index l*60 + c).
    act_scr[...] = jnp.zeros_like(act_scr)

    # ---- conv1 (Cin=1, K=13): VPU broadcast MAC over the 13 taps -----------
    _, c1, k1 = _CONV_SPECS[0]
    base = _HALO - k1 // 2
    act_scr[:, _HALO:_HALO + L, 0:1] = x_ref[...]            # (TB, L, 1)
    acc = None
    for t in range(k1):
        tap = act_scr[:, base + t: base + t + L, 0:1]        # (TB, L, 1) f32
        term = tap * cw1[t][None, :, :]                       # (TB, L, 30)
        acc = term if acc is None else acc + term
    h = jnp.maximum(acc + cb1[...][None], 0.0)                # (TB, L, 30)

    # ---- conv2..conv6: K per-tap MXU dots, f32 accumulation -----------------
    for w_ref, b_ref, (cin, cout, k) in zip(
            (cw2, cw3, cw4, cw5, cw6), (cb2, cb3, cb4, cb5, cb6),
            _CONV_SPECS[1:]):
        base = _HALO - k // 2
        act_scr[:, _HALO:_HALO + L, :cin] = h                 # aligned store
        acc = None
        for t in range(k):
            tap = act_scr[:, base + t: base + t + L, :cin]    # (TB, L, Cin)
            tap = tap.reshape(TB * L, cin).astype(jnp.bfloat16)
            d = jnp.dot(tap, w_ref[t],                        # (Cin, Cout) bf16
                        preferred_element_type=jnp.float32)
            acc = d if acc is None else acc + d               # (TB*L, Cout) f32
        h = jnp.maximum(acc + b_ref[...], 0.0).reshape(TB, L, cout)

    # ---- flatten (PyTorch c*L+l order folded into fc1_w) + fc1 --------------
    for l in range(L):
        flat_scr[:, l * _C_MAX:(l + 1) * _C_MAX] = h[:, l, :]
    h1 = jnp.dot(flat_scr[...].astype(jnp.bfloat16), fc1w[...],
                 preferred_element_type=jnp.float32)          # (TB, 1024)
    h1 = jnp.maximum(h1 + fc1b[...], 0.0)

    # ---- fc3 (both branches share one lane-dense padded output slab) --------
    out = jnp.dot(h1, fc3w[...], preferred_element_type=jnp.float32)
    out_ref[...] = (out + fc3b[...]).astype(out_ref.dtype)    # (TB, fc3_pad)


def _branch_spec(arr):
    """BlockSpec selecting branch `g` of an array stacked on a leading axis."""
    n_rest = arr.ndim - 1
    return pl.BlockSpec((None,) + tuple(arr.shape[1:]),
                        lambda g, b, _n=n_rest: (g,) + (0,) * _n)


def s2p_state_forward(x, packed, *, state_num, batch_tile=None):
    """x: (B, window_len) f32 -> (out_p (B, 1), out_s (B, state_num))."""
    B, L = x.shape
    fc3_pad = packed["fc3_w"].shape[-1]
    assert fc3_pad % 128 == 0 and fc3_pad >= max(1, state_num)

    tb = batch_tile if batch_tile is not None else (B if B <= 128 else 128)
    assert B % tb == 0 and (tb == B or tb % 8 == 0)
    nb = B // tb

    # TODO(synk): x could be passed as (B, L) and conv1 done as a 13-deep
    # im2col matmul to make the input DMA lane-dense; negligible at this size.
    x3 = x[:, :, None].astype(jnp.float32)        # unsqueeze(1) == (B, L, 1)

    flat_inputs = [x3]
    in_specs = [pl.BlockSpec((tb, L, 1), lambda g, b: (b, 0, 0))]
    for w, b_ in zip(packed["conv_w"], packed["conv_b"]):
        flat_inputs += [w, b_]
        in_specs += [_branch_spec(w), _branch_spec(b_)]
    for name in ("fc1_w", "fc1_b", "fc3_w", "fc3_b"):
        flat_inputs.append(packed[name])
        in_specs.append(_branch_spec(packed[name]))

    kernel = functools.partial(_s2p_fused_kernel, TB=tb, L=L)
    grid_spec = pltpu.PrefetchScalarGridSpec(
        num_scalar_prefetch=0,
        grid=(2, nb),                             # (branch p/s, batch tile)
        in_specs=in_specs,
        out_specs=pl.BlockSpec((None, tb, fc3_pad), lambda g, b: (g, b, 0)),
        scratch_shapes=[
            pltpu.VMEM((tb, L + 2 * _HALO, _C_MAX), jnp.float32),  # act_scr
            pltpu.VMEM((tb, L * _C_MAX), jnp.float32),             # flat_scr
        ],
    )

    # Per-branch MAC*2 FLOPs; leading 2x below = the two branches.
    conv_flops = 2 * B * L * sum(k * ci * co for ci, co, k in _CONV_SPECS)
    fc_flops = 2 * B * (_C_MAX * L * _HIDDEN + _HIDDEN * fc3_pad)
    bytes_acc = sum(int(a.size) * a.dtype.itemsize for a in flat_inputs)
    bytes_acc += 2 * B * fc3_pad * 4

    out = pl.pallas_call(
        kernel,
        grid_spec=grid_spec,
        out_shape=jax.ShapeDtypeStruct((2, B, fc3_pad), jnp.float32),
        compiler_params=pltpu.CompilerParams(
            # Branch axis independent; batch axis kept sequential ("arbitrary")
            # so branch weights stay VMEM-resident across batch tiles.
            # TODO(synk): use pltpu.CORE_PARALLEL for the branch axis on v7x.
            dimension_semantics=("parallel", "arbitrary"),
            vmem_limit_bytes=24 * 1024 * 1024),   # fits every TPU generation
        cost_estimate=pl.CostEstimate(
            flops=2 * (conv_flops + fc_flops),
            transcendentals=0,
            bytes_accessed=bytes_acc),
    )(*flat_inputs)

    out_p = out[0, :, 0:1]                        # fc3_p: 1024 -> 1
    out_s = out[1, :, 0:state_num]                # fc3_s: 1024 -> state_num
    return out_p, out_s


# ----------------------------------------------------------------------------
# Parameter construction (deterministic, synthetic, PyTorch layouts) + packing
# ----------------------------------------------------------------------------
def init_torch_params(key, window_len, state_num):
    def branch(bkey, fc3_out):
        params = {"convs": []}
        keys = jax.random.split(bkey, 2 * len(_CONV_SPECS) + 4)
        i = 0
        for cin, cout, k in _CONV_SPECS:
            scale = (cin * k) ** -0.5
            w = jax.random.uniform(keys[i], (cout, cin, k), jnp.float32,
                                   -scale, scale)
            b = jax.random.uniform(keys[i + 1], (cout,), jnp.float32,
                                   -scale, scale)
            params["convs"].append((w, b))
            i += 2
        d_in = _C_MAX * window_len
        s1 = d_in ** -0.5
        params["fc1_w"] = jax.random.uniform(keys[i], (_HIDDEN, d_in),
                                             jnp.float32, -s1, s1)
        params["fc1_b"] = jax.random.uniform(keys[i + 1], (_HIDDEN,),
                                             jnp.float32, -s1, s1)
        s2 = _HIDDEN ** -0.5
        params["fc3_w"] = jax.random.uniform(keys[i + 2], (fc3_out, _HIDDEN),
                                             jnp.float32, -s2, s2)
        params["fc3_b"] = jax.random.uniform(keys[i + 3], (fc3_out,),
                                             jnp.float32, -s2, s2)
        return params

    kp, ks = jax.random.split(key)
    return {"p": branch(kp, 1), "s": branch(ks, state_num)}


def pack_params(params, window_len):
    """PyTorch layouts -> kernel layouts, branches stacked on a leading axis."""
    L = window_len
    d_max = max(int(params[br]["fc3_w"].shape[0]) for br in ("p", "s"))
    fc3_pad = _round_up(max(1, d_max), 128)

    packed = {"conv_w": [], "conv_b": []}
    for i, (cin, cout, k) in enumerate(_CONV_SPECS):
        w_dtype = jnp.float32 if i == 0 else jnp.bfloat16   # conv1 is VPU f32
        ws, bs = [], []
        for br in ("p", "s"):
            w_pt, b_pt = params[br]["convs"][i]              # (Cout, Cin, K)
            ws.append(jnp.transpose(w_pt, (2, 1, 0)).astype(w_dtype))
            bs.append(b_pt.reshape(1, cout).astype(jnp.float32))
        packed["conv_w"].append(jnp.stack(ws))               # (2, K, Cin, Cout)
        packed["conv_b"].append(jnp.stack(bs))               # (2, 1, Cout)

    fc1_ws, fc1_bs, fc3_ws, fc3_bs = [], [], [], []
    for br in ("p", "s"):
        w = params[br]["fc1_w"]                              # (1024, C*L), col c*L+l
        w = (w.T.reshape(_C_MAX, L, _HIDDEN)                 # [c, l, h]
             .transpose(1, 0, 2)                             # [l, c, h]
             .reshape(L * _C_MAX, _HIDDEN))                  # row l*C + c
        fc1_ws.append(w.astype(jnp.bfloat16))
        fc1_bs.append(params[br]["fc1_b"].reshape(1, _HIDDEN))
        w3 = params[br]["fc3_w"].T                           # (1024, d)
        d = w3.shape[1]
        fc3_ws.append(jnp.pad(w3, ((0, 0), (0, fc3_pad - d))))
        fc3_bs.append(jnp.pad(params[br]["fc3_b"],
                              (0, fc3_pad - d)).reshape(1, fc3_pad))
    packed["fc1_w"] = jnp.stack(fc1_ws)                      # (2, L*60, 1024) bf16
    packed["fc1_b"] = jnp.stack(fc1_bs)                      # (2, 1, 1024)
    packed["fc3_w"] = jnp.stack(fc3_ws)                      # (2, 1024, fc3_pad)
    packed["fc3_b"] = jnp.stack(fc3_bs)                      # (2, 1, fc3_pad)
    return packed


# ----------------------------------------------------------------------------
# Pure numpy (f64) reference of the PyTorch forward, for a loose sanity check
# ----------------------------------------------------------------------------
def _reference_forward(x, params, window_len, state_num):
    xs = np.asarray(x, np.float64)                           # (B, L)
    outs = []
    for br in ("p", "s"):
        h = xs[:, None, :]                                   # (B, 1, L)
        for (w, b) in params[br]["convs"]:
            w = np.asarray(w, np.float64)
            b = np.asarray(b, np.float64)
            cout, cin, k = w.shape
            pad = k // 2
            hp = np.pad(h, ((0, 0), (0, 0), (pad, pad)))
            o = np.zeros((h.shape[0], cout, window_len))
            for l in range(window_len):
                o[:, :, l] = np.einsum("bck,ock->bo", hp[:, :, l:l + k], w)
            h = np.maximum(o + b[None, :, None], 0.0)
        flat = h.reshape(h.shape[0], -1)                     # (B, C*L), c*L+l
        w1 = np.asarray(params[br]["fc1_w"], np.float64)
        b1 = np.asarray(params[br]["fc1_b"], np.float64)
        h1 = np.maximum(flat @ w1.T + b1, 0.0)
        w3 = np.asarray(params[br]["fc3_w"], np.float64)
        b3 = np.asarray(params[br]["fc3_b"], np.float64)
        outs.append(h1 @ w3.T + b3)
    return outs[0], outs[1]


# ----------------------------------------------------------------------------
# Main
# ----------------------------------------------------------------------------
if __name__ == "__main__":
    window_len, state_num, batch = 16, 4, 2

    key = jax.random.PRNGKey(0)
    k_param, k_x = jax.random.split(key)
    torch_params = init_torch_params(k_param, window_len, state_num)
    packed = pack_params(torch_params, window_len)
    x = jax.random.normal(k_x, (batch, window_len), jnp.float32)

    fwd = jax.jit(functools.partial(s2p_state_forward, state_num=state_num))
    out_p, out_s = fwd(x, packed)
    jax.block_until_ready((out_p, out_s))

    assert out_p.shape == (batch, 1), out_p.shape
    assert out_s.shape == (batch, state_num), out_s.shape

    # Loose tolerance: conv2..6 / fc1 use bf16 weights + bf16 activation casts.
    ref_p, ref_s = _reference_forward(x, torch_params, window_len, state_num)
    np.testing.assert_allclose(np.asarray(out_p), ref_p, rtol=5e-2, atol=5e-3)
    np.testing.assert_allclose(np.asarray(out_s), ref_s, rtol=5e-2, atol=5e-3)

    print("KERNEL_OK")
</pallas_src>

<mosaic_0001>
module attributes {stable_mosaic.version = 11 : i64} {
  func.func @_s2p_fused_kernel(%arg0: i32, %arg1: i32, %arg2: memref<2x16x1xf32, #tpu.memory_space<vmem>>, %arg3: memref<1x13x1x30xf32, #tpu.memory_space<vmem>>, %arg4: memref<1x1x30xf32, #tpu.memory_space<vmem>>, %arg5: memref<1x11x30x30xbf16, #tpu.memory_space<vmem>>, %arg6: memref<1x1x30xf32, #tpu.memory_space<vmem>>, %arg7: memref<1x7x30x40xbf16, #tpu.memory_space<vmem>>, %arg8: memref<1x1x40xf32, #tpu.memory_space<vmem>>, %arg9: memref<1x5x40x50xbf16, #tpu.memory_space<vmem>>, %arg10: memref<1x1x50xf32, #tpu.memory_space<vmem>>, %arg11: memref<1x5x50x60xbf16, #tpu.memory_space<vmem>>, %arg12: memref<1x1x60xf32, #tpu.memory_space<vmem>>, %arg13: memref<1x5x60x60xbf16, #tpu.memory_space<vmem>>, %arg14: memref<1x1x60xf32, #tpu.memory_space<vmem>>, %arg15: memref<1x960x1024xbf16, #tpu.memory_space<vmem>>, %arg16: memref<1x1x1024xf32, #tpu.memory_space<vmem>>, %arg17: memref<1x1024x128xf32, #tpu.memory_space<vmem>>, %arg18: memref<1x1x128xf32, #tpu.memory_space<vmem>>, %arg19: memref<1x2x128xf32, #tpu.memory_space<vmem>>, %arg20: memref<2x32x60xf32, #tpu.memory_space<vmem>>, %arg21: memref<2x960xf32, #tpu.memory_space<vmem>>) attributes {dimension_semantics = [#tpu.dimension_semantics<parallel>, #tpu.dimension_semantics<arbitrary>], iteration_bounds = array<i64: 2, 1>, scalar_prefetch = 0 : i64, scratch_operands = 2 : i64, tpu.core_type = #tpu.core_type<tc>, window_params = [{transform_indices = @transform_0, window_bounds = array<i64: 2, 16, 1>}, {transform_indices = @transform_1, window_bounds = array<i64: 1, 13, 1, 30>}, {transform_indices = @transform_2, window_bounds = array<i64: 1, 1, 30>}, {transform_indices = @transform_3, window_bounds = array<i64: 1, 11, 30, 30>}, {transform_indices = @transform_4, window_bounds = array<i64: 1, 1, 30>}, {transform_indices = @transform_5, window_bounds = array<i64: 1, 7, 30, 40>}, {transform_indices = @transform_6, window_bounds = array<i64: 1, 1, 40>}, {transform_indices = @transform_7, window_bounds = array<i64: 1, 5, 40, 50>}, {transform_indices = @transform_8, window_bounds = array<i64: 1, 1, 50>}, {transform_indices = @transform_9, window_bounds = array<i64: 1, 5, 50, 60>}, {transform_indices = @transform_10, window_bounds = array<i64: 1, 1, 60>}, {transform_indices = @transform_11, window_bounds = array<i64: 1, 5, 60, 60>}, {transform_indices = @transform_12, window_bounds = array<i64: 1, 1, 60>}, {transform_indices = @transform_13, window_bounds = array<i64: 1, 960, 1024>}, {transform_indices = @transform_14, window_bounds = array<i64: 1, 1, 1024>}, {transform_indices = @transform_15, window_bounds = array<i64: 1, 1024, 128>}, {transform_indices = @transform_16, window_bounds = array<i64: 1, 1, 128>}, {transform_indices = @transform_17, window_bounds = array<i64: 1, 2, 128>}]} {
    %cst = arith.constant 0.000000e+00 : f32
    %0 = vector.broadcast %cst : f32 to vector<2x32x60xf32>
    %c0 = arith.constant 0 : index
    %c0_0 = arith.constant 0 : index
    %c0_1 = arith.constant 0 : index
    %1 = vector.load %arg20[%c0, %c0_0, %c0_1] : memref<2x32x60xf32, #tpu.memory_space<vmem>>, vector<2x32x60xf32>
    tpu.vector_store %arg20[%c0, %c0_0, %c0_1], %0 {strides = array<i32>} : memref<2x32x60xf32, #tpu.memory_space<vmem>>, vector<2x32x60xf32>,
    %c0_2 = arith.constant 0 : index
    %c0_3 = arith.constant 0 : index
    %c0_4 = arith.constant 0 : index
    %2 = vector.load %arg2[%c0_2, %c0_3, %c0_4] : memref<2x16x1xf32, #tpu.memory_space<vmem>>, vector<2x16x1xf32>
    %c0_5 = arith.constant 0 : index
    %c8 = arith.constant 8 : index
    %c0_6 = arith.constant 0 : index
    %3 = vector.load %arg20[%c0_5, %c8, %c0_6] : memref<2x32x60xf32, #tpu.memory_space<vmem>>, vector<2x16x1xf32>
    tpu.vector_store %arg20[%c0_5, %c8, %c0_6], %2 {strides = array<i32>} : memref<2x32x60xf32, #tpu.memory_space<vmem>>, vector<2x16x1xf32>,
    %c0_7 = arith.constant 0 : index
    %c2 = arith.constant 2 : index
    %c0_8 = arith.constant 0 : index
    %4 = vector.load %arg20[%c0_7, %c2, %c0_8] : memref<2x32x60xf32, #tpu.memory_space<vmem>>, vector<2x16x1xf32>
    %c0_9 = arith.constant 0 : index
    %c0_10 = arith.constant 0 : index
    %c0_11 = arith.constant 0 : index
    %c0_12 = arith.constant 0 : index
    %5 = vector.load %arg3[%c0_9, %c0_10, %c0_11, %c0_12] : memref<1x13x1x30xf32, #tpu.memory_space<vmem>>, vector<1x1x1x30xf32>
    %6 = vector.shape_cast %5 : vector<1x1x1x30xf32> to vector<1x30xf32>
    %7 = vector.shape_cast %6 : vector<1x30xf32> to vector<1x1x30xf32>
    %8 = vector.broadcast %4 : vector<2x16x1xf32> to vector<2x16x30xf32>
    %9 = vector.broadcast %7 : vector<1x1x30xf32> to vector<2x16x30xf32>
    %10 = arith.mulf %8, %9 : vector<2x16x30xf32>
    %c0_13 = arith.constant 0 : index
    %c3 = arith.constant 3 : index
    %c0_14 = arith.constant 0 : index
    %11 = vector.load %arg20[%c0_13, %c3, %c0_14] : memref<2x32x60xf32, #tpu.memory_space<vmem>>, vector<2x16x1xf32>
    %c0_15 = arith.constant 0 : index
    %c1 = arith.constant 1 : index
    %c0_16 = arith.constant 0 : index
    %c0_17 = arith.constant 0 : index
    %12 = vector.load %arg3[%c0_15, %c1, %c0_16, %c0_17] : memref<1x13x1x30xf32, #tpu.memory_space<vmem>>, vector<1x1x1x30xf32>
    %13 = vector.shape_cast %12 : vector<1x1x1x30xf32> to vector<1x30xf32>
    %14 = vector.shape_cast %13 : vector<1x30xf32> to vector<1x1x30xf32>
    %15 = vector.broadcast %11 : vector<2x16x1xf32> to vector<2x16x30xf32>
    %16 = vector.broadcast %14 : vector<1x1x30xf32> to vector<2x16x30xf32>
    %17 = arith.mulf %15, %16 : vector<2x16x30xf32>
    %18 = arith.addf %10, %17 : vector<2x16x30xf32>
    %c0_18 = arith.constant 0 : index
    %c4 = arith.constant 4 : index
    %c0_19 = arith.constant 0 : index
    %19 = vector.load %arg20[%c0_18, %c4, %c0_19] : memref<2x32x60xf32, #tpu.memory_space<vmem>>, vector<2x16x1xf32>
    %c0_20 = arith.constant 0 : index
    %c2_21 = arith.constant 2 : index
    %c0_22 = arith.constant 0 : index
    %c0_23 = arith.constant 0 : index
    %20 = vector.load %arg3[%c0_20, %c2_21, %c0_22, %c0_23] : memref<1x13x1x30xf32, #tpu.memory_space<vmem>>, vector<1x1x1x30xf32>
    %21 = vector.shape_cast %20 : vector<1x1x1x30xf32> to vector<1x30xf32>
    %22 = vector.shape_cast %21 : vector<1x30xf32> to vector<1x1x30xf32>
    %23 = vector.broadcast %19 : vector<2x16x1xf32> to vector<2x16x30xf32>
    %24 = vector.broadcast %22 : vector<1x1x30xf32> to vector<2x16x30xf32>
    %25 = arith.mulf %23, %24 : vector<2x16x30xf32>
    %26 = arith.addf %18, %25 : vector<2x16x30xf32>
    %c0_24 = arith.constant 0 : index
    %c5 = arith.constant 5 : index
    %c0_25 = arith.constant 0 : index
    %27 = vector.load %arg20[%c0_24, %c5, %c0_25] : memref<2x32x60xf32, #tpu.memory_space<vmem>>, vector<2x16x1xf32>
    %c0_26 = arith.constant 0 : index
    %c3_27 = arith.constant 3 : index
    %c0_28 = arith.constant 0 : index
    %c0_29 = arith.constant 0 : index
    %28 = vector.load %arg3[%c0_26, %c3_27, %c0_28, %c0_29] : memref<1x13x1x30xf32, #tpu.memory_space<vmem>>, vector<1x1x1x30xf32>
    %29 = vector.shape_cast %28 : vector<1x1x1x30xf32> to vector<1x30xf32>
    %30 = vector.shape_cast %29 : vector<1x30xf32> to vector<1x1x30xf32>
    %31 = vector.broadcast %27 : vector<2x16x1xf32> to vector<2x16x30xf32>
    %32 = vector.broadcast %30 : vector<1x1x30xf32> to vector<2x16x30xf32>
    %33 = arith.mulf %31, %32 : vector<2x16x30xf32>
    %34 = arith.addf %26, %33 : vector<2x16x30xf32>
    %c0_30 = arith.constant 0 : index
    %c6 = arith.constant 6 : index
    %c0_31 = arith.constant 0 : index
    %35 = vector.load %arg20[%c0_30, %c6, %c0_31] : memref<2x32x60xf32, #tpu.memory_space<vmem>>, vector<2x16x1xf32>
    %c0_32 = arith.constant 0 : index
    %c4_33 = arith.constant 4 : index
    %c0_34 = arith.constant 0 : index
    %c0_35 = arith.constant 0 : index
    %36 = vector.load %arg3[%c0_32, %c4_33, %c0_34, %c0_35] : memref<1x13x1x30xf32, #tpu.memory_space<vmem>>, vector<1x1x1x30xf32>
    %37 = vector.shape_cast %36 : vector<1x1x1x30xf32> to vector<1x30xf32>
    %38 = vector.shape_cast %37 : vector<1x30xf32> to vector<1x1x30xf32>
    %39 = vector.broadcast %35 : vector<2x16x1xf32> to vector<2x16x30xf32>
    %40 = vector.broadcast %38 : vector<1x1x30xf32> to vector<2x16x30xf32>
    %41 = arith.mulf %39, %40 : vector<2x16x30xf32>
    %42 = arith.addf %34, %41 : vector<2x16x30xf32>
    %c0_36 = arith.constant 0 : index
    %c7 = arith.constant 7 : index
    %c0_37 = arith.constant 0 : index
    %43 = vector.load %arg20[%c0_36, %c7, %c0_37] : memref<2x32x60xf32, #tpu.memory_space<vmem>>, vector<2x16x1xf32>
    %c0_38 = arith.constant 0 : index
    %c5_39 = arith.constant 5 : index
    %c0_40 = arith.constant 0 : index
    %c0_41 = arith.constant 0 : index
    %44 = vector.load %arg3[%c0_38, %c5_39, %c0_40, %c0_41] : memref<1x13x1x30xf32, #tpu.memory_space<vmem>>, vector<1x1x1x30xf32>
    %45 = vector.shape_cast %44 : vector<1x1x1x30xf32> to vector<1x30xf32>
    %46 = vector.shape_cast %45 : vector<1x30xf32> to vector<1x1x30xf32>
    %47 = vector.broadcast %43 : vector<2x16x1xf32> to vector<2x16x30xf32>
    %48 = vector.broadcast %46 : vector<1x1x30xf32> to vector<2x16x30xf32>
    %49 = arith.mulf %47, %48 : vector<2x16x30xf32>
    %50 = arith.addf %42, %49 : vector<2x16x30xf32>
    %c0_42 = arith.constant 0 : index
    %c8_43 = arith.constant 8 : index
    %c0_44 = arith.constant 0 : index
    %51 = vector.load %arg20[%c0_42, %c8_43, %c0_44] : memref<2x32x60xf32, #tpu.memory_space<vmem>>, vector<2x16x1xf32>
    %c0_45 = arith.constant 0 : index
    %c6_46 = arith.constant 6 : index
    %c0_47 = arith.constant 0 : index
    %c0_48 = arith.constant 0 : index
    %52 = vector.load %arg3[%c0_45, %c6_46, %c0_47, %c0_48] : memref<1x13x1x30xf32, #tpu.memory_space<vmem>>, vector<1x1x1x30xf32>
    %53 = vector.shape_cast %52 : vector<1x1x1x30xf32> to vector<1x30xf32>
    %54 = vector.shape_cast %53 : vector<1x30xf32> to vector<1x1x30xf32>
    %55 = vector.broadcast %51 : vector<2x16x1xf32> to vector<2x16x30xf32>
    %56 = vector.broadcast %54 : vector<1x1x30xf32> to vector<2x16x30xf32>
    %57 = arith.mulf %55, %56 : vector<2x16x30xf32>
    %58 = arith.addf %50, %57 : vector<2x16x30xf32>
    %c0_49 = arith.constant 0 : index
    %c9 = arith.constant 9 : index
    %c0_50 = arith.constant 0 : index
    %59 = vector.load %arg20[%c0_49, %c9, %c0_50] : memref<2x32x60xf32, #tpu.memory_space<vmem>>, vector<2x16x1xf32>
    %c0_51 = arith.constant 0 : index
    %c7_52 = arith.constant 7 : index
    %c0_53 = arith.constant 0 : index
    %c0_54 = arith.constant 0 : index
    %60 = vector.load %arg3[%c0_51, %c7_52, %c0_53, %c0_54] : memref<1x13x1x30xf32, #tpu.memory_space<vmem>>, vector<1x1x1x30xf32>
    %61 = vector.shape_cast %60 : vector<1x1x1x30xf32> to vector<1x30xf32>
    %62 = vector.shape_cast %61 : vector<1x30xf32> to vector<1x1x30xf32>
    %63 = vector.broadcast %59 : vector<2x16x1xf32> to vector<2x16x30xf32>
    %64 = vector.broadcast %62 : vector<1x1x30xf32> to vector<2x16x30xf32>
    %65 = arith.mulf %63, %64 : vector<2x16x30xf32>
    %66 = arith.addf %58, %65 : vector<2x16x30xf32>
    %c0_55 = arith.constant 0 : index
    %c10 = arith.constant 10 : index
    %c0_56 = arith.constant 0 : index
    %67 = vector.load %arg20[%c0_55, %c10, %c0_56] : memref<2x32x60xf32, #tpu.memory_space<vmem>>, vector<2x16x1xf32>
    %c0_57 = arith.constant 0 : index
    %c8_58 = arith.constant 8 : index
    %c0_59 = arith.constant 0 : index
    %c0_60 = arith.constant 0 : index
    %68 = vector.load %arg3[%c0_57, %c8_58, %c0_59, %c0_60] : memref<1x13x1x30xf32, #tpu.memory_space<vmem>>, vector<1x1x1x30xf32>
    %69 = vector.shape_cast %68 : vector<1x1x1x30xf32> to vector<1x30xf32>
    %70 = vector.shape_cast %69 : vector<1x30xf32> to vector<1x1x30xf32>
    %71 = vector.broadcast %67 : vector<2x16x1xf32> to vector<2x16x30xf32>
    %72 = vector.broadcast %70 : vector<1x1x30xf32> to vector<2x16x30xf32>
    %73 = arith.mulf %71, %72 : vector<2x16x30xf32>
    %74 = arith.addf %66, %73 : vector<2x16x30xf32>
    %c0_61 = arith.constant 0 : index
    %c11 = arith.constant 11 : index
    %c0_62 = arith.constant 0 : index
    %75 = vector.load %arg20[%c0_61, %c11, %c0_62] : memref<2x32x60xf32, #tpu.memory_space<vmem>>, vector<2x16x1xf32>
    %c0_63 = arith.constant 0 : index
    %c9_64 = arith.constant 9 : index
    %c0_65 = arith.constant 0 : index
    %c0_66 = arith.constant 0 : index
    %76 = vector.load %arg3[%c0_63, %c9_64, %c0_65, %c0_66] : memref<1x13x1x30xf32, #tpu.memory_space<vmem>>, vector<1x1x1x30xf32>
    %77 = vector.shape_cast %76 : vector<1x1x1x30xf32> to vector<1x30xf32>
    %78 = vector.shape_cast %77 : vector<1x30xf32> to vector<1x1x30xf32>
    %79 = vector.broadcast %75 : vector<2x16x1xf32> to vector<2x16x30xf32>
    %80 = vector.broadcast %78 : vector<1x1x30xf32> to vector<2x16x30xf32>
    %81 = arith.mulf %79, %80 : vector<2x16x30xf32>
    %82 = arith.addf %74, %81 : vector<2x16x30xf32>
    %c0_67 = arith.constant 0 : index
    %c12 = arith.constant 12 : index
    %c0_68 = arith.constant 0 : index
    %83 = vector.load %arg20[%c0_67, %c12, %c0_68] : memref<2x32x60xf32, #tpu.memory_space<vmem>>, vector<2x16x1xf32>
    %c0_69 = arith.constant 0 : index
    %c10_70 = arith.constant 10 : index
    %c0_71 = arith.constant 0 : index
    %c0_72 = arith.constant 0 : index
    %84 = vector.load %arg3[%c0_69, %c10_70, %c0_71, %c0_72] : memref<1x13x1x30xf32, #tpu.memory_space<vmem>>, vector<1x1x1x30xf32>
    %85 = vector.shape_cast %84 : vector<1x1x1x30xf32> to vector<1x30xf32>
    %86 = vector.shape_cast %85 : vector<1x30xf32> to vector<1x1x30xf32>
    %87 = vector.broadcast %83 : vector<2x16x1xf32> to vector<2x16x30xf32>
    %88 = vector.broadcast %86 : vector<1x1x30xf32> to vector<2x16x30xf32>
    %89 = arith.mulf %87, %88 : vector<2x16x30xf32>
    %90 = arith.addf %82, %89 : vector<2x16x30xf32>
    %c0_73 = arith.constant 0 : index
    %c13 = arith.constant 13 : index
    %c0_74 = arith.constant 0 : index
    %91 = vector.load %arg20[%c0_73, %c13, %c0_74] : memref<2x32x60xf32, #tpu.memory_space<vmem>>, vector<2x16x1xf32>
    %c0_75 = arith.constant 0 : index
    %c11_76 = arith.constant 11 : index
    %c0_77 = arith.constant 0 : index
    %c0_78 = arith.constant 0 : index
    %92 = vector.load %arg3[%c0_75, %c11_76, %c0_77, %c0_78] : memref<1x13x1x30xf32, #tpu.memory_space<vmem>>, vector<1x1x1x30xf32>
    %93 = vector.shape_cast %92 : vector<1x1x1x30xf32> to vector<1x30xf32>
    %94 = vector.shape_cast %93 : vector<1x30xf32> to vector<1x1x30xf32>
    %95 = vector.broadcast %91 : vector<2x16x1xf32> to vector<2x16x30xf32>
    %96 = vector.broadcast %94 : vector<1x1x30xf32> to vector<2x16x30xf32>
    %97 = arith.mulf %95, %96 : vector<2x16x30xf32>
    %98 = arith.addf %90, %97 : vector<2x16x30xf32>
    %c0_79 = arith.constant 0 : index
    %c14 = arith.constant 14 : index
    %c0_80 = arith.constant 0 : index
    %99 = vector.load %arg20[%c0_79, %c14, %c0_80] : memref<2x32x60xf32, #tpu.memory_space<vmem>>, vector<2x16x1xf32>
    %c0_81 = arith.constant 0 : index
    %c12_82 = arith.constant 12 : index
    %c0_83 = arith.constant 0 : index
    %c0_84 = arith.constant 0 : index
    %100 = vector.load %arg3[%c0_81, %c12_82, %c0_83, %c0_84] : memref<1x13x1x30xf32, #tpu.memory_space<vmem>>, vector<1x1x1x30xf32>
    %101 = vector.shape_cast %100 : vector<1x1x1x30xf32> to vector<1x30xf32>
    %102 = vector.shape_cast %101 : vector<1x30xf32> to vector<1x1x30xf32>
    %103 = vector.broadcast %99 : vector<2x16x1xf32> to vector<2x16x30xf32>
    %104 = vector.broadcast %102 : vector<1x1x30xf32> to vector<2x16x30xf32>
    %105 = arith.mulf %103, %104 : vector<2x16x30xf32>
    %106 = arith.addf %98, %105 : vector<2x16x30xf32>
    %c0_85 = arith.constant 0 : index
    %c0_86 = arith.constant 0 : index
    %c0_87 = arith.constant 0 : index
    %107 = vector.load %arg4[%c0_85, %c0_86, %c0_87] : memref<1x1x30xf32, #tpu.memory_space<vmem>>, vector<1x1x30xf32>
    %108 = vector.shape_cast %107 : vector<1x1x30xf32> to vector<1x30xf32>
    %109 = vector.shape_cast %108 : vector<1x30xf32> to vector<1x1x30xf32>
    %110 = vector.broadcast %109 : vector<1x1x30xf32> to vector<2x16x30xf32>
    %111 = arith.addf %106, %110 : vector<2x16x30xf32>
    %cst_88 = arith.constant 0.000000e+00 : f32
    %112 = vector.broadcast %cst_88 : f32 to vector<2x16x30xf32>
    %113 = arith.maximumf %111, %112 : vector<2x16x30xf32>
    %c0_89 = arith.constant 0 : index
    %c8_90 = arith.constant 8 : index
    %c0_91 = arith.constant 0 : index
    %114 = vector.load %arg20[%c0_89, %c8_90, %c0_91] : memref<2x32x60xf32, #tpu.memory_space<vmem>>, vector<2x16x30xf32>
    tpu.vector_store %arg20[%c0_89, %c8_90, %c0_91], %113 {strides = array<i32>} : memref<2x32x60xf32, #tpu.memory_space<vmem>>, vector<2x16x30xf32>,
    %c0_92 = arith.constant 0 : index
    %c3_93 = arith.constant 3 : index
    %c0_94 = arith.constant 0 : index
    %115 = vector.load %arg20[%c0_92, %c3_93, %c0_94] : memref<2x32x60xf32, #tpu.memory_space<vmem>>, vector<2x16x30xf32>
    %116 = vector.shape_cast %115 : vector<2x16x30xf32> to vector<32x30xf32>
    %117 = arith.truncf %116 : vector<32x30xf32> to vector<32x30xbf16>
    %c0_95 = arith.constant 0 : index
    %c0_96 = arith.constant 0 : index
    %c0_97 = arith.constant 0 : index
    %c0_98 = arith.constant 0 : index
    %118 = vector.load %arg5[%c0_95, %c0_96, %c0_97, %c0_98] : memref<1x11x30x30xbf16, #tpu.memory_space<vmem>>, vector<1x1x30x30xbf16>
    %119 = vector.shape_cast %118 : vector<1x1x30x30xbf16> to vector<30x30xbf16>
    %cst_99 = arith.constant dense<0.000000e+00> : vector<32x30xf32>
    %120 = tpu.matmul %117, %119, %cst_99 {dimension_numbers = #tpu.dot_dimension_numbers<[1], [0], [0], [1], [0, 0, 1, 1], [], []>} : vector<32x30xbf16>, vector<30x30xbf16>, vector<32x30xf32> -> vector<32x30xf32>
    %c0_100 = arith.constant 0 : index
    %c4_101 = arith.constant 4 : index
    %c0_102 = arith.constant 0 : index
    %121 = vector.load %arg20[%c0_100, %c4_101, %c0_102] : memref<2x32x60xf32, #tpu.memory_space<vmem>>, vector<2x16x30xf32>
    %122 = vector.shape_cast %121 : vector<2x16x30xf32> to vector<32x30xf32>
    %123 = arith.truncf %122 : vector<32x30xf32> to vector<32x30xbf16>
    %c0_103 = arith.constant 0 : index
    %c1_104 = arith.constant 1 : index
    %c0_105 = arith.constant 0 : index
    %c0_106 = arith.constant 0 : index
    %124 = vector.load %arg5[%c0_103, %c1_104, %c0_105, %c0_106] : memref<1x11x30x30xbf16, #tpu.memory_space<vmem>>, vector<1x1x30x30xbf16>
    %125 = vector.shape_cast %124 : vector<1x1x30x30xbf16> to vector<30x30xbf16>
    %cst_107 = arith.constant dense<0.000000e+00> : vector<32x30xf32>
    %126 = tpu.matmul %123, %125, %cst_107 {dimension_numbers = #tpu.dot_dimension_numbers<[1], [0], [0], [1], [0, 0, 1, 1], [], []>} : vector<32x30xbf16>, vector<30x30xbf16>, vector<32x30xf32> -> vector<32x30xf32>
    %127 = arith.addf %120, %126 : vector<32x30xf32>
    %c0_108 = arith.constant 0 : index
    %c5_109 = arith.constant 5 : index
    %c0_110 = arith.constant 0 : index
    %128 = vector.load %arg20[%c0_108, %c5_109, %c0_110] : memref<2x32x60xf32, #tpu.memory_space<vmem>>, vector<2x16x30xf32>
    %129 = vector.shape_cast %128 : vector<2x16x30xf32> to vector<32x30xf32>
    %130 = arith.truncf %129 : vector<32x30xf32> to vector<32x30xbf16>
    %c0_111 = arith.constant 0 : index
    %c2_112 = arith.constant 2 : index
    %c0_113 = arith.constant 0 : index
    %c0_114 = arith.constant 0 : index
    %131 = vector.load %arg5[%c0_111, %c2_112, %c0_113, %c0_114] : memref<1x11x30x30xbf16, #tpu.memory_space<vmem>>, vector<1x1x30x30xbf16>
    %132 = vector.shape_cast %131 : vector<1x1x30x30xbf16> to vector<30x30xbf16>
    %cst_115 = arith.constant dense<0.000000e+00> : vector<32x30xf32>
    %133 = tpu.matmul %130, %132, %cst_115 {dimension_numbers = #tpu.dot_dimension_numbers<[1], [0], [0], [1], [0, 0, 1, 1], [], []>} : vector<32x30xbf16>, vector<30x30xbf16>, vector<32x30xf32> -> vector<32x30xf32>
    %134 = arith.addf %127, %133 : vector<32x30xf32>
    %c0_116 = arith.constant 0 : index
    %c6_117 = arith.constant 6 : index
    %c0_118 = arith.constant 0 : index
    %135 = vector.load %arg20[%c0_116, %c6_117, %c0_118] : memref<2x32x60xf32, #tpu.memory_space<vmem>>, vector<2x16x30xf32>
    %136 = vector.shape_cast %135 : vector<2x16x30xf32> to vector<32x30xf32>
    %137 = arith.truncf %136 : vector<32x30xf32> to vector<32x30xbf16>
    %c0_119 = arith.constant 0 : index
    %c3_120 = arith.constant 3 : index
    %c0_121 = arith.constant 0 : index
    %c0_122 = arith.constant 0 : index
    %138 = vector.load %arg5[%c0_119, %c3_120, %c0_121, %c0_122] : memref<1x11x30x30xbf16, #tpu.memory_space<vmem>>, vector<1x1x30x30xbf16>
    %139 = vector.shape_cast %138 : vector<1x1x30x30xbf16> to vector<30x30xbf16>
    %cst_123 = arith.constant dense<0.000000e+00> : vector<32x30xf32>
    %140 = tpu.matmul %137, %139, %cst_123 {dimension_numbers = #tpu.dot_dimension_numbers<[1], [0], [0], [1], [0, 0, 1, 1], [], []>} : vector<32x30xbf16>, vector<30x30xbf16>, vector<32x30xf32> -> vector<32x30xf32>
    %141 = arith.addf %134, %140 : vector<32x30xf32>
    %c0_124 = arith.constant 0 : index
    %c7_125 = arith.constant 7 : index
    %c0_126 = arith.constant 0 : index
    %142 = vector.load %arg20[%c0_124, %c7_125, %c0_126] : memref<2x32x60xf32, #tpu.memory_space<vmem>>, vector<2x16x30xf32>
    %143 = vector.shape_cast %142 : vector<2x16x30xf32> to vector<32x30xf32>
    %144 = arith.truncf %143 : vector<32x30xf32> to vector<32x30xbf16>
    %c0_127 = arith.constant 0 : index
    %c4_128 = arith.constant 4 : index
    %c0_129 = arith.constant 0 : index
    %c0_130 = arith.constant 0 : index
    %145 = vector.load %arg5[%c0_127, %c4_128, %c0_129, %c0_130] : memref<1x11x30x30xbf16, #tpu.memory_space<vmem>>, vector<1x1x30x30xbf16>
    %146 = vector.shape_cast %145 : vector<1x1x30x30xbf16> to vector<30x30xbf16>
    %cst_131 = arith.constant dense<0.000000e+00> : vector<32x30xf32>
    %147 = tpu.matmul %144, %146, %cst_131 {dimension_numbers = #tpu.dot_dimension_numbers<[1], [0], [0], [1], [0, 0, 1, 1], [], []>} : vector<32x30xbf16>, vector<30x30xbf16>, vector<32x30xf32> -> vector<32x30xf32>
    %148 = arith.addf %141, %147 : vector<32x30xf32>
    %c0_132 = arith.constant 0 : index
    %c8_133 = arith.constant 8 : index
    %c0_134 = arith.constant 0 : index
    %149 = vector.load %arg20[%c0_132, %c8_133, %c0_134] : memref<2x32x60xf32, #tpu.memory_space<vmem>>, vector<2x16x30xf32>
    %150 = vector.shape_cast %149 : vector<2x16x30xf32> to vector<32x30xf32>
    %151 = arith.truncf %150 : vector<32x30xf32> to vector<32x30xbf16>
    %c0_135 = arith.constant 0 : index
    %c5_136 = arith.constant 5 : index
    %c0_137 = arith.constant 0 : index
    %c0_138 = arith.constant 0 : index
    %152 = vector.load %arg5[%c0_135, %c5_136, %c0_137, %c0_138] : memref<1x11x30x30xbf16, #tpu.memory_space<vmem>>, vector<1x1x30x30xbf16>
    %153 = vector.shape_cast %152 : vector<1x1x30x30xbf16> to vector<30x30xbf16>
    %cst_139 = arith.constant dense<0.000000e+00> : vector<32x30xf32>
    %154 = tpu.matmul %151, %153, %cst_139 {dimension_numbers = #tpu.dot_dimension_numbers<[1], [0], [0], [1], [0, 0, 1, 1], [], []>} : vector<32x30xbf16>, vector<30x30xbf16>, vector<32x30xf32> -> vector<32x30xf32>
    %155 = arith.addf %148, %154 : vector<32x30xf32>
    %c0_140 = arith.constant 0 : index
    %c9_141 = arith.constant 9 : index
    %c0_142 = arith.constant 0 : index
    %156 = vector.load %arg20[%c0_140, %c9_141, %c0_142] : memref<2x32x60xf32, #tpu.memory_space<vmem>>, vector<2x16x30xf32>
    %157 = vector.shape_cast %156 : vector<2x16x30xf32> to vector<32x30xf32>
    %158 = arith.truncf %157 : vector<32x30xf32> to vector<32x30xbf16>
    %c0_143 = arith.constant 0 : index
    %c6_144 = arith.constant 6 : index
    %c0_145 = arith.constant 0 : index
    %c0_146 = arith.constant 0 : index
    %159 = vector.load %arg5[%c0_143, %c6_144, %c0_145, %c0_146] : memref<1x11x30x30xbf16, #tpu.memory_space<vmem>>, vector<1x1x30x30xbf16>
    %160 = vector.shape_cast %159 : vector<1x1x30x30xbf16> to vector<30x30xbf16>
    %cst_147 = arith.constant dense<0.000000e+00> : vector<32x30xf32>
    %161 = tpu.matmul %158, %160, %cst_147 {dimension_numbers = #tpu.dot_dimension_numbers<[1], [0], [0], [1], [0, 0, 1, 1], [], []>} : vector<32x30xbf16>, vector<30x30xbf16>, vector<32x30xf32> -> vector<32x30xf32>
    %162 = arith.addf %155, %161 : vector<32x30xf32>
    %c0_148 = arith.constant 0 : index
    %c10_149 = arith.constant 10 : index
    %c0_150 = arith.constant 0 : index
    %163 = vector.load %arg20[%c0_148, %c10_149, %c0_150] : memref<2x32x60xf32, #tpu.memory_space<vmem>>, vector<2x16x30xf32>
    %164 = vector.shape_cast %163 : vector<2x16x30xf32> to vector<32x30xf32>
    %165 = arith.truncf %164 : vector<32x30xf32> to vector<32x30xbf16>
    %c0_151 = arith.constant 0 : index
    %c7_152 = arith.constant 7 : index
    %c0_153 = arith.constant 0 : index
    %c0_154 = arith.constant 0 : index
    %166 = vector.load %arg5[%c0_151, %c7_152, %c0_153, %c0_154] : memref<1x11x30x30xbf16, #tpu.memory_space<vmem>>, vector<1x1x30x30xbf16>
    %167 = vector.shape_cast %166 : vector<1x1x30x30xbf16> to vector<30x30xbf16>
    %cst_155 = arith.constant dense<0.000000e+00> : vector<32x30xf32>
    %168 = tpu.matmul %165, %167, %cst_155 {dimension_numbers = #tpu.dot_dimension_numbers<[1], [0], [0], [1], [0, 0, 1, 1], [], []>} : vector<32x30xbf16>, vector<30x30xbf16>, vector<32x30xf32> -> vector<32x30xf32>
    %169 = arith.addf %162, %168 : vector<32x30xf32>
    %c0_156 = arith.constant 0 : index
    %c11_157 = arith.constant 11 : index
    %c0_158 = arith.constant 0 : index
    %170 = vector.load %arg20[%c0_156, %c11_157, %c0_158] : memref<2x32x60xf32, #tpu.memory_space<vmem>>, vector<2x16x30xf32>
    %171 = vector.shape_cast %170 : vector<2x16x30xf32> to vector<32x30xf32>
    %172 = arith.truncf %171 : vector<32x30xf32> to vector<32x30xbf16>
    %c0_159 = arith.constant 0 : index
    %c8_160 = arith.constant 8 : index
    %c0_161 = arith.constant 0 : index
    %c0_162 = arith.constant 0 : index
    %173 = vector.load %arg5[%c0_159, %c8_160, %c0_161, %c0_162] : memref<1x11x30x30xbf16, #tpu.memory_space<vmem>>, vector<1x1x30x30xbf16>
    %174 = vector.shape_cast %173 : vector<1x1x30x30xbf16> to vector<30x30xbf16>
    %cst_163 = arith.constant dense<0.000000e+00> : vector<32x30xf32>
    %175 = tpu.matmul %172, %174, %cst_163 {dimension_numbers = #tpu.dot_dimension_numbers<[1], [0], [0], [1], [0, 0, 1, 1], [], []>} : vector<32x30xbf16>, vector<30x30xbf16>, vector<32x30xf32> -> vector<32x30xf32>
    %176 = arith.addf %169, %175 : vector<32x30xf32>
    %c0_164 = arith.constant 0 : index
    %c12_165 = arith.constant 12 : index
    %c0_166 = arith.constant 0 : index
    %177 = vector.load %arg20[%c0_164, %c12_165, %c0_166] : memref<2x32x60xf32, #tpu.memory_space<vmem>>, vector<2x16x30xf32>
    %178 = vector.shape_cast %177 : vector<2x16x30xf32> to vector<32x30xf32>
    %179 = arith.truncf %178 : vector<32x30xf32> to vector<32x30xbf16>
    %c0_167 = arith.constant 0 : index
    %c9_168 = arith.constant 9 : index
    %c0_169 = arith.constant 0 : index
    %c0_170 = arith.constant 0 : index
    %180 = vector.load %arg5[%c0_167, %c9_168, %c0_169, %c0_170] : memref<1x11x30x30xbf16, #tpu.memory_space<vmem>>, vector<1x1x30x30xbf16>
    %181 = vector.shape_cast %180 : vector<1x1x30x30xbf16> to vector<30x30xbf16>
    %cst_171 = arith.constant dense<0.000000e+00> : vector<32x30xf32>
    %182 = tpu.matmul %179, %181, %cst_171 {dimension_numbers = #tpu.dot_dimension_numbers<[1], [0], [0], [1], [0, 0, 1, 1], [], []>} : vector<32x30xbf16>, vector<30x30xbf16>, vector<32x30xf32> -> vector<32x30xf32>
    %183 = arith.addf %176, %182 : vector<32x30xf32>
    %c0_172 = arith.constant 0 : index
    %c13_173 = arith.constant 13 : index
    %c0_174 = arith.constant 0 : index
    %184 = vector.load %arg20[%c0_172, %c13_173, %c0_174] : memref<2x32x60xf32, #tpu.memory_space<vmem>>, vector<2x16x30xf32>
    %185 = vector.shape_cast %184 : vector<2x16x30xf32> to vector<32x30xf32>
    %186 = arith.truncf %185 : vector<32x30xf32> to vector<32x30xbf16>
    %c0_175 = arith.constant 0 : index
    %c10_176 = arith.constant 10 : index
    %c0_177 = arith.constant 0 : index
    %c0_178 = arith.constant 0 : index
    %187 = vector.load %arg5[%c0_175, %c10_176, %c0_177, %c0_178] : memref<1x11x30x30xbf16, #tpu.memory_space<vmem>>, vector<1x1x30x30xbf16>
    %188 = vector.shape_cast %187 : vector<1x1x30x30xbf16> to vector<30x30xbf16>
    %cst_179 = arith.constant dense<0.000000e+00> : vector<32x30xf32>
    %189 = tpu.matmul %186, %188, %cst_179 {dimension_numbers = #tpu.dot_dimension_numbers<[1], [0], [0], [1], [0, 0, 1, 1], [], []>} : vector<32x30xbf16>, vector<30x30xbf16>, vector<32x30xf32> -> vector<32x30xf32>
    %190 = arith.addf %183, %189 : vector<32x30xf32>
    %c0_180 = arith.constant 0 : index
    %c0_181 = arith.constant 0 : index
    %c0_182 = arith.constant 0 : index
    %191 = vector.load %arg6[%c0_180, %c0_181, %c0_182] : memref<1x1x30xf32, #tpu.memory_space<vmem>>, vector<1x1x30xf32>
    %192 = vector.shape_cast %191 : vector<1x1x30xf32> to vector<1x30xf32>
    %193 = vector.broadcast %192 : vector<1x30xf32> to vector<32x30xf32>
    %194 = arith.addf %190, %193 : vector<32x30xf32>
    %cst_183 = arith.constant 0.000000e+00 : f32
    %195 = vector.broadcast %cst_183 : f32 to vector<32x30xf32>
    %196 = arith.maximumf %194, %195 : vector<32x30xf32>
    %197 = vector.shape_cast %196 : vector<32x30xf32> to vector<2x16x30xf32>
    %c0_184 = arith.constant 0 : index
    %c8_185 = arith.constant 8 : index
    %c0_186 = arith.constant 0 : index
    %198 = vector.load %arg20[%c0_184, %c8_185, %c0_186] : memref<2x32x60xf32, #tpu.memory_space<vmem>>, vector<2x16x30xf32>
    tpu.vector_store %arg20[%c0_184, %c8_185, %c0_186], %197 {strides = array<i32>} : memref<2x32x60xf32, #tpu.memory_space<vmem>>, vector<2x16x30xf32>,
    %c0_187 = arith.constant 0 : index
    %c5_188 = arith.constant 5 : index
    %c0_189 = arith.constant 0 : index
    %199 = vector.load %arg20[%c0_187, %c5_188, %c0_189] : memref<2x32x60xf32, #tpu.memory_space<vmem>>, vector<2x16x30xf32>
    %200 = vector.shape_cast %199 : vector<2x16x30xf32> to vector<32x30xf32>
    %201 = arith.truncf %200 : vector<32x30xf32> to vector<32x30xbf16>
    %c0_190 = arith.constant 0 : index
    %c0_191 = arith.constant 0 : index
    %c0_192 = arith.constant 0 : index
    %c0_193 = arith.constant 0 : index
    %202 = vector.load %arg7[%c0_190, %c0_191, %c0_192, %c0_193] : memref<1x7x30x40xbf16, #tpu.memory_space<vmem>>, vector<1x1x30x40xbf16>
    %203 = vector.shape_cast %202 : vector<1x1x30x40xbf16> to vector<30x40xbf16>
    %cst_194 = arith.constant dense<0.000000e+00> : vector<32x40xf32>
    %204 = tpu.matmul %201, %203, %cst_194 {dimension_numbers = #tpu.dot_dimension_numbers<[1], [0], [0], [1], [0, 0, 1, 1], [], []>} : vector<32x30xbf16>, vector<30x40xbf16>, vector<32x40xf32> -> vector<32x40xf32>
    %c0_195 = arith.constant 0 : index
    %c6_196 = arith.constant 6 : index
    %c0_197 = arith.constant 0 : index
    %205 = vector.load %arg20[%c0_195, %c6_196, %c0_197] : memref<2x32x60xf32, #tpu.memory_space<vmem>>, vector<2x16x30xf32>
    %206 = vector.shape_cast %205 : vector<2x16x30xf32> to vector<32x30xf32>
    %207 = arith.truncf %206 : vector<32x30xf32> to vector<32x30xbf16>
    %c0_198 = arith.constant 0 : index
    %c1_199 = arith.constant 1 : index
    %c0_200 = arith.constant 0 : index
    %c0_201 = arith.constant 0 : index
    %208 = vector.load %arg7[%c0_198, %c1_199, %c0_200, %c0_201] : memref<1x7x30x40xbf16, #tpu.memory_space<vmem>>, vector<1x1x30x40xbf16>
    %209 = vector.shape_cast %208 : vector<1x1x30x40xbf16> to vector<30x40xbf16>
    %cst_202 = arith.constant dense<0.000000e+00> : vector<32x40xf32>
    %210 = tpu.matmul %207, %209, %cst_202 {dimension_numbers = #tpu.dot_dimension_numbers<[1], [0], [0], [1], [0, 0, 1, 1], [], []>} : vector<32x30xbf16>, vector<30x40xbf16>, vector<32x40xf32> -> vector<32x40xf32>
    %211 = arith.addf %204, %210 : vector<32x40xf32>
    %c0_203 = arith.constant 0 : index
    %c7_204 = arith.constant 7 : index
    %c0_205 = arith.constant 0 : index
    %212 = vector.load %arg20[%c0_203, %c7_204, %c0_205] : memref<2x32x60xf32, #tpu.memory_space<vmem>>, vector<2x16x30xf32>
    %213 = vector.shape_cast %212 : vector<2x16x30xf32> to vector<32x30xf32>
    %214 = arith.truncf %213 : vector<32x30xf32> to vector<32x30xbf16>
    %c0_206 = arith.constant 0 : index
    %c2_207 = arith.constant 2 : index
    %c0_208 = arith.constant 0 : index
    %c0_209 = arith.constant 0 : index
    %215 = vector.load %arg7[%c0_206, %c2_207, %c0_208, %c0_209] : memref<1x7x30x40xbf16, #tpu.memory_space<vmem>>, vector<1x1x30x40xbf16>
    %216 = vector.shape_cast %215 : vector<1x1x30x40xbf16> to vector<30x40xbf16>
    %cst_210 = arith.constant dense<0.000000e+00> : vector<32x40xf32>
    %217 = tpu.matmul %214, %216, %cst_210 {dimension_numbers = #tpu.dot_dimension_numbers<[1], [0], [0], [1], [0, 0, 1, 1], [], []>} : vector<32x30xbf16>, vector<30x40xbf16>, vector<32x40xf32> -> vector<32x40xf32>
    %218 = arith.addf %211, %217 : vector<32x40xf32>
    %c0_211 = arith.constant 0 : index
    %c8_212 = arith.constant 8 : index
    %c0_213 = arith.constant 0 : index
    %219 = vector.load %arg20[%c0_211, %c8_212, %c0_213] : memref<2x32x60xf32, #tpu.memory_space<vmem>>, vector<2x16x30xf32>
    %220 = vector.shape_cast %219 : vector<2x16x30xf32> to vector<32x30xf32>
    %221 = arith.truncf %220 : vector<32x30xf32> to vector<32x30xbf16>
    %c0_214 = arith.constant 0 : index
    %c3_215 = arith.constant 3 : index
    %c0_216 = arith.constant 0 : index
    %c0_217 = arith.constant 0 : index
    %222 = vector.load %arg7[%c0_214, %c3_215, %c0_216, %c0_217] : memref<1x7x30x40xbf16, #tpu.memory_space<vmem>>, vector<1x1x30x40xbf16>
    %223 = vector.shape_cast %222 : vector<1x1x30x40xbf16> to vector<30x40xbf16>
    %cst_218 = arith.constant dense<0.000000e+00> : vector<32x40xf32>
    %224 = tpu.matmul %221, %223, %cst_218 {dimension_numbers = #tpu.dot_dimension_numbers<[1], [0], [0], [1], [0, 0, 1, 1], [], []>} : vector<32x30xbf16>, vector<30x40xbf16>, vector<32x40xf32> -> vector<32x40xf32>
    %225 = arith.addf %218, %224 : vector<32x40xf32>
    %c0_219 = arith.constant 0 : index
    %c9_220 = arith.constant 9 : index
    %c0_221 = arith.constant 0 : index
    %226 = vector.load %arg20[%c0_219, %c9_220, %c0_221] : memref<2x32x60xf32, #tpu.memory_space<vmem>>, vector<2x16x30xf32>
    %227 = vector.shape_cast %226 : vector<2x16x30xf32> to vector<32x30xf32>
    %228 = arith.truncf %227 : vector<32x30xf32> to vector<32x30xbf16>
    %c0_222 = arith.constant 0 : index
    %c4_223 = arith.constant 4 : index
    %c0_224 = arith.constant 0 : index
    %c0_225 = arith.constant 0 : index
    %229 = vector.load %arg7[%c0_222, %c4_223, %c0_224, %c0_225] : memref<1x7x30x40xbf16, #tpu.memory_space<vmem>>, vector<1x1x30x40xbf16>
    %230 = vector.shape_cast %229 : vector<1x1x30x40xbf16> to vector<30x40xbf16>
    %cst_226 = arith.constant dense<0.000000e+00> : vector<32x40xf32>
    %231 = tpu.matmul %228, %230, %cst_226 {dimension_numbers = #tpu.dot_dimension_numbers<[1], [0], [0], [1], [0, 0, 1, 1], [], []>} : vector<32x30xbf16>, vector<30x40xbf16>, vector<32x40xf32> -> vector<32x40xf32>
    %232 = arith.addf %225, %231 : vector<32x40xf32>
    %c0_227 = arith.constant 0 : index
    %c10_228 = arith.constant 10 : index
    %c0_229 = arith.constant 0 : index
    %233 = vector.load %arg20[%c0_227, %c10_228, %c0_229] : memref<2x32x60xf32, #tpu.memory_space<vmem>>, vector<2x16x30xf32>
    %234 = vector.shape_cast %233 : vector<2x16x30xf32> to vector<32x30xf32>
    %235 = arith.truncf %234 : vector<32x30xf32> to vector<32x30xbf16>
    %c0_230 = arith.constant 0 : index
    %c5_231 = arith.constant 5 : index
    %c0_232 = arith.constant 0 : index
    %c0_233 = arith.constant 0 : index
    %236 = vector.load %arg7[%c0_230, %c5_231, %c0_232, %c0_233] : memref<1x7x30x40xbf16, #tpu.memory_space<vmem>>, vector<1x1x30x40xbf16>
    %237 = vector.shape_cast %236 : vector<1x1x30x40xbf16> to vector<30x40xbf16>
    %cst_234 = arith.constant dense<0.000000e+00> : vector<32x40xf32>
    %238 = tpu.matmul %235, %237, %cst_234 {dimension_numbers = #tpu.dot_dimension_numbers<[1], [0], [0], [1], [0, 0, 1, 1], [], []>} : vector<32x30xbf16>, vector<30x40xbf16>, vector<32x40xf32> -> vector<32x40xf32>
    %239 = arith.addf %232, %238 : vector<32x40xf32>
    %c0_235 = arith.constant 0 : index
    %c11_236 = arith.constant 11 : index
    %c0_237 = arith.constant 0 : index
    %240 = vector.load %arg20[%c0_235, %c11_236, %c0_237] : memref<2x32x60xf32, #tpu.memory_space<vmem>>, vector<2x16x30xf32>
    %241 = vector.shape_cast %240 : vector<2x16x30xf32> to vector<32x30xf32>
    %242 = arith.truncf %241 : vector<32x30xf32> to vector<32x30xbf16>
    %c0_238 = arith.constant 0 : index
    %c6_239 = arith.constant 6 : index
    %c0_240 = arith.constant 0 : index
    %c0_241 = arith.constant 0 : index
    %243 = vector.load %arg7[%c0_238, %c6_239, %c0_240, %c0_241] : memref<1x7x30x40xbf16, #tpu.memory_space<vmem>>, vector<1x1x30x40xbf16>
    %244 = vector.shape_cast %243 : vector<1x1x30x40xbf16> to vector<30x40xbf16>
    %cst_242 = arith.constant dense<0.000000e+00> : vector<32x40xf32>
    %245 = tpu.matmul %242, %244, %cst_242 {dimension_numbers = #tpu.dot_dimension_numbers<[1], [0], [0], [1], [0, 0, 1, 1], [], []>} : vector<32x30xbf16>, vector<30x40xbf16>, vector<32x40xf32> -> vector<32x40xf32>
    %246 = arith.addf %239, %245 : vector<32x40xf32>
    %c0_243 = arith.constant 0 : index
    %c0_244 = arith.constant 0 : index
    %c0_245 = arith.constant 0 : index
    %247 = vector.load %arg8[%c0_243, %c0_244, %c0_245] : memref<1x1x40xf32, #tpu.memory_space<vmem>>, vector<1x1x40xf32>
    %248 = vector.shape_cast %247 : vector<1x1x40xf32> to vector<1x40xf32>
    %249 = vector.broadcast %248 : vector<1x40xf32> to vector<32x40xf32>
    %250 = arith.addf %246, %249 : vector<32x40xf32>
    %cst_246 = arith.constant 0.000000e+00 : f32
    %251 = vector.broadcast %cst_246 : f32 to vector<32x40xf32>
    %252 = arith.maximumf %250, %251 : vector<32x40xf32>
    %253 = vector.shape_cast %252 : vector<32x40xf32> to vector<2x16x40xf32>
    %c0_247 = arith.constant 0 : index
    %c8_248 = arith.constant 8 : index
    %c0_249 = arith.constant 0 : index
    %254 = vector.load %arg20[%c0_247, %c8_248, %c0_249] : memref<2x32x60xf32, #tpu.memory_space<vmem>>, vector<2x16x40xf32>
    tpu.vector_store %arg20[%c0_247, %c8_248, %c0_249], %253 {strides = array<i32>} : memref<2x32x60xf32, #tpu.memory_space<vmem>>, vector<2x16x40xf32>,
    %c0_250 = arith.constant 0 : index
    %c6_251 = arith.constant 6 : index
    %c0_252 = arith.constant 0 : index
    %255 = vector.load %arg20[%c0_250, %c6_251, %c0_252] : memref<2x32x60xf32, #tpu.memory_space<vmem>>, vector<2x16x40xf32>
    %256 = vector.shape_cast %255 : vector<2x16x40xf32> to vector<32x40xf32>
    %257 = arith.truncf %256 : vector<32x40xf32> to vector<32x40xbf16>
    %c0_253 = arith.constant 0 : index
    %c0_254 = arith.constant 0 : index
    %c0_255 = arith.constant 0 : index
    %c0_256 = arith.constant 0 : index
    %258 = vector.load %arg9[%c0_253, %c0_254, %c0_255, %c0_256] : memref<1x5x40x50xbf16, #tpu.memory_space<vmem>>, vector<1x1x40x50xbf16>
    %259 = vector.shape_cast %258 : vector<1x1x40x50xbf16> to vector<40x50xbf16>
    %cst_257 = arith.constant dense<0.000000e+00> : vector<32x50xf32>
    %260 = tpu.matmul %257, %259, %cst_257 {dimension_numbers = #tpu.dot_dimension_numbers<[1], [0], [0], [1], [0, 0, 1, 1], [], []>} : vector<32x40xbf16>, vector<40x50xbf16>, vector<32x50xf32> -> vector<32x50xf32>
    %c0_258 = arith.constant 0 : index
    %c7_259 = arith.constant 7 : index
    %c0_260 = arith.constant 0 : index
    %261 = vector.load %arg20[%c0_258, %c7_259, %c0_260] : memref<2x32x60xf32, #tpu.memory_space<vmem>>, vector<2x16x40xf32>
    %262 = vector.shape_cast %261 : vector<2x16x40xf32> to vector<32x40xf32>
    %263 = arith.truncf %262 : vector<32x40xf32> to vector<32x40xbf16>
    %c0_261 = arith.constant 0 : index
    %c1_262 = arith.constant 1 : index
    %c0_263 = arith.constant 0 : index
    %c0_264 = arith.constant 0 : index
    %264 = vector.load %arg9[%c0_261, %c1_262, %c0_263, %c0_264] : memref<1x5x40x50xbf16, #tpu.memory_space<vmem>>, vector<1x1x40x50xbf16>
    %265 = vector.shape_cast %264 : vector<1x1x40x50xbf16> to vector<40x50xbf16>
    %cst_265 = arith.constant dense<0.000000e+00> : vector<32x50xf32>
    %266 = tpu.matmul %263, %265, %cst_265 {dimension_numbers = #tpu.dot_dimension_numbers<[1], [0], [0], [1], [0, 0, 1, 1], [], []>} : vector<32x40xbf16>, vector<40x50xbf16>, vector<32x50xf32> -> vector<32x50xf32>
    %267 = arith.addf %260, %266 : vector<32x50xf32>
    %c0_266 = arith.constant 0 : index
    %c8_267 = arith.constant 8 : index
    %c0_268 = arith.constant 0 : index
    %268 = vector.load %arg20[%c0_266, %c8_267, %c0_268] : memref<2x32x60xf32, #tpu.memory_space<vmem>>, vector<2x16x40xf32>
    %269 = vector.shape_cast %268 : vector<2x16x40xf32> to vector<32x40xf32>
    %270 = arith.truncf %269 : vector<32x40xf32> to vector<32x40xbf16>
    %c0_269 = arith.constant 0 : index
    %c2_270 = arith.constant 2 : index
    %c0_271 = arith.constant 0 : index
    %c0_272 = arith.constant 0 : index
    %271 = vector.load %arg9[%c0_269, %c2_270, %c0_271, %c0_272] : memref<1x5x40x50xbf16, #tpu.memory_space<vmem>>, vector<1x1x40x50xbf16>
    %272 = vector.shape_cast %271 : vector<1x1x40x50xbf16> to vector<40x50xbf16>
    %cst_273 = arith.constant dense<0.000000e+00> : vector<32x50xf32>
    %273 = tpu.matmul %270, %272, %cst_273 {dimension_numbers = #tpu.dot_dimension_numbers<[1], [0], [0], [1], [0, 0, 1, 1], [], []>} : vector<32x40xbf16>, vector<40x50xbf16>, vector<32x50xf32> -> vector<32x50xf32>
    %274 = arith.addf %267, %273 : vector<32x50xf32>
    %c0_274 = arith.constant 0 : index
    %c9_275 = arith.constant 9 : index
    %c0_276 = arith.constant 0 : index
    %275 = vector.load %arg20[%c0_274, %c9_275, %c0_276] : memref<2x32x60xf32, #tpu.memory_space<vmem>>, vector<2x16x40xf32>
    %276 = vector.shape_cast %275 : vector<2x16x40xf32> to vector<32x40xf32>
    %277 = arith.truncf %276 : vector<32x40xf32> to vector<32x40xbf16>
    %c0_277 = arith.constant 0 : index
    %c3_278 = arith.constant 3 : index
    %c0_279 = arith.constant 0 : index
    %c0_280 = arith.constant 0 : index
    %278 = vector.load %arg9[%c0_277, %c3_278, %c0_279, %c0_280] : memref<1x5x40x50xbf16, #tpu.memory_space<vmem>>, vector<1x1x40x50xbf16>
    %279 = vector.shape_cast %278 : vector<1x1x40x50xbf16> to vector<40x50xbf16>
    %cst_281 = arith.constant dense<0.000000e+00> : vector<32x50xf32>
    %280 = tpu.matmul %277, %279, %cst_281 {dimension_numbers = #tpu.dot_dimension_numbers<[1], [0], [0], [1], [0, 0, 1, 1], [], []>} : vector<32x40xbf16>, vector<40x50xbf16>, vector<32x50xf32> -> vector<32x50xf32>
    %281 = arith.addf %274, %280 : vector<32x50xf32>
    %c0_282 = arith.constant 0 : index
    %c10_283 = arith.constant 10 : index
    %c0_284 = arith.constant 0 : index
    %282 = vector.load %arg20[%c0_282, %c10_283, %c0_284] : memref<2x32x60xf32, #tpu.memory_space<vmem>>, vector<2x16x40xf32>
    %283 = vector.shape_cast %282 : vector<2x16x40xf32> to vector<32x40xf32>
    %284 = arith.truncf %283 : vector<32x40xf32> to vector<32x40xbf16>
    %c0_285 = arith.constant 0 : index
    %c4_286 = arith.constant 4 : index
    %c0_287 = arith.constant 0 : index
    %c0_288 = arith.constant 0 : index
    %285 = vector.load %arg9[%c0_285, %c4_286, %c0_287, %c0_288] : memref<1x5x40x50xbf16, #tpu.memory_space<vmem>>, vector<1x1x40x50xbf16>
    %286 = vector.shape_cast %285 : vector<1x1x40x50xbf16> to vector<40x50xbf16>
    %cst_289 = arith.constant dense<0.000000e+00> : vector<32x50xf32>
    %287 = tpu.matmul %284, %286, %cst_289 {dimension_numbers = #tpu.dot_dimension_numbers<[1], [0], [0], [1], [0, 0, 1, 1], [], []>} : vector<32x40xbf16>, vector<40x50xbf16>, vector<32x50xf32> -> vector<32x50xf32>
    %288 = arith.addf %281, %287 : vector<32x50xf32>
    %c0_290 = arith.constant 0 : index
    %c0_291 = arith.constant 0 : index
    %c0_292 = arith.constant 0 : index
    %289 = vector.load %arg10[%c0_290, %c0_291, %c0_292] : memref<1x1x50xf32, #tpu.memory_space<vmem>>, vector<1x1x50xf32>
    %290 = vector.shape_cast %289 : vector<1x1x50xf32> to vector<1x50xf32>
    %291 = vector.broadcast %290 : vector<1x50xf32> to vector<32x50xf32>
    %292 = arith.addf %288, %291 : vector<32x50xf32>
    %cst_293 = arith.constant 0.000000e+00 : f32
    %293 = vector.broadcast %cst_293 : f32 to vector<32x50xf32>
    %294 = arith.maximumf %292, %293 : vector<32x50xf32>
    %295 = vector.shape_cast %294 : vector<32x50xf32> to vector<2x16x50xf32>
    %c0_294 = arith.constant 0 : index
    %c8_295 = arith.constant 8 : index
    %c0_296 = arith.constant 0 : index
    %296 = vector.load %arg20[%c0_294, %c8_295, %c0_296] : memref<2x32x60xf32, #tpu.memory_space<vmem>>, vector<2x16x50xf32>
    tpu.vector_store %arg20[%c0_294, %c8_295, %c0_296], %295 {strides = array<i32>} : memref<2x32x60xf32, #tpu.memory_space<vmem>>, vector<2x16x50xf32>,
    %c0_297 = arith.constant 0 : index
    %c6_298 = arith.constant 6 : index
    %c0_299 = arith.constant 0 : index
    %297 = vector.load %arg20[%c0_297, %c6_298, %c0_299] : memref<2x32x60xf32, #tpu.memory_space<vmem>>, vector<2x16x50xf32>
    %298 = vector.shape_cast %297 : vector<2x16x50xf32> to vector<32x50xf32>
    %299 = arith.truncf %298 : vector<32x50xf32> to vector<32x50xbf16>
    %c0_300 = arith.constant 0 : index
    %c0_301 = arith.constant 0 : index
    %c0_302 = arith.constant 0 : index
    %c0_303 = arith.constant 0 : index
    %300 = vector.load %arg11[%c0_300, %c0_301, %c0_302, %c0_303] : memref<1x5x50x60xbf16, #tpu.memory_space<vmem>>, vector<1x1x50x60xbf16>
    %301 = vector.shape_cast %300 : vector<1x1x50x60xbf16> to vector<50x60xbf16>
    %cst_304 = arith.constant dense<0.000000e+00> : vector<32x60xf32>
    %302 = tpu.matmul %299, %301, %cst_304 {dimension_numbers = #tpu.dot_dimension_numbers<[1], [0], [0], [1], [0, 0, 1, 1], [], []>} : vector<32x50xbf16>, vector<50x60xbf16>, vector<32x60xf32> -> vector<32x60xf32>
    %c0_305 = arith.constant 0 : index
    %c7_306 = arith.constant 7 : index
    %c0_307 = arith.constant 0 : index
    %303 = vector.load %arg20[%c0_305, %c7_306, %c0_307] : memref<2x32x60xf32, #tpu.memory_space<vmem>>, vector<2x16x50xf32>
    %304 = vector.shape_cast %303 : vector<2x16x50xf32> to vector<32x50xf32>
    %305 = arith.truncf %304 : vector<32x50xf32> to vector<32x50xbf16>
    %c0_308 = arith.constant 0 : index
    %c1_309 = arith.constant 1 : index
    %c0_310 = arith.constant 0 : index
    %c0_311 = arith.constant 0 : index
    %306 = vector.load %arg11[%c0_308, %c1_309, %c0_310, %c0_311] : memref<1x5x50x60xbf16, #tpu.memory_space<vmem>>, vector<1x1x50x60xbf16>
    %307 = vector.shape_cast %306 : vector<1x1x50x60xbf16> to vector<50x60xbf16>
    %cst_312 = arith.constant dense<0.000000e+00> : vector<32x60xf32>
    %308 = tpu.matmul %305, %307, %cst_312 {dimension_numbers = #tpu.dot_dimension_numbers<[1], [0], [0], [1], [0, 0, 1, 1], [], []>} : vector<32x50xbf16>, vector<50x60xbf16>, vector<32x60xf32> -> vector<32x60xf32>
    %309 = arith.addf %302, %308 : vector<32x60xf32>
    %c0_313 = arith.constant 0 : index
    %c8_314 = arith.constant 8 : index
    %c0_315 = arith.constant 0 : index
    %310 = vector.load %arg20[%c0_313, %c8_314, %c0_315] : memref<2x32x60xf32, #tpu.memory_space<vmem>>, vector<2x16x50xf32>
    %311 = vector.shape_cast %310 : vector<2x16x50xf32> to vector<32x50xf32>
    %312 = arith.truncf %311 : vector<32x50xf32> to vector<32x50xbf16>
    %c0_316 = arith.constant 0 : index
    %c2_317 = arith.constant 2 : index
    %c0_318 = arith.constant 0 : index
    %c0_319 = arith.constant 0 : index
    %313 = vector.load %arg11[%c0_316, %c2_317, %c0_318, %c0_319] : memref<1x5x50x60xbf16, #tpu.memory_space<vmem>>, vector<1x1x50x60xbf16>
    %314 = vector.shape_cast %313 : vector<1x1x50x60xbf16> to vector<50x60xbf16>
    %cst_320 = arith.constant dense<0.000000e+00> : vector<32x60xf32>
    %315 = tpu.matmul %312, %314, %cst_320 {dimension_numbers = #tpu.dot_dimension_numbers<[1], [0], [0], [1], [0, 0, 1, 1], [], []>} : vector<32x50xbf16>, vector<50x60xbf16>, vector<32x60xf32> -> vector<32x60xf32>
    %316 = arith.addf %309, %315 : vector<32x60xf32>
    %c0_321 = arith.constant 0 : index
    %c9_322 = arith.constant 9 : index
    %c0_323 = arith.constant 0 : index
    %317 = vector.load %arg20[%c0_321, %c9_322, %c0_323] : memref<2x32x60xf32, #tpu.memory_space<vmem>>, vector<2x16x50xf32>
    %318 = vector.shape_cast %317 : vector<2x16x50xf32> to vector<32x50xf32>
    %319 = arith.truncf %318 : vector<32x50xf32> to vector<32x50xbf16>
    %c0_324 = arith.constant 0 : index
    %c3_325 = arith.constant 3 : index
    %c0_326 = arith.constant 0 : index
    %c0_327 = arith.constant 0 : index
    %320 = vector.load %arg11[%c0_324, %c3_325, %c0_326, %c0_327] : memref<1x5x50x60xbf16, #tpu.memory_space<vmem>>, vector<1x1x50x60xbf16>
    %321 = vector.shape_cast %320 : vector<1x1x50x60xbf16> to vector<50x60xbf16>
    %cst_328 = arith.constant dense<0.000000e+00> : vector<32x60xf32>
    %322 = tpu.matmul %319, %321, %cst_328 {dimension_numbers = #tpu.dot_dimension_numbers<[1], [0], [0], [1], [0, 0, 1, 1], [], []>} : vector<32x50xbf16>, vector<50x60xbf16>, vector<32x60xf32> -> vector<32x60xf32>
    %323 = arith.addf %316, %322 : vector<32x60xf32>
    %c0_329 = arith.constant 0 : index
    %c10_330 = arith.constant 10 : index
    %c0_331 = arith.constant 0 : index
    %324 = vector.load %arg20[%c0_329, %c10_330, %c0_331] : memref<2x32x60xf32, #tpu.memory_space<vmem>>, vector<2x16x50xf32>
    %325 = vector.shape_cast %324 : vector<2x16x50xf32> to vector<32x50xf32>
    %326 = arith.truncf %325 : vector<32x50xf32> to vector<32x50xbf16>
    %c0_332 = arith.constant 0 : index
    %c4_333 = arith.constant 4 : index
    %c0_334 = arith.constant 0 : index
    %c0_335 = arith.constant 0 : index
    %327 = vector.load %arg11[%c0_332, %c4_333, %c0_334, %c0_335] : memref<1x5x50x60xbf16, #tpu.memory_space<vmem>>, vector<1x1x50x60xbf16>
    %328 = vector.shape_cast %327 : vector<1x1x50x60xbf16> to vector<50x60xbf16>
    %cst_336 = arith.constant dense<0.000000e+00> : vector<32x60xf32>
    %329 = tpu.matmul %326, %328, %cst_336 {dimension_numbers = #tpu.dot_dimension_numbers<[1], [0], [0], [1], [0, 0, 1, 1], [], []>} : vector<32x50xbf16>, vector<50x60xbf16>, vector<32x60xf32> -> vector<32x60xf32>
    %330 = arith.addf %323, %329 : vector<32x60xf32>
    %c0_337 = arith.constant 0 : index
    %c0_338 = arith.constant 0 : index
    %c0_339 = arith.constant 0 : index
    %331 = vector.load %arg12[%c0_337, %c0_338, %c0_339] : memref<1x1x60xf32, #tpu.memory_space<vmem>>, vector<1x1x60xf32>
    %332 = vector.shape_cast %331 : vector<1x1x60xf32> to vector<1x60xf32>
    %333 = vector.broadcast %332 : vector<1x60xf32> to vector<32x60xf32>
    %334 = arith.addf %330, %333 : vector<32x60xf32>
    %cst_340 = arith.constant 0.000000e+00 : f32
    %335 = vector.broadcast %cst_340 : f32 to vector<32x60xf32>
    %336 = arith.maximumf %334, %335 : vector<32x60xf32>
    %337 = vector.shape_cast %336 : vector<32x60xf32> to vector<2x16x60xf32>
    %c0_341 = arith.constant 0 : index
    %c8_342 = arith.constant 8 : index
    %c0_343 = arith.constant 0 : index
    %338 = vector.load %arg20[%c0_341, %c8_342, %c0_343] : memref<2x32x60xf32, #tpu.memory_space<vmem>>, vector<2x16x60xf32>
    tpu.vector_store %arg20[%c0_341, %c8_342, %c0_343], %337 {strides = array<i32>} : memref<2x32x60xf32, #tpu.memory_space<vmem>>, vector<2x16x60xf32>,
    %c0_344 = arith.constant 0 : index
    %c6_345 = arith.constant 6 : index
    %c0_346 = arith.constant 0 : index
    %339 = vector.load %arg20[%c0_344, %c6_345, %c0_346] : memref<2x32x60xf32, #tpu.memory_space<vmem>>, vector<2x16x60xf32>
    %340 = vector.shape_cast %339 : vector<2x16x60xf32> to vector<32x60xf32>
    %341 = arith.truncf %340 : vector<32x60xf32> to vector<32x60xbf16>
    %c0_347 = arith.constant 0 : index
    %c0_348 = arith.constant 0 : index
    %c0_349 = arith.constant 0 : index
    %c0_350 = arith.constant 0 : index
    %342 = vector.load %arg13[%c0_347, %c0_348, %c0_349, %c0_350] : memref<1x5x60x60xbf16, #tpu.memory_space<vmem>>, vector<1x1x60x60xbf16>
    %343 = vector.shape_cast %342 : vector<1x1x60x60xbf16> to vector<60x60xbf16>
    %cst_351 = arith.constant dense<0.000000e+00> : vector<32x60xf32>
    %344 = tpu.matmul %341, %343, %cst_351 {dimension_numbers = #tpu.dot_dimension_numbers<[1], [0], [0], [1], [0, 0, 1, 1], [], []>} : vector<32x60xbf16>, vector<60x60xbf16>, vector<32x60xf32> -> vector<32x60xf32>
    %c0_352 = arith.constant 0 : index
    %c7_353 = arith.constant 7 : index
    %c0_354 = arith.constant 0 : index
    %345 = vector.load %arg20[%c0_352, %c7_353, %c0_354] : memref<2x32x60xf32, #tpu.memory_space<vmem>>, vector<2x16x60xf32>
    %346 = vector.shape_cast %345 : vector<2x16x60xf32> to vector<32x60xf32>
    %347 = arith.truncf %346 : vector<32x60xf32> to vector<32x60xbf16>
    %c0_355 = arith.constant 0 : index
    %c1_356 = arith.constant 1 : index
    %c0_357 = arith.constant 0 : index
    %c0_358 = arith.constant 0 : index
    %348 = vector.load %arg13[%c0_355, %c1_356, %c0_357, %c0_358] : memref<1x5x60x60xbf16, #tpu.memory_space<vmem>>, vector<1x1x60x60xbf16>
    %349 = vector.shape_cast %348 : vector<1x1x60x60xbf16> to vector<60x60xbf16>
    %cst_359 = arith.constant dense<0.000000e+00> : vector<32x60xf32>
    %350 = tpu.matmul %347, %349, %cst_359 {dimension_numbers = #tpu.dot_dimension_numbers<[1], [0], [0], [1], [0, 0, 1, 1], [], []>} : vector<32x60xbf16>, vector<60x60xbf16>, vector<32x60xf32> -> vector<32x60xf32>
    %351 = arith.addf %344, %350 : vector<32x60xf32>
    %c0_360 = arith.constant 0 : index
    %c8_361 = arith.constant 8 : index
    %c0_362 = arith.constant 0 : index
    %352 = vector.load %arg20[%c0_360, %c8_361, %c0_362] : memref<2x32x60xf32, #tpu.memory_space<vmem>>, vector<2x16x60xf32>
    %353 = vector.shape_cast %352 : vector<2x16x60xf32> to vector<32x60xf32>
    %354 = arith.truncf %353 : vector<32x60xf32> to vector<32x60xbf16>
    %c0_363 = arith.constant 0 : index
    %c2_364 = arith.constant 2 : index
    %c0_365 = arith.constant 0 : index
    %c0_366 = arith.constant 0 : index
    %355 = vector.load %arg13[%c0_363, %c2_364, %c0_365, %c0_366] : memref<1x5x60x60xbf16, #tpu.memory_space<vmem>>, vector<1x1x60x60xbf16>
    %356 = vector.shape_cast %355 : vector<1x1x60x60xbf16> to vector<60x60xbf16>
    %cst_367 = arith.constant dense<0.000000e+00> : vector<32x60xf32>
    %357 = tpu.matmul %354, %356, %cst_367 {dimension_numbers = #tpu.dot_dimension_numbers<[1], [0], [0], [1], [0, 0, 1, 1], [], []>} : vector<32x60xbf16>, vector<60x60xbf16>, vector<32x60xf32> -> vector<32x60xf32>
    %358 = arith.addf %351, %357 : vector<32x60xf32>
    %c0_368 = arith.constant 0 : index
    %c9_369 = arith.constant 9 : index
    %c0_370 = arith.constant 0 : index
    %359 = vector.load %arg20[%c0_368, %c9_369, %c0_370] : memref<2x32x60xf32, #tpu.memory_space<vmem>>, vector<2x16x60xf32>
    %360 = vector.shape_cast %359 : vector<2x16x60xf32> to vector<32x60xf32>
    %361 = arith.truncf %360 : vector<32x60xf32> to vector<32x60xbf16>
    %c0_371 = arith.constant 0 : index
    %c3_372 = arith.constant 3 : index
    %c0_373 = arith.constant 0 : index
    %c0_374 = arith.constant 0 : index
    %362 = vector.load %arg13[%c0_371, %c3_372, %c0_373, %c0_374] : memref<1x5x60x60xbf16, #tpu.memory_space<vmem>>, vector<1x1x60x60xbf16>
    %363 = vector.shape_cast %362 : vector<1x1x60x60xbf16> to vector<60x60xbf16>
    %cst_375 = arith.constant dense<0.000000e+00> : vector<32x60xf32>
    %364 = tpu.matmul %361, %363, %cst_375 {dimension_numbers = #tpu.dot_dimension_numbers<[1], [0], [0], [1], [0, 0, 1, 1], [], []>} : vector<32x60xbf16>, vector<60x60xbf16>, vector<32x60xf32> -> vector<32x60xf32>
    %365 = arith.addf %358, %364 : vector<32x60xf32>
    %c0_376 = arith.constant 0 : index
    %c10_377 = arith.constant 10 : index
    %c0_378 = arith.constant 0 : index
    %366 = vector.load %arg20[%c0_376, %c10_377, %c0_378] : memref<2x32x60xf32, #tpu.memory_space<vmem>>, vector<2x16x60xf32>
    %367 = vector.shape_cast %366 : vector<2x16x60xf32> to vector<32x60xf32>
    %368 = arith.truncf %367 : vector<32x60xf32> to vector<32x60xbf16>
    %c0_379 = arith.constant 0 : index
    %c4_380 = arith.constant 4 : index
    %c0_381 = arith.constant 0 : index
    %c0_382 = arith.constant 0 : index
    %369 = vector.load %arg13[%c0_379, %c4_380, %c0_381, %c0_382] : memref<1x5x60x60xbf16, #tpu.memory_space<vmem>>, vector<1x1x60x60xbf16>
    %370 = vector.shape_cast %369 : vector<1x1x60x60xbf16> to vector<60x60xbf16>
    %cst_383 = arith.constant dense<0.000000e+00> : vector<32x60xf32>
    %371 = tpu.matmul %368, %370, %cst_383 {dimension_numbers = #tpu.dot_dimension_numbers<[1], [0], [0], [1], [0, 0, 1, 1], [], []>} : vector<32x60xbf16>, vector<60x60xbf16>, vector<32x60xf32> -> vector<32x60xf32>
    %372 = arith.addf %365, %371 : vector<32x60xf32>
    %c0_384 = arith.constant 0 : index
    %c0_385 = arith.constant 0 : index
    %c0_386 = arith.constant 0 : index
    %373 = vector.load %arg14[%c0_384, %c0_385, %c0_386] : memref<1x1x60xf32, #tpu.memory_space<vmem>>, vector<1x1x60xf32>
    %374 = vector.shape_cast %373 : vector<1x1x60xf32> to vector<1x60xf32>
    %375 = vector.broadcast %374 : vector<1x60xf32> to vector<32x60xf32>
    %376 = arith.addf %372, %375 : vector<32x60xf32>
    %cst_387 = arith.constant 0.000000e+00 : f32
    %377 = vector.broadcast %cst_387 : f32 to vector<32x60xf32>
    %378 = arith.maximumf %376, %377 : vector<32x60xf32>
    %379 = vector.shape_cast %378 : vector<32x60xf32> to vector<2x16x60xf32>
    %380 = vector.extract_strided_slice %379 {offsets = [0, 0, 0], sizes = [2, 1, 60], strides = [1, 1, 1]} : vector<2x16x60xf32> to vector<2x1x60xf32>
    %381 = vector.shape_cast %380 : vector<2x1x60xf32> to vector<2x60xf32>
    %c0_388 = arith.constant 0 : index
    %c0_389 = arith.constant 0 : index
    %382 = vector.load %arg21[%c0_388, %c0_389] : memref<2x960xf32, #tpu.memory_space<vmem>>, vector<2x60xf32>
    tpu.vector_store %arg21[%c0_388, %c0_389], %381 {strides = array<i32>} : memref<2x960xf32, #tpu.memory_space<vmem>>, vector<2x60xf32>,
    %383 = vector.extract_strided_slice %379 {offsets = [0, 1, 0], sizes = [2, 1, 60], strides = [1, 1, 1]} : vector<2x16x60xf32> to vector<2x1x60xf32>
    %384 = vector.shape_cast %383 : vector<2x1x60xf32> to vector<2x60xf32>
    %c0_390 = arith.constant 0 : index
    %c60 = arith.constant 60 : index
    %385 = vector.load %arg21[%c0_390, %c60] : memref<2x960xf32, #tpu.memory_space<vmem>>, vector<2x60xf32>
    tpu.vector_store %arg21[%c0_390, %c60], %384 {strides = array<i32>} : memref<2x960xf32, #tpu.memory_space<vmem>>, vector<2x60xf32>,
    %386 = vector.extract_strided_slice %379 {offsets = [0, 2, 0], sizes = [2, 1, 60], strides = [1, 1, 1]} : vector<2x16x60xf32> to vector<2x1x60xf32>
    %387 = vector.shape_cast %386 : vector<2x1x60xf32> to vector<2x60xf32>
    %c0_391 = arith.constant 0 : index
    %c120 = arith.constant 120 : index
    %388 = vector.load %arg21[%c0_391, %c120] : memref<2x960xf32, #tpu.memory_space<vmem>>, vector<2x60xf32>
    tpu.vector_store %arg21[%c0_391, %c120], %387 {strides = array<i32>} : memref<2x960xf32, #tpu.memory_space<vmem>>, vector<2x60xf32>,
    %389 = vector.extract_strided_slice %379 {offsets = [0, 3, 0], sizes = [2, 1, 60], strides = [1, 1, 1]} : vector<2x16x60xf32> to vector<2x1x60xf32>
    %390 = vector.shape_cast %389 : vector<2x1x60xf32> to vector<2x60xf32>
    %c0_392 = arith.constant 0 : index
    %c180 = arith.constant 180 : index
    %391 = vector.load %arg21[%c0_392, %c180] : memref<2x960xf32, #tpu.memory_space<vmem>>, vector<2x60xf32>
    tpu.vector_store %arg21[%c0_392, %c180], %390 {strides = array<i32>} : memref<2x960xf32, #tpu.memory_space<vmem>>, vector<2x60xf32>,
    %392 = vector.extract_strided_slice %379 {offsets = [0, 4, 0], sizes = [2, 1, 60], strides = [1, 1, 1]} : vector<2x16x60xf32> to vector<2x1x60xf32>
    %393 = vector.shape_cast %392 : vector<2x1x60xf32> to vector<2x60xf32>
    %c0_393 = arith.constant 0 : index
    %c240 = arith.constant 240 : index
    %394 = vector.load %arg21[%c0_393, %c240] : memref<2x960xf32, #tpu.memory_space<vmem>>, vector<2x60xf32>
    tpu.vector_store %arg21[%c0_393, %c240], %393 {strides = array<i32>} : memref<2x960xf32, #tpu.memory_space<vmem>>, vector<2x60xf32>,
    %395 = vector.extract_strided_slice %379 {offsets = [0, 5, 0], sizes = [2, 1, 60], strides = [1, 1, 1]} : vector<2x16x60xf32> to vector<2x1x60xf32>
    %396 = vector.shape_cast %395 : vector<2x1x60xf32> to vector<2x60xf32>
    %c0_394 = arith.constant 0 : index
    %c300 = arith.constant 300 : index
    %397 = vector.load %arg21[%c0_394, %c300] : memref<2x960xf32, #tpu.memory_space<vmem>>, vector<2x60xf32>
    tpu.vector_store %arg21[%c0_394, %c300], %396 {strides = array<i32>} : memref<2x960xf32, #tpu.memory_space<vmem>>, vector<2x60xf32>,
    %398 = vector.extract_strided_slice %379 {offsets = [0, 6, 0], sizes = [2, 1, 60], strides = [1, 1, 1]} : vector<2x16x60xf32> to vector<2x1x60xf32>
    %399 = vector.shape_cast %398 : vector<2x1x60xf32> to vector<2x60xf32>
    %c0_395 = arith.constant 0 : index
    %c360 = arith.constant 360 : index
    %400 = vector.load %arg21[%c0_395, %c360] : memref<2x960xf32, #tpu.memory_space<vmem>>, vector<2x60xf32>
    tpu.vector_store %arg21[%c0_395, %c360], %399 {strides = array<i32>} : memref<2x960xf32, #tpu.memory_space<vmem>>, vector<2x60xf32>,
    %401 = vector.extract_strided_slice %379 {offsets = [0, 7, 0], sizes = [2, 1, 60], strides = [1, 1, 1]} : vector<2x16x60xf32> to vector<2x1x60xf32>
    %402 = vector.shape_cast %401 : vector<2x1x60xf32> to vector<2x60xf32>
    %c0_396 = arith.constant 0 : index
    %c420 = arith.constant 420 : index
    %403 = vector.load %arg21[%c0_396, %c420] : memref<2x960xf32, #tpu.memory_space<vmem>>, vector<2x60xf32>
    tpu.vector_store %arg21[%c0_396, %c420], %402 {strides = array<i32>} : memref<2x960xf32, #tpu.memory_space<vmem>>, vector<2x60xf32>,
    %404 = vector.extract_strided_slice %379 {offsets = [0, 8, 0], sizes = [2, 1, 60], strides = [1, 1, 1]} : vector<2x16x60xf32> to vector<2x1x60xf32>
    %405 = vector.shape_cast %404 : vector<2x1x60xf32> to vector<2x60xf32>
    %c0_397 = arith.constant 0 : index
    %c480 = arith.constant 480 : index
    %406 = vector.load %arg21[%c0_397, %c480] : memref<2x960xf32, #tpu.memory_space<vmem>>, vector<2x60xf32>
    tpu.vector_store %arg21[%c0_397, %c480], %405 {strides = array<i32>} : memref<2x960xf32, #tpu.memory_space<vmem>>, vector<2x60xf32>,
    %407 = vector.extract_strided_slice %379 {offsets = [0, 9, 0], sizes = [2, 1, 60], strides = [1, 1, 1]} : vector<2x16x60xf32> to vector<2x1x60xf32>
    %408 = vector.shape_cast %407 : vector<2x1x60xf32> to vector<2x60xf32>
    %c0_398 = arith.constant 0 : index
    %c540 = arith.constant 540 : index
    %409 = vector.load %arg21[%c0_398, %c540] : memref<2x960xf32, #tpu.memory_space<vmem>>, vector<2x60xf32>
    tpu.vector_store %arg21[%c0_398, %c540], %408 {strides = array<i32>} : memref<2x960xf32, #tpu.memory_space<vmem>>, vector<2x60xf32>,
    %410 = vector.extract_strided_slice %379 {offsets = [0, 10, 0], sizes = [2, 1, 60], strides = [1, 1, 1]} : vector<2x16x60xf32> to vector<2x1x60xf32>
    %411 = vector.shape_cast %410 : vector<2x1x60xf32> to vector<2x60xf32>
    %c0_399 = arith.constant 0 : index
    %c600 = arith.constant 600 : index
    %412 = vector.load %arg21[%c0_399, %c600] : memref<2x960xf32, #tpu.memory_space<vmem>>, vector<2x60xf32>
    tpu.vector_store %arg21[%c0_399, %c600], %411 {strides = array<i32>} : memref<2x960xf32, #tpu.memory_space<vmem>>, vector<2x60xf32>,
    %413 = vector.extract_strided_slice %379 {offsets = [0, 11, 0], sizes = [2, 1, 60], strides = [1, 1, 1]} : vector<2x16x60xf32> to vector<2x1x60xf32>
    %414 = vector.shape_cast %413 : vector<2x1x60xf32> to vector<2x60xf32>
    %c0_400 = arith.constant 0 : index
    %c660 = arith.constant 660 : index
    %415 = vector.load %arg21[%c0_400, %c660] : memref<2x960xf32, #tpu.memory_space<vmem>>, vector<2x60xf32>
    tpu.vector_store %arg21[%c0_400, %c660], %414 {strides = array<i32>} : memref<2x960xf32, #tpu.memory_space<vmem>>, vector<2x60xf32>,
    %416 = vector.extract_strided_slice %379 {offsets = [0, 12, 0], sizes = [2, 1, 60], strides = [1, 1, 1]} : vector<2x16x60xf32> to vector<2x1x60xf32>
    %417 = vector.shape_cast %416 : vector<2x1x60xf32> to vector<2x60xf32>
    %c0_401 = arith.constant 0 : index
    %c720 = arith.constant 720 : index
    %418 = vector.load %arg21[%c0_401, %c720] : memref<2x960xf32, #tpu.memory_space<vmem>>, vector<2x60xf32>
    tpu.vector_store %arg21[%c0_401, %c720], %417 {strides = array<i32>} : memref<2x960xf32, #tpu.memory_space<vmem>>, vector<2x60xf32>,
    %419 = vector.extract_strided_slice %379 {offsets = [0, 13, 0], sizes = [2, 1, 60], strides = [1, 1, 1]} : vector<2x16x60xf32> to vector<2x1x60xf32>
    %420 = vector.shape_cast %419 : vector<2x1x60xf32> to vector<2x60xf32>
    %c0_402 = arith.constant 0 : index
    %c780 = arith.constant 780 : index
    %421 = vector.load %arg21[%c0_402, %c780] : memref<2x960xf32, #tpu.memory_space<vmem>>, vector<2x60xf32>
    tpu.vector_store %arg21[%c0_402, %c780], %420 {strides = array<i32>} : memref<2x960xf32, #tpu.memory_space<vmem>>, vector<2x60xf32>,
    %422 = vector.extract_strided_slice %379 {offsets = [0, 14, 0], sizes = [2, 1, 60], strides = [1, 1, 1]} : vector<2x16x60xf32> to vector<2x1x60xf32>
    %423 = vector.shape_cast %422 : vector<2x1x60xf32> to vector<2x60xf32>
    %c0_403 = arith.constant 0 : index
    %c840 = arith.constant 840 : index
    %424 = vector.load %arg21[%c0_403, %c840] : memref<2x960xf32, #tpu.memory_space<vmem>>, vector<2x60xf32>
    tpu.vector_store %arg21[%c0_403, %c840], %423 {strides = array<i32>} : memref<2x960xf32, #tpu.memory_space<vmem>>, vector<2x60xf32>,
    %425 = vector.extract_strided_slice %379 {offsets = [0, 15, 0], sizes = [2, 1, 60], strides = [1, 1, 1]} : vector<2x16x60xf32> to vector<2x1x60xf32>
    %426 = vector.shape_cast %425 : vector<2x1x60xf32> to vector<2x60xf32>
    %c0_404 = arith.constant 0 : index
    %c900 = arith.constant 900 : index
    %427 = vector.load %arg21[%c0_404, %c900] : memref<2x960xf32, #tpu.memory_space<vmem>>, vector<2x60xf32>
    tpu.vector_store %arg21[%c0_404, %c900], %426 {strides = array<i32>} : memref<2x960xf32, #tpu.memory_space<vmem>>, vector<2x60xf32>,
    %c0_405 = arith.constant 0 : index
    %c0_406 = arith.constant 0 : index
    %428 = vector.load %arg21[%c0_405, %c0_406] : memref<2x960xf32, #tpu.memory_space<vmem>>, vector<2x960xf32>
    %429 = arith.truncf %428 : vector<2x960xf32> to vector<2x960xbf16>
    %c0_407 = arith.constant 0 : index
    %c0_408 = arith.constant 0 : index
    %c0_409 = arith.constant 0 : index
    %430 = vector.load %arg15[%c0_407, %c0_408, %c0_409] : memref<1x960x1024xbf16, #tpu.memory_space<vmem>>, vector<1x960x1024xbf16>
    %431 = vector.shape_cast %430 : vector<1x960x1024xbf16> to vector<960x1024xbf16>
    %cst_410 = arith.constant dense<0.000000e+00> : vector<2x1024xf32>
    %432 = tpu.matmul %429, %431, %cst_410 {dimension_numbers = #tpu.dot_dimension_numbers<[1], [0], [0], [1], [0, 0, 1, 1], [], []>} : vector<2x960xbf16>, vector<960x1024xbf16>, vector<2x1024xf32> -> vector<2x1024xf32>
    %c0_411 = arith.constant 0 : index
    %c0_412 = arith.constant 0 : index
    %c0_413 = arith.constant 0 : index
    %433 = vector.load %arg16[%c0_411, %c0_412, %c0_413] : memref<1x1x1024xf32, #tpu.memory_space<vmem>>, vector<1x1x1024xf32>
    %434 = vector.shape_cast %433 : vector<1x1x1024xf32> to vector<1x1024xf32>
    %435 = vector.broadcast %434 : vector<1x1024xf32> to vector<2x1024xf32>
    %436 = arith.addf %432, %435 : vector<2x1024xf32>
    %cst_414 = arith.constant 0.000000e+00 : f32
    %437 = vector.broadcast %cst_414 : f32 to vector<2x1024xf32>
    %438 = arith.maximumf %436, %437 : vector<2x1024xf32>
    %c0_415 = arith.constant 0 : index
    %c0_416 = arith.constant 0 : index
    %c0_417 = arith.constant 0 : index
    %439 = vector.load %arg17[%c0_415, %c0_416, %c0_417] : memref<1x1024x128xf32, #tpu.memory_space<vmem>>, vector<1x1024x128xf32>
    %440 = vector.shape_cast %439 : vector<1x1024x128xf32> to vector<1024x128xf32>
    %cst_418 = arith.constant dense<0.000000e+00> : vector<2x128xf32>
    %441 = tpu.matmul %438, %440, %cst_418 {dimension_numbers = #tpu.dot_dimension_numbers<[1], [0], [0], [1], [0, 0, 1, 1], [], []>} : vector<2x1024xf32>, vector<1024x128xf32>, vector<2x128xf32> -> vector<2x128xf32>
    %c0_419 = arith.constant 0 : index
    %c0_420 = arith.constant 0 : index
    %c0_421 = arith.constant 0 : index
    %442 = vector.load %arg18[%c0_419, %c0_420, %c0_421] : memref<1x1x128xf32, #tpu.memory_space<vmem>>, vector<1x1x128xf32>
    %443 = vector.shape_cast %442 : vector<1x1x128xf32> to vector<1x128xf32>
    %444 = vector.broadcast %443 : vector<1x128xf32> to vector<2x128xf32>
    %445 = arith.addf %441, %444 : vector<2x128xf32>
    %c0_422 = arith.constant 0 : index
    %c0_423 = arith.constant 0 : index
    %c0_424 = arith.constant 0 : index
    %446 = vector.load %arg19[%c0_422, %c0_423, %c0_424] : memref<1x2x128xf32, #tpu.memory_space<vmem>>, vector<1x2x128xf32>
    %447 = vector.shape_cast %446 : vector<1x2x128xf32> to vector<2x128xf32>
    %448 = vector.shape_cast %445 : vector<2x128xf32> to vector<1x2x128xf32>
    tpu.vector_store %arg19[%c0_422, %c0_423, %c0_424], %448 {strides = array<i32>} : memref<1x2x128xf32, #tpu.memory_space<vmem>>, vector<1x2x128xf32>,
    return
  }
  func.func @transform_0(%arg0: i32, %arg1: i32) -> (i32, i32, i32) {
    %c0_i32 = arith.constant 0 : i32
    %c0_i32_0 = arith.constant 0 : i32
    %c0_i32_1 = arith.constant 0 : i32
    return %arg1, %c0_i32, %c0_i32_0 : i32, i32, i32
  }
  func.func @transform_1(%arg0: i32, %arg1: i32) -> (i32, i32, i32, i32) {
    %c0_i32 = arith.constant 0 : i32
    %c0_i32_0 = arith.constant 0 : i32
    %c0_i32_1 = arith.constant 0 : i32
    %c0_i32_2 = arith.constant 0 : i32
    return %arg0, %c0_i32, %c0_i32_0, %c0_i32_1 : i32, i32, i32, i32
  }
  func.func @transform_2(%arg0: i32, %arg1: i32) -> (i32, i32, i32) {
    %c0_i32 = arith.constant 0 : i32
    %c0_i32_0 = arith.constant 0 : i32
    %c0_i32_1 = arith.constant 0 : i32
    return %arg0, %c0_i32, %c0_i32_0 : i32, i32, i32
  }
  func.func @transform_3(%arg0: i32, %arg1: i32) -> (i32, i32, i32, i32) {
    %c0_i32 = arith.constant 0 : i32
    %c0_i32_0 = arith.constant 0 : i32
    %c0_i32_1 = arith.constant 0 : i32
    %c0_i32_2 = arith.constant 0 : i32
    return %arg0, %c0_i32, %c0_i32_0, %c0_i32_1 : i32, i32, i32, i32
  }
  func.func @transform_4(%arg0: i32, %arg1: i32) -> (i32, i32, i32) {
    %c0_i32 = arith.constant 0 : i32
    %c0_i32_0 = arith.constant 0 : i32
    %c0_i32_1 = arith.constant 0 : i32
    return %arg0, %c0_i32, %c0_i32_0 : i32, i32, i32
  }
  func.func @transform_5(%arg0: i32, %arg1: i32) -> (i32, i32, i32, i32) {
    %c0_i32 = arith.constant 0 : i32
    %c0_i32_0 = arith.constant 0 : i32
    %c0_i32_1 = arith.constant 0 : i32
    %c0_i32_2 = arith.constant 0 : i32
    return %arg0, %c0_i32, %c0_i32_0, %c0_i32_1 : i32, i32, i32, i32
  }
  func.func @transform_6(%arg0: i32, %arg1: i32) -> (i32, i32, i32) {
    %c0_i32 = arith.constant 0 : i32
    %c0_i32_0 = arith.constant 0 : i32
    %c0_i32_1 = arith.constant 0 : i32
    return %arg0, %c0_i32, %c0_i32_0 : i32, i32, i32
  }
  func.func @transform_7(%arg0: i32, %arg1: i32) -> (i32, i32, i32, i32) {
    %c0_i32 = arith.constant 0 : i32
    %c0_i32_0 = arith.constant 0 : i32
    %c0_i32_1 = arith.constant 0 : i32
    %c0_i32_2 = arith.constant 0 : i32
    return %arg0, %c0_i32, %c0_i32_0, %c0_i32_1 : i32, i32, i32, i32
  }
  func.func @transform_8(%arg0: i32, %arg1: i32) -> (i32, i32, i32) {
    %c0_i32 = arith.constant 0 : i32
    %c0_i32_0 = arith.constant 0 : i32
    %c0_i32_1 = arith.constant 0 : i32
    return %arg0, %c0_i32, %c0_i32_0 : i32, i32, i32
  }
  func.func @transform_9(%arg0: i32, %arg1: i32) -> (i32, i32, i32, i32) {
    %c0_i32 = arith.constant 0 : i32
    %c0_i32_0 = arith.constant 0 : i32
    %c0_i32_1 = arith.constant 0 : i32
    %c0_i32_2 = arith.constant 0 : i32
    return %arg0, %c0_i32, %c0_i32_0, %c0_i32_1 : i32, i32, i32, i32
  }
  func.func @transform_10(%arg0: i32, %arg1: i32) -> (i32, i32, i32) {
    %c0_i32 = arith.constant 0 : i32
    %c0_i32_0 = arith.constant 0 : i32
    %c0_i32_1 = arith.constant 0 : i32
    return %arg0, %c0_i32, %c0_i32_0 : i32, i32, i32
  }
  func.func @transform_11(%arg0: i32, %arg1: i32) -> (i32, i32, i32, i32) {
    %c0_i32 = arith.constant 0 : i32
    %c0_i32_0 = arith.constant 0 : i32
    %c0_i32_1 = arith.constant 0 : i32
    %c0_i32_2 = arith.constant 0 : i32
    return %arg0, %c0_i32, %c0_i32_0, %c0_i32_1 : i32, i32, i32, i32
  }
  func.func @transform_12(%arg0: i32, %arg1: i32) -> (i32, i32, i32) {
    %c0_i32 = arith.constant 0 : i32
    %c0_i32_0 = arith.constant 0 : i32
    %c0_i32_1 = arith.constant 0 : i32
    return %arg0, %c0_i32, %c0_i32_0 : i32, i32, i32
  }
  func.func @transform_13(%arg0: i32, %arg1: i32) -> (i32, i32, i32) {
    %c0_i32 = arith.constant 0 : i32
    %c0_i32_0 = arith.constant 0 : i32
    %c0_i32_1 = arith.constant 0 : i32
    return %arg0, %c0_i32, %c0_i32_0 : i32, i32, i32
  }
  func.func @transform_14(%arg0: i32, %arg1: i32) -> (i32, i32, i32) {
    %c0_i32 = arith.constant 0 : i32
    %c0_i32_0 = arith.constant 0 : i32
    %c0_i32_1 = arith.constant 0 : i32
    return %arg0, %c0_i32, %c0_i32_0 : i32, i32, i32
  }
  func.func @transform_15(%arg0: i32, %arg1: i32) -> (i32, i32, i32) {
    %c0_i32 = arith.constant 0 : i32
    %c0_i32_0 = arith.constant 0 : i32
    %c0_i32_1 = arith.constant 0 : i32
    return %arg0, %c0_i32, %c0_i32_0 : i32, i32, i32
  }
  func.func @transform_16(%arg0: i32, %arg1: i32) -> (i32, i32, i32) {
    %c0_i32 = arith.constant 0 : i32
    %c0_i32_0 = arith.constant 0 : i32
    %c0_i32_1 = arith.constant 0 : i32
    return %arg0, %c0_i32, %c0_i32_0 : i32, i32, i32
  }
  func.func @transform_17(%arg0: i32, %arg1: i32) -> (i32, i32, i32) {
    %c0_i32 = arith.constant 0 : i32
    %c0_i32_0 = arith.constant 0 : i32
    return %arg0, %arg1, %c0_i32 : i32, i32, i32
  }
}

</mosaic_0001>

<llo_original>
// kernel: s2p_state_forward.1
$region0: #{s2p_state_forward.1}
  #allocation0 [shape = 'u32[]', space=smem, size = 0x4, offset = 0x4, fixed_abs, tag = 'smem constant byte address 0x4 - core index']
  #allocation1 [shape = 'u32[144,128]{1,0:T(1,128)}', space=vmem, size = 0x12000, scoped, tag = 'internal scratch']
  #allocation2 [shape = 'f32[2,32,60]{2,1,0:T(8,128)}', space=vmem, size = 0x8000, scoped, tag = 'scratch operand']
  #allocation3 [shape = 'f32[2,960]{1,0:T(2,128)}', space=vmem, size = 0x2000, scoped, tag = 'scratch operand']
  %s0 = inlined_call_operand.vmem [shape: f32[2,16,1], index: 0, kind: input, shape index: {}]
  %s1 = inlined_call_operand.hbm [shape: f32[2,13,1,30], index: 1, kind: input, shape index: {}]
  %s2 = inlined_call_operand.hbm [shape: f32[2,1,30], index: 2, kind: input, shape index: {}]
  %s3 = inlined_call_operand.vmem [shape: bf16[2,11,30,30], index: 3, kind: input, shape index: {}]
  %s4 = inlined_call_operand.hbm [shape: f32[2,1,30], index: 4, kind: input, shape index: {}]
  %s5 = inlined_call_operand.vmem [shape: bf16[2,7,30,40], index: 5, kind: input, shape index: {}]
  %s6 = inlined_call_operand.hbm [shape: f32[2,1,40], index: 6, kind: input, shape index: {}]
  %s7 = inlined_call_operand.hbm [shape: bf16[2,5,40,50], index: 7, kind: input, shape index: {}]
  %s8 = inlined_call_operand.hbm [shape: f32[2,1,50], index: 8, kind: input, shape index: {}]
  %s9 = inlined_call_operand.vmem [shape: bf16[2,5,50,60], index: 9, kind: input, shape index: {}]
  %s10 = inlined_call_operand.hbm [shape: f32[2,1,60], index: 10, kind: input, shape index: {}]
  %s11 = inlined_call_operand.vmem [shape: bf16[2,5,60,60], index: 11, kind: input, shape index: {}]
  %s12 = inlined_call_operand.hbm [shape: f32[2,1,60], index: 12, kind: input, shape index: {}]
  %s13 = inlined_call_operand.hbm [shape: bf16[2,960,1024], index: 13, kind: input, shape index: {}]
  %s14 = inlined_call_operand.hbm [shape: f32[2,1,1024], index: 14, kind: input, shape index: {}]
  %s15 = inlined_call_operand.hbm [shape: f32[2,1024,128], index: 15, kind: input, shape index: {}]
  %s16 = inlined_call_operand.hbm [shape: f32[2,1,128], index: 16, kind: input, shape index: {}]
  %s17 = inlined_call_operand.vmem [shape: f32[2,2,128], index: 17, kind: output, shape index: {}]
  %s18 = sld [smem:[#allocation0]]
  $region149: #{s2p_state_forward.1} parent=0
    _
  %s20 = ssub.s32 1, %s18
  %s21 = scalar_select 0, %s20, %s18
  $region1: #{s2p_state_forward.1} parent=0
    #allocation4 [shape = 'u8[13312]{0}', space=vmem, size = 0x3400, scoped, tag = 'input window, operand 1']
    #allocation5 [shape = 's32[2]{0}', space=sflag, size = 0x8, scoped, tag = 'scoped memory for s2p_state_forward.1']
    #allocation6 [shape = 'u8[1024]{0}', space=vmem, size = 0x400, scoped, tag = 'input window, operand 2']
    #allocation7 [shape = 's32[2]{0}', space=sflag, size = 0x8, scoped, tag = 'scoped memory for s2p_state_forward.1']
    #allocation8 [shape = 'u8[1024]{0}', space=vmem, size = 0x400, scoped, tag = 'input window, operand 4']
    #allocation9 [shape = 'u8[1024]{0}', space=vmem, size = 0x400, scoped, tag = 'input window, operand 6']
    #allocation10 [shape = 's32[2]{0}', space=sflag, size = 0x8, scoped, tag = 'scoped memory for s2p_state_forward.1']
    #allocation11 [shape = 'u8[102400]{0}', space=vmem, size = 0x19000, scoped, tag = 'input window, operand 7']
    #allocation12 [shape = 'u8[1024]{0}', space=vmem, size = 0x400, scoped, tag = 'input window, operand 8']
    #allocation13 [shape = 's32[2]{0}', space=sflag, size = 0x8, scoped, tag = 'scoped memory for s2p_state_forward.1']
    #allocation14 [shape = 'u8[1024]{0}', space=vmem, size = 0x400, scoped, tag = 'input window, operand 10']
    #allocation15 [shape = 'u8[1024]{0}', space=vmem, size = 0x400, scoped, tag = 'input window, operand 12']
    #allocation16 [shape = 's32[2]{0}', space=sflag, size = 0x8, scoped, tag = 'scoped memory for s2p_state_forward.1']
    #allocation17 [shape = 'u8[3932160]{0}', space=vmem, size = 0x3c0000, scoped, tag = 'input window, operand 13']
    #allocation18 [shape = 'u8[8192]{0}', space=vmem, size = 0x2000, scoped, tag = 'input window, operand 14']
    #allocation19 [shape = 's32[2]{0}', space=sflag, size = 0x8, scoped, tag = 'scoped memory for s2p_state_forward.1']
    #allocation20 [shape = 'u8[1048576]{0}', space=vmem, size = 0x100000, scoped, tag = 'input window, operand 15']
    #allocation21 [shape = 'u8[1024]{0}', space=vmem, size = 0x400, scoped, tag = 'input window, operand 16']
    #allocation22 [shape = 's32[2]{0}', space=sflag, size = 0x8, scoped, tag = 'scoped memory for s2p_state_forward.1']
    %22 = vsyncpa [#allocation5], 0
    %s23 = scalar_lea.sflag [#allocation5], 1
    %24 = vsyncpa %s23, 0
    %25 = vsyncpa [#allocation7], 0
    %s26 = scalar_lea.sflag [#allocation7], 1
    %27 = vsyncpa %s26, 0
    %28 = vsyncpa [#allocation10], 0
    %s29 = scalar_lea.sflag [#allocation10], 1
    %30 = vsyncpa %s29, 0
    %31 = vsyncpa [#allocation13], 0
    %s32 = scalar_lea.sflag [#allocation13], 1
    %33 = vsyncpa %s32, 0
    %34 = vsyncpa [#allocation16], 0
    %s35 = scalar_lea.sflag [#allocation16], 1
    %36 = vsyncpa %s35, 0
    %37 = vsyncpa [#allocation19], 0
    %s38 = scalar_lea.sflag [#allocation19], 1
    %39 = vsyncpa %s38, 0
    %40 = vsyncpa [#allocation22], 0
    %s41 = scalar_lea.sflag [#allocation22], 1
    %42 = vsyncpa %s41, 0
    loop: start=0, step=1, limit=4
    $region2: #{s2p_state_forward.1} parent=1 // loop_pre_header
      _
    $region3: #{s2p_state_forward.1} parent=1 // loop_header
      %s44 = sphi 0, %s48
      %p45 = scmp.ge.s32.totalorder %s44, 4
      %s51 = sphi 0, %s63
      %s52 = sphi 0, %s59
      %s53 = sphi 0, %s51
      %s54 = sphi 0, %s52
      %s55 = sphi 0, %s53
      %s56 = sphi 0, %s54
      %s66 = sphi 0, %s68
      %s69 = sphi 0, %s66
      %s70 = sphi 0, %s69
      %s86 = sphi 0, %s70
      %s92 = sphi 0, %s94
      %s95 = sphi 0, %s92
      %s96 = sphi 0, %s95
      %s112 = sphi 0, %s96
      %s118 = sphi 0, %s120
      %s121 = sphi 0, %s118
      %s122 = sphi 0, %s121
      %s138 = sphi 0, %s122
      %s144 = sphi 0, %s146
      %s147 = sphi 0, %s144
      %s148 = sphi 0, %s147
      %s164 = sphi 0, %s148
      %s170 = sphi 0, %s172
      %s173 = sphi 0, %s170
      %s174 = sphi 0, %s173
      %s190 = sphi 0, %s174
      %s196 = sphi 0, %s198
      %s199 = sphi 0, %s196
      %s200 = sphi 0, %s199
      %s216 = sphi 0, %s200
      %s222 = sphi 0, %s224
      %s225 = sphi 0, %s222
      %s226 = sphi 0, %s225
      %s242 = sphi 0, %s226
      %s248 = sphi 0, %s250
      %s251 = sphi 0, %s248
      %s252 = sphi 0, %s251
      %s268 = sphi 0, %s252
      %s274 = sphi 0, %s276
      %s277 = sphi 0, %s274
      %s278 = sphi 0, %s277
      %s294 = sphi 0, %s278
      %s300 = sphi 0, %s302
      %s303 = sphi 0, %s300
      %s304 = sphi 0, %s303
      %s320 = sphi 0, %s304
      %s326 = sphi 0, %s328
      %s329 = sphi 0, %s326
      %s330 = sphi 0, %s329
      %s346 = sphi 0, %s330
      %s352 = sphi 0, %s354
      %s355 = sphi 0, %s352
      %s356 = sphi 0, %s355
      %s372 = sphi 0, %s356
      %s378 = sphi 0, %s380
      %s381 = sphi 0, %s378
      %s382 = sphi 0, %s381
      %s398 = sphi 0, %s382
      %s404 = sphi 0, %s406
      %s407 = sphi 0, %s404
      %s408 = sphi 0, %s407
      %s424 = sphi 0, %s408
      %s430 = sphi 0, %s432
      %s433 = sphi 0, %s430
      %s434 = sphi 0, %s433
      %s450 = sphi 0, %s434
      %s456 = sphi 0, %s458
      %s459 = sphi 0, %s456
      %s460 = sphi 0, %s459
      %s476 = sphi 0, %s460
      %s482 = sphi 0, %s484
      %s485 = sphi 0, %s482
      %s486 = sphi 0, %s485
      %s502 = sphi 0, %s486
      %s510 = sphi 0, %s512
      %s513 = sphi 0, %s510
      %s514 = sphi 0, %s513
      %s530 = sphi 0, %s514
    $region4: #{s2p_state_forward.1} parent=1 // loop_header_branch
      %47 = sbr.rel (%p45) target = $region8
    $region5: #{s2p_state_forward.1} parent=1 // loop_body
      %s49 = ssub.s32 %s44, 1
      %s50 = ssub.s32 %s44, 2
      %s57 = sadd.s32 1, %s52
      %p58 = scmp.ge.s32.totalorder %s57, 1
      %s59 = scalar_select %p58, 0, %s57
      %s60 = sadd.s32 1, %s51
      %s61 = scalar_select %p58, %s60, %s51
      %p62 = scmp.ge.s32.totalorder %s61, 2
      %s63 = scalar_select %p62, 0, %s61
      %s64 = ssub.s32 %s52, %s59
      %p65 = scmp.eq.s32.totalorder %s64, 0
      %s67 = sadd.s32 %s66, 1
      %s68 = scalar_select %p65, %s66, %s67
      %p71 = pneg %p65
      %p72 = scmp.eq.s32.totalorder %s44, 1
      %p73 = por %p71, %p72
      %p74 = scmp.ne.s32.totalorder %s66, %s69
      %p75 = scmp.eq.s32.totalorder %s44, 0
      %p76 = por %p74, %p75
      %p77 = scmp.ne.s32.totalorder %s66, %s69
      %p78 = scmp.eq.s32.totalorder %s49, 1
      %p79 = por %p77, %p78
      %p80 = scmp.ne.s32.totalorder %s69, %s70
      %p81 = scmp.eq.s32.totalorder %s49, 0
      %p82 = por %p80, %p81
      %p83 = scmp.ne.s32.totalorder %s69, %s70
      %p84 = scmp.eq.s32.totalorder %s50, 1
      %p85 = por %p83, %p84
      %p87 = scmp.ne.s32.totalorder %s70, %s86
      %p88 = scmp.eq.s32.totalorder %s50, 0
      %p89 = por %p87, %p88
      %s90 = ssub.s32 %s51, %s63
      %p91 = scmp.eq.s32.totalorder %s90, 0
      %s93 = sadd.s32 %s92, 1
      %s94 = scalar_select %p91, %s92, %s93
      %p97 = pneg %p91
      %p98 = scmp.eq.s32.totalorder %s44, 1
      %p99 = por %p97, %p98
      %p100 = scmp.ne.s32.totalorder %s92, %s95
      %p101 = scmp.eq.s32.totalorder %s44, 0
      %p102 = por %p100, %p101
      %p103 = scmp.ne.s32.totalorder %s92, %s95
      %p104 = scmp.eq.s32.totalorder %s49, 1
      %p105 = por %p103, %p104
      %p106 = scmp.ne.s32.totalorder %s95, %s96
      %p107 = scmp.eq.s32.totalorder %s49, 0
      %p108 = por %p106, %p107
      %p109 = scmp.ne.s32.totalorder %s95, %s96
      %p110 = scmp.eq.s32.totalorder %s50, 1
      %p111 = por %p109, %p110
      %p113 = scmp.ne.s32.totalorder %s96, %s112
      %p114 = scmp.eq.s32.totalorder %s50, 0
      %p115 = por %p113, %p114
      %s116 = ssub.s32 %s51, %s63
      %p117 = scmp.eq.s32.totalorder %s116, 0
      %s119 = sadd.s32 %s118, 1
      %s120 = scalar_select %p117, %s118, %s119
      %p123 = pneg %p117
      %p124 = scmp.eq.s32.totalorder %s44, 1
      %p125 = por %p123, %p124
      %p126 = scmp.ne.s32.totalorder %s118, %s121
      %p127 = scmp.eq.s32.totalorder %s44, 0
      %p128 = por %p126, %p127
      %p129 = scmp.ne.s32.totalorder %s118, %s121
      %p130 = scmp.eq.s32.totalorder %s49, 1
      %p131 = por %p129, %p130
      %p132 = scmp.ne.s32.totalorder %s121, %s122
      %p133 = scmp.eq.s32.totalorder %s49, 0
      %p134 = por %p132, %p133
      %p135 = scmp.ne.s32.totalorder %s121, %s122
      %p136 = scmp.eq.s32.totalorder %s50, 1
      %p137 = por %p135, %p136
      %p139 = scmp.ne.s32.totalorder %s122, %s138
      %p140 = scmp.eq.s32.totalorder %s50, 0
      %p141 = por %p139, %p140
      %s142 = ssub.s32 %s51, %s63
      %p143 = scmp.eq.s32.totalorder %s142, 0
      %s145 = sadd.s32 %s144, 1
      %s146 = scalar_select %p143, %s144, %s145
      %p149 = pneg %p143
      %p150 = scmp.eq.s32.totalorder %s44, 1
      %p151 = por %p149, %p150
      %p152 = scmp.ne.s32.totalorder %s144, %s147
      %p153 = scmp.eq.s32.totalorder %s44, 0
      %p154 = por %p152, %p153
      %p155 = scmp.ne.s32.totalorder %s144, %s147
      %p156 = scmp.eq.s32.totalorder %s49, 1
      %p157 = por %p155, %p156
      %p158 = scmp.ne.s32.totalorder %s147, %s148
      %p159 = scmp.eq.s32.totalorder %s49, 0
      %p160 = por %p158, %p159
      %p161 = scmp.ne.s32.totalorder %s147, %s148
      %p162 = scmp.eq.s32.totalorder %s50, 1
      %p163 = por %p161, %p162
      %p165 = scmp.ne.s32.totalorder %s148, %s164
      %p166 = scmp.eq.s32.totalorder %s50, 0
      %p167 = por %p165, %p166
      %s168 = ssub.s32 %s51, %s63
      %p169 = scmp.eq.s32.totalorder %s168, 0
      %s171 = sadd.s32 %s170, 1
      %s172 = scalar_select %p169, %s170, %s171
      %p175 = pneg %p169
      %p176 = scmp.eq.s32.totalorder %s44, 1
      %p177 = por %p175, %p176
      %p178 = scmp.ne.s32.totalorder %s170, %s173
      %p179 = scmp.eq.s32.totalorder %s44, 0
      %p180 = por %p178, %p179
      %p181 = scmp.ne.s32.totalorder %s170, %s173
      %p182 = scmp.eq.s32.totalorder %s49, 1
      %p183 = por %p181, %p182
      %p184 = scmp.ne.s32.totalorder %s173, %s174
      %p185 = scmp.eq.s32.totalorder %s49, 0
      %p186 = por %p184, %p185
      %p187 = scmp.ne.s32.totalorder %s173, %s174
      %p188 = scmp.eq.s32.totalorder %s50, 1
      %p189 = por %p187, %p188
      %p191 = scmp.ne.s32.totalorder %s174, %s190
      %p192 = scmp.eq.s32.totalorder %s50, 0
      %p193 = por %p191, %p192
      %s194 = ssub.s32 %s51, %s63
      %p195 = scmp.eq.s32.totalorder %s194, 0
      %s197 = sadd.s32 %s196, 1
      %s198 = scalar_select %p195, %s196, %s197
      %p201 = pneg %p195
      %p202 = scmp.eq.s32.totalorder %s44, 1
      %p203 = por %p201, %p202
      %p204 = scmp.ne.s32.totalorder %s196, %s199
      %p205 = scmp.eq.s32.totalorder %s44, 0
      %p206 = por %p204, %p205
      %p207 = scmp.ne.s32.totalorder %s196, %s199
      %p208 = scmp.eq.s32.totalorder %s49, 1
      %p209 = por %p207, %p208
      %p210 = scmp.ne.s32.totalorder %s199, %s200
      %p211 = scmp.eq.s32.totalorder %s49, 0
      %p212 = por %p210, %p211
      %p213 = scmp.ne.s32.totalorder %s199, %s200
      %p214 = scmp.eq.s32.totalorder %s50, 1
      %p215 = por %p213, %p214
      %p217 = scmp.ne.s32.totalorder %s200, %s216
      %p218 = scmp.eq.s32.totalorder %s50, 0
      %p219 = por %p217, %p218
      %s220 = ssub.s32 %s51, %s63
      %p221 = scmp.eq.s32.totalorder %s220, 0
      %s223 = sadd.s32 %s222, 1
      %s224 = scalar_select %p221, %s222, %s223
      %p227 = pneg %p221
      %p228 = scmp.eq.s32.totalorder %s44, 1
      %p229 = por %p227, %p228
      %p230 = scmp.ne.s32.totalorder %s222, %s225
      %p231 = scmp.eq.s32.totalorder %s44, 0
      %p232 = por %p230, %p231
      %p233 = scmp.ne.s32.totalorder %s222, %s225
      %p234 = scmp.eq.s32.totalorder %s49, 1
      %p235 = por %p233, %p234
      %p236 = scmp.ne.s32.totalorder %s225, %s226
      %p237 = scmp.eq.s32.totalorder %s49, 0
      %p238 = por %p236, %p237
      %p239 = scmp.ne.s32.totalorder %s225, %s226
      %p240 = scmp.eq.s32.totalorder %s50, 1
      %p241 = por %p239, %p240
      %p243 = scmp.ne.s32.totalorder %s226, %s242
      %p244 = scmp.eq.s32.totalorder %s50, 0
      %p245 = por %p243, %p244
      %s246 = ssub.s32 %s51, %s63
      %p247 = scmp.eq.s32.totalorder %s246, 0
      %s249 = sadd.s32 %s248, 1
      %s250 = scalar_select %p247, %s248, %s249
      %p253 = pneg %p247
      %p254 = scmp.eq.s32.totalorder %s44, 1
      %p255 = por %p253, %p254
      %p256 = scmp.ne.s32.totalorder %s248, %s251
      %p257 = scmp.eq.s32.totalorder %s44, 0
      %p258 = por %p256, %p257
      %p259 = scmp.ne.s32.totalorder %s248, %s251
      %p260 = scmp.eq.s32.totalorder %s49, 1
      %p261 = por %p259, %p260
      %p262 = scmp.ne.s32.totalorder %s251, %s252
      %p263 = scmp.eq.s32.totalorder %s49, 0
      %p264 = por %p262, %p263
      %p265 = scmp.ne.s32.totalorder %s251, %s252
      %p266 = scmp.eq.s32.totalorder %s50, 1
      %p267 = por %p265, %p266
      %p269 = scmp.ne.s32.totalorder %s252, %s268
      %p270 = scmp.eq.s32.totalorder %s50, 0
      %p271 = por %p269, %p270
      %s272 = ssub.s32 %s51, %s63
      %p273 = scmp.eq.s32.totalorder %s272, 0
      %s275 = sadd.s32 %s274, 1
      %s276 = scalar_select %p273, %s274, %s275
      %p279 = pneg %p273
      %p280 = scmp.eq.s32.totalorder %s44, 1
      %p281 = por %p279, %p280
      %p282 = scmp.ne.s32.totalorder %s274, %s277
      %p283 = scmp.eq.s32.totalorder %s44, 0
      %p284 = por %p282, %p283
      %p285 = scmp.ne.s32.totalorder %s274, %s277
      %p286 = scmp.eq.s32.totalorder %s49, 1
      %p287 = por %p285, %p286
      %p288 = scmp.ne.s32.totalorder %s277, %s278
      %p289 = scmp.eq.s32.totalorder %s49, 0
      %p290 = por %p288, %p289
      %p291 = scmp.ne.s32.totalorder %s277, %s278
      %p292 = scmp.eq.s32.totalorder %s50, 1
      %p293 = por %p291, %p292
      %p295 = scmp.ne.s32.totalorder %s278, %s294
      %p296 = scmp.eq.s32.totalorder %s50, 0
      %p297 = por %p295, %p296
      %s298 = ssub.s32 %s51, %s63
      %p299 = scmp.eq.s32.totalorder %s298, 0
      %s301 = sadd.s32 %s300, 1
      %s302 = scalar_select %p299, %s300, %s301
      %p305 = pneg %p299
      %p306 = scmp.eq.s32.totalorder %s44, 1
      %p307 = por %p305, %p306
      %p308 = scmp.ne.s32.totalorder %s300, %s303
      %p309 = scmp.eq.s32.totalorder %s44, 0
      %p310 = por %p308, %p309
      %p311 = scmp.ne.s32.totalorder %s300, %s303
      %p312 = scmp.eq.s32.totalorder %s49, 1
      %p313 = por %p311, %p312
      %p314 = scmp.ne.s32.totalorder %s303, %s304
      %p315 = scmp.eq.s32.totalorder %s49, 0
      %p316 = por %p314, %p315
      %p317 = scmp.ne.s32.totalorder %s303, %s304
      %p318 = scmp.eq.s32.totalorder %s50, 1
      %p319 = por %p317, %p318
      %p321 = scmp.ne.s32.totalorder %s304, %s320
      %p322 = scmp.eq.s32.totalorder %s50, 0
      %p323 = por %p321, %p322
      %s324 = ssub.s32 %s51, %s63
      %p325 = scmp.eq.s32.totalorder %s324, 0
      %s327 = sadd.s32 %s326, 1
      %s328 = scalar_select %p325, %s326, %s327
      %p331 = pneg %p325
      %p332 = scmp.eq.s32.totalorder %s44, 1
      %p333 = por %p331, %p332
      %p334 = scmp.ne.s32.totalorder %s326, %s329
      %p335 = scmp.eq.s32.totalorder %s44, 0
      %p336 = por %p334, %p335
      %p337 = scmp.ne.s32.totalorder %s326, %s329
      %p338 = scmp.eq.s32.totalorder %s49, 1
      %p339 = por %p337, %p338
      %p340 = scmp.ne.s32.totalorder %s329, %s330
      %p341 = scmp.eq.s32.totalorder %s49, 0
      %p342 = por %p340, %p341
      %p343 = scmp.ne.s32.totalorder %s329, %s330
      %p344 = scmp.eq.s32.totalorder %s50, 1
      %p345 = por %p343, %p344
      %p347 = scmp.ne.s32.totalorder %s330, %s346
      %p348 = scmp.eq.s32.totalorder %s50, 0
      %p349 = por %p347, %p348
      %s350 = ssub.s32 %s51, %s63
      %p351 = scmp.eq.s32.totalorder %s350, 0
      %s353 = sadd.s32 %s352, 1
      %s354 = scalar_select %p351, %s352, %s353
      %p357 = pneg %p351
      %p358 = scmp.eq.s32.totalorder %s44, 1
      %p359 = por %p357, %p358
      %p360 = scmp.ne.s32.totalorder %s352, %s355
      %p361 = scmp.eq.s32.totalorder %s44, 0
      %p362 = por %p360, %p361
      %p363 = scmp.ne.s32.totalorder %s352, %s355
      %p364 = scmp.eq.s32.totalorder %s49, 1
      %p365 = por %p363, %p364
      %p366 = scmp.ne.s32.totalorder %s355, %s356
      %p367 = scmp.eq.s32.totalorder %s49, 0
      %p368 = por %p366, %p367
      %p369 = scmp.ne.s32.totalorder %s355, %s356
      %p370 = scmp.eq.s32.totalorder %s50, 1
      %p371 = por %p369, %p370
      %p373 = scmp.ne.s32.totalorder %s356, %s372
      %p374 = scmp.eq.s32.totalorder %s50, 0
      %p375 = por %p373, %p374
      %s376 = ssub.s32 %s51, %s63
      %p377 = scmp.eq.s32.totalorder %s376, 0
      %s379 = sadd.s32 %s378, 1
      %s380 = scalar_select %p377, %s378, %s379
      %p383 = pneg %p377
      %p384 = scmp.eq.s32.totalorder %s44, 1
      %p385 = por %p383, %p384
      %p386 = scmp.ne.s32.totalorder %s378, %s381
      %p387 = scmp.eq.s32.totalorder %s44, 0
      %p388 = por %p386, %p387
      %p389 = scmp.ne.s32.totalorder %s378, %s381
      %p390 = scmp.eq.s32.totalorder %s49, 1
      %p391 = por %p389, %p390
      %p392 = scmp.ne.s32.totalorder %s381, %s382
      %p393 = scmp.eq.s32.totalorder %s49, 0
      %p394 = por %p392, %p393
      %p395 = scmp.ne.s32.totalorder %s381, %s382
      %p396 = scmp.eq.s32.totalorder %s50, 1
      %p397 = por %p395, %p396
      %p399 = scmp.ne.s32.totalorder %s382, %s398
      %p400 = scmp.eq.s32.totalorder %s50, 0
      %p401 = por %p399, %p400
      %s402 = ssub.s32 %s51, %s63
      %p403 = scmp.eq.s32.totalorder %s402, 0
      %s405 = sadd.s32 %s404, 1
      %s406 = scalar_select %p403, %s404, %s405
      %p409 = pneg %p403
      %p410 = scmp.eq.s32.totalorder %s44, 1
      %p411 = por %p409, %p410
      %p412 = scmp.ne.s32.totalorder %s404, %s407
      %p413 = scmp.eq.s32.totalorder %s44, 0
      %p414 = por %p412, %p413
      %p415 = scmp.ne.s32.totalorder %s404, %s407
      %p416 = scmp.eq.s32.totalorder %s49, 1
      %p417 = por %p415, %p416
      %p418 = scmp.ne.s32.totalorder %s407, %s408
      %p419 = scmp.eq.s32.totalorder %s49, 0
      %p420 = por %p418, %p419
      %p421 = scmp.ne.s32.totalorder %s407, %s408
      %p422 = scmp.eq.s32.totalorder %s50, 1
      %p423 = por %p421, %p422
      %p425 = scmp.ne.s32.totalorder %s408, %s424
      %p426 = scmp.eq.s32.totalorder %s50, 0
      %p427 = por %p425, %p426
      %s428 = ssub.s32 %s51, %s63
      %p429 = scmp.eq.s32.totalorder %s428, 0
      %s431 = sadd.s32 %s430, 1
      %s432 = scalar_select %p429, %s430, %s431
      %p435 = pneg %p429
      %p436 = scmp.eq.s32.totalorder %s44, 1
      %p437 = por %p435, %p436
      %p438 = scmp.ne.s32.totalorder %s430, %s433
      %p439 = scmp.eq.s32.totalorder %s44, 0
      %p440 = por %p438, %p439
      %p441 = scmp.ne.s32.totalorder %s430, %s433
      %p442 = scmp.eq.s32.totalorder %s49, 1
      %p443 = por %p441, %p442
      %p444 = scmp.ne.s32.totalorder %s433, %s434
      %p445 = scmp.eq.s32.totalorder %s49, 0
      %p446 = por %p444, %p445
      %p447 = scmp.ne.s32.totalorder %s433, %s434
      %p448 = scmp.eq.s32.totalorder %s50, 1
      %p449 = por %p447, %p448
      %p451 = scmp.ne.s32.totalorder %s434, %s450
      %p452 = scmp.eq.s32.totalorder %s50, 0
      %p453 = por %p451, %p452
      %s454 = ssub.s32 %s51, %s63
      %p455 = scmp.eq.s32.totalorder %s454, 0
      %s457 = sadd.s32 %s456, 1
      %s458 = scalar_select %p455, %s456, %s457
      %p461 = pneg %p455
      %p462 = scmp.eq.s32.totalorder %s44, 1
      %p463 = por %p461, %p462
      %p464 = scmp.ne.s32.totalorder %s456, %s459
      %p465 = scmp.eq.s32.totalorder %s44, 0
      %p466 = por %p464, %p465
      %p467 = scmp.ne.s32.totalorder %s456, %s459
      %p468 = scmp.eq.s32.totalorder %s49, 1
      %p469 = por %p467, %p468
      %p470 = scmp.ne.s32.totalorder %s459, %s460
      %p471 = scmp.eq.s32.totalorder %s49, 0
      %p472 = por %p470, %p471
      %p473 = scmp.ne.s32.totalorder %s459, %s460
      %p474 = scmp.eq.s32.totalorder %s50, 1
      %p475 = por %p473, %p474
      %p477 = scmp.ne.s32.totalorder %s460, %s476
      %p478 = scmp.eq.s32.totalorder %s50, 0
      %p479 = por %p477, %p478
      %s480 = ssub.s32 %s51, %s63
      %p481 = scmp.eq.s32.totalorder %s480, 0
      %s483 = sadd.s32 %s482, 1
      %s484 = scalar_select %p481, %s482, %s483
      %p487 = pneg %p481
      %p488 = scmp.eq.s32.totalorder %s44, 1
      %p489 = por %p487, %p488
      %p490 = scmp.ne.s32.totalorder %s482, %s485
      %p491 = scmp.eq.s32.totalorder %s44, 0
      %p492 = por %p490, %p491
      %p493 = scmp.ne.s32.totalorder %s482, %s485
      %p494 = scmp.eq.s32.totalorder %s49, 1
      %p495 = por %p493, %p494
      %p496 = scmp.ne.s32.totalorder %s485, %s486
      %p497 = scmp.eq.s32.totalorder %s49, 0
      %p498 = por %p496, %p497
      %p499 = scmp.ne.s32.totalorder %s485, %s486
      %p500 = scmp.eq.s32.totalorder %s50, 1
      %p501 = por %p499, %p500
      %p503 = scmp.ne.s32.totalorder %s486, %s502
      %p504 = scmp.eq.s32.totalorder %s50, 0
      %p505 = por %p503, %p504
      %s506 = ssub.s32 %s51, %s63
      %s507 = ssub.s32 %s52, %s59
      %s508 = sor.u32 %s506, %s507
      %p509 = scmp.eq.s32.totalorder %s508, 0
      %s511 = sadd.s32 %s510, 1
      %s512 = scalar_select %p509, %s510, %s511
      %p515 = pneg %p509
      %p516 = scmp.eq.s32.totalorder %s44, 1
      %p517 = por %p515, %p516
      %p518 = scmp.ne.s32.totalorder %s510, %s513
      %p519 = scmp.eq.s32.totalorder %s44, 0
      %p520 = por %p518, %p519
      %p521 = scmp.ne.s32.totalorder %s510, %s513
      %p522 = scmp.eq.s32.totalorder %s49, 1
      %p523 = por %p521, %p522
      %p524 = scmp.ne.s32.totalorder %s513, %s514
      %p525 = scmp.eq.s32.totalorder %s49, 0
      %p526 = por %p524, %p525
      %p527 = scmp.ne.s32.totalorder %s513, %s514
      %p528 = scmp.eq.s32.totalorder %s50, 1
      %p529 = por %p527, %p528
      %p531 = scmp.ne.s32.totalorder %s514, %s530
      %p532 = scmp.eq.s32.totalorder %s50, 0
      %p533 = por %p531, %p532
      %p534 = scmp.le.s32.totalorder 1, %s44
      %p535 = scmp.lt.s32.totalorder %s44, 3
      %p536 = pnand %p534, %p535
      %p537 = pneg %p536
      // Predicated region
      $region9: #{s2p_state_forward.1} parent=5 // pred_check
        _
      $region10: #{s2p_state_forward.1} parent=5 // pred_check_branch
        %539 = sbr.rel (%p536) target = $region12
      $region11: #{s2p_state_forward.1} parent=5 // pred_region
        %s540 = ssub.s32 %s44, 1
        // Predicated region
        $region13: #{s2p_state_forward.1} parent=11 // pred_check
          %p541 = pneg %p82
        $region14: #{s2p_state_forward.1} parent=11 // pred_check_branch
          %543 = sbr.rel (%p541) target = $region16
        $region15: #{s2p_state_forward.1} parent=11 // pred_region
          %s544 = smul.u32 2, %s54
          %p545 = scmp.lt.s32.totalorder %s544, 1
          %s546 = scalar_select %p545, %s544, 1
          %s547 = smul.addr %s546, 2
          %s548 = smul.addr %s547, 8
          %s549 = scalar_lea.vmem %s0, %s548
          %s550 = smul.u32 2, %s54
        $region16: #{s2p_state_forward.1} parent=11 // pred_fallthru
          _
      $region12: #{s2p_state_forward.1} parent=5 // pred_fallthru
        _
      %p551 = scmp.lt.s32.totalorder %s44, 2
      // Predicated region
      $region17: #{s2p_state_forward.1} parent=5 // pred_check
        %p552 = pneg %p551
      $region18: #{s2p_state_forward.1} parent=5 // pred_check_branch
        %554 = sbr.rel (%p552) target = $region20
      $region19: #{s2p_state_forward.1} parent=5 // pred_region
        // Predicated region
        $region21: #{s2p_state_forward.1} parent=19 // pred_check
          %p555 = pneg %p102
        $region22: #{s2p_state_forward.1} parent=19 // pred_check_branch
          %557 = sbr.rel (%p555) target = $region24
        $region23: #{s2p_state_forward.1} parent=19 // pred_region
          %s558 = sand.u32 %s92, 1
          %s559 = scalar_lea.sflag [#allocation5], %s558
          %s560 = sand.u32 %s92, 1
          %s561 = smul.addr %s560, 13
          %s562 = scalar_lea.vmem [#allocation4], %s561
          %s564 = ssub.s32 208, 208
          %565 = vsyncadd %s559, %s564
          %s566 = smul.addr %s51, 13
          %s567 = smul.addr %s566, 16
          %s568 = scalar_lea.hbm %s1, %s567
          %s569 = sshll.u32 %s562, 4
          %s570 = int_to_ptr.vmem [resolvable:$true] %s569
          %575 = dma.hbm_to_vmem [thread:$0]  %s568, 208, %s570, %s559, 16, 16, 1
        $region24: #{s2p_state_forward.1} parent=19 // pred_fallthru
          _
        // Predicated region
        $region25: #{s2p_state_forward.1} parent=19 // pred_check
          %p576 = pneg %p128
        $region26: #{s2p_state_forward.1} parent=19 // pred_check_branch
          %578 = sbr.rel (%p576) target = $region28
        $region27: #{s2p_state_forward.1} parent=19 // pred_region
          %s579 = sand.u32 %s44, 1
          %s580 = scalar_lea.sflag [#allocation7], %s579
          %s581 = sand.u32 %s118, 1
          %s582 = scalar_lea.vmem [#allocation6], %s581
          %s584 = ssub.s32 16, 16
          %585 = vsyncadd %s580, %s584
          %s586 = smul.addr %s51, 16
          %s587 = scalar_lea.hbm %s2, %s586
          %s589 = sshll.u32 %s582, 4
          %s590 = int_to_ptr.vmem [resolvable:$true] %s589
          %592 = dma.hbm_to_vmem [thread:$0]  %s587, 16, %s590, %s580
        $region28: #{s2p_state_forward.1} parent=19 // pred_fallthru
          _
        // Predicated region
        $region29: #{s2p_state_forward.1} parent=19 // pred_check
          %p593 = pneg %p154
        $region30: #{s2p_state_forward.1} parent=19 // pred_check_branch
          %595 = sbr.rel (%p593) target = $region32
        $region31: #{s2p_state_forward.1} parent=19 // pred_region
          %p596 = scmp.lt.s32.totalorder %s51, 1
          %s597 = scalar_select %p596, %s51, 1
          %s598 = smul.addr %s597, 44
          %s599 = smul.addr %s598, 4
          %s600 = scalar_lea.vmem %s3, %s599
        $region32: #{s2p_state_forward.1} parent=19 // pred_fallthru
          _
        // Predicated region
        $region33: #{s2p_state_forward.1} parent=19 // pred_check
          %p601 = pneg %p180
        $region34: #{s2p_state_forward.1} parent=19 // pred_check_branch
          %603 = sbr.rel (%p601) target = $region36
        $region35: #{s2p_state_forward.1} parent=19 // pred_region
          %s604 = sand.u32 %s44, 1
          %s605 = scalar_lea.sflag [#allocation7], %s604
          %s606 = sand.u32 %s170, 1
          %s607 = scalar_lea.vmem [#allocation8], %s606
          %s609 = ssub.s32 16, 16
          %610 = vsyncadd %s605, %s609
          %s611 = smul.addr %s51, 16
          %s612 = scalar_lea.hbm %s4, %s611
          %s614 = sshll.u32 %s607, 4
          %s615 = int_to_ptr.vmem [resolvable:$true] %s614
          %617 = dma.hbm_to_vmem [thread:$0]  %s612, 16, %s615, %s605
        $region36: #{s2p_state_forward.1} parent=19 // pred_fallthru
          _
        // Predicated region
        $region37: #{s2p_state_forward.1} parent=19 // pred_check
          %p618 = pneg %p206
        $region38: #{s2p_state_forward.1} parent=19 // pred_check_branch
          %620 = sbr.rel (%p618) target = $region40
        $region39: #{s2p_state_forward.1} parent=19 // pred_region
          %p621 = scmp.lt.s32.totalorder %s51, 1
          %s622 = scalar_select %p621, %s51, 1
          %s623 = smul.addr %s622, 28
          %s624 = smul.addr %s623, 4
          %s625 = scalar_lea.vmem %s5, %s624
        $region40: #{s2p_state_forward.1} parent=19 // pred_fallthru
          _
        // Predicated region
        $region41: #{s2p_state_forward.1} parent=19 // pred_check
          %p626 = pneg %p232
        $region42: #{s2p_state_forward.1} parent=19 // pred_check_branch
          %628 = sbr.rel (%p626) target = $region44
        $region43: #{s2p_state_forward.1} parent=19 // pred_region
          %s629 = sand.u32 %s44, 1
          %s630 = scalar_lea.sflag [#allocation10], %s629
          %s631 = sand.u32 %s222, 1
          %s632 = scalar_lea.vmem [#allocation9], %s631
          %s634 = ssub.s32 16, 16
          %635 = vsyncadd %s630, %s634
          %s636 = smul.addr %s51, 16
          %s637 = scalar_lea.hbm %s6, %s636
          %s639 = sshll.u32 %s632, 4
          %s640 = int_to_ptr.vmem [resolvable:$true] %s639
          %642 = dma.hbm_to_vmem [thread:$0]  %s637, 16, %s640, %s630
        $region44: #{s2p_state_forward.1} parent=19 // pred_fallthru
          _
        // Predicated region
        $region45: #{s2p_state_forward.1} parent=19 // pred_check
          %p643 = pneg %p258
        $region46: #{s2p_state_forward.1} parent=19 // pred_check_branch
          %645 = sbr.rel (%p643) target = $region48
        $region47: #{s2p_state_forward.1} parent=19 // pred_region
          %s646 = sand.u32 %s44, 1
          %s647 = scalar_lea.sflag [#allocation10], %s646
          %s648 = sand.u32 %s248, 1
          %s649 = smul.addr %s648, 100
          %s650 = scalar_lea.vmem [#allocation11], %s649
          %s652 = ssub.s32 1600, 1600
          %653 = vsyncadd %s647, %s652
          %s654 = smul.addr %s51, 25
          %s655 = smul.addr %s654, 64
          %s656 = scalar_lea.hbm %s7, %s655
          %s657 = sshll.u32 %s650, 4
          %s658 = int_to_ptr.vmem [resolvable:$true] %s657
          %663 = dma.hbm_to_vmem [thread:$0]  %s656, 1600, %s658, %s647, 64, 64, 4
        $region48: #{s2p_state_forward.1} parent=19 // pred_fallthru
          _
        // Predicated region
        $region49: #{s2p_state_forward.1} parent=19 // pred_check
          %p664 = pneg %p284
        $region50: #{s2p_state_forward.1} parent=19 // pred_check_branch
          %666 = sbr.rel (%p664) target = $region52
        $region51: #{s2p_state_forward.1} parent=19 // pred_region
          %s667 = sand.u32 %s44, 1
          %s668 = scalar_lea.sflag [#allocation13], %s667
          %s669 = sand.u32 %s274, 1
          %s670 = scalar_lea.vmem [#allocation12], %s669
          %s672 = ssub.s32 16, 16
          %673 = vsyncadd %s668, %s672
          %s674 = smul.addr %s51, 16
          %s675 = scalar_lea.hbm %s8, %s674
          %s677 = sshll.u32 %s670, 4
          %s678 = int_to_ptr.vmem [resolvable:$true] %s677
          %680 = dma.hbm_to_vmem [thread:$0]  %s675, 16, %s678, %s668
        $region52: #{s2p_state_forward.1} parent=19 // pred_fallthru
          _
        // Predicated region
        $region53: #{s2p_state_forward.1} parent=19 // pred_check
          %p681 = pneg %p310
        $region54: #{s2p_state_forward.1} parent=19 // pred_check_branch
          %683 = sbr.rel (%p681) target = $region56
        $region55: #{s2p_state_forward.1} parent=19 // pred_region
          %p684 = scmp.lt.s32.totalorder %s51, 1
          %s685 = scalar_select %p684, %s51, 1
          %s686 = smul.addr %s685, 35
          %s687 = smul.addr %s686, 4
          %s688 = scalar_lea.vmem %s9, %s687
        $region56: #{s2p_state_forward.1} parent=19 // pred_fallthru
          _
        // Predicated region
        $region57: #{s2p_state_forward.1} parent=19 // pred_check
          %p689 = pneg %p336
        $region58: #{s2p_state_forward.1} parent=19 // pred_check_branch
          %691 = sbr.rel (%p689) target = $region60
        $region59: #{s2p_state_forward.1} parent=19 // pred_region
          %s692 = sand.u32 %s44, 1
          %s693 = scalar_lea.sflag [#allocation13], %s692
          %s694 = sand.u32 %s326, 1
          %s695 = scalar_lea.vmem [#allocation14], %s694
          %s697 = ssub.s32 16, 16
          %698 = vsyncadd %s693, %s697
          %s699 = smul.addr %s51, 16
          %s700 = scalar_lea.hbm %s10, %s699
          %s702 = sshll.u32 %s695, 4
          %s703 = int_to_ptr.vmem [resolvable:$true] %s702
          %705 = dma.hbm_to_vmem [thread:$0]  %s700, 16, %s703, %s693
        $region60: #{s2p_state_forward.1} parent=19 // pred_fallthru
          _
        // Predicated region
        $region61: #{s2p_state_forward.1} parent=19 // pred_check
          %p706 = pneg %p362
        $region62: #{s2p_state_forward.1} parent=19 // pred_check_branch
          %708 = sbr.rel (%p706) target = $region64
        $region63: #{s2p_state_forward.1} parent=19 // pred_region
          %p709 = scmp.lt.s32.totalorder %s51, 1
          %s710 = scalar_select %p709, %s51, 1
          %s711 = smul.addr %s710, 40
          %s712 = smul.addr %s711, 4
          %s713 = scalar_lea.vmem %s11, %s712
        $region64: #{s2p_state_forward.1} parent=19 // pred_fallthru
          _
        // Predicated region
        $region65: #{s2p_state_forward.1} parent=19 // pred_check
          %p714 = pneg %p388
        $region66: #{s2p_state_forward.1} parent=19 // pred_check_branch
          %716 = sbr.rel (%p714) target = $region68
        $region67: #{s2p_state_forward.1} parent=19 // pred_region
          %s717 = sand.u32 %s44, 1
          %s718 = scalar_lea.sflag [#allocation16], %s717
          %s719 = sand.u32 %s378, 1
          %s720 = scalar_lea.vmem [#allocation15], %s719
          %s722 = ssub.s32 16, 16
          %723 = vsyncadd %s718, %s722
          %s724 = smul.addr %s51, 16
          %s725 = scalar_lea.hbm %s12, %s724
          %s727 = sshll.u32 %s720, 4
          %s728 = int_to_ptr.vmem [resolvable:$true] %s727
          %730 = dma.hbm_to_vmem [thread:$0]  %s725, 16, %s728, %s718
        $region68: #{s2p_state_forward.1} parent=19 // pred_fallthru
          _
        // Predicated region
        $region69: #{s2p_state_forward.1} parent=19 // pred_check
          %p731 = pneg %p414
        $region70: #{s2p_state_forward.1} parent=19 // pred_check_branch
          %733 = sbr.rel (%p731) target = $region72
        $region71: #{s2p_state_forward.1} parent=19 // pred_region
          %s734 = sand.u32 %s44, 1
          %s735 = scalar_lea.sflag [#allocation16], %s734
          %s736 = sand.u32 %s404, 1
          %s737 = smul.addr %s736, 3840
          %s738 = scalar_lea.vmem [#allocation17], %s737
          %s740 = ssub.s32 61440, 61440
          %741 = vsyncadd %s735, %s740
          %s742 = smul.addr %s51, 960
          %s743 = smul.addr %s742, 64
          %s744 = scalar_lea.hbm %s13, %s743
          %s745 = sshll.u32 %s738, 4
          %s746 = int_to_ptr.vmem [resolvable:$true] %s745
          %751 = dma.hbm_to_vmem [thread:$0]  %s744, 61440, %s746, %s735, 512, 512, 32
        $region72: #{s2p_state_forward.1} parent=19 // pred_fallthru
          _
        // Predicated region
        $region73: #{s2p_state_forward.1} parent=19 // pred_check
          %p752 = pneg %p440
        $region74: #{s2p_state_forward.1} parent=19 // pred_check_branch
          %754 = sbr.rel (%p752) target = $region76
        $region75: #{s2p_state_forward.1} parent=19 // pred_region
          %s755 = sand.u32 %s44, 1
          %s756 = scalar_lea.sflag [#allocation19], %s755
          %s757 = sand.u32 %s430, 1
          %s758 = smul.addr %s757, 8
          %s759 = scalar_lea.vmem [#allocation18], %s758
          %s761 = ssub.s32 128, 128
          %762 = vsyncadd %s756, %s761
          %s763 = smul.addr %s51, 8
          %s764 = smul.addr %s763, 16
          %s765 = scalar_lea.hbm %s14, %s764
          %s767 = sshll.u32 %s759, 4
          %s768 = int_to_ptr.vmem [resolvable:$true] %s767
          %770 = dma.hbm_to_vmem [thread:$0]  %s765, 128, %s768, %s756
        $region76: #{s2p_state_forward.1} parent=19 // pred_fallthru
          _
        // Predicated region
        $region77: #{s2p_state_forward.1} parent=19 // pred_check
          %p771 = pneg %p466
        $region78: #{s2p_state_forward.1} parent=19 // pred_check_branch
          %773 = sbr.rel (%p771) target = $region80
        $region79: #{s2p_state_forward.1} parent=19 // pred_region
          %s774 = sand.u32 %s44, 1
          %s775 = scalar_lea.sflag [#allocation19], %s774
          %s776 = sand.u32 %s456, 1
          %s777 = smul.addr %s776, 1024
          %s778 = scalar_lea.vmem [#allocation20], %s777
          %s780 = ssub.s32 16384, 16384
          %781 = vsyncadd %s775, %s780
          %s782 = smul.addr %s51, 128
          %s783 = smul.addr %s782, 128
          %s784 = scalar_lea.hbm %s15, %s783
          %s785 = sshll.u32 %s778, 4
          %s786 = int_to_ptr.vmem [resolvable:$true] %s785
          %791 = dma.hbm_to_vmem [thread:$0]  %s784, 16384, %s786, %s775, 128, 128, 8
        $region80: #{s2p_state_forward.1} parent=19 // pred_fallthru
          _
        // Predicated region
        $region81: #{s2p_state_forward.1} parent=19 // pred_check
          %p792 = pneg %p492
        $region82: #{s2p_state_forward.1} parent=19 // pred_check_branch
          %794 = sbr.rel (%p792) target = $region84
        $region83: #{s2p_state_forward.1} parent=19 // pred_region
          %s795 = sand.u32 %s482, 1
          %s796 = scalar_lea.sflag [#allocation22], %s795
          %s797 = sand.u32 %s482, 1
          %s798 = scalar_lea.vmem [#allocation21], %s797
          %s800 = ssub.s32 16, 16
          %801 = vsyncadd %s796, %s800
          %s802 = smul.addr %s51, 16
          %s803 = scalar_lea.hbm %s16, %s802
          %s805 = sshll.u32 %s798, 4
          %s806 = int_to_ptr.vmem [resolvable:$true] %s805
          %808 = dma.hbm_to_vmem [thread:$0]  %s803, 16, %s806, %s796
        $region84: #{s2p_state_forward.1} parent=19 // pred_fallthru
          _
      $region20: #{s2p_state_forward.1} parent=5 // pred_fallthru
        _
      %p809 = scmp.le.s32.totalorder 1, %s44
      %p810 = scmp.lt.s32.totalorder %s44, 3
      %p811 = pnand %p809, %p810
      %p812 = pneg %p811
      // Predicated region
      $region85: #{s2p_state_forward.1} parent=5 // pred_check
        _
      $region86: #{s2p_state_forward.1} parent=5 // pred_check_branch
        %814 = sbr.rel (%p811) target = $region88
      $region87: #{s2p_state_forward.1} parent=5 // pred_region
        %s815 = ssub.s32 %s44, 1
        %s816 = sand.u32 %s95, 1
        %s817 = scalar_lea.sflag [#allocation5], %s816
        %s818 = sand.u32 %s95, 1
        %s819 = smul.addr %s818, 13
        %s820 = scalar_lea.vmem [#allocation4], %s819
        // Predicated region
        $region89: #{s2p_state_forward.1} parent=87 // pred_check
          %p821 = pneg %p108
        $region90: #{s2p_state_forward.1} parent=87 // pred_check_branch
          %823 = sbr.rel (%p821) target = $region92
        $region91: #{s2p_state_forward.1} parent=87 // pred_region
          %824 = dma.done %s817, 208
        $region92: #{s2p_state_forward.1} parent=87 // pred_fallthru
          _
        %s825 = sand.u32 %s49, 1
        %s826 = scalar_lea.sflag [#allocation7], %s825
        %s827 = sand.u32 %s121, 1
        %s828 = scalar_lea.vmem [#allocation6], %s827
        // Predicated region
        $region93: #{s2p_state_forward.1} parent=87 // pred_check
          %p829 = pneg %p134
        $region94: #{s2p_state_forward.1} parent=87 // pred_check_branch
          %831 = sbr.rel (%p829) target = $region96
        $region95: #{s2p_state_forward.1} parent=87 // pred_region
          %832 = dma.done %s826, 16
        $region96: #{s2p_state_forward.1} parent=87 // pred_fallthru
          _
        %s833 = sand.u32 %s49, 1
        %s834 = scalar_lea.sflag [#allocation7], %s833
        %s835 = sand.u32 %s173, 1
        %s836 = scalar_lea.vmem [#allocation8], %s835
        // Predicated region
        $region97: #{s2p_state_forward.1} parent=87 // pred_check
          %p837 = pneg %p186
        $region98: #{s2p_state_forward.1} parent=87 // pred_check_branch
          %839 = sbr.rel (%p837) target = $region100
        $region99: #{s2p_state_forward.1} parent=87 // pred_region
          %840 = dma.done %s834, 16
        $region100: #{s2p_state_forward.1} parent=87 // pred_fallthru
          _
        %s841 = sand.u32 %s49, 1
        %s842 = scalar_lea.sflag [#allocation10], %s841
        %s843 = sand.u32 %s225, 1
        %s844 = scalar_lea.vmem [#allocation9], %s843
        // Predicated region
        $region101: #{s2p_state_forward.1} parent=87 // pred_check
          %p845 = pneg %p238
        $region102: #{s2p_state_forward.1} parent=87 // pred_check_branch
          %847 = sbr.rel (%p845) target = $region104
        $region103: #{s2p_state_forward.1} parent=87 // pred_region
          %848 = dma.done %s842, 16
        $region104: #{s2p_state_forward.1} parent=87 // pred_fallthru
          _
        %s849 = sand.u32 %s49, 1
        %s850 = scalar_lea.sflag [#allocation10], %s849
        %s851 = sand.u32 %s251, 1
        %s852 = smul.addr %s851, 100
        %s853 = scalar_lea.vmem [#allocation11], %s852
        // Predicated region
        $region105: #{s2p_state_forward.1} parent=87 // pred_check
          %p854 = pneg %p264
        $region106: #{s2p_state_forward.1} parent=87 // pred_check_branch
          %856 = sbr.rel (%p854) target = $region108
        $region107: #{s2p_state_forward.1} parent=87 // pred_region
          %857 = dma.done %s850, 1600
        $region108: #{s2p_state_forward.1} parent=87 // pred_fallthru
          _
        %s858 = sand.u32 %s49, 1
        %s859 = scalar_lea.sflag [#allocation13], %s858
        %s860 = sand.u32 %s277, 1
        %s861 = scalar_lea.vmem [#allocation12], %s860
        // Predicated region
        $region109: #{s2p_state_forward.1} parent=87 // pred_check
          %p862 = pneg %p290
        $region110: #{s2p_state_forward.1} parent=87 // pred_check_branch
          %864 = sbr.rel (%p862) target = $region112
        $region111: #{s2p_state_forward.1} parent=87 // pred_region
          %865 = dma.done %s859, 16
        $region112: #{s2p_state_forward.1} parent=87 // pred_fallthru
          _
        %s866 = sand.u32 %s49, 1
        %s867 = scalar_lea.sflag [#allocation13], %s866
        %s868 = sand.u32 %s329, 1
        %s869 = scalar_lea.vmem [#allocation14], %s868
        // Predicated region
        $region113: #{s2p_state_forward.1} parent=87 // pred_check
          %p870 = pneg %p342
        $region114: #{s2p_state_forward.1} parent=87 // pred_check_branch
          %872 = sbr.rel (%p870) target = $region116
        $region115: #{s2p_state_forward.1} parent=87 // pred_region
          %873 = dma.done %s867, 16
        $region116: #{s2p_state_forward.1} parent=87 // pred_fallthru
          _
        %s874 = sand.u32 %s49, 1
        %s875 = scalar_lea.sflag [#allocation16], %s874
        %s876 = sand.u32 %s381, 1
        %s877 = scalar_lea.vmem [#allocation15], %s876
        // Predicated region
        $region117: #{s2p_state_forward.1} parent=87 // pred_check
          %p878 = pneg %p394
        $region118: #{s2p_state_forward.1} parent=87 // pred_check_branch
          %880 = sbr.rel (%p878) target = $region120
        $region119: #{s2p_state_forward.1} parent=87 // pred_region
          %881 = dma.done %s875, 16
        $region120: #{s2p_state_forward.1} parent=87 // pred_fallthru
          _
        %s882 = sand.u32 %s49, 1
        %s883 = scalar_lea.sflag [#allocation16], %s882
        %s884 = sand.u32 %s407, 1
        %s885 = smul.addr %s884, 3840
        %s886 = scalar_lea.vmem [#allocation17], %s885
        // Predicated region
        $region121: #{s2p_state_forward.1} parent=87 // pred_check
          %p887 = pneg %p420
        $region122: #{s2p_state_forward.1} parent=87 // pred_check_branch
          %889 = sbr.rel (%p887) target = $region124
        $region123: #{s2p_state_forward.1} parent=87 // pred_region
          %890 = dma.done %s883, 61440
        $region124: #{s2p_state_forward.1} parent=87 // pred_fallthru
          _
        %s891 = sand.u32 %s49, 1
        %s892 = scalar_lea.sflag [#allocation19], %s891
        %s893 = sand.u32 %s433, 1
        %s894 = smul.addr %s893, 8
        %s895 = scalar_lea.vmem [#allocation18], %s894
        // Predicated region
        $region125: #{s2p_state_forward.1} parent=87 // pred_check
          %p896 = pneg %p446
        $region126: #{s2p_state_forward.1} parent=87 // pred_check_branch
          %898 = sbr.rel (%p896) target = $region128
        $region127: #{s2p_state_forward.1} parent=87 // pred_region
          %899 = dma.done %s892, 128
        $region128: #{s2p_state_forward.1} parent=87 // pred_fallthru
          _
        %s900 = sand.u32 %s49, 1
        %s901 = scalar_lea.sflag [#allocation19], %s900
        %s902 = sand.u32 %s459, 1
        %s903 = smul.addr %s902, 1024
        %s904 = scalar_lea.vmem [#allocation20], %s903
        // Predicated region
        $region129: #{s2p_state_forward.1} parent=87 // pred_check
          %p905 = pneg %p472
        $region130: #{s2p_state_forward.1} parent=87 // pred_check_branch
          %907 = sbr.rel (%p905) target = $region132
        $region131: #{s2p_state_forward.1} parent=87 // pred_region
          %908 = dma.done %s901, 16384
        $region132: #{s2p_state_forward.1} parent=87 // pred_fallthru
          _
        %s909 = sand.u32 %s485, 1
        %s910 = scalar_lea.sflag [#allocation22], %s909
        %s911 = sand.u32 %s485, 1
        %s912 = scalar_lea.vmem [#allocation21], %s911
        // Predicated region
        $region133: #{s2p_state_forward.1} parent=87 // pred_check
          %p913 = pneg %p498
        $region134: #{s2p_state_forward.1} parent=87 // pred_check_branch
          %915 = sbr.rel (%p913) target = $region136
        $region135: #{s2p_state_forward.1} parent=87 // pred_region
          %916 = dma.done %s910, 16
        $region136: #{s2p_state_forward.1} parent=87 // pred_fallthru
          _
        %s917 = smul.u32 2, %s54
        %p918 = scmp.lt.s32.totalorder %s917, 1
        %s919 = scalar_select %p918, %s917, 1
        %s920 = smul.addr %s919, 2
        %s921 = smul.addr %s920, 8
        %s922 = scalar_lea.vmem %s0, %s921
        %p923 = pneg %p82
        %p924 = pneg %p79
        %s925 = sand.u32 %s95, 1
        %s926 = scalar_lea.sflag [#allocation5], %s925
        %s927 = sand.u32 %s95, 1
        %s928 = smul.addr %s927, 13
        %s929 = scalar_lea.vmem [#allocation4], %s928
        %p930 = pneg %p108
        %p931 = pneg %p105
        %s932 = sand.u32 %s49, 1
        %s933 = scalar_lea.sflag [#allocation7], %s932
        %s934 = sand.u32 %s121, 1
        %s935 = scalar_lea.vmem [#allocation6], %s934
        %p936 = pneg %p134
        %p937 = pneg %p131
        %p938 = scmp.lt.s32.totalorder %s53, 1
        %s939 = scalar_select %p938, %s53, 1
        %s940 = smul.addr %s939, 44
        %s941 = smul.addr %s940, 4
        %s942 = scalar_lea.vmem %s3, %s941
        %p943 = pneg %p160
        %p944 = pneg %p157
        %s945 = sand.u32 %s49, 1
        %s946 = scalar_lea.sflag [#allocation7], %s945
        %s947 = sand.u32 %s173, 1
        %s948 = scalar_lea.vmem [#allocation8], %s947
        %p949 = pneg %p186
        %p950 = pneg %p183
        %p951 = scmp.lt.s32.totalorder %s53, 1
        %s952 = scalar_select %p951, %s53, 1
        %s953 = smul.addr %s952, 28
        %s954 = smul.addr %s953, 4
        %s955 = scalar_lea.vmem %s5, %s954
        %p956 = pneg %p212
        %p957 = pneg %p209
        %s958 = sand.u32 %s49, 1
        %s959 = scalar_lea.sflag [#allocation10], %s958
        %s960 = sand.u32 %s225, 1
        %s961 = scalar_lea.vmem [#allocation9], %s960
        %p962 = pneg %p238
        %p963 = pneg %p235
        %s964 = sand.u32 %s49, 1
        %s965 = scalar_lea.sflag [#allocation10], %s964
        %s966 = sand.u32 %s251, 1
        %s967 = smul.addr %s966, 100
        %s968 = scalar_lea.vmem [#allocation11], %s967
        %p969 = pneg %p264
        %p970 = pneg %p261
        %s971 = sand.u32 %s49, 1
        %s972 = scalar_lea.sflag [#allocation13], %s971
        %s973 = sand.u32 %s277, 1
        %s974 = scalar_lea.vmem [#allocation12], %s973
        %p975 = pneg %p290
        %p976 = pneg %p287
        %p977 = scmp.lt.s32.totalorder %s53, 1
        %s978 = scalar_select %p977, %s53, 1
        %s979 = smul.addr %s978, 35
        %s980 = smul.addr %s979, 4
        %s981 = scalar_lea.vmem %s9, %s980
        %p982 = pneg %p316
        %p983 = pneg %p313
        %s984 = sand.u32 %s49, 1
        %s985 = scalar_lea.sflag [#allocation13], %s984
        %s986 = sand.u32 %s329, 1
        %s987 = scalar_lea.vmem [#allocation14], %s986
        %p988 = pneg %p342
        %p989 = pneg %p339
        %p990 = scmp.lt.s32.totalorder %s53, 1
        %s991 = scalar_select %p990, %s53, 1
        %s992 = smul.addr %s991, 40
        %s993 = smul.addr %s992, 4
        %s994 = scalar_lea.vmem %s11, %s993
        %p995 = pneg %p368
        %p996 = pneg %p365
        %s997 = sand.u32 %s49, 1
        %s998 = scalar_lea.sflag [#allocation16], %s997
        %s999 = sand.u32 %s381, 1
        %s1000 = scalar_lea.vmem [#allocation15], %s999
        %p1001 = pneg %p394
        %p1002 = pneg %p391
        %s1003 = sand.u32 %s49, 1
        %s1004 = scalar_lea.sflag [#allocation16], %s1003
        %s1005 = sand.u32 %s407, 1
        %s1006 = smul.addr %s1005, 3840
        %s1007 = scalar_lea.vmem [#allocation17], %s1006
        %p1008 = pneg %p420
        %p1009 = pneg %p417
        %s1010 = sand.u32 %s49, 1
        %s1011 = scalar_lea.sflag [#allocation19], %s1010
        %s1012 = sand.u32 %s433, 1
        %s1013 = smul.addr %s1012, 8
        %s1014 = scalar_lea.vmem [#allocation18], %s1013
        %p1015 = pneg %p446
        %p1016 = pneg %p443
        %s1017 = sand.u32 %s49, 1
        %s1018 = scalar_lea.sflag [#allocation19], %s1017
        %s1019 = sand.u32 %s459, 1
        %s1020 = smul.addr %s1019, 1024
        %s1021 = scalar_lea.vmem [#allocation20], %s1020
        %p1022 = pneg %p472
        %p1023 = pneg %p469
        %s1024 = sand.u32 %s485, 1
        %s1025 = scalar_lea.sflag [#allocation22], %s1024
        %s1026 = sand.u32 %s485, 1
        %s1027 = scalar_lea.vmem [#allocation21], %s1026
        %p1028 = pneg %p498
        %p1029 = pneg %p495
        %p1030 = pneg %p526
        %p1031 = pneg %p523
        %p1032 = scmp.lt.s32.totalorder %s53, 1
        %s1033 = scalar_select %p1032, %s53, 1
        %p1034 = scmp.lt.s32.totalorder %s54, 0
        %s1035 = scalar_select %p1034, %s54, 0
        %s1036 = sadd.s32 %s1035, %s1033
        %s1037 = smul.addr %s1036, 2
        %s1038 = scalar_lea.vmem %s17, %s1037
        %s1039 = smul.u32 2, %s54
        %p1040 = scmp.lt.s32.totalorder %s1039, 1
        %s1041 = scalar_select %p1040, %s1039, 1
        %s1042 = smul.addr %s1041, 2
        %s1043 = smul.addr %s1042, 8
        %s1044 = scalar_lea.vmem %s0, %s1043
        %s1045 = smul.u32 2, %s54
        %p1046 = scmp.lt.s32.totalorder %s53, 1
        %s1047 = scalar_select %p1046, %s53, 1
        %s1048 = smul.addr %s1047, 44
        %s1049 = smul.addr %s1048, 4
        %s1050 = scalar_lea.vmem %s3, %s1049
        %p1051 = scmp.lt.s32.totalorder %s53, 1
        %s1052 = scalar_select %p1051, %s53, 1
        %s1053 = smul.addr %s1052, 28
        %s1054 = smul.addr %s1053, 4
        %s1055 = scalar_lea.vmem %s5, %s1054
        %p1056 = scmp.lt.s32.totalorder %s53, 1
        %s1057 = scalar_select %p1056, %s53, 1
        %s1058 = smul.addr %s1057, 35
        %s1059 = smul.addr %s1058, 4
        %s1060 = scalar_lea.vmem %s9, %s1059
        %p1061 = scmp.lt.s32.totalorder %s53, 1
        %s1062 = scalar_select %p1061, %s53, 1
        %s1063 = smul.addr %s1062, 40
        %s1064 = smul.addr %s1063, 4
        %s1065 = scalar_lea.vmem %s11, %s1064
        %p1066 = scmp.lt.s32.totalorder %s53, 1
        %s1067 = scalar_select %p1066, %s53, 1
        %p1068 = scmp.lt.s32.totalorder %s54, 0
        %s1069 = scalar_select %p1068, %s54, 0
        %s1070 = sadd.s32 %s1069, %s1067
        %s1071 = smul.addr %s1070, 2
        %s1072 = scalar_lea.vmem %s17, %s1071
        %vm1074 = vcmask 490496
        %1075 = vst.msk [vmem:[#allocation2] sm:$0xff] %vm1074, 0.0
        %1076 = vst.msk [vmem:[#allocation2 + $0x8] sm:$0xff] %vm1074, 0.0
        %1077 = vst.msk [vmem:[#allocation2 + $0x10] sm:$0xff] %vm1074, 0.0
        %1078 = vst.msk [vmem:[#allocation2 + $0x18] sm:$0xff] %vm1074, 0.0
        %1079 = vst.msk [vmem:[#allocation2 + $0x20] sm:$0xff] %vm1074, 0.0
        %1080 = vst.msk [vmem:[#allocation2 + $0x28] sm:$0xff] %vm1074, 0.0
        %1081 = vst.msk [vmem:[#allocation2 + $0x30] sm:$0xff] %vm1074, 0.0
        %1082 = vst.msk [vmem:[#allocation2 + $0x38] sm:$0xff] %vm1074, 0.0
        %v1083 = vld [vmem:[%s1044] sm:$0xff]
        %v1084 = vld [vmem:[%s1044 + $0x8] sm:$0xff]
        %v1085 = vld [vmem:[%s1044 + $0x10] sm:$0xff]
        %v1086 = vld [vmem:[%s1044 + $0x18] sm:$0xff]
        %vm1087 = vcmask 7168
        %1088 = vst.msk [vmem:[#allocation2 + $0x8] sm:$0xff] %vm1087, %v1083
        %1089 = vst.msk [vmem:[#allocation2 + $0x10] sm:$0xff] %vm1087, %v1084
        %1090 = vst.msk [vmem:[#allocation2 + $0x28] sm:$0xff] %vm1087, %v1085
        %1091 = vst.msk [vmem:[#allocation2 + $0x30] sm:$0xff] %vm1087, %v1086
        %v1092 = vld [vmem:[#allocation2 + $0x2] sm:$0xff]
        %v1093 = vld [vmem:[#allocation2 + $0xa] sm:$0xff]
        %v1094 = vld [vmem:[#allocation2 + $0x22] sm:$0xff]
        %v1095 = vld [vmem:[#allocation2 + $0x2a] sm:$0xff]
        %v1096 = vld [vmem:[%s820] sm:$0x1]
        %1098 = vset.pattern.permute.xlu0 0
        %1099 = vperm.xlu0 %1098, %v1092
        %v1100 = vpop.permute.xlu0 %1099
        %1103 = vset.pattern.permute.xlu0 0
        %1104 = vperm.xlu0 %1103, %v1093
        %v1105 = vpop.permute.xlu0 %1104
        %1108 = vset.pattern.permute.xlu0 0
        %1109 = vperm.xlu0 %1108, %v1094
        %v1110 = vpop.permute.xlu0 %1109
        %1113 = vset.pattern.permute.xlu0 0
        %1114 = vperm.xlu0 %1113, %v1095
        %v1115 = vpop.permute.xlu0 %1114
        %v1118 = vlaneseq
        %v1119 = vshrl.u32 %v1118, 7
        %v1120 = vsub.s32 0, %v1119
        %v1121 = vrot.slane %v1096, %v1120
        %v1123 = vmul.f32 %v1100, %v1121
        %v1124 = vmul.f32 %v1105, %v1121
        %v1125 = vmul.f32 %v1110, %v1121
        %v1126 = vmul.f32 %v1115, %v1121
        %v1127 = vld [vmem:[#allocation2 + $0x3] sm:$0xff]
        %v1128 = vld [vmem:[#allocation2 + $0xb] sm:$0xff]
        %v1129 = vld [vmem:[#allocation2 + $0x23] sm:$0xff]
        %v1130 = vld [vmem:[#allocation2 + $0x2b] sm:$0xff]
        %s1131 = scalar_lea.vmem %s820, 1 [#allocation4]
        %v1132 = vld [vmem:[%s1131] sm:$0x1]
        %1134 = vset.pattern.permute.xlu0 0
        %1135 = vperm.xlu0 %1134, %v1127
        %v1136 = vpop.permute.xlu0 %1135
        %1139 = vset.pattern.permute.xlu0 0
        %1140 = vperm.xlu0 %1139, %v1128
        %v1141 = vpop.permute.xlu0 %1140
        %1144 = vset.pattern.permute.xlu0 0
        %1145 = vperm.xlu0 %1144, %v1129
        %v1146 = vpop.permute.xlu0 %1145
        %1149 = vset.pattern.permute.xlu0 0
        %1150 = vperm.xlu0 %1149, %v1130
        %v1151 = vpop.permute.xlu0 %1150
        %v1154 = vlaneseq
        %v1155 = vshrl.u32 %v1154, 7
        %v1156 = vsub.s32 0, %v1155
        %v1157 = vrot.slane %v1132, %v1156
        %v1159 = vmul.f32 %v1136, %v1157
        %v1160 = vmul.f32 %v1141, %v1157
        %v1161 = vmul.f32 %v1146, %v1157
        %v1162 = vmul.f32 %v1151, %v1157
        %v1163 = vadd.f32 %v1123, %v1159
        %v1164 = vadd.f32 %v1124, %v1160
        %v1165 = vadd.f32 %v1125, %v1161
        %v1166 = vadd.f32 %v1126, %v1162
        %v1167 = vld [vmem:[#allocation2 + $0x4] sm:$0xff]
        %v1168 = vld [vmem:[#allocation2 + $0xc] sm:$0xff]
        %v1169 = vld [vmem:[#allocation2 + $0x24] sm:$0xff]
        %v1170 = vld [vmem:[#allocation2 + $0x2c] sm:$0xff]
        %s1171 = scalar_lea.vmem %s820, 2 [#allocation4]
        %v1172 = vld [vmem:[%s1171] sm:$0x1]
        %1174 = vset.pattern.permute.xlu0 0
        %1175 = vperm.xlu0 %1174, %v1167
        %v1176 = vpop.permute.xlu0 %1175
        %1179 = vset.pattern.permute.xlu0 0
        %1180 = vperm.xlu0 %1179, %v1168
        %v1181 = vpop.permute.xlu0 %1180
        %1184 = vset.pattern.permute.xlu0 0
        %1185 = vperm.xlu0 %1184, %v1169
        %v1186 = vpop.permute.xlu0 %1185
        %1189 = vset.pattern.permute.xlu0 0
        %1190 = vperm.xlu0 %1189, %v1170
        %v1191 = vpop.permute.xlu0 %1190
        %v1194 = vlaneseq
        %v1195 = vshrl.u32 %v1194, 7
        %v1196 = vsub.s32 0, %v1195
        %v1197 = vrot.slane %v1172, %v1196
        %v1199 = vmul.f32 %v1176, %v1197
        %v1200 = vmul.f32 %v1181, %v1197
        %v1201 = vmul.f32 %v1186, %v1197
        %v1202 = vmul.f32 %v1191, %v1197
        %v1203 = vadd.f32 %v1163, %v1199
        %v1204 = vadd.f32 %v1164, %v1200
        %v1205 = vadd.f32 %v1165, %v1201
        %v1206 = vadd.f32 %v1166, %v1202
        %v1207 = vld [vmem:[#allocation2 + $0x5] sm:$0xff]
        %v1208 = vld [vmem:[#allocation2 + $0xd] sm:$0xff]
        %v1209 = vld [vmem:[#allocation2 + $0x25] sm:$0xff]
        %v1210 = vld [vmem:[#allocation2 + $0x2d] sm:$0xff]
        %s1211 = scalar_lea.vmem %s820, 3 [#allocation4]
        %v1212 = vld [vmem:[%s1211] sm:$0x1]
        %1214 = vset.pattern.permute.xlu0 0
        %1215 = vperm.xlu0 %1214, %v1207
        %v1216 = vpop.permute.xlu0 %1215
        %1219 = vset.pattern.permute.xlu0 0
        %1220 = vperm.xlu0 %1219, %v1208
        %v1221 = vpop.permute.xlu0 %1220
        %1224 = vset.pattern.permute.xlu0 0
        %1225 = vperm.xlu0 %1224, %v1209
        %v1226 = vpop.permute.xlu0 %1225
        %1229 = vset.pattern.permute.xlu0 0
        %1230 = vperm.xlu0 %1229, %v1210
        %v1231 = vpop.permute.xlu0 %1230
        %v1234 = vlaneseq
        %v1235 = vshrl.u32 %v1234, 7
        %v1236 = vsub.s32 0, %v1235
        %v1237 = vrot.slane %v1212, %v1236
        %v1239 = vmul.f32 %v1216, %v1237
        %v1240 = vmul.f32 %v1221, %v1237
        %v1241 = vmul.f32 %v1226, %v1237
        %v1242 = vmul.f32 %v1231, %v1237
        %v1243 = vadd.f32 %v1203, %v1239
        %v1244 = vadd.f32 %v1204, %v1240
        %v1245 = vadd.f32 %v1205, %v1241
        %v1246 = vadd.f32 %v1206, %v1242
        %v1247 = vld [vmem:[#allocation2 + $0x6] sm:$0xff]
        %v1248 = vld [vmem:[#allocation2 + $0xe] sm:$0xff]
        %v1249 = vld [vmem:[#allocation2 + $0x26] sm:$0xff]
        %v1250 = vld [vmem:[#allocation2 + $0x2e] sm:$0xff]
        %s1251 = scalar_lea.vmem %s820, 4 [#allocation4]
        %v1252 = vld [vmem:[%s1251] sm:$0x1]
        %1254 = vset.pattern.permute.xlu0 0
        %1255 = vperm.xlu0 %1254, %v1247
        %v1256 = vpop.permute.xlu0 %1255
        %1259 = vset.pattern.permute.xlu0 0
        %1260 = vperm.xlu0 %1259, %v1248
        %v1261 = vpop.permute.xlu0 %1260
        %1264 = vset.pattern.permute.xlu0 0
        %1265 = vperm.xlu0 %1264, %v1249
        %v1266 = vpop.permute.xlu0 %1265
        %1269 = vset.pattern.permute.xlu0 0
        %1270 = vperm.xlu0 %1269, %v1250
        %v1271 = vpop.permute.xlu0 %1270
        %v1274 = vlaneseq
        %v1275 = vshrl.u32 %v1274, 7
        %v1276 = vsub.s32 0, %v1275
        %v1277 = vrot.slane %v1252, %v1276
        %v1279 = vmul.f32 %v1256, %v1277
        %v1280 = vmul.f32 %v1261, %v1277
        %v1281 = vmul.f32 %v1266, %v1277
        %v1282 = vmul.f32 %v1271, %v1277
        %v1283 = vadd.f32 %v1243, %v1279
        %v1284 = vadd.f32 %v1244, %v1280
        %v1285 = vadd.f32 %v1245, %v1281
        %v1286 = vadd.f32 %v1246, %v1282
        %v1287 = vld [vmem:[#allocation2 + $0x7] sm:$0xff]
        %v1288 = vld [vmem:[#allocation2 + $0xf] sm:$0xff]
        %v1289 = vld [vmem:[#allocation2 + $0x27] sm:$0xff]
        %v1290 = vld [vmem:[#allocation2 + $0x2f] sm:$0xff]
        %s1291 = scalar_lea.vmem %s820, 5 [#allocation4]
        %v1292 = vld [vmem:[%s1291] sm:$0x1]
        %1294 = vset.pattern.permute.xlu0 0
        %1295 = vperm.xlu0 %1294, %v1287
        %v1296 = vpop.permute.xlu0 %1295
        %1299 = vset.pattern.permute.xlu0 0
        %1300 = vperm.xlu0 %1299, %v1288
        %v1301 = vpop.permute.xlu0 %1300
        %1304 = vset.pattern.permute.xlu0 0
        %1305 = vperm.xlu0 %1304, %v1289
        %v1306 = vpop.permute.xlu0 %1305
        %1309 = vset.pattern.permute.xlu0 0
        %1310 = vperm.xlu0 %1309, %v1290
        %v1311 = vpop.permute.xlu0 %1310
        %v1314 = vlaneseq
        %v1315 = vshrl.u32 %v1314, 7
        %v1316 = vsub.s32 0, %v1315
        %v1317 = vrot.slane %v1292, %v1316
        %v1319 = vmul.f32 %v1296, %v1317
        %v1320 = vmul.f32 %v1301, %v1317
        %v1321 = vmul.f32 %v1306, %v1317
        %v1322 = vmul.f32 %v1311, %v1317
        %v1323 = vadd.f32 %v1283, %v1319
        %v1324 = vadd.f32 %v1284, %v1320
        %v1325 = vadd.f32 %v1285, %v1321
        %v1326 = vadd.f32 %v1286, %v1322
        %v1327 = vld [vmem:[#allocation2 + $0x8] sm:$0xff]
        %v1328 = vld [vmem:[#allocation2 + $0x10] sm:$0xff]
        %v1329 = vld [vmem:[#allocation2 + $0x28] sm:$0xff]
        %v1330 = vld [vmem:[#allocation2 + $0x30] sm:$0xff]
        %s1331 = scalar_lea.vmem %s820, 6 [#allocation4]
        %v1332 = vld [vmem:[%s1331] sm:$0x1]
        %1334 = vset.pattern.permute.xlu0 0
        %1335 = vperm.xlu0 %1334, %v1327
        %v1336 = vpop.permute.xlu0 %1335
        %1339 = vset.pattern.permute.xlu0 0
        %1340 = vperm.xlu0 %1339, %v1328
        %v1341 = vpop.permute.xlu0 %1340
        %1344 = vset.pattern.permute.xlu0 0
        %1345 = vperm.xlu0 %1344, %v1329
        %v1346 = vpop.permute.xlu0 %1345
        %1349 = vset.pattern.permute.xlu0 0
        %1350 = vperm.xlu0 %1349, %v1330
        %v1351 = vpop.permute.xlu0 %1350
        %v1354 = vlaneseq
        %v1355 = vshrl.u32 %v1354, 7
        %v1356 = vsub.s32 0, %v1355
        %v1357 = vrot.slane %v1332, %v1356
        %v1359 = vmul.f32 %v1336, %v1357
        %v1360 = vmul.f32 %v1341, %v1357
        %v1361 = vmul.f32 %v1346, %v1357
        %v1362 = vmul.f32 %v1351, %v1357
        %v1363 = vadd.f32 %v1323, %v1359
        %v1364 = vadd.f32 %v1324, %v1360
        %v1365 = vadd.f32 %v1325, %v1361
        %v1366 = vadd.f32 %v1326, %v1362
        %v1367 = vld [vmem:[#allocation2 + $0x9] sm:$0xff]
        %v1368 = vld [vmem:[#allocation2 + $0x11] sm:$0xff]
        %v1369 = vld [vmem:[#allocation2 + $0x29] sm:$0xff]
        %v1370 = vld [vmem:[#allocation2 + $0x31] sm:$0xff]
        %s1371 = scalar_lea.vmem %s820, 7 [#allocation4]
        %v1372 = vld [vmem:[%s1371] sm:$0x1]
        %1374 = vset.pattern.permute.xlu0 0
        %1375 = vperm.xlu0 %1374, %v1367
        %v1376 = vpop.permute.xlu0 %1375
        %1379 = vset.pattern.permute.xlu0 0
        %1380 = vperm.xlu0 %1379, %v1368
        %v1381 = vpop.permute.xlu0 %1380
        %1384 = vset.pattern.permute.xlu0 0
        %1385 = vperm.xlu0 %1384, %v1369
        %v1386 = vpop.permute.xlu0 %1385
        %1389 = vset.pattern.permute.xlu0 0
        %1390 = vperm.xlu0 %1389, %v1370
        %v1391 = vpop.permute.xlu0 %1390
        %v1394 = vlaneseq
        %v1395 = vshrl.u32 %v1394, 7
        %v1396 = vsub.s32 0, %v1395
        %v1397 = vrot.slane %v1372, %v1396
        %v1399 = vmul.f32 %v1376, %v1397
        %v1400 = vmul.f32 %v1381, %v1397
        %v1401 = vmul.f32 %v1386, %v1397
        %v1402 = vmul.f32 %v1391, %v1397
        %v1403 = vadd.f32 %v1363, %v1399
        %v1404 = vadd.f32 %v1364, %v1400
        %v1405 = vadd.f32 %v1365, %v1401
        %v1406 = vadd.f32 %v1366, %v1402
        %v1407 = vld [vmem:[#allocation2 + $0xa] sm:$0xff]
        %v1408 = vld [vmem:[#allocation2 + $0x12] sm:$0xff]
        %v1409 = vld [vmem:[#allocation2 + $0x2a] sm:$0xff]
        %v1410 = vld [vmem:[#allocation2 + $0x32] sm:$0xff]
        %s1411 = scalar_lea.vmem %s820, 8 [#allocation4]
        %v1412 = vld [vmem:[%s1411] sm:$0x1]
        %1414 = vset.pattern.permute.xlu0 0
        %1415 = vperm.xlu0 %1414, %v1407
        %v1416 = vpop.permute.xlu0 %1415
        %1419 = vset.pattern.permute.xlu0 0
        %1420 = vperm.xlu0 %1419, %v1408
        %v1421 = vpop.permute.xlu0 %1420
        %1424 = vset.pattern.permute.xlu0 0
        %1425 = vperm.xlu0 %1424, %v1409
        %v1426 = vpop.permute.xlu0 %1425
        %1429 = vset.pattern.permute.xlu0 0
        %1430 = vperm.xlu0 %1429, %v1410
        %v1431 = vpop.permute.xlu0 %1430
        %v1434 = vlaneseq
        %v1435 = vshrl.u32 %v1434, 7
        %v1436 = vsub.s32 0, %v1435
        %v1437 = vrot.slane %v1412, %v1436
        %v1439 = vmul.f32 %v1416, %v1437
        %v1440 = vmul.f32 %v1421, %v1437
        %v1441 = vmul.f32 %v1426, %v1437
        %v1442 = vmul.f32 %v1431, %v1437
        %v1443 = vadd.f32 %v1403, %v1439
        %v1444 = vadd.f32 %v1404, %v1440
        %v1445 = vadd.f32 %v1405, %v1441
        %v1446 = vadd.f32 %v1406, %v1442
        %v1447 = vld [vmem:[#allocation2 + $0xb] sm:$0xff]
        %v1448 = vld [vmem:[#allocation2 + $0x13] sm:$0xff]
        %v1449 = vld [vmem:[#allocation2 + $0x2b] sm:$0xff]
        %v1450 = vld [vmem:[#allocation2 + $0x33] sm:$0xff]
        %s1451 = scalar_lea.vmem %s820, 9 [#allocation4]
        %v1452 = vld [vmem:[%s1451] sm:$0x1]
        %1454 = vset.pattern.permute.xlu0 0
        %1455 = vperm.xlu0 %1454, %v1447
        %v1456 = vpop.permute.xlu0 %1455
        %1459 = vset.pattern.permute.xlu0 0
        %1460 = vperm.xlu0 %1459, %v1448
        %v1461 = vpop.permute.xlu0 %1460
        %1464 = vset.pattern.permute.xlu0 0
        %1465 = vperm.xlu0 %1464, %v1449
        %v1466 = vpop.permute.xlu0 %1465
        %1469 = vset.pattern.permute.xlu0 0
        %1470 = vperm.xlu0 %1469, %v1450
        %v1471 = vpop.permute.xlu0 %1470
        %v1474 = vlaneseq
        %v1475 = vshrl.u32 %v1474, 7
        %v1476 = vsub.s32 0, %v1475
        %v1477 = vrot.slane %v1452, %v1476
        %v1479 = vmul.f32 %v1456, %v1477
        %v1480 = vmul.f32 %v1461, %v1477
        %v1481 = vmul.f32 %v1466, %v1477
        %v1482 = vmul.f32 %v1471, %v1477
        %v1483 = vadd.f32 %v1443, %v1479
        %v1484 = vadd.f32 %v1444, %v1480
        %v1485 = vadd.f32 %v1445, %v1481
        %v1486 = vadd.f32 %v1446, %v1482
        %v1487 = vld [vmem:[#allocation2 + $0xc] sm:$0xff]
        %v1488 = vld [vmem:[#allocation2 + $0x14] sm:$0xff]
        %v1489 = vld [vmem:[#allocation2 + $0x2c] sm:$0xff]
        %v1490 = vld [vmem:[#allocation2 + $0x34] sm:$0xff]
        %s1491 = scalar_lea.vmem %s820, 10 [#allocation4]
        %v1492 = vld [vmem:[%s1491] sm:$0x1]
        %1494 = vset.pattern.permute.xlu0 0
        %1495 = vperm.xlu0 %1494, %v1487
        %v1496 = vpop.permute.xlu0 %1495
        %1499 = vset.pattern.permute.xlu0 0
        %1500 = vperm.xlu0 %1499, %v1488
        %v1501 = vpop.permute.xlu0 %1500
        %1504 = vset.pattern.permute.xlu0 0
        %1505 = vperm.xlu0 %1504, %v1489
        %v1506 = vpop.permute.xlu0 %1505
        %1509 = vset.pattern.permute.xlu0 0
        %1510 = vperm.xlu0 %1509, %v1490
        %v1511 = vpop.permute.xlu0 %1510
        %v1514 = vlaneseq
        %v1515 = vshrl.u32 %v1514, 7
        %v1516 = vsub.s32 0, %v1515
        %v1517 = vrot.slane %v1492, %v1516
        %v1519 = vmul.f32 %v1496, %v1517
        %v1520 = vmul.f32 %v1501, %v1517
        %v1521 = vmul.f32 %v1506, %v1517
        %v1522 = vmul.f32 %v1511, %v1517
        %v1523 = vadd.f32 %v1483, %v1519
        %v1524 = vadd.f32 %v1484, %v1520
        %v1525 = vadd.f32 %v1485, %v1521
        %v1526 = vadd.f32 %v1486, %v1522
        %v1527 = vld [vmem:[#allocation2 + $0xd] sm:$0xff]
        %v1528 = vld [vmem:[#allocation2 + $0x15] sm:$0xff]
        %v1529 = vld [vmem:[#allocation2 + $0x2d] sm:$0xff]
        %v1530 = vld [vmem:[#allocation2 + $0x35] sm:$0xff]
        %s1531 = scalar_lea.vmem %s820, 11 [#allocation4]
        %v1532 = vld [vmem:[%s1531] sm:$0x1]
        %1534 = vset.pattern.permute.xlu0 0
        %1535 = vperm.xlu0 %1534, %v1527
        %v1536 = vpop.permute.xlu0 %1535
        %1539 = vset.pattern.permute.xlu0 0
        %1540 = vperm.xlu0 %1539, %v1528
        %v1541 = vpop.permute.xlu0 %1540
        %1544 = vset.pattern.permute.xlu0 0
        %1545 = vperm.xlu0 %1544, %v1529
        %v1546 = vpop.permute.xlu0 %1545
        %1549 = vset.pattern.permute.xlu0 0
        %1550 = vperm.xlu0 %1549, %v1530
        %v1551 = vpop.permute.xlu0 %1550
        %v1554 = vlaneseq
        %v1555 = vshrl.u32 %v1554, 7
        %v1556 = vsub.s32 0, %v1555
        %v1557 = vrot.slane %v1532, %v1556
        %v1559 = vmul.f32 %v1536, %v1557
        %v1560 = vmul.f32 %v1541, %v1557
        %v1561 = vmul.f32 %v1546, %v1557
        %v1562 = vmul.f32 %v1551, %v1557
        %v1563 = vadd.f32 %v1523, %v1559
        %v1564 = vadd.f32 %v1524, %v1560
        %v1565 = vadd.f32 %v1525, %v1561
        %v1566 = vadd.f32 %v1526, %v1562
        %v1567 = vld [vmem:[#allocation2 + $0xe] sm:$0xff]
        %v1568 = vld [vmem:[#allocation2 + $0x16] sm:$0xff]
        %v1569 = vld [vmem:[#allocation2 + $0x2e] sm:$0xff]
        %v1570 = vld [vmem:[#allocation2 + $0x36] sm:$0xff]
        %s1571 = scalar_lea.vmem %s820, 12 [#allocation4]
        %v1572 = vld [vmem:[%s1571] sm:$0x1]
        %1574 = vset.pattern.permute.xlu0 0
        %1575 = vperm.xlu0 %1574, %v1567
        %v1576 = vpop.permute.xlu0 %1575
        %1579 = vset.pattern.permute.xlu0 0
        %1580 = vperm.xlu0 %1579, %v1568
        %v1581 = vpop.permute.xlu0 %1580
        %1584 = vset.pattern.permute.xlu0 0
        %1585 = vperm.xlu0 %1584, %v1569
        %v1586 = vpop.permute.xlu0 %1585
        %1589 = vset.pattern.permute.xlu0 0
        %1590 = vperm.xlu0 %1589, %v1570
        %v1591 = vpop.permute.xlu0 %1590
        %v1594 = vlaneseq
        %v1595 = vshrl.u32 %v1594, 7
        %v1596 = vsub.s32 0, %v1595
        %v1597 = vrot.slane %v1572, %v1596
        %v1599 = vmul.f32 %v1576, %v1597
        %v1600 = vmul.f32 %v1581, %v1597
        %v1601 = vmul.f32 %v1586, %v1597
        %v1602 = vmul.f32 %v1591, %v1597
        %v1603 = vadd.f32 %v1563, %v1599
        %v1604 = vadd.f32 %v1564, %v1600
        %v1605 = vadd.f32 %v1565, %v1601
        %v1606 = vadd.f32 %v1566, %v1602
        %v1607 = vld [vmem:[%s828] sm:$0x1]
        %v1609 = vlaneseq
        %v1610 = vshrl.u32 %v1609, 7
        %v1611 = vsub.s32 0, %v1610
        %v1612 = vrot.slane %v1607, %v1611
        %v1614 = vadd.f32 %v1603, %v1612
        %v1615 = vadd.f32 %v1604, %v1612
        %v1616 = vadd.f32 %v1605, %v1612
        %v1617 = vadd.f32 %v1606, %v1612
        %v1618 = vmax.f32 %v1614, 0.0
        %v1619 = vmax.f32 %v1615, 0.0
        %v1620 = vmax.f32 %v1616, 0.0
        %v1621 = vmax.f32 %v1617, 0.0
        %vm1622 = vcmask 244736
        %1623 = vst.msk [vmem:[#allocation2 + $0x8] sm:$0xff] %vm1622, %v1618
        %1624 = vst.msk [vmem:[#allocation2 + $0x10] sm:$0xff] %vm1622, %v1619
        %1625 = vst.msk [vmem:[#allocation2 + $0x28] sm:$0xff] %vm1622, %v1620
        %1626 = vst.msk [vmem:[#allocation2 + $0x30] sm:$0xff] %vm1622, %v1621
        %v1627 = vld [vmem:[#allocation2 + $0x3] sm:$0xff]
        %v1628 = vld [vmem:[#allocation2 + $0xb] sm:$0xff]
        %v1629 = vld [vmem:[#allocation2 + $0x23] sm:$0xff]
        %v1630 = vld [vmem:[#allocation2 + $0x2b] sm:$0xff]
        %v1631 = vpack.c.bf16 %v1628, %v1627
        %v1632 = vpack.c.bf16 %v1630, %v1629
        %v1633 = vld [vmem:[%s1050] sm:$0xf]
        %v1634 = vld [vmem:[%s1050 + $0x4] sm:$0xf]
        %v1635 = vld [vmem:[%s1050 + $0x8] sm:$0xf]
        %v1636 = vld [vmem:[%s1050 + $0xc] sm:$0x7]
        %v1637 = vld [vmem:[#allocation2 + $0x4] sm:$0xff]
        %v1638 = vld [vmem:[#allocation2 + $0xc] sm:$0xff]
        %v1639 = vld [vmem:[#allocation2 + $0x24] sm:$0xff]
        %v1640 = vld [vmem:[#allocation2 + $0x2c] sm:$0xff]
        %v1641 = vpack.c.bf16 %v1638, %v1637
        %v1642 = vpack.c.bf16 %v1640, %v1639
        %s1643 = scalar_lea.vmem %s1050, 16
        %v1644 = vld [vmem:[%s1643] sm:$0xf]
        %v1645 = vld [vmem:[%s1643 + $0x4] sm:$0xf]
        %v1646 = vld [vmem:[%s1643 + $0x8] sm:$0xf]
        %v1647 = vld [vmem:[%s1643 + $0xc] sm:$0x7]
        %v1652 = vunpack.c.l.b16 %v1644
        %v1653 = vunpack.c.l.b16 %v1645
        %v1654 = vunpack.c.l.b16 %v1646
        %v1655 = vunpack.c.l.b16 %v1647
        %v1656 = vpack.c.b16 %v1653, %v1652
        %v1657 = vpack.c.b16 %v1655, %v1654
        %v1660 = vsel %vm1622, %v1641, 0
        %v1663 = vsel %vm1622, %v1642, 0
        %vm1665 = vcmask 1046528
        %v1667 = vsel %vm1665, %v1657, 0
        %1669 = vmatprep.subr.bf16.mxu0 0
        %1670 = vmatpush1.bf16.msra.mxu0 %v1656
        %1671 = vmatprep.subr.bf16.mxu0 0
        %1672 = vmatpush1.bf16.msra.mxu0 %v1667
        %1673 = vmatprep.subr.bf16.mxu0 0
        %1674 = vmatpush1.bf16.msra.mxu0 0
        %1675 = vmatprep.subr.bf16.mxu0 0
        %1676 = vmatpush1.bf16.msra.mxu0 0
        %1677 = vmatprep.subr.bf16.mxu0 0
        %1678 = vmatpush1.bf16.msra.mxu0 0
        %1679 = vmatprep.subr.bf16.mxu0 0
        %1680 = vmatpush1.bf16.msra.mxu0 0
        %1681 = vmatprep.subr.bf16.mxu0 0
        %1682 = vmatpush1.bf16.msra.mxu0 0
        %1683 = vmatprep.subr.bf16.mxu0 0
        %1684 = vmatpush1.bf16.msra.mxu0 0
        %1685 = vmatprep.subr.bf16.mxu0 0
        %1686 = vmatpush1.bf16.msra.mxu0 0
        %1687 = vmatprep.subr.bf16.mxu0 0
        %1688 = vmatpush1.bf16.msra.mxu0 0
        %1689 = vmatprep.subr.bf16.mxu0 0
        %1690 = vmatpush1.bf16.msra.mxu0 0
        %1691 = vmatprep.subr.bf16.mxu0 0
        %1692 = vmatpush1.bf16.msra.mxu0 0
        %1693 = vmatprep.subr.bf16.mxu0 0
        %1694 = vmatpush1.bf16.msra.mxu0 0
        %1695 = vmatprep.subr.bf16.mxu0 0
        %1696 = vmatpush1.bf16.msra.mxu0 0
        %1697 = vmatprep.subr.bf16.mxu0 0
        %1698 = vmatpush1.bf16.msra.mxu0 0
        %1699 = vmatprep.subr.bf16.mxu0 0
        %1700 = vmatpush1.bf16.msra.mxu0 0
        %1701 = vmatprep.mubr.bf16.mxu0 0
        %1702 = vmatmul.mubr.bf16.gmra.mrb[0].mxu0 %v1660
        %v1703 = vpop.f32.mrb[0].mxu0
        %v1704 = vadd.f32 0.0, %v1703
        %v1705 = vpop.f32.mrb[0].mxu0
        %v1706 = vpop.f32.mrb[0].mxu0
        %v1707 = vadd.f32 0.0, %v1706
        %v1708 = vpop.f32.mrb[0].mxu0
        %1709 = vmatprep.mubr.bf16.mxu0 0
        %1710 = vmatmul.mubr.bf16.gmra.mrb[0].mxu0 %v1663
        %v1711 = vpop.f32.mrb[0].mxu0
        %v1712 = vadd.f32 0.0, %v1711
        %v1713 = vpop.f32.mrb[0].mxu0
        %v1714 = vpop.f32.mrb[0].mxu0
        %v1715 = vadd.f32 0.0, %v1714
        %v1716 = vpop.f32.mrb[0].mxu0
        %1717 = vdwg.mxu0
        %v1722 = vunpack.c.l.b16 %v1633
        %v1723 = vunpack.c.l.b16 %v1634
        %v1724 = vunpack.c.l.b16 %v1635
        %v1725 = vunpack.c.l.b16 %v1636
        %v1726 = vpack.c.b16 %v1723, %v1722
        %v1727 = vpack.c.b16 %v1725, %v1724
        %v1730 = vsel %vm1622, %v1631, 0
        %v1733 = vsel %vm1622, %v1632, 0
        %v1736 = vsel %vm1665, %v1727, 0
        %1738 = vmatprep.subr.bf16.mxu0 0
        %1739 = vmatpush1.bf16.msra.mxu0 %v1726
        %1740 = vmatprep.subr.bf16.mxu0 0
        %1741 = vmatpush1.bf16.msra.mxu0 %v1736
        %1742 = vmatprep.subr.bf16.mxu0 0
        %1743 = vmatpush1.bf16.msra.mxu0 0
        %1744 = vmatprep.subr.bf16.mxu0 0
        %1745 = vmatpush1.bf16.msra.mxu0 0
        %1746 = vmatprep.subr.bf16.mxu0 0
        %1747 = vmatpush1.bf16.msra.mxu0 0
        %1748 = vmatprep.subr.bf16.mxu0 0
        %1749 = vmatpush1.bf16.msra.mxu0 0
        %1750 = vmatprep.subr.bf16.mxu0 0
        %1751 = vmatpush1.bf16.msra.mxu0 0
        %1752 = vmatprep.subr.bf16.mxu0 0
        %1753 = vmatpush1.bf16.msra.mxu0 0
        %1754 = vmatprep.subr.bf16.mxu0 0
        %1755 = vmatpush1.bf16.msra.mxu0 0
        %1756 = vmatprep.subr.bf16.mxu0 0
        %1757 = vmatpush1.bf16.msra.mxu0 0
        %1758 = vmatprep.subr.bf16.mxu0 0
        %1759 = vmatpush1.bf16.msra.mxu0 0
        %1760 = vmatprep.subr.bf16.mxu0 0
        %1761 = vmatpush1.bf16.msra.mxu0 0
        %1762 = vmatprep.subr.bf16.mxu0 0
        %1763 = vmatpush1.bf16.msra.mxu0 0
        %1764 = vmatprep.subr.bf16.mxu0 0
        %1765 = vmatpush1.bf16.msra.mxu0 0
        %1766 = vmatprep.subr.bf16.mxu0 0
        %1767 = vmatpush1.bf16.msra.mxu0 0
        %1768 = vmatprep.subr.bf16.mxu0 0
        %1769 = vmatpush1.bf16.msra.mxu0 0
        %1770 = vmatprep.mubr.bf16.mxu0 0
        %1771 = vmatmul.mubr.bf16.gmra.mrb[0].mxu0 %v1730
        %v1772 = vpop.f32.mrb[0].mxu0
        %v1773 = vadd.f32 %v1704, %v1772
        %v1774 = vpop.f32.mrb[0].mxu0
        %v1775 = vpop.f32.mrb[0].mxu0
        %v1776 = vadd.f32 %v1707, %v1775
        %v1777 = vpop.f32.mrb[0].mxu0
        %1778 = vmatprep.mubr.bf16.mxu0 0
        %1779 = vmatmul.mubr.bf16.gmra.mrb[0].mxu0 %v1733
        %v1780 = vpop.f32.mrb[0].mxu0
        %v1781 = vadd.f32 %v1712, %v1780
        %v1782 = vpop.f32.mrb[0].mxu0
        %v1783 = vpop.f32.mrb[0].mxu0
        %v1784 = vadd.f32 %v1715, %v1783
        %v1785 = vpop.f32.mrb[0].mxu0
        %1786 = vdwg.mxu0
        %v1787 = vld [vmem:[#allocation2 + $0x5] sm:$0xff]
        %v1788 = vld [vmem:[#allocation2 + $0xd] sm:$0xff]
        %v1789 = vld [vmem:[#allocation2 + $0x25] sm:$0xff]
        %v1790 = vld [vmem:[#allocation2 + $0x2d] sm:$0xff]
        %v1791 = vpack.c.bf16 %v1788, %v1787
        %v1792 = vpack.c.bf16 %v1790, %v1789
        %s1793 = scalar_lea.vmem %s1050, 32
        %v1794 = vld [vmem:[%s1793] sm:$0xf]
        %v1795 = vld [vmem:[%s1793 + $0x4] sm:$0xf]
        %v1796 = vld [vmem:[%s1793 + $0x8] sm:$0xf]
        %v1797 = vld [vmem:[%s1793 + $0xc] sm:$0x7]
        %v1802 = vunpack.c.l.b16 %v1794
        %v1803 = vunpack.c.l.b16 %v1795
        %v1804 = vunpack.c.l.b16 %v1796
        %v1805 = vunpack.c.l.b16 %v1797
        %v1806 = vpack.c.b16 %v1803, %v1802
        %v1807 = vpack.c.b16 %v1805, %v1804
        %v1810 = vsel %vm1622, %v1791, 0
        %v1813 = vsel %vm1622, %v1792, 0
        %v1816 = vsel %vm1665, %v1807, 0
        %1818 = vmatprep.subr.bf16.mxu0 0
        %1819 = vmatpush1.bf16.msra.mxu0 %v1806
        %1820 = vmatprep.subr.bf16.mxu0 0
        %1821 = vmatpush1.bf16.msra.mxu0 %v1816
        %1822 = vmatprep.subr.bf16.mxu0 0
        %1823 = vmatpush1.bf16.msra.mxu0 0
        %1824 = vmatprep.subr.bf16.mxu0 0
        %1825 = vmatpush1.bf16.msra.mxu0 0
        %1826 = vmatprep.subr.bf16.mxu0 0
        %1827 = vmatpush1.bf16.msra.mxu0 0
        %1828 = vmatprep.subr.bf16.mxu0 0
        %1829 = vmatpush1.bf16.msra.mxu0 0
        %1830 = vmatprep.subr.bf16.mxu0 0
        %1831 = vmatpush1.bf16.msra.mxu0 0
        %1832 = vmatprep.subr.bf16.mxu0 0
        %1833 = vmatpush1.bf16.msra.mxu0 0
        %1834 = vmatprep.subr.bf16.mxu0 0
        %1835 = vmatpush1.bf16.msra.mxu0 0
        %1836 = vmatprep.subr.bf16.mxu0 0
        %1837 = vmatpush1.bf16.msra.mxu0 0
        %1838 = vmatprep.subr.bf16.mxu0 0
        %1839 = vmatpush1.bf16.msra.mxu0 0
        %1840 = vmatprep.subr.bf16.mxu0 0
        %1841 = vmatpush1.bf16.msra.mxu0 0
        %1842 = vmatprep.subr.bf16.mxu0 0
        %1843 = vmatpush1.bf16.msra.mxu0 0
        %1844 = vmatprep.subr.bf16.mxu0 0
        %1845 = vmatpush1.bf16.msra.mxu0 0
        %1846 = vmatprep.subr.bf16.mxu0 0
        %1847 = vmatpush1.bf16.msra.mxu0 0
        %1848 = vmatprep.subr.bf16.mxu0 0
        %1849 = vmatpush1.bf16.msra.mxu0 0
        %1850 = vmatprep.mubr.bf16.mxu0 0
        %1851 = vmatmul.mubr.bf16.gmra.mrb[0].mxu0 %v1810
        %v1852 = vpop.f32.mrb[0].mxu0
        %v1853 = vadd.f32 0.0, %v1852
        %v1854 = vpop.f32.mrb[0].mxu0
        %v1855 = vpop.f32.mrb[0].mxu0
        %v1856 = vadd.f32 0.0, %v1855
        %v1857 = vpop.f32.mrb[0].mxu0
        %1858 = vmatprep.mubr.bf16.mxu0 0
        %1859 = vmatmul.mubr.bf16.gmra.mrb[0].mxu0 %v1813
        %v1860 = vpop.f32.mrb[0].mxu0
        %v1861 = vadd.f32 0.0, %v1860
        %v1862 = vpop.f32.mrb[0].mxu0
        %v1863 = vpop.f32.mrb[0].mxu0
        %v1864 = vadd.f32 0.0, %v1863
        %v1865 = vpop.f32.mrb[0].mxu0
        %1866 = vdwg.mxu0
        %v1867 = vadd.f32 %v1773, %v1853
        %v1868 = vadd.f32 %v1776, %v1856
        %v1869 = vadd.f32 %v1781, %v1861
        %v1870 = vadd.f32 %v1784, %v1864
        %v1871 = vld [vmem:[#allocation2 + $0x6] sm:$0xff]
        %v1872 = vld [vmem:[#allocation2 + $0xe] sm:$0xff]
        %v1873 = vld [vmem:[#allocation2 + $0x26] sm:$0xff]
        %v1874 = vld [vmem:[#allocation2 + $0x2e] sm:$0xff]
        %v1875 = vpack.c.bf16 %v1872, %v1871
        %v1876 = vpack.c.bf16 %v1874, %v1873
        %s1877 = scalar_lea.vmem %s1050, 48
        %v1878 = vld [vmem:[%s1877] sm:$0xf]
        %v1879 = vld [vmem:[%s1877 + $0x4] sm:$0xf]
        %v1880 = vld [vmem:[%s1877 + $0x8] sm:$0xf]
        %v1881 = vld [vmem:[%s1877 + $0xc] sm:$0x7]
        %v1886 = vunpack.c.l.b16 %v1878
        %v1887 = vunpack.c.l.b16 %v1879
        %v1888 = vunpack.c.l.b16 %v1880
        %v1889 = vunpack.c.l.b16 %v1881
        %v1890 = vpack.c.b16 %v1887, %v1886
        %v1891 = vpack.c.b16 %v1889, %v1888
        %v1894 = vsel %vm1622, %v1875, 0
        %v1897 = vsel %vm1622, %v1876, 0
        %v1900 = vsel %vm1665, %v1891, 0
        %1902 = vmatprep.subr.bf16.mxu0 0
        %1903 = vmatpush1.bf16.msra.mxu0 %v1890
        %1904 = vmatprep.subr.bf16.mxu0 0
        %1905 = vmatpush1.bf16.msra.mxu0 %v1900
        %1906 = vmatprep.subr.bf16.mxu0 0
        %1907 = vmatpush1.bf16.msra.mxu0 0
        %1908 = vmatprep.subr.bf16.mxu0 0
        %1909 = vmatpush1.bf16.msra.mxu0 0
        %1910 = vmatprep.subr.bf16.mxu0 0
        %1911 = vmatpush1.bf16.msra.mxu0 0
        %1912 = vmatprep.subr.bf16.mxu0 0
        %1913 = vmatpush1.bf16.msra.mxu0 0
        %1914 = vmatprep.subr.bf16.mxu0 0
        %1915 = vmatpush1.bf16.msra.mxu0 0
        %1916 = vmatprep.subr.bf16.mxu0 0
        %1917 = vmatpush1.bf16.msra.mxu0 0
        %1918 = vmatprep.subr.bf16.mxu0 0
        %1919 = vmatpush1.bf16.msra.mxu0 0
        %1920 = vmatprep.subr.bf16.mxu0 0
        %1921 = vmatpush1.bf16.msra.mxu0 0
        %1922 = vmatprep.subr.bf16.mxu0 0
        %1923 = vmatpush1.bf16.msra.mxu0 0
        %1924 = vmatprep.subr.bf16.mxu0 0
        %1925 = vmatpush1.bf16.msra.mxu0 0
        %1926 = vmatprep.subr.bf16.mxu0 0
        %1927 = vmatpush1.bf16.msra.mxu0 0
        %1928 = vmatprep.subr.bf16.mxu0 0
        %1929 = vmatpush1.bf16.msra.mxu0 0
        %1930 = vmatprep.subr.bf16.mxu0 0
        %1931 = vmatpush1.bf16.msra.mxu0 0
        %1932 = vmatprep.subr.bf16.mxu0 0
        %1933 = vmatpush1.bf16.msra.mxu0 0
        %1934 = vmatprep.mubr.bf16.mxu0 0
        %1935 = vmatmul.mubr.bf16.gmra.mrb[0].mxu0 %v1894
        %v1936 = vpop.f32.mrb[0].mxu0
        %v1937 = vadd.f32 0.0, %v1936
        %v1938 = vpop.f32.mrb[0].mxu0
        %v1939 = vpop.f32.mrb[0].mxu0
        %v1940 = vadd.f32 0.0, %v1939
        %v1941 = vpop.f32.mrb[0].mxu0
        %1942 = vmatprep.mubr.bf16.mxu0 0
        %1943 = vmatmul.mubr.bf16.gmra.mrb[0].mxu0 %v1897
        %v1944 = vpop.f32.mrb[0].mxu0
        %v1945 = vadd.f32 0.0, %v1944
        %v1946 = vpop.f32.mrb[0].mxu0
        %v1947 = vpop.f32.mrb[0].mxu0
        %v1948 = vadd.f32 0.0, %v1947
        %v1949 = vpop.f32.mrb[0].mxu0
        %1950 = vdwg.mxu0
        %v1951 = vadd.f32 %v1867, %v1937
        %v1952 = vadd.f32 %v1868, %v1940
        %v1953 = vadd.f32 %v1869, %v1945
        %v1954 = vadd.f32 %v1870, %v1948
        %v1955 = vld [vmem:[#allocation2 + $0x7] sm:$0xff]
        %v1956 = vld [vmem:[#allocation2 + $0xf] sm:$0xff]
        %v1957 = vld [vmem:[#allocation2 + $0x27] sm:$0xff]
        %v1958 = vld [vmem:[#allocation2 + $0x2f] sm:$0xff]
        %v1959 = vpack.c.bf16 %v1956, %v1955
        %v1960 = vpack.c.bf16 %v1958, %v1957
        %s1961 = scalar_lea.vmem %s1050, 64
        %v1962 = vld [vmem:[%s1961] sm:$0xf]
        %v1963 = vld [vmem:[%s1961 + $0x4] sm:$0xf]
        %v1964 = vld [vmem:[%s1961 + $0x8] sm:$0xf]
        %v1965 = vld [vmem:[%s1961 + $0xc] sm:$0x7]
        %v1970 = vunpack.c.l.b16 %v1962
        %v1971 = vunpack.c.l.b16 %v1963
        %v1972 = vunpack.c.l.b16 %v1964
        %v1973 = vunpack.c.l.b16 %v1965
        %v1974 = vpack.c.b16 %v1971, %v1970
        %v1975 = vpack.c.b16 %v1973, %v1972
        %v1978 = vsel %vm1622, %v1959, 0
        %v1981 = vsel %vm1622, %v1960, 0
        %v1984 = vsel %vm1665, %v1975, 0
        %1986 = vmatprep.subr.bf16.mxu0 0
        %1987 = vmatpush1.bf16.msra.mxu0 %v1974
        %1988 = vmatprep.subr.bf16.mxu0 0
        %1989 = vmatpush1.bf16.msra.mxu0 %v1984
        %1990 = vmatprep.subr.bf16.mxu0 0
        %1991 = vmatpush1.bf16.msra.mxu0 0
        %1992 = vmatprep.subr.bf16.mxu0 0
        %1993 = vmatpush1.bf16.msra.mxu0 0
        %1994 = vmatprep.subr.bf16.mxu0 0
        %1995 = vmatpush1.bf16.msra.mxu0 0
        %1996 = vmatprep.subr.bf16.mxu0 0
        %1997 = vmatpush1.bf16.msra.mxu0 0
        %1998 = vmatprep.subr.bf16.mxu0 0
        %1999 = vmatpush1.bf16.msra.mxu0 0
        %2000 = vmatprep.subr.bf16.mxu0 0
        %2001 = vmatpush1.bf16.msra.mxu0 0
        %2002 = vmatprep.subr.bf16.mxu0 0
        %2003 = vmatpush1.bf16.msra.mxu0 0
        %2004 = vmatprep.subr.bf16.mxu0 0
        %2005 = vmatpush1.bf16.msra.mxu0 0
        %2006 = vmatprep.subr.bf16.mxu0 0
        %2007 = vmatpush1.bf16.msra.mxu0 0
        %2008 = vmatprep.subr.bf16.mxu0 0
        %2009 = vmatpush1.bf16.msra.mxu0 0
        %2010 = vmatprep.subr.bf16.mxu0 0
        %2011 = vmatpush1.bf16.msra.mxu0 0
        %2012 = vmatprep.subr.bf16.mxu0 0
        %2013 = vmatpush1.bf16.msra.mxu0 0
        %2014 = vmatprep.subr.bf16.mxu0 0
        %2015 = vmatpush1.bf16.msra.mxu0 0
        %2016 = vmatprep.subr.bf16.mxu0 0
        %2017 = vmatpush1.bf16.msra.mxu0 0
        %2018 = vmatprep.mubr.bf16.mxu0 0
        %2019 = vmatmul.mubr.bf16.gmra.mrb[0].mxu0 %v1978
        %v2020 = vpop.f32.mrb[0].mxu0
        %v2021 = vadd.f32 0.0, %v2020
        %v2022 = vpop.f32.mrb[0].mxu0
        %v2023 = vpop.f32.mrb[0].mxu0
        %v2024 = vadd.f32 0.0, %v2023
        %v2025 = vpop.f32.mrb[0].mxu0
        %2026 = vmatprep.mubr.bf16.mxu0 0
        %2027 = vmatmul.mubr.bf16.gmra.mrb[0].mxu0 %v1981
        %v2028 = vpop.f32.mrb[0].mxu0
        %v2029 = vadd.f32 0.0, %v2028
        %v2030 = vpop.f32.mrb[0].mxu0
        %v2031 = vpop.f32.mrb[0].mxu0
        %v2032 = vadd.f32 0.0, %v2031
        %v2033 = vpop.f32.mrb[0].mxu0
        %2034 = vdwg.mxu0
        %v2035 = vadd.f32 %v1951, %v2021
        %v2036 = vadd.f32 %v1952, %v2024
        %v2037 = vadd.f32 %v1953, %v2029
        %v2038 = vadd.f32 %v1954, %v2032
        %v2039 = vld [vmem:[#allocation2 + $0x8] sm:$0xff]
        %v2040 = vld [vmem:[#allocation2 + $0x10] sm:$0xff]
        %v2041 = vld [vmem:[#allocation2 + $0x28] sm:$0xff]
        %v2042 = vld [vmem:[#allocation2 + $0x30] sm:$0xff]
        %v2043 = vpack.c.bf16 %v2040, %v2039
        %v2044 = vpack.c.bf16 %v2042, %v2041
        %s2045 = scalar_lea.vmem %s1050, 80
        %v2046 = vld [vmem:[%s2045] sm:$0xf]
        %v2047 = vld [vmem:[%s2045 + $0x4] sm:$0xf]
        %v2048 = vld [vmem:[%s2045 + $0x8] sm:$0xf]
        %v2049 = vld [vmem:[%s2045 + $0xc] sm:$0x7]
        %v2054 = vunpack.c.l.b16 %v2046
        %v2055 = vunpack.c.l.b16 %v2047
        %v2056 = vunpack.c.l.b16 %v2048
        %v2057 = vunpack.c.l.b16 %v2049
        %v2058 = vpack.c.b16 %v2055, %v2054
        %v2059 = vpack.c.b16 %v2057, %v2056
        %v2062 = vsel %vm1622, %v2043, 0
        %v2065 = vsel %vm1622, %v2044, 0
        %v2068 = vsel %vm1665, %v2059, 0
        %2070 = vmatprep.subr.bf16.mxu0 0
        %2071 = vmatpush1.bf16.msra.mxu0 %v2058
        %2072 = vmatprep.subr.bf16.mxu0 0
        %2073 = vmatpush1.bf16.msra.mxu0 %v2068
        %2074 = vmatprep.subr.bf16.mxu0 0
        %2075 = vmatpush1.bf16.msra.mxu0 0
        %2076 = vmatprep.subr.bf16.mxu0 0
        %2077 = vmatpush1.bf16.msra.mxu0 0
        %2078 = vmatprep.subr.bf16.mxu0 0
        %2079 = vmatpush1.bf16.msra.mxu0 0
        %2080 = vmatprep.subr.bf16.mxu0 0
        %2081 = vmatpush1.bf16.msra.mxu0 0
        %2082 = vmatprep.subr.bf16.mxu0 0
        %2083 = vmatpush1.bf16.msra.mxu0 0
        %2084 = vmatprep.subr.bf16.mxu0 0
        %2085 = vmatpush1.bf16.msra.mxu0 0
        %2086 = vmatprep.subr.bf16.mxu0 0
        %2087 = vmatpush1.bf16.msra.mxu0 0
        %2088 = vmatprep.subr.bf16.mxu0 0
        %2089 = vmatpush1.bf16.msra.mxu0 0
        %2090 = vmatprep.subr.bf16.mxu0 0
        %2091 = vmatpush1.bf16.msra.mxu0 0
        %2092 = vmatprep.subr.bf16.mxu0 0
        %2093 = vmatpush1.bf16.msra.mxu0 0
        %2094 = vmatprep.subr.bf16.mxu0 0
        %2095 = vmatpush1.bf16.msra.mxu0 0
        %2096 = vmatprep.subr.bf16.mxu0 0
        %2097 = vmatpush1.bf16.msra.mxu0 0
        %2098 = vmatprep.subr.bf16.mxu0 0
        %2099 = vmatpush1.bf16.msra.mxu0 0
        %2100 = vmatprep.subr.bf16.mxu0 0
        %2101 = vmatpush1.bf16.msra.mxu0 0
        %2102 = vmatprep.mubr.bf16.mxu0 0
        %2103 = vmatmul.mubr.bf16.gmra.mrb[0].mxu0 %v2062
        %v2104 = vpop.f32.mrb[0].mxu0
        %v2105 = vadd.f32 0.0, %v2104
        %v2106 = vpop.f32.mrb[0].mxu0
        %v2107 = vpop.f32.mrb[0].mxu0
        %v2108 = vadd.f32 0.0, %v2107
        %v2109 = vpop.f32.mrb[0].mxu0
        %2110 = vmatprep.mubr.bf16.mxu0 0
        %2111 = vmatmul.mubr.bf16.gmra.mrb[0].mxu0 %v2065
        %v2112 = vpop.f32.mrb[0].mxu0
        %v2113 = vadd.f32 0.0, %v2112
        %v2114 = vpop.f32.mrb[0].mxu0
        %v2115 = vpop.f32.mrb[0].mxu0
        %v2116 = vadd.f32 0.0, %v2115
        %v2117 = vpop.f32.mrb[0].mxu0
        %2118 = vdwg.mxu0
        %v2119 = vadd.f32 %v2035, %v2105
        %v2120 = vadd.f32 %v2036, %v2108
        %v2121 = vadd.f32 %v2037, %v2113
        %v2122 = vadd.f32 %v2038, %v2116
        %v2123 = vld [vmem:[#allocation2 + $0x9] sm:$0xff]
        %v2124 = vld [vmem:[#allocation2 + $0x11] sm:$0xff]
        %v2125 = vld [vmem:[#allocation2 + $0x29] sm:$0xff]
        %v2126 = vld [vmem:[#allocation2 + $0x31] sm:$0xff]
        %v2127 = vpack.c.bf16 %v2124, %v2123
        %v2128 = vpack.c.bf16 %v2126, %v2125
        %s2129 = scalar_lea.vmem %s1050, 96
        %v2130 = vld [vmem:[%s2129] sm:$0xf]
        %v2131 = vld [vmem:[%s2129 + $0x4] sm:$0xf]
        %v2132 = vld [vmem:[%s2129 + $0x8] sm:$0xf]
        %v2133 = vld [vmem:[%s2129 + $0xc] sm:$0x7]
        %v2138 = vunpack.c.l.b16 %v2130
        %v2139 = vunpack.c.l.b16 %v2131
        %v2140 = vunpack.c.l.b16 %v2132
        %v2141 = vunpack.c.l.b16 %v2133
        %v2142 = vpack.c.b16 %v2139, %v2138
        %v2143 = vpack.c.b16 %v2141, %v2140
        %v2146 = vsel %vm1622, %v2127, 0
        %v2149 = vsel %vm1622, %v2128, 0
        %v2152 = vsel %vm1665, %v2143, 0
        %2154 = vmatprep.subr.bf16.mxu0 0
        %2155 = vmatpush1.bf16.msra.mxu0 %v2142
        %2156 = vmatprep.subr.bf16.mxu0 0
        %2157 = vmatpush1.bf16.msra.mxu0 %v2152
        %2158 = vmatprep.subr.bf16.mxu0 0
        %2159 = vmatpush1.bf16.msra.mxu0 0
        %2160 = vmatprep.subr.bf16.mxu0 0
        %2161 = vmatpush1.bf16.msra.mxu0 0
        %2162 = vmatprep.subr.bf16.mxu0 0
        %2163 = vmatpush1.bf16.msra.mxu0 0
        %2164 = vmatprep.subr.bf16.mxu0 0
        %2165 = vmatpush1.bf16.msra.mxu0 0
        %2166 = vmatprep.subr.bf16.mxu0 0
        %2167 = vmatpush1.bf16.msra.mxu0 0
        %2168 = vmatprep.subr.bf16.mxu0 0
        %2169 = vmatpush1.bf16.msra.mxu0 0
        %2170 = vmatprep.subr.bf16.mxu0 0
        %2171 = vmatpush1.bf16.msra.mxu0 0
        %2172 = vmatprep.subr.bf16.mxu0 0
        %2173 = vmatpush1.bf16.msra.mxu0 0
        %2174 = vmatprep.subr.bf16.mxu0 0
        %2175 = vmatpush1.bf16.msra.mxu0 0
        %2176 = vmatprep.subr.bf16.mxu0 0
        %2177 = vmatpush1.bf16.msra.mxu0 0
        %2178 = vmatprep.subr.bf16.mxu0 0
        %2179 = vmatpush1.bf16.msra.mxu0 0
        %2180 = vmatprep.subr.bf16.mxu0 0
        %2181 = vmatpush1.bf16.msra.mxu0 0
        %2182 = vmatprep.subr.bf16.mxu0 0
        %2183 = vmatpush1.bf16.msra.mxu0 0
        %2184 = vmatprep.subr.bf16.mxu0 0
        %2185 = vmatpush1.bf16.msra.mxu0 0
        %2186 = vmatprep.mubr.bf16.mxu0 0
        %2187 = vmatmul.mubr.bf16.gmra.mrb[0].mxu0 %v2146
        %v2188 = vpop.f32.mrb[0].mxu0
        %v2189 = vadd.f32 0.0, %v2188
        %v2190 = vpop.f32.mrb[0].mxu0
        %v2191 = vpop.f32.mrb[0].mxu0
        %v2192 = vadd.f32 0.0, %v2191
        %v2193 = vpop.f32.mrb[0].mxu0
        %2194 = vmatprep.mubr.bf16.mxu0 0
        %2195 = vmatmul.mubr.bf16.gmra.mrb[0].mxu0 %v2149
        %v2196 = vpop.f32.mrb[0].mxu0
        %v2197 = vadd.f32 0.0, %v2196
        %v2198 = vpop.f32.mrb[0].mxu0
        %v2199 = vpop.f32.mrb[0].mxu0
        %v2200 = vadd.f32 0.0, %v2199
        %v2201 = vpop.f32.mrb[0].mxu0
        %2202 = vdwg.mxu0
        %v2203 = vadd.f32 %v2119, %v2189
        %v2204 = vadd.f32 %v2120, %v2192
        %v2205 = vadd.f32 %v2121, %v2197
        %v2206 = vadd.f32 %v2122, %v2200
        %v2207 = vld [vmem:[#allocation2 + $0xa] sm:$0xff]
        %v2208 = vld [vmem:[#allocation2 + $0x12] sm:$0xff]
        %v2209 = vld [vmem:[#allocation2 + $0x2a] sm:$0xff]
        %v2210 = vld [vmem:[#allocation2 + $0x32] sm:$0xff]
        %v2211 = vpack.c.bf16 %v2208, %v2207
        %v2212 = vpack.c.bf16 %v2210, %v2209
        %s2213 = scalar_lea.vmem %s1050, 112
        %v2214 = vld [vmem:[%s2213] sm:$0xf]
        %v2215 = vld [vmem:[%s2213 + $0x4] sm:$0xf]
        %v2216 = vld [vmem:[%s2213 + $0x8] sm:$0xf]
        %v2217 = vld [vmem:[%s2213 + $0xc] sm:$0x7]
        %v2222 = vunpack.c.l.b16 %v2214
        %v2223 = vunpack.c.l.b16 %v2215
        %v2224 = vunpack.c.l.b16 %v2216
        %v2225 = vunpack.c.l.b16 %v2217
        %v2226 = vpack.c.b16 %v2223, %v2222
        %v2227 = vpack.c.b16 %v2225, %v2224
        %v2230 = vsel %vm1622, %v2211, 0
        %v2233 = vsel %vm1622, %v2212, 0
        %v2236 = vsel %vm1665, %v2227, 0
        %2238 = vmatprep.subr.bf16.mxu0 0
        %2239 = vmatpush1.bf16.msra.mxu0 %v2226
        %2240 = vmatprep.subr.bf16.mxu0 0
        %2241 = vmatpush1.bf16.msra.mxu0 %v2236
        %2242 = vmatprep.subr.bf16.mxu0 0
        %2243 = vmatpush1.bf16.msra.mxu0 0
        %2244 = vmatprep.subr.bf16.mxu0 0
        %2245 = vmatpush1.bf16.msra.mxu0 0
        %2246 = vmatprep.subr.bf16.mxu0 0
        %2247 = vmatpush1.bf16.msra.mxu0 0
        %2248 = vmatprep.subr.bf16.mxu0 0
        %2249 = vmatpush1.bf16.msra.mxu0 0
        %2250 = vmatprep.subr.bf16.mxu0 0
        %2251 = vmatpush1.bf16.msra.mxu0 0
        %2252 = vmatprep.subr.bf16.mxu0 0
        %2253 = vmatpush1.bf16.msra.mxu0 0
        %2254 = vmatprep.subr.bf16.mxu0 0
        %2255 = vmatpush1.bf16.msra.mxu0 0
        %2256 = vmatprep.subr.bf16.mxu0 0
        %2257 = vmatpush1.bf16.msra.mxu0 0
        %2258 = vmatprep.subr.bf16.mxu0 0
        %2259 = vmatpush1.bf16.msra.mxu0 0
        %2260 = vmatprep.subr.bf16.mxu0 0
        %2261 = vmatpush1.bf16.msra.mxu0 0
        %2262 = vmatprep.subr.bf16.mxu0 0
        %2263 = vmatpush1.bf16.msra.mxu0 0
        %2264 = vmatprep.subr.bf16.mxu0 0
        %2265 = vmatpush1.bf16.msra.mxu0 0
        %2266 = vmatprep.subr.bf16.mxu0 0
        %2267 = vmatpush1.bf16.msra.mxu0 0
        %2268 = vmatprep.subr.bf16.mxu0 0
        %2269 = vmatpush1.bf16.msra.mxu0 0
        %2270 = vmatprep.mubr.bf16.mxu0 0
        %2271 = vmatmul.mubr.bf16.gmra.mrb[0].mxu0 %v2230
        %v2272 = vpop.f32.mrb[0].mxu0
        %v2273 = vadd.f32 0.0, %v2272
        %v2274 = vpop.f32.mrb[0].mxu0
        %v2275 = vpop.f32.mrb[0].mxu0
        %v2276 = vadd.f32 0.0, %v2275
        %v2277 = vpop.f32.mrb[0].mxu0
        %2278 = vmatprep.mubr.bf16.mxu0 0
        %2279 = vmatmul.mubr.bf16.gmra.mrb[0].mxu0 %v2233
        %v2280 = vpop.f32.mrb[0].mxu0
        %v2281 = vadd.f32 0.0, %v2280
        %v2282 = vpop.f32.mrb[0].mxu0
        %v2283 = vpop.f32.mrb[0].mxu0
        %v2284 = vadd.f32 0.0, %v2283
        %v2285 = vpop.f32.mrb[0].mxu0
        %2286 = vdwg.mxu0
        %v2287 = vadd.f32 %v2203, %v2273
        %v2288 = vadd.f32 %v2204, %v2276
        %v2289 = vadd.f32 %v2205, %v2281
        %v2290 = vadd.f32 %v2206, %v2284
        %v2291 = vld [vmem:[#allocation2 + $0xb] sm:$0xff]
        %v2292 = vld [vmem:[#allocation2 + $0x13] sm:$0xff]
        %v2293 = vld [vmem:[#allocation2 + $0x2b] sm:$0xff]
        %v2294 = vld [vmem:[#allocation2 + $0x33] sm:$0xff]
        %v2295 = vpack.c.bf16 %v2292, %v2291
        %v2296 = vpack.c.bf16 %v2294, %v2293
        %s2297 = scalar_lea.vmem %s1050, 128
        %v2298 = vld [vmem:[%s2297] sm:$0xf]
        %v2299 = vld [vmem:[%s2297 + $0x4] sm:$0xf]
        %v2300 = vld [vmem:[%s2297 + $0x8] sm:$0xf]
        %v2301 = vld [vmem:[%s2297 + $0xc] sm:$0x7]
        %v2306 = vunpack.c.l.b16 %v2298
        %v2307 = vunpack.c.l.b16 %v2299
        %v2308 = vunpack.c.l.b16 %v2300
        %v2309 = vunpack.c.l.b16 %v2301
        %v2310 = vpack.c.b16 %v2307, %v2306
        %v2311 = vpack.c.b16 %v2309, %v2308
        %v2314 = vsel %vm1622, %v2295, 0
        %v2317 = vsel %vm1622, %v2296, 0
        %v2320 = vsel %vm1665, %v2311, 0
        %2322 = vmatprep.subr.bf16.mxu0 0
        %2323 = vmatpush1.bf16.msra.mxu0 %v2310
        %2324 = vmatprep.subr.bf16.mxu0 0
        %2325 = vmatpush1.bf16.msra.mxu0 %v2320
        %2326 = vmatprep.subr.bf16.mxu0 0
        %2327 = vmatpush1.bf16.msra.mxu0 0
        %2328 = vmatprep.subr.bf16.mxu0 0
        %2329 = vmatpush1.bf16.msra.mxu0 0
        %2330 = vmatprep.subr.bf16.mxu0 0
        %2331 = vmatpush1.bf16.msra.mxu0 0
        %2332 = vmatprep.subr.bf16.mxu0 0
        %2333 = vmatpush1.bf16.msra.mxu0 0
        %2334 = vmatprep.subr.bf16.mxu0 0
        %2335 = vmatpush1.bf16.msra.mxu0 0
        %2336 = vmatprep.subr.bf16.mxu0 0
        %2337 = vmatpush1.bf16.msra.mxu0 0
        %2338 = vmatprep.subr.bf16.mxu0 0
        %2339 = vmatpush1.bf16.msra.mxu0 0
        %2340 = vmatprep.subr.bf16.mxu0 0
        %2341 = vmatpush1.bf16.msra.mxu0 0
        %2342 = vmatprep.subr.bf16.mxu0 0
        %2343 = vmatpush1.bf16.msra.mxu0 0
        %2344 = vmatprep.subr.bf16.mxu0 0
        %2345 = vmatpush1.bf16.msra.mxu0 0
        %2346 = vmatprep.subr.bf16.mxu0 0
        %2347 = vmatpush1.bf16.msra.mxu0 0
        %2348 = vmatprep.subr.bf16.mxu0 0
        %2349 = vmatpush1.bf16.msra.mxu0 0
        %2350 = vmatprep.subr.bf16.mxu0 0
        %2351 = vmatpush1.bf16.msra.mxu0 0
        %2352 = vmatprep.subr.bf16.mxu0 0
        %2353 = vmatpush1.bf16.msra.mxu0 0
        %2354 = vmatprep.mubr.bf16.mxu0 0
        %2355 = vmatmul.mubr.bf16.gmra.mrb[0].mxu0 %v2314
        %v2356 = vpop.f32.mrb[0].mxu0
        %v2357 = vadd.f32 0.0, %v2356
        %v2358 = vpop.f32.mrb[0].mxu0
        %v2359 = vpop.f32.mrb[0].mxu0
        %v2360 = vadd.f32 0.0, %v2359
        %v2361 = vpop.f32.mrb[0].mxu0
        %2362 = vmatprep.mubr.bf16.mxu0 0
        %2363 = vmatmul.mubr.bf16.gmra.mrb[0].mxu0 %v2317
        %v2364 = vpop.f32.mrb[0].mxu0
        %v2365 = vadd.f32 0.0, %v2364
        %v2366 = vpop.f32.mrb[0].mxu0
        %v2367 = vpop.f32.mrb[0].mxu0
        %v2368 = vadd.f32 0.0, %v2367
        %v2369 = vpop.f32.mrb[0].mxu0
        %2370 = vdwg.mxu0
        %v2371 = vadd.f32 %v2287, %v2357
        %v2372 = vadd.f32 %v2288, %v2360
        %v2373 = vadd.f32 %v2289, %v2365
        %v2374 = vadd.f32 %v2290, %v2368
        %v2375 = vld [vmem:[#allocation2 + $0xc] sm:$0xff]
        %v2376 = vld [vmem:[#allocation2 + $0x14] sm:$0xff]
        %v2377 = vld [vmem:[#allocation2 + $0x2c] sm:$0xff]
        %v2378 = vld [vmem:[#allocation2 + $0x34] sm:$0xff]
        %v2379 = vpack.c.bf16 %v2376, %v2375
        %v2380 = vpack.c.bf16 %v2378, %v2377
        %s2381 = scalar_lea.vmem %s1050, 144
        %v2382 = vld [vmem:[%s2381] sm:$0xf]
        %v2383 = vld [vmem:[%s2381 + $0x4] sm:$0xf]
        %v2384 = vld [vmem:[%s2381 + $0x8] sm:$0xf]
        %v2385 = vld [vmem:[%s2381 + $0xc] sm:$0x7]
        %v2390 = vunpack.c.l.b16 %v2382
        %v2391 = vunpack.c.l.b16 %v2383
        %v2392 = vunpack.c.l.b16 %v2384
        %v2393 = vunpack.c.l.b16 %v2385
        %v2394 = vpack.c.b16 %v2391, %v2390
        %v2395 = vpack.c.b16 %v2393, %v2392
        %v2398 = vsel %vm1622, %v2379, 0
        %v2401 = vsel %vm1622, %v2380, 0
        %v2404 = vsel %vm1665, %v2395, 0
        %2406 = vmatprep.subr.bf16.mxu0 0
        %2407 = vmatpush1.bf16.msra.mxu0 %v2394
        %2408 = vmatprep.subr.bf16.mxu0 0
        %2409 = vmatpush1.bf16.msra.mxu0 %v2404
        %2410 = vmatprep.subr.bf16.mxu0 0
        %2411 = vmatpush1.bf16.msra.mxu0 0
        %2412 = vmatprep.subr.bf16.mxu0 0
        %2413 = vmatpush1.bf16.msra.mxu0 0
        %2414 = vmatprep.subr.bf16.mxu0 0
        %2415 = vmatpush1.bf16.msra.mxu0 0
        %2416 = vmatprep.subr.bf16.mxu0 0
        %2417 = vmatpush1.bf16.msra.mxu0 0
        %2418 = vmatprep.subr.bf16.mxu0 0
        %2419 = vmatpush1.bf16.msra.mxu0 0
        %2420 = vmatprep.subr.bf16.mxu0 0
        %2421 = vmatpush1.bf16.msra.mxu0 0
        %2422 = vmatprep.subr.bf16.mxu0 0
        %2423 = vmatpush1.bf16.msra.mxu0 0
        %2424 = vmatprep.subr.bf16.mxu0 0
        %2425 = vmatpush1.bf16.msra.mxu0 0
        %2426 = vmatprep.subr.bf16.mxu0 0
        %2427 = vmatpush1.bf16.msra.mxu0 0
        %2428 = vmatprep.subr.bf16.mxu0 0
        %2429 = vmatpush1.bf16.msra.mxu0 0
        %2430 = vmatprep.subr.bf16.mxu0 0
        %2431 = vmatpush1.bf16.msra.mxu0 0
        %2432 = vmatprep.subr.bf16.mxu0 0
        %2433 = vmatpush1.bf16.msra.mxu0 0
        %2434 = vmatprep.subr.bf16.mxu0 0
        %2435 = vmatpush1.bf16.msra.mxu0 0
        %2436 = vmatprep.subr.bf16.mxu0 0
        %2437 = vmatpush1.bf16.msra.mxu0 0
        %2438 = vmatprep.mubr.bf16.mxu0 0
        %2439 = vmatmul.mubr.bf16.gmra.mrb[0].mxu0 %v2398
        %v2440 = vpop.f32.mrb[0].mxu0
        %v2441 = vadd.f32 0.0, %v2440
        %v2442 = vpop.f32.mrb[0].mxu0
        %v2443 = vpop.f32.mrb[0].mxu0
        %v2444 = vadd.f32 0.0, %v2443
        %v2445 = vpop.f32.mrb[0].mxu0
        %2446 = vmatprep.mubr.bf16.mxu0 0
        %2447 = vmatmul.mubr.bf16.gmra.mrb[0].mxu0 %v2401
        %v2448 = vpop.f32.mrb[0].mxu0
        %v2449 = vadd.f32 0.0, %v2448
        %v2450 = vpop.f32.mrb[0].mxu0
        %v2451 = vpop.f32.mrb[0].mxu0
        %v2452 = vadd.f32 0.0, %v2451
        %v2453 = vpop.f32.mrb[0].mxu0
        %2454 = vdwg.mxu0
        %v2455 = vadd.f32 %v2371, %v2441
        %v2456 = vadd.f32 %v2372, %v2444
        %v2457 = vadd.f32 %v2373, %v2449
        %v2458 = vadd.f32 %v2374, %v2452
        %v2459 = vld [vmem:[#allocation2 + $0xd] sm:$0xff]
        %v2460 = vld [vmem:[#allocation2 + $0x15] sm:$0xff]
        %v2461 = vld [vmem:[#allocation2 + $0x2d] sm:$0xff]
        %v2462 = vld [vmem:[#allocation2 + $0x35] sm:$0xff]
        %v2463 = vpack.c.bf16 %v2460, %v2459
        %v2464 = vpack.c.bf16 %v2462, %v2461
        %s2465 = scalar_lea.vmem %s1050, 160
        %v2466 = vld [vmem:[%s2465] sm:$0xf]
        %v2467 = vld [vmem:[%s2465 + $0x4] sm:$0xf]
        %v2468 = vld [vmem:[%s2465 + $0x8] sm:$0xf]
        %v2469 = vld [vmem:[%s2465 + $0xc] sm:$0x7]
        %v2474 = vunpack.c.l.b16 %v2466
        %v2475 = vunpack.c.l.b16 %v2467
        %v2476 = vunpack.c.l.b16 %v2468
        %v2477 = vunpack.c.l.b16 %v2469
        %v2478 = vpack.c.b16 %v2475, %v2474
        %v2479 = vpack.c.b16 %v2477, %v2476
        %v2482 = vsel %vm1622, %v2463, 0
        %v2485 = vsel %vm1622, %v2464, 0
        %v2488 = vsel %vm1665, %v2479, 0
        %2490 = vmatprep.subr.bf16.mxu0 0
        %2491 = vmatpush1.bf16.msra.mxu0 %v2478
        %2492 = vmatprep.subr.bf16.mxu0 0
        %2493 = vmatpush1.bf16.msra.mxu0 %v2488
        %2494 = vmatprep.subr.bf16.mxu0 0
        %2495 = vmatpush1.bf16.msra.mxu0 0
        %2496 = vmatprep.subr.bf16.mxu0 0
        %2497 = vmatpush1.bf16.msra.mxu0 0
        %2498 = vmatprep.subr.bf16.mxu0 0
        %2499 = vmatpush1.bf16.msra.mxu0 0
        %2500 = vmatprep.subr.bf16.mxu0 0
        %2501 = vmatpush1.bf16.msra.mxu0 0
        %2502 = vmatprep.subr.bf16.mxu0 0
        %2503 = vmatpush1.bf16.msra.mxu0 0
        %2504 = vmatprep.subr.bf16.mxu0 0
        %2505 = vmatpush1.bf16.msra.mxu0 0
        %2506 = vmatprep.subr.bf16.mxu0 0
        %2507 = vmatpush1.bf16.msra.mxu0 0
        %2508 = vmatprep.subr.bf16.mxu0 0
        %2509 = vmatpush1.bf16.msra.mxu0 0
        %2510 = vmatprep.subr.bf16.mxu0 0
        %2511 = vmatpush1.bf16.msra.mxu0 0
        %2512 = vmatprep.subr.bf16.mxu0 0
        %2513 = vmatpush1.bf16.msra.mxu0 0
        %2514 = vmatprep.subr.bf16.mxu0 0
        %2515 = vmatpush1.bf16.msra.mxu0 0
        %2516 = vmatprep.subr.bf16.mxu0 0
        %2517 = vmatpush1.bf16.msra.mxu0 0
        %2518 = vmatprep.subr.bf16.mxu0 0
        %2519 = vmatpush1.bf16.msra.mxu0 0
        %2520 = vmatprep.subr.bf16.mxu0 0
        %2521 = vmatpush1.bf16.msra.mxu0 0
        %2522 = vmatprep.mubr.bf16.mxu0 0
        %2523 = vmatmul.mubr.bf16.gmra.mrb[0].mxu0 %v2482
        %v2524 = vpop.f32.mrb[0].mxu0
        %v2525 = vadd.f32 0.0, %v2524
        %v2526 = vpop.f32.mrb[0].mxu0
        %v2527 = vpop.f32.mrb[0].mxu0
        %v2528 = vadd.f32 0.0, %v2527
        %v2529 = vpop.f32.mrb[0].mxu0
        %2530 = vmatprep.mubr.bf16.mxu0 0
        %2531 = vmatmul.mubr.bf16.gmra.mrb[0].mxu0 %v2485
        %v2532 = vpop.f32.mrb[0].mxu0
        %v2533 = vadd.f32 0.0, %v2532
        %v2534 = vpop.f32.mrb[0].mxu0
        %v2535 = vpop.f32.mrb[0].mxu0
        %v2536 = vadd.f32 0.0, %v2535
        %v2537 = vpop.f32.mrb[0].mxu0
        %2538 = vdwg.mxu0
        %v2539 = vadd.f32 %v2455, %v2525
        %v2540 = vadd.f32 %v2456, %v2528
        %v2541 = vadd.f32 %v2457, %v2533
        %v2542 = vadd.f32 %v2458, %v2536
        %v2543 = vld [vmem:[%s836] sm:$0x1]
        %v2545 = vlaneseq
        %v2546 = vshrl.u32 %v2545, 7
        %v2547 = vsub.s32 0, %v2546
        %v2548 = vrot.slane %v2543, %v2547
        %v2550 = vadd.f32 %v2539, %v2548
        %v2551 = vadd.f32 %v2540, %v2548
        %v2552 = vadd.f32 %v2541, %v2548
        %v2553 = vadd.f32 %v2542, %v2548
        %v2554 = vmax.f32 %v2550, 0.0
        %v2555 = vmax.f32 %v2551, 0.0
        %v2556 = vmax.f32 %v2552, 0.0
        %v2557 = vmax.f32 %v2553, 0.0
        %2558 = vst.msk [vmem:[#allocation2 + $0x8] sm:$0xff] %vm1622, %v2554
        %2559 = vst.msk [vmem:[#allocation2 + $0x10] sm:$0xff] %vm1622, %v2555
        %2560 = vst.msk [vmem:[#allocation2 + $0x28] sm:$0xff] %vm1622, %v2556
        %2561 = vst.msk [vmem:[#allocation2 + $0x30] sm:$0xff] %vm1622, %v2557
        %v2562 = vld [vmem:[#allocation2 + $0x5] sm:$0xff]
        %v2563 = vld [vmem:[#allocation2 + $0xd] sm:$0xff]
        %v2564 = vld [vmem:[#allocation2 + $0x25] sm:$0xff]
        %v2565 = vld [vmem:[#allocation2 + $0x2d] sm:$0xff]
        %v2566 = vpack.c.bf16 %v2563, %v2562
        %v2567 = vpack.c.bf16 %v2565, %v2564
        %v2568 = vld [vmem:[%s1055] sm:$0xf]
        %v2569 = vld [vmem:[%s1055 + $0x4] sm:$0xf]
        %v2570 = vld [vmem:[%s1055 + $0x8] sm:$0xf]
        %v2571 = vld [vmem:[%s1055 + $0xc] sm:$0x7]
        %v2572 = vld [vmem:[#allocation2 + $0x6] sm:$0xff]
        %v2573 = vld [vmem:[#allocation2 + $0xe] sm:$0xff]
        %v2574 = vld [vmem:[#allocation2 + $0x26] sm:$0xff]
        %v2575 = vld [vmem:[#allocation2 + $0x2e] sm:$0xff]
        %v2576 = vpack.c.bf16 %v2573, %v2572
        %v2577 = vpack.c.bf16 %v2575, %v2574
        %s2578 = scalar_lea.vmem %s1055, 16
        %v2579 = vld [vmem:[%s2578] sm:$0xf]
        %v2580 = vld [vmem:[%s2578 + $0x4] sm:$0xf]
        %v2581 = vld [vmem:[%s2578 + $0x8] sm:$0xf]
        %v2582 = vld [vmem:[%s2578 + $0xc] sm:$0x7]
        %v2587 = vunpack.c.l.b16 %v2579
        %v2588 = vunpack.c.l.b16 %v2580
        %v2589 = vunpack.c.l.b16 %v2581
        %v2590 = vunpack.c.l.b16 %v2582
        %v2591 = vpack.c.b16 %v2588, %v2587
        %v2592 = vpack.c.b16 %v2590, %v2589
        %v2595 = vsel %vm1622, %v2576, 0
        %v2598 = vsel %vm1622, %v2577, 0
        %v2601 = vsel %vm1665, %v2592, 0
        %2603 = vmatprep.subr.bf16.mxu0 0
        %2604 = vmatpush1.bf16.msra.mxu0 %v2591
        %2605 = vmatprep.subr.bf16.mxu0 0
        %2606 = vmatpush1.bf16.msra.mxu0 %v2601
        %2607 = vmatprep.subr.bf16.mxu0 0
        %2608 = vmatpush1.bf16.msra.mxu0 0
        %2609 = vmatprep.subr.bf16.mxu0 0
        %2610 = vmatpush1.bf16.msra.mxu0 0
        %2611 = vmatprep.subr.bf16.mxu0 0
        %2612 = vmatpush1.bf16.msra.mxu0 0
        %2613 = vmatprep.subr.bf16.mxu0 0
        %2614 = vmatpush1.bf16.msra.mxu0 0
        %2615 = vmatprep.subr.bf16.mxu0 0
        %2616 = vmatpush1.bf16.msra.mxu0 0
        %2617 = vmatprep.subr.bf16.mxu0 0
        %2618 = vmatpush1.bf16.msra.mxu0 0
        %2619 = vmatprep.subr.bf16.mxu0 0
        %2620 = vmatpush1.bf16.msra.mxu0 0
        %2621 = vmatprep.subr.bf16.mxu0 0
        %2622 = vmatpush1.bf16.msra.mxu0 0
        %2623 = vmatprep.subr.bf16.mxu0 0
        %2624 = vmatpush1.bf16.msra.mxu0 0
        %2625 = vmatprep.subr.bf16.mxu0 0
        %2626 = vmatpush1.bf16.msra.mxu0 0
        %2627 = vmatprep.subr.bf16.mxu0 0
        %2628 = vmatpush1.bf16.msra.mxu0 0
        %2629 = vmatprep.subr.bf16.mxu0 0
        %2630 = vmatpush1.bf16.msra.mxu0 0
        %2631 = vmatprep.subr.bf16.mxu0 0
        %2632 = vmatpush1.bf16.msra.mxu0 0
        %2633 = vmatprep.subr.bf16.mxu0 0
        %2634 = vmatpush1.bf16.msra.mxu0 0
        %2635 = vmatprep.mubr.bf16.mxu0 0
        %2636 = vmatmul.mubr.bf16.gmra.mrb[0].mxu0 %v2595
        %v2637 = vpop.f32.mrb[0].mxu0
        %v2638 = vadd.f32 0.0, %v2637
        %v2639 = vpop.f32.mrb[0].mxu0
        %v2640 = vpop.f32.mrb[0].mxu0
        %v2641 = vadd.f32 0.0, %v2640
        %v2642 = vpop.f32.mrb[0].mxu0
        %2643 = vmatprep.mubr.bf16.mxu0 0
        %2644 = vmatmul.mubr.bf16.gmra.mrb[0].mxu0 %v2598
        %v2645 = vpop.f32.mrb[0].mxu0
        %v2646 = vadd.f32 0.0, %v2645
        %v2647 = vpop.f32.mrb[0].mxu0
        %v2648 = vpop.f32.mrb[0].mxu0
        %v2649 = vadd.f32 0.0, %v2648
        %v2650 = vpop.f32.mrb[0].mxu0
        %2651 = vdwg.mxu0
        %v2656 = vunpack.c.l.b16 %v2568
        %v2657 = vunpack.c.l.b16 %v2569
        %v2658 = vunpack.c.l.b16 %v2570
        %v2659 = vunpack.c.l.b16 %v2571
        %v2660 = vpack.c.b16 %v2657, %v2656
        %v2661 = vpack.c.b16 %v2659, %v2658
        %v2664 = vsel %vm1622, %v2566, 0
        %v2667 = vsel %vm1622, %v2567, 0
        %v2670 = vsel %vm1665, %v2661, 0
        %2672 = vmatprep.subr.bf16.mxu0 0
        %2673 = vmatpush1.bf16.msra.mxu0 %v2660
        %2674 = vmatprep.subr.bf16.mxu0 0
        %2675 = vmatpush1.bf16.msra.mxu0 %v2670
        %2676 = vmatprep.subr.bf16.mxu0 0
        %2677 = vmatpush1.bf16.msra.mxu0 0
        %2678 = vmatprep.subr.bf16.mxu0 0
        %2679 = vmatpush1.bf16.msra.mxu0 0
        %2680 = vmatprep.subr.bf16.mxu0 0
        %2681 = vmatpush1.bf16.msra.mxu0 0
        %2682 = vmatprep.subr.bf16.mxu0 0
        %2683 = vmatpush1.bf16.msra.mxu0 0
        %2684 = vmatprep.subr.bf16.mxu0 0
        %2685 = vmatpush1.bf16.msra.mxu0 0
        %2686 = vmatprep.subr.bf16.mxu0 0
        %2687 = vmatpush1.bf16.msra.mxu0 0
        %2688 = vmatprep.subr.bf16.mxu0 0
        %2689 = vmatpush1.bf16.msra.mxu0 0
        %2690 = vmatprep.subr.bf16.mxu0 0
        %2691 = vmatpush1.bf16.msra.mxu0 0
        %2692 = vmatprep.subr.bf16.mxu0 0
        %2693 = vmatpush1.bf16.msra.mxu0 0
        %2694 = vmatprep.subr.bf16.mxu0 0
        %2695 = vmatpush1.bf16.msra.mxu0 0
        %2696 = vmatprep.subr.bf16.mxu0 0
        %2697 = vmatpush1.bf16.msra.mxu0 0
        %2698 = vmatprep.subr.bf16.mxu0 0
        %2699 = vmatpush1.bf16.msra.mxu0 0
        %2700 = vmatprep.subr.bf16.mxu0 0
        %2701 = vmatpush1.bf16.msra.mxu0 0
        %2702 = vmatprep.subr.bf16.mxu0 0
        %2703 = vmatpush1.bf16.msra.mxu0 0
        %2704 = vmatprep.mubr.bf16.mxu0 0
        %2705 = vmatmul.mubr.bf16.gmra.mrb[0].mxu0 %v2664
        %v2706 = vpop.f32.mrb[0].mxu0
        %v2707 = vadd.f32 %v2638, %v2706
        %v2708 = vpop.f32.mrb[0].mxu0
        %v2709 = vpop.f32.mrb[0].mxu0
        %v2710 = vadd.f32 %v2641, %v2709
        %v2711 = vpop.f32.mrb[0].mxu0
        %2712 = vmatprep.mubr.bf16.mxu0 0
        %2713 = vmatmul.mubr.bf16.gmra.mrb[0].mxu0 %v2667
        %v2714 = vpop.f32.mrb[0].mxu0
        %v2715 = vadd.f32 %v2646, %v2714
        %v2716 = vpop.f32.mrb[0].mxu0
        %v2717 = vpop.f32.mrb[0].mxu0
        %v2718 = vadd.f32 %v2649, %v2717
        %v2719 = vpop.f32.mrb[0].mxu0
        %2720 = vdwg.mxu0
        %v2721 = vld [vmem:[#allocation2 + $0x7] sm:$0xff]
        %v2722 = vld [vmem:[#allocation2 + $0xf] sm:$0xff]
        %v2723 = vld [vmem:[#allocation2 + $0x27] sm:$0xff]
        %v2724 = vld [vmem:[#allocation2 + $0x2f] sm:$0xff]
        %v2725 = vpack.c.bf16 %v2722, %v2721
        %v2726 = vpack.c.bf16 %v2724, %v2723
        %s2727 = scalar_lea.vmem %s1055, 32
        %v2728 = vld [vmem:[%s2727] sm:$0xf]
        %v2729 = vld [vmem:[%s2727 + $0x4] sm:$0xf]
        %v2730 = vld [vmem:[%s2727 + $0x8] sm:$0xf]
        %v2731 = vld [vmem:[%s2727 + $0xc] sm:$0x7]
        %v2736 = vunpack.c.l.b16 %v2728
        %v2737 = vunpack.c.l.b16 %v2729
        %v2738 = vunpack.c.l.b16 %v2730
        %v2739 = vunpack.c.l.b16 %v2731
        %v2740 = vpack.c.b16 %v2737, %v2736
        %v2741 = vpack.c.b16 %v2739, %v2738
        %v2744 = vsel %vm1622, %v2725, 0
        %v2747 = vsel %vm1622, %v2726, 0
        %v2750 = vsel %vm1665, %v2741, 0
        %2752 = vmatprep.subr.bf16.mxu0 0
        %2753 = vmatpush1.bf16.msra.mxu0 %v2740
        %2754 = vmatprep.subr.bf16.mxu0 0
        %2755 = vmatpush1.bf16.msra.mxu0 %v2750
        %2756 = vmatprep.subr.bf16.mxu0 0
        %2757 = vmatpush1.bf16.msra.mxu0 0
        %2758 = vmatprep.subr.bf16.mxu0 0
        %2759 = vmatpush1.bf16.msra.mxu0 0
        %2760 = vmatprep.subr.bf16.mxu0 0
        %2761 = vmatpush1.bf16.msra.mxu0 0
        %2762 = vmatprep.subr.bf16.mxu0 0
        %2763 = vmatpush1.bf16.msra.mxu0 0
        %2764 = vmatprep.subr.bf16.mxu0 0
        %2765 = vmatpush1.bf16.msra.mxu0 0
        %2766 = vmatprep.subr.bf16.mxu0 0
        %2767 = vmatpush1.bf16.msra.mxu0 0
        %2768 = vmatprep.subr.bf16.mxu0 0
        %2769 = vmatpush1.bf16.msra.mxu0 0
        %2770 = vmatprep.subr.bf16.mxu0 0
        %2771 = vmatpush1.bf16.msra.mxu0 0
        %2772 = vmatprep.subr.bf16.mxu0 0
        %2773 = vmatpush1.bf16.msra.mxu0 0
        %2774 = vmatprep.subr.bf16.mxu0 0
        %2775 = vmatpush1.bf16.msra.mxu0 0
        %2776 = vmatprep.subr.bf16.mxu0 0
        %2777 = vmatpush1.bf16.msra.mxu0 0
        %2778 = vmatprep.subr.bf16.mxu0 0
        %2779 = vmatpush1.bf16.msra.mxu0 0
        %2780 = vmatprep.subr.bf16.mxu0 0
        %2781 = vmatpush1.bf16.msra.mxu0 0
        %2782 = vmatprep.subr.bf16.mxu0 0
        %2783 = vmatpush1.bf16.msra.mxu0 0
        %2784 = vmatprep.mubr.bf16.mxu0 0
        %2785 = vmatmul.mubr.bf16.gmra.mrb[0].mxu0 %v2744
        %v2786 = vpop.f32.mrb[0].mxu0
        %v2787 = vadd.f32 0.0, %v2786
        %v2788 = vpop.f32.mrb[0].mxu0
        %v2789 = vpop.f32.mrb[0].mxu0
        %v2790 = vadd.f32 0.0, %v2789
        %v2791 = vpop.f32.mrb[0].mxu0
        %2792 = vmatprep.mubr.bf16.mxu0 0
        %2793 = vmatmul.mubr.bf16.gmra.mrb[0].mxu0 %v2747
        %v2794 = vpop.f32.mrb[0].mxu0
        %v2795 = vadd.f32 0.0, %v2794
        %v2796 = vpop.f32.mrb[0].mxu0
        %v2797 = vpop.f32.mrb[0].mxu0
        %v2798 = vadd.f32 0.0, %v2797
        %v2799 = vpop.f32.mrb[0].mxu0
        %2800 = vdwg.mxu0
        %v2801 = vadd.f32 %v2707, %v2787
        %v2802 = vadd.f32 %v2710, %v2790
        %v2803 = vadd.f32 %v2715, %v2795
        %v2804 = vadd.f32 %v2718, %v2798
        %v2805 = vld [vmem:[#allocation2 + $0x8] sm:$0xff]
        %v2806 = vld [vmem:[#allocation2 + $0x10] sm:$0xff]
        %v2807 = vld [vmem:[#allocation2 + $0x28] sm:$0xff]
        %v2808 = vld [vmem:[#allocation2 + $0x30] sm:$0xff]
        %v2809 = vpack.c.bf16 %v2806, %v2805
        %v2810 = vpack.c.bf16 %v2808, %v2807
        %s2811 = scalar_lea.vmem %s1055, 48
        %v2812 = vld [vmem:[%s2811] sm:$0xf]
        %v2813 = vld [vmem:[%s2811 + $0x4] sm:$0xf]
        %v2814 = vld [vmem:[%s2811 + $0x8] sm:$0xf]
        %v2815 = vld [vmem:[%s2811 + $0xc] sm:$0x7]
        %v2820 = vunpack.c.l.b16 %v2812
        %v2821 = vunpack.c.l.b16 %v2813
        %v2822 = vunpack.c.l.b16 %v2814
        %v2823 = vunpack.c.l.b16 %v2815
        %v2824 = vpack.c.b16 %v2821, %v2820
        %v2825 = vpack.c.b16 %v2823, %v2822
        %v2828 = vsel %vm1622, %v2809, 0
        %v2831 = vsel %vm1622, %v2810, 0
        %v2834 = vsel %vm1665, %v2825, 0
        %2836 = vmatprep.subr.bf16.mxu0 0
        %2837 = vmatpush1.bf16.msra.mxu0 %v2824
        %2838 = vmatprep.subr.bf16.mxu0 0
        %2839 = vmatpush1.bf16.msra.mxu0 %v2834
        %2840 = vmatprep.subr.bf16.mxu0 0
        %2841 = vmatpush1.bf16.msra.mxu0 0
        %2842 = vmatprep.subr.bf16.mxu0 0
        %2843 = vmatpush1.bf16.msra.mxu0 0
        %2844 = vmatprep.subr.bf16.mxu0 0
        %2845 = vmatpush1.bf16.msra.mxu0 0
        %2846 = vmatprep.subr.bf16.mxu0 0
        %2847 = vmatpush1.bf16.msra.mxu0 0
        %2848 = vmatprep.subr.bf16.mxu0 0
        %2849 = vmatpush1.bf16.msra.mxu0 0
        %2850 = vmatprep.subr.bf16.mxu0 0
        %2851 = vmatpush1.bf16.msra.mxu0 0
        %2852 = vmatprep.subr.bf16.mxu0 0
        %2853 = vmatpush1.bf16.msra.mxu0 0
        %2854 = vmatprep.subr.bf16.mxu0 0
        %2855 = vmatpush1.bf16.msra.mxu0 0
        %2856 = vmatprep.subr.bf16.mxu0 0
        %2857 = vmatpush1.bf16.msra.mxu0 0
        %2858 = vmatprep.subr.bf16.mxu0 0
        %2859 = vmatpush1.bf16.msra.mxu0 0
        %2860 = vmatprep.subr.bf16.mxu0 0
        %2861 = vmatpush1.bf16.msra.mxu0 0
        %2862 = vmatprep.subr.bf16.mxu0 0
        %2863 = vmatpush1.bf16.msra.mxu0 0
        %2864 = vmatprep.subr.bf16.mxu0 0
        %2865 = vmatpush1.bf16.msra.mxu0 0
        %2866 = vmatprep.subr.bf16.mxu0 0
        %2867 = vmatpush1.bf16.msra.mxu0 0
        %2868 = vmatprep.mubr.bf16.mxu0 0
        %2869 = vmatmul.mubr.bf16.gmra.mrb[0].mxu0 %v2828
        %v2870 = vpop.f32.mrb[0].mxu0
        %v2871 = vadd.f32 0.0, %v2870
        %v2872 = vpop.f32.mrb[0].mxu0
        %v2873 = vpop.f32.mrb[0].mxu0
        %v2874 = vadd.f32 0.0, %v2873
        %v2875 = vpop.f32.mrb[0].mxu0
        %2876 = vmatprep.mubr.bf16.mxu0 0
        %2877 = vmatmul.mubr.bf16.gmra.mrb[0].mxu0 %v2831
        %v2878 = vpop.f32.mrb[0].mxu0
        %v2879 = vadd.f32 0.0, %v2878
        %v2880 = vpop.f32.mrb[0].mxu0
        %v2881 = vpop.f32.mrb[0].mxu0
        %v2882 = vadd.f32 0.0, %v2881
        %v2883 = vpop.f32.mrb[0].mxu0
        %2884 = vdwg.mxu0
        %v2885 = vadd.f32 %v2801, %v2871
        %v2886 = vadd.f32 %v2802, %v2874
        %v2887 = vadd.f32 %v2803, %v2879
        %v2888 = vadd.f32 %v2804, %v2882
        %v2889 = vld [vmem:[#allocation2 + $0x9] sm:$0xff]
        %v2890 = vld [vmem:[#allocation2 + $0x11] sm:$0xff]
        %v2891 = vld [vmem:[#allocation2 + $0x29] sm:$0xff]
        %v2892 = vld [vmem:[#allocation2 + $0x31] sm:$0xff]
        %v2893 = vpack.c.bf16 %v2890, %v2889
        %v2894 = vpack.c.bf16 %v2892, %v2891
        %s2895 = scalar_lea.vmem %s1055, 64
        %v2896 = vld [vmem:[%s2895] sm:$0xf]
        %v2897 = vld [vmem:[%s2895 + $0x4] sm:$0xf]
        %v2898 = vld [vmem:[%s2895 + $0x8] sm:$0xf]
        %v2899 = vld [vmem:[%s2895 + $0xc] sm:$0x7]
        %v2904 = vunpack.c.l.b16 %v2896
        %v2905 = vunpack.c.l.b16 %v2897
        %v2906 = vunpack.c.l.b16 %v2898
        %v2907 = vunpack.c.l.b16 %v2899
        %v2908 = vpack.c.b16 %v2905, %v2904
        %v2909 = vpack.c.b16 %v2907, %v2906
        %v2912 = vsel %vm1622, %v2893, 0
        %v2915 = vsel %vm1622, %v2894, 0
        %v2918 = vsel %vm1665, %v2909, 0
        %2920 = vmatprep.subr.bf16.mxu0 0
        %2921 = vmatpush1.bf16.msra.mxu0 %v2908
        %2922 = vmatprep.subr.bf16.mxu0 0
        %2923 = vmatpush1.bf16.msra.mxu0 %v2918
        %2924 = vmatprep.subr.bf16.mxu0 0
        %2925 = vmatpush1.bf16.msra.mxu0 0
        %2926 = vmatprep.subr.bf16.mxu0 0
        %2927 = vmatpush1.bf16.msra.mxu0 0
        %2928 = vmatprep.subr.bf16.mxu0 0
        %2929 = vmatpush1.bf16.msra.mxu0 0
        %2930 = vmatprep.subr.bf16.mxu0 0
        %2931 = vmatpush1.bf16.msra.mxu0 0
        %2932 = vmatprep.subr.bf16.mxu0 0
        %2933 = vmatpush1.bf16.msra.mxu0 0
        %2934 = vmatprep.subr.bf16.mxu0 0
        %2935 = vmatpush1.bf16.msra.mxu0 0
        %2936 = vmatprep.subr.bf16.mxu0 0
        %2937 = vmatpush1.bf16.msra.mxu0 0
        %2938 = vmatprep.subr.bf16.mxu0 0
        %2939 = vmatpush1.bf16.msra.mxu0 0
        %2940 = vmatprep.subr.bf16.mxu0 0
        %2941 = vmatpush1.bf16.msra.mxu0 0
        %2942 = vmatprep.subr.bf16.mxu0 0
        %2943 = vmatpush1.bf16.msra.mxu0 0
        %2944 = vmatprep.subr.bf16.mxu0 0
        %2945 = vmatpush1.bf16.msra.mxu0 0
        %2946 = vmatprep.subr.bf16.mxu0 0
        %2947 = vmatpush1.bf16.msra.mxu0 0
        %2948 = vmatprep.subr.bf16.mxu0 0
        %2949 = vmatpush1.bf16.msra.mxu0 0
        %2950 = vmatprep.subr.bf16.mxu0 0
        %2951 = vmatpush1.bf16.msra.mxu0 0
        %2952 = vmatprep.mubr.bf16.mxu0 0
        %2953 = vmatmul.mubr.bf16.gmra.mrb[0].mxu0 %v2912
        %v2954 = vpop.f32.mrb[0].mxu0
        %v2955 = vadd.f32 0.0, %v2954
        %v2956 = vpop.f32.mrb[0].mxu0
        %v2957 = vpop.f32.mrb[0].mxu0
        %v2958 = vadd.f32 0.0, %v2957
        %v2959 = vpop.f32.mrb[0].mxu0
        %2960 = vmatprep.mubr.bf16.mxu0 0
        %2961 = vmatmul.mubr.bf16.gmra.mrb[0].mxu0 %v2915
        %v2962 = vpop.f32.mrb[0].mxu0
        %v2963 = vadd.f32 0.0, %v2962
        %v2964 = vpop.f32.mrb[0].mxu0
        %v2965 = vpop.f32.mrb[0].mxu0
        %v2966 = vadd.f32 0.0, %v2965
        %v2967 = vpop.f32.mrb[0].mxu0
        %2968 = vdwg.mxu0
        %v2969 = vadd.f32 %v2885, %v2955
        %v2970 = vadd.f32 %v2886, %v2958
        %v2971 = vadd.f32 %v2887, %v2963
        %v2972 = vadd.f32 %v2888, %v2966
        %v2973 = vld [vmem:[#allocation2 + $0xa] sm:$0xff]
        %v2974 = vld [vmem:[#allocation2 + $0x12] sm:$0xff]
        %v2975 = vld [vmem:[#allocation2 + $0x2a] sm:$0xff]
        %v2976 = vld [vmem:[#allocation2 + $0x32] sm:$0xff]
        %v2977 = vpack.c.bf16 %v2974, %v2973
        %v2978 = vpack.c.bf16 %v2976, %v2975
        %s2979 = scalar_lea.vmem %s1055, 80
        %v2980 = vld [vmem:[%s2979] sm:$0xf]
        %v2981 = vld [vmem:[%s2979 + $0x4] sm:$0xf]
        %v2982 = vld [vmem:[%s2979 + $0x8] sm:$0xf]
        %v2983 = vld [vmem:[%s2979 + $0xc] sm:$0x7]
        %v2988 = vunpack.c.l.b16 %v2980
        %v2989 = vunpack.c.l.b16 %v2981
        %v2990 = vunpack.c.l.b16 %v2982
        %v2991 = vunpack.c.l.b16 %v2983
        %v2992 = vpack.c.b16 %v2989, %v2988
        %v2993 = vpack.c.b16 %v2991, %v2990
        %v2996 = vsel %vm1622, %v2977, 0
        %v2999 = vsel %vm1622, %v2978, 0
        %v3002 = vsel %vm1665, %v2993, 0
        %3004 = vmatprep.subr.bf16.mxu0 0
        %3005 = vmatpush1.bf16.msra.mxu0 %v2992
        %3006 = vmatprep.subr.bf16.mxu0 0
        %3007 = vmatpush1.bf16.msra.mxu0 %v3002
        %3008 = vmatprep.subr.bf16.mxu0 0
        %3009 = vmatpush1.bf16.msra.mxu0 0
        %3010 = vmatprep.subr.bf16.mxu0 0
        %3011 = vmatpush1.bf16.msra.mxu0 0
        %3012 = vmatprep.subr.bf16.mxu0 0
        %3013 = vmatpush1.bf16.msra.mxu0 0
        %3014 = vmatprep.subr.bf16.mxu0 0
        %3015 = vmatpush1.bf16.msra.mxu0 0
        %3016 = vmatprep.subr.bf16.mxu0 0
        %3017 = vmatpush1.bf16.msra.mxu0 0
        %3018 = vmatprep.subr.bf16.mxu0 0
        %3019 = vmatpush1.bf16.msra.mxu0 0
        %3020 = vmatprep.subr.bf16.mxu0 0
        %3021 = vmatpush1.bf16.msra.mxu0 0
        %3022 = vmatprep.subr.bf16.mxu0 0
        %3023 = vmatpush1.bf16.msra.mxu0 0
        %3024 = vmatprep.subr.bf16.mxu0 0
        %3025 = vmatpush1.bf16.msra.mxu0 0
        %3026 = vmatprep.subr.bf16.mxu0 0
        %3027 = vmatpush1.bf16.msra.mxu0 0
        %3028 = vmatprep.subr.bf16.mxu0 0
        %3029 = vmatpush1.bf16.msra.mxu0 0
        %3030 = vmatprep.subr.bf16.mxu0 0
        %3031 = vmatpush1.bf16.msra.mxu0 0
        %3032 = vmatprep.subr.bf16.mxu0 0
        %3033 = vmatpush1.bf16.msra.mxu0 0
        %3034 = vmatprep.subr.bf16.mxu0 0
        %3035 = vmatpush1.bf16.msra.mxu0 0
        %3036 = vmatprep.mubr.bf16.mxu0 0
        %3037 = vmatmul.mubr.bf16.gmra.mrb[0].mxu0 %v2996
        %v3038 = vpop.f32.mrb[0].mxu0
        %v3039 = vadd.f32 0.0, %v3038
        %v3040 = vpop.f32.mrb[0].mxu0
        %v3041 = vpop.f32.mrb[0].mxu0
        %v3042 = vadd.f32 0.0, %v3041
        %v3043 = vpop.f32.mrb[0].mxu0
        %3044 = vmatprep.mubr.bf16.mxu0 0
        %3045 = vmatmul.mubr.bf16.gmra.mrb[0].mxu0 %v2999
        %v3046 = vpop.f32.mrb[0].mxu0
        %v3047 = vadd.f32 0.0, %v3046
        %v3048 = vpop.f32.mrb[0].mxu0
        %v3049 = vpop.f32.mrb[0].mxu0
        %v3050 = vadd.f32 0.0, %v3049
        %v3051 = vpop.f32.mrb[0].mxu0
        %3052 = vdwg.mxu0
        %v3053 = vadd.f32 %v2969, %v3039
        %v3054 = vadd.f32 %v2970, %v3042
        %v3055 = vadd.f32 %v2971, %v3047
        %v3056 = vadd.f32 %v2972, %v3050
        %v3057 = vld [vmem:[#allocation2 + $0xb] sm:$0xff]
        %v3058 = vld [vmem:[#allocation2 + $0x13] sm:$0xff]
        %v3059 = vld [vmem:[#allocation2 + $0x2b] sm:$0xff]
        %v3060 = vld [vmem:[#allocation2 + $0x33] sm:$0xff]
        %v3061 = vpack.c.bf16 %v3058, %v3057
        %v3062 = vpack.c.bf16 %v3060, %v3059
        %s3063 = scalar_lea.vmem %s1055, 96
        %v3064 = vld [vmem:[%s3063] sm:$0xf]
        %v3065 = vld [vmem:[%s3063 + $0x4] sm:$0xf]
        %v3066 = vld [vmem:[%s3063 + $0x8] sm:$0xf]
        %v3067 = vld [vmem:[%s3063 + $0xc] sm:$0x7]
        %v3072 = vunpack.c.l.b16 %v3064
        %v3073 = vunpack.c.l.b16 %v3065
        %v3074 = vunpack.c.l.b16 %v3066
        %v3075 = vunpack.c.l.b16 %v3067
        %v3076 = vpack.c.b16 %v3073, %v3072
        %v3077 = vpack.c.b16 %v3075, %v3074
        %v3080 = vsel %vm1622, %v3061, 0
        %v3083 = vsel %vm1622, %v3062, 0
        %v3086 = vsel %vm1665, %v3077, 0
        %3088 = vmatprep.subr.bf16.mxu0 0
        %3089 = vmatpush1.bf16.msra.mxu0 %v3076
        %3090 = vmatprep.subr.bf16.mxu0 0
        %3091 = vmatpush1.bf16.msra.mxu0 %v3086
        %3092 = vmatprep.subr.bf16.mxu0 0
        %3093 = vmatpush1.bf16.msra.mxu0 0
        %3094 = vmatprep.subr.bf16.mxu0 0
        %3095 = vmatpush1.bf16.msra.mxu0 0
        %3096 = vmatprep.subr.bf16.mxu0 0
        %3097 = vmatpush1.bf16.msra.mxu0 0
        %3098 = vmatprep.subr.bf16.mxu0 0
        %3099 = vmatpush1.bf16.msra.mxu0 0
        %3100 = vmatprep.subr.bf16.mxu0 0
        %3101 = vmatpush1.bf16.msra.mxu0 0
        %3102 = vmatprep.subr.bf16.mxu0 0
        %3103 = vmatpush1.bf16.msra.mxu0 0
        %3104 = vmatprep.subr.bf16.mxu0 0
        %3105 = vmatpush1.bf16.msra.mxu0 0
        %3106 = vmatprep.subr.bf16.mxu0 0
        %3107 = vmatpush1.bf16.msra.mxu0 0
        %3108 = vmatprep.subr.bf16.mxu0 0
        %3109 = vmatpush1.bf16.msra.mxu0 0
        %3110 = vmatprep.subr.bf16.mxu0 0
        %3111 = vmatpush1.bf16.msra.mxu0 0
        %3112 = vmatprep.subr.bf16.mxu0 0
        %3113 = vmatpush1.bf16.msra.mxu0 0
        %3114 = vmatprep.subr.bf16.mxu0 0
        %3115 = vmatpush1.bf16.msra.mxu0 0
        %3116 = vmatprep.subr.bf16.mxu0 0
        %3117 = vmatpush1.bf16.msra.mxu0 0
        %3118 = vmatprep.subr.bf16.mxu0 0
        %3119 = vmatpush1.bf16.msra.mxu0 0
        %3120 = vmatprep.mubr.bf16.mxu0 0
        %3121 = vmatmul.mubr.bf16.gmra.mrb[0].mxu0 %v3080
        %v3122 = vpop.f32.mrb[0].mxu0
        %v3123 = vadd.f32 0.0, %v3122
        %v3124 = vpop.f32.mrb[0].mxu0
        %v3125 = vpop.f32.mrb[0].mxu0
        %v3126 = vadd.f32 0.0, %v3125
        %v3127 = vpop.f32.mrb[0].mxu0
        %3128 = vmatprep.mubr.bf16.mxu0 0
        %3129 = vmatmul.mubr.bf16.gmra.mrb[0].mxu0 %v3083
        %v3130 = vpop.f32.mrb[0].mxu0
        %v3131 = vadd.f32 0.0, %v3130
        %v3132 = vpop.f32.mrb[0].mxu0
        %v3133 = vpop.f32.mrb[0].mxu0
        %v3134 = vadd.f32 0.0, %v3133
        %v3135 = vpop.f32.mrb[0].mxu0
        %3136 = vdwg.mxu0
        %v3137 = vadd.f32 %v3053, %v3123
        %v3138 = vadd.f32 %v3054, %v3126
        %v3139 = vadd.f32 %v3055, %v3131
        %v3140 = vadd.f32 %v3056, %v3134
        %v3141 = vld [vmem:[%s844] sm:$0x1]
        %v3143 = vlaneseq
        %v3144 = vshrl.u32 %v3143, 7
        %v3145 = vsub.s32 0, %v3144
        %v3146 = vrot.slane %v3141, %v3145
        %v3148 = vadd.f32 %v3137, %v3146
        %v3149 = vadd.f32 %v3138, %v3146
        %v3150 = vadd.f32 %v3139, %v3146
        %v3151 = vadd.f32 %v3140, %v3146
        %v3152 = vmax.f32 %v3148, 0.0
        %v3153 = vmax.f32 %v3149, 0.0
        %v3154 = vmax.f32 %v3150, 0.0
        %v3155 = vmax.f32 %v3151, 0.0
        %vm3156 = vcmask 326656
        %3157 = vst.msk [vmem:[#allocation2 + $0x8] sm:$0xff] %vm3156, %v3152
        %3158 = vst.msk [vmem:[#allocation2 + $0x10] sm:$0xff] %vm3156, %v3153
        %3159 = vst.msk [vmem:[#allocation2 + $0x28] sm:$0xff] %vm3156, %v3154
        %3160 = vst.msk [vmem:[#allocation2 + $0x30] sm:$0xff] %vm3156, %v3155
        %v3161 = vld [vmem:[#allocation2 + $0x6] sm:$0xff]
        %v3162 = vld [vmem:[#allocation2 + $0xe] sm:$0xff]
        %v3163 = vld [vmem:[#allocation2 + $0x26] sm:$0xff]
        %v3164 = vld [vmem:[#allocation2 + $0x2e] sm:$0xff]
        %v3165 = vpack.c.bf16 %v3162, %v3161
        %v3166 = vpack.c.bf16 %v3164, %v3163
        %v3167 = vld [vmem:[%s853] sm:$0xf]
        %v3168 = vld [vmem:[%s853 + $0x4] sm:$0xf]
        %v3169 = vld [vmem:[%s853 + $0x8] sm:$0xf]
        %v3170 = vld [vmem:[%s853 + $0xc] sm:$0xf]
        %v3171 = vld [vmem:[%s853 + $0x10] sm:$0xf]
        %v3172 = vld [vmem:[#allocation2 + $0x7] sm:$0xff]
        %v3173 = vld [vmem:[#allocation2 + $0xf] sm:$0xff]
        %v3174 = vld [vmem:[#allocation2 + $0x27] sm:$0xff]
        %v3175 = vld [vmem:[#allocation2 + $0x2f] sm:$0xff]
        %v3176 = vpack.c.bf16 %v3173, %v3172
        %v3177 = vpack.c.bf16 %v3175, %v3174
        %s3178 = scalar_lea.vmem %s853, 20 [#allocation11]
        %v3179 = vld [vmem:[%s3178] sm:$0xf]
        %v3180 = vld [vmem:[%s3178 + $0x4] sm:$0xf]
        %v3181 = vld [vmem:[%s3178 + $0x8] sm:$0xf]
        %v3182 = vld [vmem:[%s3178 + $0xc] sm:$0xf]
        %v3183 = vld [vmem:[%s3178 + $0x10] sm:$0xf]
        %v3189 = vunpack.c.l.b16 %v3179
        %v3190 = vunpack.c.l.b16 %v3180
        %v3191 = vunpack.c.l.b16 %v3181
        %v3192 = vunpack.c.l.b16 %v3182
        %v3193 = vunpack.c.l.b16 %v3183
        %v3194 = vpack.c.b16 %v3190, %v3189
        %v3195 = vpack.c.b16 %v3192, %v3191
        %v3196 = vpack.c.b16 %v3193, %v3193
        %v3200 = vsel %vm3156, %v3176, 0
        %v3203 = vsel %vm3156, %v3177, 0
        %vm3205 = vcmask 1043456
        %v3207 = vsel %vm3205, %v3196, 0
        %3209 = vmatprep.subr.bf16.mxu0 0
        %3210 = vmatpush1.bf16.msra.mxu0 %v3194
        %3211 = vmatprep.subr.bf16.mxu0 0
        %3212 = vmatpush1.bf16.msra.mxu0 %v3195
        %3213 = vmatprep.subr.bf16.mxu0 0
        %3214 = vmatpush1.bf16.msra.mxu0 %v3207
        %3215 = vmatprep.subr.bf16.mxu0 0
        %3216 = vmatpush1.bf16.msra.mxu0 0
        %3217 = vmatprep.subr.bf16.mxu0 0
        %3218 = vmatpush1.bf16.msra.mxu0 0
        %3219 = vmatprep.subr.bf16.mxu0 0
        %3220 = vmatpush1.bf16.msra.mxu0 0
        %3221 = vmatprep.subr.bf16.mxu0 0
        %3222 = vmatpush1.bf16.msra.mxu0 0
        %3223 = vmatprep.subr.bf16.mxu0 0
        %3224 = vmatpush1.bf16.msra.mxu0 0
        %3225 = vmatprep.subr.bf16.mxu0 0
        %3226 = vmatpush1.bf16.msra.mxu0 0
        %3227 = vmatprep.subr.bf16.mxu0 0
        %3228 = vmatpush1.bf16.msra.mxu0 0
        %3229 = vmatprep.subr.bf16.mxu0 0
        %3230 = vmatpush1.bf16.msra.mxu0 0
        %3231 = vmatprep.subr.bf16.mxu0 0
        %3232 = vmatpush1.bf16.msra.mxu0 0
        %3233 = vmatprep.subr.bf16.mxu0 0
        %3234 = vmatpush1.bf16.msra.mxu0 0
        %3235 = vmatprep.subr.bf16.mxu0 0
        %3236 = vmatpush1.bf16.msra.mxu0 0
        %3237 = vmatprep.subr.bf16.mxu0 0
        %3238 = vmatpush1.bf16.msra.mxu0 0
        %3239 = vmatprep.subr.bf16.mxu0 0
        %3240 = vmatpush1.bf16.msra.mxu0 0
        %3241 = vmatprep.mubr.bf16.mxu0 0
        %3242 = vmatmul.mubr.bf16.gmra.mrb[0].mxu0 %v3200
        %v3243 = vpop.f32.mrb[0].mxu0
        %v3244 = vadd.f32 0.0, %v3243
        %v3245 = vpop.f32.mrb[0].mxu0
        %v3246 = vpop.f32.mrb[0].mxu0
        %v3247 = vadd.f32 0.0, %v3246
        %v3248 = vpop.f32.mrb[0].mxu0
        %3249 = vmatprep.mubr.bf16.mxu0 0
        %3250 = vmatmul.mubr.bf16.gmra.mrb[0].mxu0 %v3203
        %v3251 = vpop.f32.mrb[0].mxu0
        %v3252 = vadd.f32 0.0, %v3251
        %v3253 = vpop.f32.mrb[0].mxu0
        %v3254 = vpop.f32.mrb[0].mxu0
        %v3255 = vadd.f32 0.0, %v3254
        %v3256 = vpop.f32.mrb[0].mxu0
        %3257 = vdwg.mxu0
        %v3263 = vunpack.c.l.b16 %v3167
        %v3264 = vunpack.c.l.b16 %v3168
        %v3265 = vunpack.c.l.b16 %v3169
        %v3266 = vunpack.c.l.b16 %v3170
        %v3267 = vunpack.c.l.b16 %v3171
        %v3268 = vpack.c.b16 %v3264, %v3263
        %v3269 = vpack.c.b16 %v3266, %v3265
        %v3270 = vpack.c.b16 %v3267, %v3267
        %v3274 = vsel %vm3156, %v3165, 0
        %v3277 = vsel %vm3156, %v3166, 0
        %v3280 = vsel %vm3205, %v3270, 0
        %3282 = vmatprep.subr.bf16.mxu0 0
        %3283 = vmatpush1.bf16.msra.mxu0 %v3268
        %3284 = vmatprep.subr.bf16.mxu0 0
        %3285 = vmatpush1.bf16.msra.mxu0 %v3269
        %3286 = vmatprep.subr.bf16.mxu0 0
        %3287 = vmatpush1.bf16.msra.mxu0 %v3280
        %3288 = vmatprep.subr.bf16.mxu0 0
        %3289 = vmatpush1.bf16.msra.mxu0 0
        %3290 = vmatprep.subr.bf16.mxu0 0
        %3291 = vmatpush1.bf16.msra.mxu0 0
        %3292 = vmatprep.subr.bf16.mxu0 0
        %3293 = vmatpush1.bf16.msra.mxu0 0
        %3294 = vmatprep.subr.bf16.mxu0 0
        %3295 = vmatpush1.bf16.msra.mxu0 0
        %3296 = vmatprep.subr.bf16.mxu0 0
        %3297 = vmatpush1.bf16.msra.mxu0 0
        %3298 = vmatprep.subr.bf16.mxu0 0
        %3299 = vmatpush1.bf16.msra.mxu0 0
        %3300 = vmatprep.subr.bf16.mxu0 0
        %3301 = vmatpush1.bf16.msra.mxu0 0
        %3302 = vmatprep.subr.bf16.mxu0 0
        %3303 = vmatpush1.bf16.msra.mxu0 0
        %3304 = vmatprep.subr.bf16.mxu0 0
        %3305 = vmatpush1.bf16.msra.mxu0 0
        %3306 = vmatprep.subr.bf16.mxu0 0
        %3307 = vmatpush1.bf16.msra.mxu0 0
        %3308 = vmatprep.subr.bf16.mxu0 0
        %3309 = vmatpush1.bf16.msra.mxu0 0
        %3310 = vmatprep.subr.bf16.mxu0 0
        %3311 = vmatpush1.bf16.msra.mxu0 0
        %3312 = vmatprep.subr.bf16.mxu0 0
        %3313 = vmatpush1.bf16.msra.mxu0 0
        %3314 = vmatprep.mubr.bf16.mxu0 0
        %3315 = vmatmul.mubr.bf16.gmra.mrb[0].mxu0 %v3274
        %v3316 = vpop.f32.mrb[0].mxu0
        %v3317 = vadd.f32 %v3244, %v3316
        %v3318 = vpop.f32.mrb[0].mxu0
        %v3319 = vpop.f32.mrb[0].mxu0
        %v3320 = vadd.f32 %v3247, %v3319
        %v3321 = vpop.f32.mrb[0].mxu0
        %3322 = vmatprep.mubr.bf16.mxu0 0
        %3323 = vmatmul.mubr.bf16.gmra.mrb[0].mxu0 %v3277
        %v3324 = vpop.f32.mrb[0].mxu0
        %v3325 = vadd.f32 %v3252, %v3324
        %v3326 = vpop.f32.mrb[0].mxu0
        %v3327 = vpop.f32.mrb[0].mxu0
        %v3328 = vadd.f32 %v3255, %v3327
        %v3329 = vpop.f32.mrb[0].mxu0
        %3330 = vdwg.mxu0
        %v3331 = vld [vmem:[#allocation2 + $0x8] sm:$0xff]
        %v3332 = vld [vmem:[#allocation2 + $0x10] sm:$0xff]
        %v3333 = vld [vmem:[#allocation2 + $0x28] sm:$0xff]
        %v3334 = vld [vmem:[#allocation2 + $0x30] sm:$0xff]
        %v3335 = vpack.c.bf16 %v3332, %v3331
        %v3336 = vpack.c.bf16 %v3334, %v3333
        %s3337 = scalar_lea.vmem %s853, 40 [#allocation11]
        %v3338 = vld [vmem:[%s3337] sm:$0xf]
        %v3339 = vld [vmem:[%s3337 + $0x4] sm:$0xf]
        %v3340 = vld [vmem:[%s3337 + $0x8] sm:$0xf]
        %v3341 = vld [vmem:[%s3337 + $0xc] sm:$0xf]
        %v3342 = vld [vmem:[%s3337 + $0x10] sm:$0xf]
        %v3348 = vunpack.c.l.b16 %v3338
        %v3349 = vunpack.c.l.b16 %v3339
        %v3350 = vunpack.c.l.b16 %v3340
        %v3351 = vunpack.c.l.b16 %v3341
        %v3352 = vunpack.c.l.b16 %v3342
        %v3353 = vpack.c.b16 %v3349, %v3348
        %v3354 = vpack.c.b16 %v3351, %v3350
        %v3355 = vpack.c.b16 %v3352, %v3352
        %v3359 = vsel %vm3156, %v3335, 0
        %v3362 = vsel %vm3156, %v3336, 0
        %v3365 = vsel %vm3205, %v3355, 0
        %3367 = vmatprep.subr.bf16.mxu0 0
        %3368 = vmatpush1.bf16.msra.mxu0 %v3353
        %3369 = vmatprep.subr.bf16.mxu0 0
        %3370 = vmatpush1.bf16.msra.mxu0 %v3354
        %3371 = vmatprep.subr.bf16.mxu0 0
        %3372 = vmatpush1.bf16.msra.mxu0 %v3365
        %3373 = vmatprep.subr.bf16.mxu0 0
        %3374 = vmatpush1.bf16.msra.mxu0 0
        %3375 = vmatprep.subr.bf16.mxu0 0
        %3376 = vmatpush1.bf16.msra.mxu0 0
        %3377 = vmatprep.subr.bf16.mxu0 0
        %3378 = vmatpush1.bf16.msra.mxu0 0
        %3379 = vmatprep.subr.bf16.mxu0 0
        %3380 = vmatpush1.bf16.msra.mxu0 0
        %3381 = vmatprep.subr.bf16.mxu0 0
        %3382 = vmatpush1.bf16.msra.mxu0 0
        %3383 = vmatprep.subr.bf16.mxu0 0
        %3384 = vmatpush1.bf16.msra.mxu0 0
        %3385 = vmatprep.subr.bf16.mxu0 0
        %3386 = vmatpush1.bf16.msra.mxu0 0
        %3387 = vmatprep.subr.bf16.mxu0 0
        %3388 = vmatpush1.bf16.msra.mxu0 0
        %3389 = vmatprep.subr.bf16.mxu0 0
        %3390 = vmatpush1.bf16.msra.mxu0 0
        %3391 = vmatprep.subr.bf16.mxu0 0
        %3392 = vmatpush1.bf16.msra.mxu0 0
        %3393 = vmatprep.subr.bf16.mxu0 0
        %3394 = vmatpush1.bf16.msra.mxu0 0
        %3395 = vmatprep.subr.bf16.mxu0 0
        %3396 = vmatpush1.bf16.msra.mxu0 0
        %3397 = vmatprep.subr.bf16.mxu0 0
        %3398 = vmatpush1.bf16.msra.mxu0 0
        %3399 = vmatprep.mubr.bf16.mxu0 0
        %3400 = vmatmul.mubr.bf16.gmra.mrb[0].mxu0 %v3359
        %v3401 = vpop.f32.mrb[0].mxu0
        %v3402 = vadd.f32 0.0, %v3401
        %v3403 = vpop.f32.mrb[0].mxu0
        %v3404 = vpop.f32.mrb[0].mxu0
        %v3405 = vadd.f32 0.0, %v3404
        %v3406 = vpop.f32.mrb[0].mxu0
        %3407 = vmatprep.mubr.bf16.mxu0 0
        %3408 = vmatmul.mubr.bf16.gmra.mrb[0].mxu0 %v3362
        %v3409 = vpop.f32.mrb[0].mxu0
        %v3410 = vadd.f32 0.0, %v3409
        %v3411 = vpop.f32.mrb[0].mxu0
        %v3412 = vpop.f32.mrb[0].mxu0
        %v3413 = vadd.f32 0.0, %v3412
        %v3414 = vpop.f32.mrb[0].mxu0
        %3415 = vdwg.mxu0
        %v3416 = vadd.f32 %v3317, %v3402
        %v3417 = vadd.f32 %v3320, %v3405
        %v3418 = vadd.f32 %v3325, %v3410
        %v3419 = vadd.f32 %v3328, %v3413
        %v3420 = vld [vmem:[#allocation2 + $0x9] sm:$0xff]
        %v3421 = vld [vmem:[#allocation2 + $0x11] sm:$0xff]
        %v3422 = vld [vmem:[#allocation2 + $0x29] sm:$0xff]
        %v3423 = vld [vmem:[#allocation2 + $0x31] sm:$0xff]
        %v3424 = vpack.c.bf16 %v3421, %v3420
        %v3425 = vpack.c.bf16 %v3423, %v3422
        %s3426 = scalar_lea.vmem %s853, 60 [#allocation11]
        %v3427 = vld [vmem:[%s3426] sm:$0xf]
        %v3428 = vld [vmem:[%s3426 + $0x4] sm:$0xf]
        %v3429 = vld [vmem:[%s3426 + $0x8] sm:$0xf]
        %v3430 = vld [vmem:[%s3426 + $0xc] sm:$0xf]
        %v3431 = vld [vmem:[%s3426 + $0x10] sm:$0xf]
        %v3437 = vunpack.c.l.b16 %v3427
        %v3438 = vunpack.c.l.b16 %v3428
        %v3439 = vunpack.c.l.b16 %v3429
        %v3440 = vunpack.c.l.b16 %v3430
        %v3441 = vunpack.c.l.b16 %v3431
        %v3442 = vpack.c.b16 %v3438, %v3437
        %v3443 = vpack.c.b16 %v3440, %v3439
        %v3444 = vpack.c.b16 %v3441, %v3441
        %v3448 = vsel %vm3156, %v3424, 0
        %v3451 = vsel %vm3156, %v3425, 0
        %v3454 = vsel %vm3205, %v3444, 0
        %3456 = vmatprep.subr.bf16.mxu0 0
        %3457 = vmatpush1.bf16.msra.mxu0 %v3442
        %3458 = vmatprep.subr.bf16.mxu0 0
        %3459 = vmatpush1.bf16.msra.mxu0 %v3443
        %3460 = vmatprep.subr.bf16.mxu0 0
        %3461 = vmatpush1.bf16.msra.mxu0 %v3454
        %3462 = vmatprep.subr.bf16.mxu0 0
        %3463 = vmatpush1.bf16.msra.mxu0 0
        %3464 = vmatprep.subr.bf16.mxu0 0
        %3465 = vmatpush1.bf16.msra.mxu0 0
        %3466 = vmatprep.subr.bf16.mxu0 0
        %3467 = vmatpush1.bf16.msra.mxu0 0
        %3468 = vmatprep.subr.bf16.mxu0 0
        %3469 = vmatpush1.bf16.msra.mxu0 0
        %3470 = vmatprep.subr.bf16.mxu0 0
        %3471 = vmatpush1.bf16.msra.mxu0 0
        %3472 = vmatprep.subr.bf16.mxu0 0
        %3473 = vmatpush1.bf16.msra.mxu0 0
        %3474 = vmatprep.subr.bf16.mxu0 0
        %3475 = vmatpush1.bf16.msra.mxu0 0
        %3476 = vmatprep.subr.bf16.mxu0 0
        %3477 = vmatpush1.bf16.msra.mxu0 0
        %3478 = vmatprep.subr.bf16.mxu0 0
        %3479 = vmatpush1.bf16.msra.mxu0 0
        %3480 = vmatprep.subr.bf16.mxu0 0
        %3481 = vmatpush1.bf16.msra.mxu0 0
        %3482 = vmatprep.subr.bf16.mxu0 0
        %3483 = vmatpush1.bf16.msra.mxu0 0
        %3484 = vmatprep.subr.bf16.mxu0 0
        %3485 = vmatpush1.bf16.msra.mxu0 0
        %3486 = vmatprep.subr.bf16.mxu0 0
        %3487 = vmatpush1.bf16.msra.mxu0 0
        %3488 = vmatprep.mubr.bf16.mxu0 0
        %3489 = vmatmul.mubr.bf16.gmra.mrb[0].mxu0 %v3448
        %v3490 = vpop.f32.mrb[0].mxu0
        %v3491 = vadd.f32 0.0, %v3490
        %v3492 = vpop.f32.mrb[0].mxu0
        %v3493 = vpop.f32.mrb[0].mxu0
        %v3494 = vadd.f32 0.0, %v3493
        %v3495 = vpop.f32.mrb[0].mxu0
        %3496 = vmatprep.mubr.bf16.mxu0 0
        %3497 = vmatmul.mubr.bf16.gmra.mrb[0].mxu0 %v3451
        %v3498 = vpop.f32.mrb[0].mxu0
        %v3499 = vadd.f32 0.0, %v3498
        %v3500 = vpop.f32.mrb[0].mxu0
        %v3501 = vpop.f32.mrb[0].mxu0
        %v3502 = vadd.f32 0.0, %v3501
        %v3503 = vpop.f32.mrb[0].mxu0
        %3504 = vdwg.mxu0
        %v3505 = vadd.f32 %v3416, %v3491
        %v3506 = vadd.f32 %v3417, %v3494
        %v3507 = vadd.f32 %v3418, %v3499
        %v3508 = vadd.f32 %v3419, %v3502
        %v3509 = vld [vmem:[#allocation2 + $0xa] sm:$0xff]
        %v3510 = vld [vmem:[#allocation2 + $0x12] sm:$0xff]
        %v3511 = vld [vmem:[#allocation2 + $0x2a] sm:$0xff]
        %v3512 = vld [vmem:[#allocation2 + $0x32] sm:$0xff]
        %v3513 = vpack.c.bf16 %v3510, %v3509
        %v3514 = vpack.c.bf16 %v3512, %v3511
        %s3515 = scalar_lea.vmem %s853, 80 [#allocation11]
        %v3516 = vld [vmem:[%s3515] sm:$0xf]
        %v3517 = vld [vmem:[%s3515 + $0x4] sm:$0xf]
        %v3518 = vld [vmem:[%s3515 + $0x8] sm:$0xf]
        %v3519 = vld [vmem:[%s3515 + $0xc] sm:$0xf]
        %v3520 = vld [vmem:[%s3515 + $0x10] sm:$0xf]
        %v3526 = vunpack.c.l.b16 %v3516
        %v3527 = vunpack.c.l.b16 %v3517
        %v3528 = vunpack.c.l.b16 %v3518
        %v3529 = vunpack.c.l.b16 %v3519
        %v3530 = vunpack.c.l.b16 %v3520
        %v3531 = vpack.c.b16 %v3527, %v3526
        %v3532 = vpack.c.b16 %v3529, %v3528
        %v3533 = vpack.c.b16 %v3530, %v3530
        %v3537 = vsel %vm3156, %v3513, 0
        %v3540 = vsel %vm3156, %v3514, 0
        %v3543 = vsel %vm3205, %v3533, 0
        %3545 = vmatprep.subr.bf16.mxu0 0
        %3546 = vmatpush1.bf16.msra.mxu0 %v3531
        %3547 = vmatprep.subr.bf16.mxu0 0
        %3548 = vmatpush1.bf16.msra.mxu0 %v3532
        %3549 = vmatprep.subr.bf16.mxu0 0
        %3550 = vmatpush1.bf16.msra.mxu0 %v3543
        %3551 = vmatprep.subr.bf16.mxu0 0
        %3552 = vmatpush1.bf16.msra.mxu0 0
        %3553 = vmatprep.subr.bf16.mxu0 0
        %3554 = vmatpush1.bf16.msra.mxu0 0
        %3555 = vmatprep.subr.bf16.mxu0 0
        %3556 = vmatpush1.bf16.msra.mxu0 0
        %3557 = vmatprep.subr.bf16.mxu0 0
        %3558 = vmatpush1.bf16.msra.mxu0 0
        %3559 = vmatprep.subr.bf16.mxu0 0
        %3560 = vmatpush1.bf16.msra.mxu0 0
        %3561 = vmatprep.subr.bf16.mxu0 0
        %3562 = vmatpush1.bf16.msra.mxu0 0
        %3563 = vmatprep.subr.bf16.mxu0 0
        %3564 = vmatpush1.bf16.msra.mxu0 0
        %3565 = vmatprep.subr.bf16.mxu0 0
        %3566 = vmatpush1.bf16.msra.mxu0 0
        %3567 = vmatprep.subr.bf16.mxu0 0
        %3568 = vmatpush1.bf16.msra.mxu0 0
        %3569 = vmatprep.subr.bf16.mxu0 0
        %3570 = vmatpush1.bf16.msra.mxu0 0
        %3571 = vmatprep.subr.bf16.mxu0 0
        %3572 = vmatpush1.bf16.msra.mxu0 0
        %3573 = vmatprep.subr.bf16.mxu0 0
        %3574 = vmatpush1.bf16.msra.mxu0 0
        %3575 = vmatprep.subr.bf16.mxu0 0
        %3576 = vmatpush1.bf16.msra.mxu0 0
        %3577 = vmatprep.mubr.bf16.mxu0 0
        %3578 = vmatmul.mubr.bf16.gmra.mrb[0].mxu0 %v3537
        %v3579 = vpop.f32.mrb[0].mxu0
        %v3580 = vadd.f32 0.0, %v3579
        %v3581 = vpop.f32.mrb[0].mxu0
        %v3582 = vpop.f32.mrb[0].mxu0
        %v3583 = vadd.f32 0.0, %v3582
        %v3584 = vpop.f32.mrb[0].mxu0
        %3585 = vmatprep.mubr.bf16.mxu0 0
        %3586 = vmatmul.mubr.bf16.gmra.mrb[0].mxu0 %v3540
        %v3587 = vpop.f32.mrb[0].mxu0
        %v3588 = vadd.f32 0.0, %v3587
        %v3589 = vpop.f32.mrb[0].mxu0
        %v3590 = vpop.f32.mrb[0].mxu0
        %v3591 = vadd.f32 0.0, %v3590
        %v3592 = vpop.f32.mrb[0].mxu0
        %3593 = vdwg.mxu0
        %v3594 = vadd.f32 %v3505, %v3580
        %v3595 = vadd.f32 %v3506, %v3583
        %v3596 = vadd.f32 %v3507, %v3588
        %v3597 = vadd.f32 %v3508, %v3591
        %v3598 = vld [vmem:[%s861] sm:$0x1]
        %v3600 = vlaneseq
        %v3601 = vshrl.u32 %v3600, 7
        %v3602 = vsub.s32 0, %v3601
        %v3603 = vrot.slane %v3598, %v3602
        %v3605 = vadd.f32 %v3594, %v3603
        %v3606 = vadd.f32 %v3595, %v3603
        %v3607 = vadd.f32 %v3596, %v3603
        %v3608 = vadd.f32 %v3597, %v3603
        %v3609 = vmax.f32 %v3605, 0.0
        %v3610 = vmax.f32 %v3606, 0.0
        %v3611 = vmax.f32 %v3607, 0.0
        %v3612 = vmax.f32 %v3608, 0.0
        %vm3613 = vcmask 408576
        %3614 = vst.msk [vmem:[#allocation2 + $0x8] sm:$0xff] %vm3613, %v3609
        %3615 = vst.msk [vmem:[#allocation2 + $0x10] sm:$0xff] %vm3613, %v3610
        %3616 = vst.msk [vmem:[#allocation2 + $0x28] sm:$0xff] %vm3613, %v3611
        %3617 = vst.msk [vmem:[#allocation2 + $0x30] sm:$0xff] %vm3613, %v3612
        %v3618 = vld [vmem:[#allocation2 + $0x6] sm:$0xff]
        %v3619 = vld [vmem:[#allocation2 + $0xe] sm:$0xff]
        %v3620 = vld [vmem:[#allocation2 + $0x26] sm:$0xff]
        %v3621 = vld [vmem:[#allocation2 + $0x2e] sm:$0xff]
        %v3622 = vpack.c.bf16 %v3619, %v3618
        %v3623 = vpack.c.bf16 %v3621, %v3620
        %v3624 = vld [vmem:[%s1060] sm:$0xf]
        %v3625 = vld [vmem:[%s1060 + $0x4] sm:$0xf]
        %v3626 = vld [vmem:[%s1060 + $0x8] sm:$0xf]
        %v3627 = vld [vmem:[%s1060 + $0xc] sm:$0xf]
        %v3628 = vld [vmem:[%s1060 + $0x10] sm:$0xf]
        %v3629 = vld [vmem:[%s1060 + $0x14] sm:$0xf]
        %v3630 = vld [vmem:[%s1060 + $0x18] sm:$0x1]
        %v3631 = vld [vmem:[#allocation2 + $0x7] sm:$0xff]
        %v3632 = vld [vmem:[#allocation2 + $0xf] sm:$0xff]
        %v3633 = vld [vmem:[#allocation2 + $0x27] sm:$0xff]
        %v3634 = vld [vmem:[#allocation2 + $0x2f] sm:$0xff]
        %v3635 = vpack.c.bf16 %v3632, %v3631
        %v3636 = vpack.c.bf16 %v3634, %v3633
        %s3637 = scalar_lea.vmem %s1060, 28
        %v3638 = vld [vmem:[%s3637] sm:$0xf]
        %v3639 = vld [vmem:[%s3637 + $0x4] sm:$0xf]
        %v3640 = vld [vmem:[%s3637 + $0x8] sm:$0xf]
        %v3641 = vld [vmem:[%s3637 + $0xc] sm:$0xf]
        %v3642 = vld [vmem:[%s3637 + $0x10] sm:$0xf]
        %v3643 = vld [vmem:[%s3637 + $0x14] sm:$0xf]
        %v3644 = vld [vmem:[%s3637 + $0x18] sm:$0x1]
        %v3652 = vunpack.c.l.b16 %v3638
        %v3653 = vunpack.c.l.b16 %v3639
        %v3654 = vunpack.c.l.b16 %v3640
        %v3655 = vunpack.c.l.b16 %v3641
        %v3656 = vunpack.c.l.b16 %v3642
        %v3657 = vunpack.c.l.b16 %v3643
        %v3658 = vunpack.c.l.b16 %v3644
        %v3659 = vpack.c.b16 %v3653, %v3652
        %v3660 = vpack.c.b16 %v3655, %v3654
        %v3661 = vpack.c.b16 %v3657, %v3656
        %v3662 = vpack.c.b16 %v3658, %v3658
        %v3667 = vsel %vm3613, %v3635, 0
        %v3670 = vsel %vm3613, %v3636, 0
        %vm3672 = vcmask 1040384
        %v3674 = vsel %vm3672, %v3662, 0
        %3676 = vmatprep.subr.bf16.mxu0 0
        %3677 = vmatpush1.bf16.msra.mxu0 %v3659
        %3678 = vmatprep.subr.bf16.mxu0 0
        %3679 = vmatpush1.bf16.msra.mxu0 %v3660
        %3680 = vmatprep.subr.bf16.mxu0 0
        %3681 = vmatpush1.bf16.msra.mxu0 %v3661
        %3682 = vmatprep.subr.bf16.mxu0 0
        %3683 = vmatpush1.bf16.msra.mxu0 %v3674
        %3684 = vmatprep.subr.bf16.mxu0 0
        %3685 = vmatpush1.bf16.msra.mxu0 0
        %3686 = vmatprep.subr.bf16.mxu0 0
        %3687 = vmatpush1.bf16.msra.mxu0 0
        %3688 = vmatprep.subr.bf16.mxu0 0
        %3689 = vmatpush1.bf16.msra.mxu0 0
        %3690 = vmatprep.subr.bf16.mxu0 0
        %3691 = vmatpush1.bf16.msra.mxu0 0
        %3692 = vmatprep.subr.bf16.mxu0 0
        %3693 = vmatpush1.bf16.msra.mxu0 0
        %3694 = vmatprep.subr.bf16.mxu0 0
        %3695 = vmatpush1.bf16.msra.mxu0 0
        %3696 = vmatprep.subr.bf16.mxu0 0
        %3697 = vmatpush1.bf16.msra.mxu0 0
        %3698 = vmatprep.subr.bf16.mxu0 0
        %3699 = vmatpush1.bf16.msra.mxu0 0
        %3700 = vmatprep.subr.bf16.mxu0 0
        %3701 = vmatpush1.bf16.msra.mxu0 0
        %3702 = vmatprep.subr.bf16.mxu0 0
        %3703 = vmatpush1.bf16.msra.mxu0 0
        %3704 = vmatprep.subr.bf16.mxu0 0
        %3705 = vmatpush1.bf16.msra.mxu0 0
        %3706 = vmatprep.subr.bf16.mxu0 0
        %3707 = vmatpush1.bf16.msra.mxu0 0
        %3708 = vmatprep.mubr.bf16.mxu0 0
        %3709 = vmatmul.mubr.bf16.gmra.mrb[0].mxu0 %v3667
        %v3710 = vpop.f32.mrb[0].mxu0
        %v3711 = vadd.f32 0.0, %v3710
        %v3712 = vpop.f32.mrb[0].mxu0
        %v3713 = vpop.f32.mrb[0].mxu0
        %v3714 = vadd.f32 0.0, %v3713
        %v3715 = vpop.f32.mrb[0].mxu0
        %3716 = vmatprep.mubr.bf16.mxu0 0
        %3717 = vmatmul.mubr.bf16.gmra.mrb[0].mxu0 %v3670
        %v3718 = vpop.f32.mrb[0].mxu0
        %v3719 = vadd.f32 0.0, %v3718
        %v3720 = vpop.f32.mrb[0].mxu0
        %v3721 = vpop.f32.mrb[0].mxu0
        %v3722 = vadd.f32 0.0, %v3721
        %v3723 = vpop.f32.mrb[0].mxu0
        %3724 = vdwg.mxu0
        %v3732 = vunpack.c.l.b16 %v3624
        %v3733 = vunpack.c.l.b16 %v3625
        %v3734 = vunpack.c.l.b16 %v3626
        %v3735 = vunpack.c.l.b16 %v3627
        %v3736 = vunpack.c.l.b16 %v3628
        %v3737 = vunpack.c.l.b16 %v3629
        %v3738 = vunpack.c.l.b16 %v3630
        %v3739 = vpack.c.b16 %v3733, %v3732
        %v3740 = vpack.c.b16 %v3735, %v3734
        %v3741 = vpack.c.b16 %v3737, %v3736
        %v3742 = vpack.c.b16 %v3738, %v3738
        %v3747 = vsel %vm3613, %v3622, 0
        %v3750 = vsel %vm3613, %v3623, 0
        %v3753 = vsel %vm3672, %v3742, 0
        %3755 = vmatprep.subr.bf16.mxu0 0
        %3756 = vmatpush1.bf16.msra.mxu0 %v3739
        %3757 = vmatprep.subr.bf16.mxu0 0
        %3758 = vmatpush1.bf16.msra.mxu0 %v3740
        %3759 = vmatprep.subr.bf16.mxu0 0
        %3760 = vmatpush1.bf16.msra.mxu0 %v3741
        %3761 = vmatprep.subr.bf16.mxu0 0
        %3762 = vmatpush1.bf16.msra.mxu0 %v3753
        %3763 = vmatprep.subr.bf16.mxu0 0
        %3764 = vmatpush1.bf16.msra.mxu0 0
        %3765 = vmatprep.subr.bf16.mxu0 0
        %3766 = vmatpush1.bf16.msra.mxu0 0
        %3767 = vmatprep.subr.bf16.mxu0 0
        %3768 = vmatpush1.bf16.msra.mxu0 0
        %3769 = vmatprep.subr.bf16.mxu0 0
        %3770 = vmatpush1.bf16.msra.mxu0 0
        %3771 = vmatprep.subr.bf16.mxu0 0
        %3772 = vmatpush1.bf16.msra.mxu0 0
        %3773 = vmatprep.subr.bf16.mxu0 0
        %3774 = vmatpush1.bf16.msra.mxu0 0
        %3775 = vmatprep.subr.bf16.mxu0 0
        %3776 = vmatpush1.bf16.msra.mxu0 0
        %3777 = vmatprep.subr.bf16.mxu0 0
        %3778 = vmatpush1.bf16.msra.mxu0 0
        %3779 = vmatprep.subr.bf16.mxu0 0
        %3780 = vmatpush1.bf16.msra.mxu0 0
        %3781 = vmatprep.subr.bf16.mxu0 0
        %3782 = vmatpush1.bf16.msra.mxu0 0
        %3783 = vmatprep.subr.bf16.mxu0 0
        %3784 = vmatpush1.bf16.msra.mxu0 0
        %3785 = vmatprep.subr.bf16.mxu0 0
        %3786 = vmatpush1.bf16.msra.mxu0 0
        %3787 = vmatprep.mubr.bf16.mxu0 0
        %3788 = vmatmul.mubr.bf16.gmra.mrb[0].mxu0 %v3747
        %v3789 = vpop.f32.mrb[0].mxu0
        %v3790 = vadd.f32 %v3711, %v3789
        %v3791 = vpop.f32.mrb[0].mxu0
        %v3792 = vpop.f32.mrb[0].mxu0
        %v3793 = vadd.f32 %v3714, %v3792
        %v3794 = vpop.f32.mrb[0].mxu0
        %3795 = vmatprep.mubr.bf16.mxu0 0
        %3796 = vmatmul.mubr.bf16.gmra.mrb[0].mxu0 %v3750
        %v3797 = vpop.f32.mrb[0].mxu0
        %v3798 = vadd.f32 %v3719, %v3797
        %v3799 = vpop.f32.mrb[0].mxu0
        %v3800 = vpop.f32.mrb[0].mxu0
        %v3801 = vadd.f32 %v3722, %v3800
        %v3802 = vpop.f32.mrb[0].mxu0
        %3803 = vdwg.mxu0
        %v3804 = vld [vmem:[#allocation2 + $0x8] sm:$0xff]
        %v3805 = vld [vmem:[#allocation2 + $0x10] sm:$0xff]
        %v3806 = vld [vmem:[#allocation2 + $0x28] sm:$0xff]
        %v3807 = vld [vmem:[#allocation2 + $0x30] sm:$0xff]
        %v3808 = vpack.c.bf16 %v3805, %v3804
        %v3809 = vpack.c.bf16 %v3807, %v3806
        %s3810 = scalar_lea.vmem %s1060, 56
        %v3811 = vld [vmem:[%s3810] sm:$0xf]
        %v3812 = vld [vmem:[%s3810 + $0x4] sm:$0xf]
        %v3813 = vld [vmem:[%s3810 + $0x8] sm:$0xf]
        %v3814 = vld [vmem:[%s3810 + $0xc] sm:$0xf]
        %v3815 = vld [vmem:[%s3810 + $0x10] sm:$0xf]
        %v3816 = vld [vmem:[%s3810 + $0x14] sm:$0xf]
        %v3817 = vld [vmem:[%s3810 + $0x18] sm:$0x1]
        %v3825 = vunpack.c.l.b16 %v3811
        %v3826 = vunpack.c.l.b16 %v3812
        %v3827 = vunpack.c.l.b16 %v3813
        %v3828 = vunpack.c.l.b16 %v3814
        %v3829 = vunpack.c.l.b16 %v3815
        %v3830 = vunpack.c.l.b16 %v3816
        %v3831 = vunpack.c.l.b16 %v3817
        %v3832 = vpack.c.b16 %v3826, %v3825
        %v3833 = vpack.c.b16 %v3828, %v3827
        %v3834 = vpack.c.b16 %v3830, %v3829
        %v3835 = vpack.c.b16 %v3831, %v3831
        %v3840 = vsel %vm3613, %v3808, 0
        %v3843 = vsel %vm3613, %v3809, 0
        %v3846 = vsel %vm3672, %v3835, 0
        %3848 = vmatprep.subr.bf16.mxu0 0
        %3849 = vmatpush1.bf16.msra.mxu0 %v3832
        %3850 = vmatprep.subr.bf16.mxu0 0
        %3851 = vmatpush1.bf16.msra.mxu0 %v3833
        %3852 = vmatprep.subr.bf16.mxu0 0
        %3853 = vmatpush1.bf16.msra.mxu0 %v3834
        %3854 = vmatprep.subr.bf16.mxu0 0
        %3855 = vmatpush1.bf16.msra.mxu0 %v3846
        %3856 = vmatprep.subr.bf16.mxu0 0
        %3857 = vmatpush1.bf16.msra.mxu0 0
        %3858 = vmatprep.subr.bf16.mxu0 0
        %3859 = vmatpush1.bf16.msra.mxu0 0
        %3860 = vmatprep.subr.bf16.mxu0 0
        %3861 = vmatpush1.bf16.msra.mxu0 0
        %3862 = vmatprep.subr.bf16.mxu0 0
        %3863 = vmatpush1.bf16.msra.mxu0 0
        %3864 = vmatprep.subr.bf16.mxu0 0
        %3865 = vmatpush1.bf16.msra.mxu0 0
        %3866 = vmatprep.subr.bf16.mxu0 0
        %3867 = vmatpush1.bf16.msra.mxu0 0
        %3868 = vmatprep.subr.bf16.mxu0 0
        %3869 = vmatpush1.bf16.msra.mxu0 0
        %3870 = vmatprep.subr.bf16.mxu0 0
        %3871 = vmatpush1.bf16.msra.mxu0 0
        %3872 = vmatprep.subr.bf16.mxu0 0
        %3873 = vmatpush1.bf16.msra.mxu0 0
        %3874 = vmatprep.subr.bf16.mxu0 0
        %3875 = vmatpush1.bf16.msra.mxu0 0
        %3876 = vmatprep.subr.bf16.mxu0 0
        %3877 = vmatpush1.bf16.msra.mxu0 0
        %3878 = vmatprep.subr.bf16.mxu0 0
        %3879 = vmatpush1.bf16.msra.mxu0 0
        %3880 = vmatprep.mubr.bf16.mxu0 0
        %3881 = vmatmul.mubr.bf16.gmra.mrb[0].mxu0 %v3840
        %v3882 = vpop.f32.mrb[0].mxu0
        %v3883 = vadd.f32 0.0, %v3882
        %v3884 = vpop.f32.mrb[0].mxu0
        %v3885 = vpop.f32.mrb[0].mxu0
        %v3886 = vadd.f32 0.0, %v3885
        %v3887 = vpop.f32.mrb[0].mxu0
        %3888 = vmatprep.mubr.bf16.mxu0 0
        %3889 = vmatmul.mubr.bf16.gmra.mrb[0].mxu0 %v3843
        %v3890 = vpop.f32.mrb[0].mxu0
        %v3891 = vadd.f32 0.0, %v3890
        %v3892 = vpop.f32.mrb[0].mxu0
        %v3893 = vpop.f32.mrb[0].mxu0
        %v3894 = vadd.f32 0.0, %v3893
        %v3895 = vpop.f32.mrb[0].mxu0
        %3896 = vdwg.mxu0
        %v3897 = vadd.f32 %v3790, %v3883
        %v3898 = vadd.f32 %v3793, %v3886
        %v3899 = vadd.f32 %v3798, %v3891
        %v3900 = vadd.f32 %v3801, %v3894
        %v3901 = vld [vmem:[#allocation2 + $0x9] sm:$0xff]
        %v3902 = vld [vmem:[#allocation2 + $0x11] sm:$0xff]
        %v3903 = vld [vmem:[#allocation2 + $0x29] sm:$0xff]
        %v3904 = vld [vmem:[#allocation2 + $0x31] sm:$0xff]
        %v3905 = vpack.c.bf16 %v3902, %v3901
        %v3906 = vpack.c.bf16 %v3904, %v3903
        %s3907 = scalar_lea.vmem %s1060, 84
        %v3908 = vld [vmem:[%s3907] sm:$0xf]
        %v3909 = vld [vmem:[%s3907 + $0x4] sm:$0xf]
        %v3910 = vld [vmem:[%s3907 + $0x8] sm:$0xf]
        %v3911 = vld [vmem:[%s3907 + $0xc] sm:$0xf]
        %v3912 = vld [vmem:[%s3907 + $0x10] sm:$0xf]
        %v3913 = vld [vmem:[%s3907 + $0x14] sm:$0xf]
        %v3914 = vld [vmem:[%s3907 + $0x18] sm:$0x1]
        %v3922 = vunpack.c.l.b16 %v3908
        %v3923 = vunpack.c.l.b16 %v3909
        %v3924 = vunpack.c.l.b16 %v3910
        %v3925 = vunpack.c.l.b16 %v3911
        %v3926 = vunpack.c.l.b16 %v3912
        %v3927 = vunpack.c.l.b16 %v3913
        %v3928 = vunpack.c.l.b16 %v3914
        %v3929 = vpack.c.b16 %v3923, %v3922
        %v3930 = vpack.c.b16 %v3925, %v3924
        %v3931 = vpack.c.b16 %v3927, %v3926
        %v3932 = vpack.c.b16 %v3928, %v3928
        %v3937 = vsel %vm3613, %v3905, 0
        %v3940 = vsel %vm3613, %v3906, 0
        %v3943 = vsel %vm3672, %v3932, 0
        %3945 = vmatprep.subr.bf16.mxu0 0
        %3946 = vmatpush1.bf16.msra.mxu0 %v3929
        %3947 = vmatprep.subr.bf16.mxu0 0
        %3948 = vmatpush1.bf16.msra.mxu0 %v3930
        %3949 = vmatprep.subr.bf16.mxu0 0
        %3950 = vmatpush1.bf16.msra.mxu0 %v3931
        %3951 = vmatprep.subr.bf16.mxu0 0
        %3952 = vmatpush1.bf16.msra.mxu0 %v3943
        %3953 = vmatprep.subr.bf16.mxu0 0
        %3954 = vmatpush1.bf16.msra.mxu0 0
        %3955 = vmatprep.subr.bf16.mxu0 0
        %3956 = vmatpush1.bf16.msra.mxu0 0
        %3957 = vmatprep.subr.bf16.mxu0 0
        %3958 = vmatpush1.bf16.msra.mxu0 0
        %3959 = vmatprep.subr.bf16.mxu0 0
        %3960 = vmatpush1.bf16.msra.mxu0 0
        %3961 = vmatprep.subr.bf16.mxu0 0
        %3962 = vmatpush1.bf16.msra.mxu0 0
        %3963 = vmatprep.subr.bf16.mxu0 0
        %3964 = vmatpush1.bf16.msra.mxu0 0
        %3965 = vmatprep.subr.bf16.mxu0 0
        %3966 = vmatpush1.bf16.msra.mxu0 0
        %3967 = vmatprep.subr.bf16.mxu0 0
        %3968 = vmatpush1.bf16.msra.mxu0 0
        %3969 = vmatprep.subr.bf16.mxu0 0
        %3970 = vmatpush1.bf16.msra.mxu0 0
        %3971 = vmatprep.subr.bf16.mxu0 0
        %3972 = vmatpush1.bf16.msra.mxu0 0
        %3973 = vmatprep.subr.bf16.mxu0 0
        %3974 = vmatpush1.bf16.msra.mxu0 0
        %3975 = vmatprep.subr.bf16.mxu0 0
        %3976 = vmatpush1.bf16.msra.mxu0 0
        %3977 = vmatprep.mubr.bf16.mxu0 0
        %3978 = vmatmul.mubr.bf16.gmra.mrb[0].mxu0 %v3937
        %v3979 = vpop.f32.mrb[0].mxu0
        %v3980 = vadd.f32 0.0, %v3979
        %v3981 = vpop.f32.mrb[0].mxu0
        %v3982 = vpop.f32.mrb[0].mxu0
        %v3983 = vadd.f32 0.0, %v3982
        %v3984 = vpop.f32.mrb[0].mxu0
        %3985 = vmatprep.mubr.bf16.mxu0 0
        %3986 = vmatmul.mubr.bf16.gmra.mrb[0].mxu0 %v3940
        %v3987 = vpop.f32.mrb[0].mxu0
        %v3988 = vadd.f32 0.0, %v3987
        %v3989 = vpop.f32.mrb[0].mxu0
        %v3990 = vpop.f32.mrb[0].mxu0
        %v3991 = vadd.f32 0.0, %v3990
        %v3992 = vpop.f32.mrb[0].mxu0
        %3993 = vdwg.mxu0
        %v3994 = vadd.f32 %v3897, %v3980
        %v3995 = vadd.f32 %v3898, %v3983
        %v3996 = vadd.f32 %v3899, %v3988
        %v3997 = vadd.f32 %v3900, %v3991
        %v3998 = vld [vmem:[#allocation2 + $0xa] sm:$0xff]
        %v3999 = vld [vmem:[#allocation2 + $0x12] sm:$0xff]
        %v4000 = vld [vmem:[#allocation2 + $0x2a] sm:$0xff]
        %v4001 = vld [vmem:[#allocation2 + $0x32] sm:$0xff]
        %v4002 = vpack.c.bf16 %v3999, %v3998
        %v4003 = vpack.c.bf16 %v4001, %v4000
        %s4004 = scalar_lea.vmem %s1060, 112
        %v4005 = vld [vmem:[%s4004] sm:$0xf]
        %v4006 = vld [vmem:[%s4004 + $0x4] sm:$0xf]
        %v4007 = vld [vmem:[%s4004 + $0x8] sm:$0xf]
        %v4008 = vld [vmem:[%s4004 + $0xc] sm:$0xf]
        %v4009 = vld [vmem:[%s4004 + $0x10] sm:$0xf]
        %v4010 = vld [vmem:[%s4004 + $0x14] sm:$0xf]
        %v4011 = vld [vmem:[%s4004 + $0x18] sm:$0x1]
        %v4019 = vunpack.c.l.b16 %v4005
        %v4020 = vunpack.c.l.b16 %v4006
        %v4021 = vunpack.c.l.b16 %v4007
        %v4022 = vunpack.c.l.b16 %v4008
        %v4023 = vunpack.c.l.b16 %v4009
        %v4024 = vunpack.c.l.b16 %v4010
        %v4025 = vunpack.c.l.b16 %v4011
        %v4026 = vpack.c.b16 %v4020, %v4019
        %v4027 = vpack.c.b16 %v4022, %v4021
        %v4028 = vpack.c.b16 %v4024, %v4023
        %v4029 = vpack.c.b16 %v4025, %v4025
        %v4034 = vsel %vm3613, %v4002, 0
        %v4037 = vsel %vm3613, %v4003, 0
        %v4040 = vsel %vm3672, %v4029, 0
        %4042 = vmatprep.subr.bf16.mxu0 0
        %4043 = vmatpush1.bf16.msra.mxu0 %v4026
        %4044 = vmatprep.subr.bf16.mxu0 0
        %4045 = vmatpush1.bf16.msra.mxu0 %v4027
        %4046 = vmatprep.subr.bf16.mxu0 0
        %4047 = vmatpush1.bf16.msra.mxu0 %v4028
        %4048 = vmatprep.subr.bf16.mxu0 0
        %4049 = vmatpush1.bf16.msra.mxu0 %v4040
        %4050 = vmatprep.subr.bf16.mxu0 0
        %4051 = vmatpush1.bf16.msra.mxu0 0
        %4052 = vmatprep.subr.bf16.mxu0 0
        %4053 = vmatpush1.bf16.msra.mxu0 0
        %4054 = vmatprep.subr.bf16.mxu0 0
        %4055 = vmatpush1.bf16.msra.mxu0 0
        %4056 = vmatprep.subr.bf16.mxu0 0
        %4057 = vmatpush1.bf16.msra.mxu0 0
        %4058 = vmatprep.subr.bf16.mxu0 0
        %4059 = vmatpush1.bf16.msra.mxu0 0
        %4060 = vmatprep.subr.bf16.mxu0 0
        %4061 = vmatpush1.bf16.msra.mxu0 0
        %4062 = vmatprep.subr.bf16.mxu0 0
        %4063 = vmatpush1.bf16.msra.mxu0 0
        %4064 = vmatprep.subr.bf16.mxu0 0
        %4065 = vmatpush1.bf16.msra.mxu0 0
        %4066 = vmatprep.subr.bf16.mxu0 0
        %4067 = vmatpush1.bf16.msra.mxu0 0
        %4068 = vmatprep.subr.bf16.mxu0 0
        %4069 = vmatpush1.bf16.msra.mxu0 0
        %4070 = vmatprep.subr.bf16.mxu0 0
        %4071 = vmatpush1.bf16.msra.mxu0 0
        %4072 = vmatprep.subr.bf16.mxu0 0
        %4073 = vmatpush1.bf16.msra.mxu0 0
        %4074 = vmatprep.mubr.bf16.mxu0 0
        %4075 = vmatmul.mubr.bf16.gmra.mrb[0].mxu0 %v4034
        %v4076 = vpop.f32.mrb[0].mxu0
        %v4077 = vadd.f32 0.0, %v4076
        %v4078 = vpop.f32.mrb[0].mxu0
        %v4079 = vpop.f32.mrb[0].mxu0
        %v4080 = vadd.f32 0.0, %v4079
        %v4081 = vpop.f32.mrb[0].mxu0
        %4082 = vmatprep.mubr.bf16.mxu0 0
        %4083 = vmatmul.mubr.bf16.gmra.mrb[0].mxu0 %v4037
        %v4084 = vpop.f32.mrb[0].mxu0
        %v4085 = vadd.f32 0.0, %v4084
        %v4086 = vpop.f32.mrb[0].mxu0
        %v4087 = vpop.f32.mrb[0].mxu0
        %v4088 = vadd.f32 0.0, %v4087
        %v4089 = vpop.f32.mrb[0].mxu0
        %4090 = vdwg.mxu0
        %v4091 = vadd.f32 %v3994, %v4077
        %v4092 = vadd.f32 %v3995, %v4080
        %v4093 = vadd.f32 %v3996, %v4085
        %v4094 = vadd.f32 %v3997, %v4088
        %v4095 = vld [vmem:[%s869] sm:$0x1]
        %v4097 = vlaneseq
        %v4098 = vshrl.u32 %v4097, 7
        %v4099 = vsub.s32 0, %v4098
        %v4100 = vrot.slane %v4095, %v4099
        %v4102 = vadd.f32 %v4091, %v4100
        %v4103 = vadd.f32 %v4092, %v4100
        %v4104 = vadd.f32 %v4093, %v4100
        %v4105 = vadd.f32 %v4094, %v4100
        %v4106 = vmax.f32 %v4102, 0.0
        %v4107 = vmax.f32 %v4103, 0.0
        %v4108 = vmax.f32 %v4104, 0.0
        %v4109 = vmax.f32 %v4105, 0.0
        %4110 = vst.msk [vmem:[#allocation2 + $0x8] sm:$0xff] %vm1074, %v4106
        %4111 = vst.msk [vmem:[#allocation2 + $0x10] sm:$0xff] %vm1074, %v4107
        %4112 = vst.msk [vmem:[#allocation2 + $0x28] sm:$0xff] %vm1074, %v4108
        %4113 = vst.msk [vmem:[#allocation2 + $0x30] sm:$0xff] %vm1074, %v4109
        %v4114 = vld [vmem:[#allocation2 + $0x6] sm:$0xff]
        %v4115 = vld [vmem:[#allocation2 + $0xe] sm:$0xff]
        %v4116 = vld [vmem:[#allocation2 + $0x26] sm:$0xff]
        %v4117 = vld [vmem:[#allocation2 + $0x2e] sm:$0xff]
        %v4118 = vpack.c.bf16 %v4115, %v4114
        %v4119 = vpack.c.bf16 %v4117, %v4116
        %v4120 = vld [vmem:[%s1065] sm:$0xf]
        %v4121 = vld [vmem:[%s1065 + $0x4] sm:$0xf]
        %v4122 = vld [vmem:[%s1065 + $0x8] sm:$0xf]
        %v4123 = vld [vmem:[%s1065 + $0xc] sm:$0xf]
        %v4124 = vld [vmem:[%s1065 + $0x10] sm:$0xf]
        %v4125 = vld [vmem:[%s1065 + $0x14] sm:$0xf]
        %v4126 = vld [vmem:[%s1065 + $0x18] sm:$0xf]
        %v4127 = vld [vmem:[%s1065 + $0x1c] sm:$0x3]
        %v4128 = vld [vmem:[#allocation2 + $0x7] sm:$0xff]
        %v4129 = vld [vmem:[#allocation2 + $0xf] sm:$0xff]
        %v4130 = vld [vmem:[#allocation2 + $0x27] sm:$0xff]
        %v4131 = vld [vmem:[#allocation2 + $0x2f] sm:$0xff]
        %v4132 = vpack.c.bf16 %v4129, %v4128
        %v4133 = vpack.c.bf16 %v4131, %v4130
        %s4134 = scalar_lea.vmem %s1065, 32
        %v4135 = vld [vmem:[%s4134] sm:$0xf]
        %v4136 = vld [vmem:[%s4134 + $0x4] sm:$0xf]
        %v4137 = vld [vmem:[%s4134 + $0x8] sm:$0xf]
        %v4138 = vld [vmem:[%s4134 + $0xc] sm:$0xf]
        %v4139 = vld [vmem:[%s4134 + $0x10] sm:$0xf]
        %v4140 = vld [vmem:[%s4134 + $0x14] sm:$0xf]
        %v4141 = vld [vmem:[%s4134 + $0x18] sm:$0xf]
        %v4142 = vld [vmem:[%s4134 + $0x1c] sm:$0x3]
        %v4151 = vunpack.c.l.b16 %v4135
        %v4152 = vunpack.c.l.b16 %v4136
        %v4153 = vunpack.c.l.b16 %v4137
        %v4154 = vunpack.c.l.b16 %v4138
        %v4155 = vunpack.c.l.b16 %v4139
        %v4156 = vunpack.c.l.b16 %v4140
        %v4157 = vunpack.c.l.b16 %v4141
        %v4158 = vunpack.c.l.b16 %v4142
        %v4159 = vpack.c.b16 %v4152, %v4151
        %v4160 = vpack.c.b16 %v4154, %v4153
        %v4161 = vpack.c.b16 %v4156, %v4155
        %v4162 = vpack.c.b16 %v4158, %v4157
        %v4167 = vsel %vm1074, %v4132, 0
        %v4170 = vsel %vm1074, %v4133, 0
        %vm4172 = vcmask 1045504
        %v4174 = vsel %vm4172, %v4162, 0
        %4176 = vmatprep.subr.bf16.mxu0 0
        %4177 = vmatpush1.bf16.msra.mxu0 %v4159
        %4178 = vmatprep.subr.bf16.mxu0 0
        %4179 = vmatpush1.bf16.msra.mxu0 %v4160
        %4180 = vmatprep.subr.bf16.mxu0 0
        %4181 = vmatpush1.bf16.msra.mxu0 %v4161
        %4182 = vmatprep.subr.bf16.mxu0 0
        %4183 = vmatpush1.bf16.msra.mxu0 %v4174
        %4184 = vmatprep.subr.bf16.mxu0 0
        %4185 = vmatpush1.bf16.msra.mxu0 0
        %4186 = vmatprep.subr.bf16.mxu0 0
        %4187 = vmatpush1.bf16.msra.mxu0 0
        %4188 = vmatprep.subr.bf16.mxu0 0
        %4189 = vmatpush1.bf16.msra.mxu0 0
        %4190 = vmatprep.subr.bf16.mxu0 0
        %4191 = vmatpush1.bf16.msra.mxu0 0
        %4192 = vmatprep.subr.bf16.mxu0 0
        %4193 = vmatpush1.bf16.msra.mxu0 0
        %4194 = vmatprep.subr.bf16.mxu0 0
        %4195 = vmatpush1.bf16.msra.mxu0 0
        %4196 = vmatprep.subr.bf16.mxu0 0
        %4197 = vmatpush1.bf16.msra.mxu0 0
        %4198 = vmatprep.subr.bf16.mxu0 0
        %4199 = vmatpush1.bf16.msra.mxu0 0
        %4200 = vmatprep.subr.bf16.mxu0 0
        %4201 = vmatpush1.bf16.msra.mxu0 0
        %4202 = vmatprep.subr.bf16.mxu0 0
        %4203 = vmatpush1.bf16.msra.mxu0 0
        %4204 = vmatprep.subr.bf16.mxu0 0
        %4205 = vmatpush1.bf16.msra.mxu0 0
        %4206 = vmatprep.subr.bf16.mxu0 0
        %4207 = vmatpush1.bf16.msra.mxu0 0
        %4208 = vmatprep.mubr.bf16.mxu0 0
        %4209 = vmatmul.mubr.bf16.gmra.mrb[0].mxu0 %v4167
        %v4210 = vpop.f32.mrb[0].mxu0
        %v4211 = vadd.f32 0.0, %v4210
        %v4212 = vpop.f32.mrb[0].mxu0
        %v4213 = vpop.f32.mrb[0].mxu0
        %v4214 = vadd.f32 0.0, %v4213
        %v4215 = vpop.f32.mrb[0].mxu0
        %4216 = vmatprep.mubr.bf16.mxu0 0
        %4217 = vmatmul.mubr.bf16.gmra.mrb[0].mxu0 %v4170
        %v4218 = vpop.f32.mrb[0].mxu0
        %v4219 = vadd.f32 0.0, %v4218
        %v4220 = vpop.f32.mrb[0].mxu0
        %v4221 = vpop.f32.mrb[0].mxu0
        %v4222 = vadd.f32 0.0, %v4221
        %v4223 = vpop.f32.mrb[0].mxu0
        %4224 = vdwg.mxu0
        %v4233 = vunpack.c.l.b16 %v4120
        %v4234 = vunpack.c.l.b16 %v4121
        %v4235 = vunpack.c.l.b16 %v4122
        %v4236 = vunpack.c.l.b16 %v4123
        %v4237 = vunpack.c.l.b16 %v4124
        %v4238 = vunpack.c.l.b16 %v4125
        %v4239 = vunpack.c.l.b16 %v4126
        %v4240 = vunpack.c.l.b16 %v4127
        %v4241 = vpack.c.b16 %v4234, %v4233
        %v4242 = vpack.c.b16 %v4236, %v4235
        %v4243 = vpack.c.b16 %v4238, %v4237
        %v4244 = vpack.c.b16 %v4240, %v4239
        %v4249 = vsel %vm1074, %v4118, 0
        %v4252 = vsel %vm1074, %v4119, 0
        %v4255 = vsel %vm4172, %v4244, 0
        %4257 = vmatprep.subr.bf16.mxu0 0
        %4258 = vmatpush1.bf16.msra.mxu0 %v4241
        %4259 = vmatprep.subr.bf16.mxu0 0
        %4260 = vmatpush1.bf16.msra.mxu0 %v4242
        %4261 = vmatprep.subr.bf16.mxu0 0
        %4262 = vmatpush1.bf16.msra.mxu0 %v4243
        %4263 = vmatprep.subr.bf16.mxu0 0
        %4264 = vmatpush1.bf16.msra.mxu0 %v4255
        %4265 = vmatprep.subr.bf16.mxu0 0
        %4266 = vmatpush1.bf16.msra.mxu0 0
        %4267 = vmatprep.subr.bf16.mxu0 0
        %4268 = vmatpush1.bf16.msra.mxu0 0
        %4269 = vmatprep.subr.bf16.mxu0 0
        %4270 = vmatpush1.bf16.msra.mxu0 0
        %4271 = vmatprep.subr.bf16.mxu0 0
        %4272 = vmatpush1.bf16.msra.mxu0 0
        %4273 = vmatprep.subr.bf16.mxu0 0
        %4274 = vmatpush1.bf16.msra.mxu0 0
        %4275 = vmatprep.subr.bf16.mxu0 0
        %4276 = vmatpush1.bf16.msra.mxu0 0
        %4277 = vmatprep.subr.bf16.mxu0 0
        %4278 = vmatpush1.bf16.msra.mxu0 0
        %4279 = vmatprep.subr.bf16.mxu0 0
        %4280 = vmatpush1.bf16.msra.mxu0 0
        %4281 = vmatprep.subr.bf16.mxu0 0
        %4282 = vmatpush1.bf16.msra.mxu0 0
        %4283 = vmatprep.subr.bf16.mxu0 0
        %4284 = vmatpush1.bf16.msra.mxu0 0
        %4285 = vmatprep.subr.bf16.mxu0 0
        %4286 = vmatpush1.bf16.msra.mxu0 0
        %4287 = vmatprep.subr.bf16.mxu0 0
        %4288 = vmatpush1.bf16.msra.mxu0 0
        %4289 = vmatprep.mubr.bf16.mxu0 0
        %4290 = vmatmul.mubr.bf16.gmra.mrb[0].mxu0 %v4249
        %v4291 = vpop.f32.mrb[0].mxu0
        %v4292 = vadd.f32 %v4211, %v4291
        %v4293 = vpop.f32.mrb[0].mxu0
        %v4294 = vpop.f32.mrb[0].mxu0
        %v4295 = vadd.f32 %v4214, %v4294
        %v4296 = vpop.f32.mrb[0].mxu0
        %4297 = vmatprep.mubr.bf16.mxu0 0
        %4298 = vmatmul.mubr.bf16.gmra.mrb[0].mxu0 %v4252
        %v4299 = vpop.f32.mrb[0].mxu0
        %v4300 = vadd.f32 %v4219, %v4299
        %v4301 = vpop.f32.mrb[0].mxu0
        %v4302 = vpop.f32.mrb[0].mxu0
        %v4303 = vadd.f32 %v4222, %v4302
        %v4304 = vpop.f32.mrb[0].mxu0
        %4305 = vdwg.mxu0
        %v4306 = vld [vmem:[#allocation2 + $0x8] sm:$0xff]
        %v4307 = vld [vmem:[#allocation2 + $0x10] sm:$0xff]
        %v4308 = vld [vmem:[#allocation2 + $0x28] sm:$0xff]
        %v4309 = vld [vmem:[#allocation2 + $0x30] sm:$0xff]
        %v4310 = vpack.c.bf16 %v4307, %v4306
        %v4311 = vpack.c.bf16 %v4309, %v4308
        %s4312 = scalar_lea.vmem %s1065, 64
        %v4313 = vld [vmem:[%s4312] sm:$0xf]
        %v4314 = vld [vmem:[%s4312 + $0x4] sm:$0xf]
        %v4315 = vld [vmem:[%s4312 + $0x8] sm:$0xf]
        %v4316 = vld [vmem:[%s4312 + $0xc] sm:$0xf]
        %v4317 = vld [vmem:[%s4312 + $0x10] sm:$0xf]
        %v4318 = vld [vmem:[%s4312 + $0x14] sm:$0xf]
        %v4319 = vld [vmem:[%s4312 + $0x18] sm:$0xf]
        %v4320 = vld [vmem:[%s4312 + $0x1c] sm:$0x3]
        %v4329 = vunpack.c.l.b16 %v4313
        %v4330 = vunpack.c.l.b16 %v4314
        %v4331 = vunpack.c.l.b16 %v4315
        %v4332 = vunpack.c.l.b16 %v4316
        %v4333 = vunpack.c.l.b16 %v4317
        %v4334 = vunpack.c.l.b16 %v4318
        %v4335 = vunpack.c.l.b16 %v4319
        %v4336 = vunpack.c.l.b16 %v4320
        %v4337 = vpack.c.b16 %v4330, %v4329
        %v4338 = vpack.c.b16 %v4332, %v4331
        %v4339 = vpack.c.b16 %v4334, %v4333
        %v4340 = vpack.c.b16 %v4336, %v4335
        %v4345 = vsel %vm1074, %v4310, 0
        %v4348 = vsel %vm1074, %v4311, 0
        %v4351 = vsel %vm4172, %v4340, 0
        %4353 = vmatprep.subr.bf16.mxu0 0
        %4354 = vmatpush1.bf16.msra.mxu0 %v4337
        %4355 = vmatprep.subr.bf16.mxu0 0
        %4356 = vmatpush1.bf16.msra.mxu0 %v4338
        %4357 = vmatprep.subr.bf16.mxu0 0
        %4358 = vmatpush1.bf16.msra.mxu0 %v4339
        %4359 = vmatprep.subr.bf16.mxu0 0
        %4360 = vmatpush1.bf16.msra.mxu0 %v4351
        %4361 = vmatprep.subr.bf16.mxu0 0
        %4362 = vmatpush1.bf16.msra.mxu0 0
        %4363 = vmatprep.subr.bf16.mxu0 0
        %4364 = vmatpush1.bf16.msra.mxu0 0
        %4365 = vmatprep.subr.bf16.mxu0 0
        %4366 = vmatpush1.bf16.msra.mxu0 0
        %4367 = vmatprep.subr.bf16.mxu0 0
        %4368 = vmatpush1.bf16.msra.mxu0 0
        %4369 = vmatprep.subr.bf16.mxu0 0
        %4370 = vmatpush1.bf16.msra.mxu0 0
        %4371 = vmatprep.subr.bf16.mxu0 0
        %4372 = vmatpush1.bf16.msra.mxu0 0
        %4373 = vmatprep.subr.bf16.mxu0 0
        %4374 = vmatpush1.bf16.msra.mxu0 0
        %4375 = vmatprep.subr.bf16.mxu0 0
        %4376 = vmatpush1.bf16.msra.mxu0 0
        %4377 = vmatprep.subr.bf16.mxu0 0
        %4378 = vmatpush1.bf16.msra.mxu0 0
        %4379 = vmatprep.subr.bf16.mxu0 0
        %4380 = vmatpush1.bf16.msra.mxu0 0
        %4381 = vmatprep.subr.bf16.mxu0 0
        %4382 = vmatpush1.bf16.msra.mxu0 0
        %4383 = vmatprep.subr.bf16.mxu0 0
        %4384 = vmatpush1.bf16.msra.mxu0 0
        %4385 = vmatprep.mubr.bf16.mxu0 0
        %4386 = vmatmul.mubr.bf16.gmra.mrb[0].mxu0 %v4345
        %v4387 = vpop.f32.mrb[0].mxu0
        %v4388 = vadd.f32 0.0, %v4387
        %v4389 = vpop.f32.mrb[0].mxu0
        %v4390 = vpop.f32.mrb[0].mxu0
        %v4391 = vadd.f32 0.0, %v4390
        %v4392 = vpop.f32.mrb[0].mxu0
        %4393 = vmatprep.mubr.bf16.mxu0 0
        %4394 = vmatmul.mubr.bf16.gmra.mrb[0].mxu0 %v4348
        %v4395 = vpop.f32.mrb[0].mxu0
        %v4396 = vadd.f32 0.0, %v4395
        %v4397 = vpop.f32.mrb[0].mxu0
        %v4398 = vpop.f32.mrb[0].mxu0
        %v4399 = vadd.f32 0.0, %v4398
        %v4400 = vpop.f32.mrb[0].mxu0
        %4401 = vdwg.mxu0
        %v4402 = vadd.f32 %v4292, %v4388
        %v4403 = vadd.f32 %v4295, %v4391
        %v4404 = vadd.f32 %v4300, %v4396
        %v4405 = vadd.f32 %v4303, %v4399
        %v4406 = vld [vmem:[#allocation2 + $0x9] sm:$0xff]
        %v4407 = vld [vmem:[#allocation2 + $0x11] sm:$0xff]
        %v4408 = vld [vmem:[#allocation2 + $0x29] sm:$0xff]
        %v4409 = vld [vmem:[#allocation2 + $0x31] sm:$0xff]
        %v4410 = vpack.c.bf16 %v4407, %v4406
        %v4411 = vpack.c.bf16 %v4409, %v4408
        %s4412 = scalar_lea.vmem %s1065, 96
        %v4413 = vld [vmem:[%s4412] sm:$0xf]
        %v4414 = vld [vmem:[%s4412 + $0x4] sm:$0xf]
        %v4415 = vld [vmem:[%s4412 + $0x8] sm:$0xf]
        %v4416 = vld [vmem:[%s4412 + $0xc] sm:$0xf]
        %v4417 = vld [vmem:[%s4412 + $0x10] sm:$0xf]
        %v4418 = vld [vmem:[%s4412 + $0x14] sm:$0xf]
        %v4419 = vld [vmem:[%s4412 + $0x18] sm:$0xf]
        %v4420 = vld [vmem:[%s4412 + $0x1c] sm:$0x3]
        %v4429 = vunpack.c.l.b16 %v4413
        %v4430 = vunpack.c.l.b16 %v4414
        %v4431 = vunpack.c.l.b16 %v4415
        %v4432 = vunpack.c.l.b16 %v4416
        %v4433 = vunpack.c.l.b16 %v4417
        %v4434 = vunpack.c.l.b16 %v4418
        %v4435 = vunpack.c.l.b16 %v4419
        %v4436 = vunpack.c.l.b16 %v4420
        %v4437 = vpack.c.b16 %v4430, %v4429
        %v4438 = vpack.c.b16 %v4432, %v4431
        %v4439 = vpack.c.b16 %v4434, %v4433
        %v4440 = vpack.c.b16 %v4436, %v4435
        %v4445 = vsel %vm1074, %v4410, 0
        %v4448 = vsel %vm1074, %v4411, 0
        %v4451 = vsel %vm4172, %v4440, 0
        %4453 = vmatprep.subr.bf16.mxu0 0
        %4454 = vmatpush1.bf16.msra.mxu0 %v4437
        %4455 = vmatprep.subr.bf16.mxu0 0
        %4456 = vmatpush1.bf16.msra.mxu0 %v4438
        %4457 = vmatprep.subr.bf16.mxu0 0
        %4458 = vmatpush1.bf16.msra.mxu0 %v4439
        %4459 = vmatprep.subr.bf16.mxu0 0
        %4460 = vmatpush1.bf16.msra.mxu0 %v4451
        %4461 = vmatprep.subr.bf16.mxu0 0
        %4462 = vmatpush1.bf16.msra.mxu0 0
        %4463 = vmatprep.subr.bf16.mxu0 0
        %4464 = vmatpush1.bf16.msra.mxu0 0
        %4465 = vmatprep.subr.bf16.mxu0 0
        %4466 = vmatpush1.bf16.msra.mxu0 0
        %4467 = vmatprep.subr.bf16.mxu0 0
        %4468 = vmatpush1.bf16.msra.mxu0 0
        %4469 = vmatprep.subr.bf16.mxu0 0
        %4470 = vmatpush1.bf16.msra.mxu0 0
        %4471 = vmatprep.subr.bf16.mxu0 0
        %4472 = vmatpush1.bf16.msra.mxu0 0
        %4473 = vmatprep.subr.bf16.mxu0 0
        %4474 = vmatpush1.bf16.msra.mxu0 0
        %4475 = vmatprep.subr.bf16.mxu0 0
        %4476 = vmatpush1.bf16.msra.mxu0 0
        %4477 = vmatprep.subr.bf16.mxu0 0
        %4478 = vmatpush1.bf16.msra.mxu0 0
        %4479 = vmatprep.subr.bf16.mxu0 0
        %4480 = vmatpush1.bf16.msra.mxu0 0
        %4481 = vmatprep.subr.bf16.mxu0 0
        %4482 = vmatpush1.bf16.msra.mxu0 0
        %4483 = vmatprep.subr.bf16.mxu0 0
        %4484 = vmatpush1.bf16.msra.mxu0 0
        %4485 = vmatprep.mubr.bf16.mxu0 0
        %4486 = vmatmul.mubr.bf16.gmra.mrb[0].mxu0 %v4445
        %v4487 = vpop.f32.mrb[0].mxu0
        %v4488 = vadd.f32 0.0, %v4487
        %v4489 = vpop.f32.mrb[0].mxu0
        %v4490 = vpop.f32.mrb[0].mxu0
        %v4491 = vadd.f32 0.0, %v4490
        %v4492 = vpop.f32.mrb[0].mxu0
        %4493 = vmatprep.mubr.bf16.mxu0 0
        %4494 = vmatmul.mubr.bf16.gmra.mrb[0].mxu0 %v4448
        %v4495 = vpop.f32.mrb[0].mxu0
        %v4496 = vadd.f32 0.0, %v4495
        %v4497 = vpop.f32.mrb[0].mxu0
        %v4498 = vpop.f32.mrb[0].mxu0
        %v4499 = vadd.f32 0.0, %v4498
        %v4500 = vpop.f32.mrb[0].mxu0
        %4501 = vdwg.mxu0
        %v4502 = vadd.f32 %v4402, %v4488
        %v4503 = vadd.f32 %v4403, %v4491
        %v4504 = vadd.f32 %v4404, %v4496
        %v4505 = vadd.f32 %v4405, %v4499
        %v4506 = vld [vmem:[#allocation2 + $0xa] sm:$0xff]
        %v4507 = vld [vmem:[#allocation2 + $0x12] sm:$0xff]
        %v4508 = vld [vmem:[#allocation2 + $0x2a] sm:$0xff]
        %v4509 = vld [vmem:[#allocation2 + $0x32] sm:$0xff]
        %v4510 = vpack.c.bf16 %v4507, %v4506
        %v4511 = vpack.c.bf16 %v4509, %v4508
        %s4512 = scalar_lea.vmem %s1065, 128
        %v4513 = vld [vmem:[%s4512] sm:$0xf]
        %v4514 = vld [vmem:[%s4512 + $0x4] sm:$0xf]
        %v4515 = vld [vmem:[%s4512 + $0x8] sm:$0xf]
        %v4516 = vld [vmem:[%s4512 + $0xc] sm:$0xf]
        %v4517 = vld [vmem:[%s4512 + $0x10] sm:$0xf]
        %v4518 = vld [vmem:[%s4512 + $0x14] sm:$0xf]
        %v4519 = vld [vmem:[%s4512 + $0x18] sm:$0xf]
        %v4520 = vld [vmem:[%s4512 + $0x1c] sm:$0x3]
        %v4529 = vunpack.c.l.b16 %v4513
        %v4530 = vunpack.c.l.b16 %v4514
        %v4531 = vunpack.c.l.b16 %v4515
        %v4532 = vunpack.c.l.b16 %v4516
        %v4533 = vunpack.c.l.b16 %v4517
        %v4534 = vunpack.c.l.b16 %v4518
        %v4535 = vunpack.c.l.b16 %v4519
        %v4536 = vunpack.c.l.b16 %v4520
        %v4537 = vpack.c.b16 %v4530, %v4529
        %v4538 = vpack.c.b16 %v4532, %v4531
        %v4539 = vpack.c.b16 %v4534, %v4533
        %v4540 = vpack.c.b16 %v4536, %v4535
        %v4545 = vsel %vm1074, %v4510, 0
        %v4548 = vsel %vm1074, %v4511, 0
        %v4551 = vsel %vm4172, %v4540, 0
        %4553 = vmatprep.subr.bf16.mxu0 0
        %4554 = vmatpush1.bf16.msra.mxu0 %v4537
        %4555 = vmatprep.subr.bf16.mxu0 0
        %4556 = vmatpush1.bf16.msra.mxu0 %v4538
        %4557 = vmatprep.subr.bf16.mxu0 0
        %4558 = vmatpush1.bf16.msra.mxu0 %v4539
        %4559 = vmatprep.subr.bf16.mxu0 0
        %4560 = vmatpush1.bf16.msra.mxu0 %v4551
        %4561 = vmatprep.subr.bf16.mxu0 0
        %4562 = vmatpush1.bf16.msra.mxu0 0
        %4563 = vmatprep.subr.bf16.mxu0 0
        %4564 = vmatpush1.bf16.msra.mxu0 0
        %4565 = vmatprep.subr.bf16.mxu0 0
        %4566 = vmatpush1.bf16.msra.mxu0 0
        %4567 = vmatprep.subr.bf16.mxu0 0
        %4568 = vmatpush1.bf16.msra.mxu0 0
        %4569 = vmatprep.subr.bf16.mxu0 0
        %4570 = vmatpush1.bf16.msra.mxu0 0
        %4571 = vmatprep.subr.bf16.mxu0 0
        %4572 = vmatpush1.bf16.msra.mxu0 0
        %4573 = vmatprep.subr.bf16.mxu0 0
        %4574 = vmatpush1.bf16.msra.mxu0 0
        %4575 = vmatprep.subr.bf16.mxu0 0
        %4576 = vmatpush1.bf16.msra.mxu0 0
        %4577 = vmatprep.subr.bf16.mxu0 0
        %4578 = vmatpush1.bf16.msra.mxu0 0
        %4579 = vmatprep.subr.bf16.mxu0 0
        %4580 = vmatpush1.bf16.msra.mxu0 0
        %4581 = vmatprep.subr.bf16.mxu0 0
        %4582 = vmatpush1.bf16.msra.mxu0 0
        %4583 = vmatprep.subr.bf16.mxu0 0
        %4584 = vmatpush1.bf16.msra.mxu0 0
        %4585 = vmatprep.mubr.bf16.mxu0 0
        %4586 = vmatmul.mubr.bf16.gmra.mrb[0].mxu0 %v4545
        %v4587 = vpop.f32.mrb[0].mxu0
        %v4588 = vadd.f32 0.0, %v4587
        %v4589 = vpop.f32.mrb[0].mxu0
        %v4590 = vpop.f32.mrb[0].mxu0
        %v4591 = vadd.f32 0.0, %v4590
        %v4592 = vpop.f32.mrb[0].mxu0
        %4593 = vmatprep.mubr.bf16.mxu0 0
        %4594 = vmatmul.mubr.bf16.gmra.mrb[0].mxu0 %v4548
        %v4595 = vpop.f32.mrb[0].mxu0
        %v4596 = vadd.f32 0.0, %v4595
        %v4597 = vpop.f32.mrb[0].mxu0
        %v4598 = vpop.f32.mrb[0].mxu0
        %v4599 = vadd.f32 0.0, %v4598
        %v4600 = vpop.f32.mrb[0].mxu0
        %4601 = vdwg.mxu0
        %v4602 = vadd.f32 %v4502, %v4588
        %v4603 = vadd.f32 %v4503, %v4591
        %v4604 = vadd.f32 %v4504, %v4596
        %v4605 = vadd.f32 %v4505, %v4599
        %v4606 = vld [vmem:[%s877] sm:$0x1]
        %v4608 = vlaneseq
        %v4609 = vshrl.u32 %v4608, 7
        %v4610 = vsub.s32 0, %v4609
        %v4611 = vrot.slane %v4606, %v4610
        %v4613 = vadd.f32 %v4602, %v4611
        %v4614 = vadd.f32 %v4603, %v4611
        %v4615 = vadd.f32 %v4604, %v4611
        %v4616 = vadd.f32 %v4605, %v4611
        %v4617 = vmax.f32 %v4613, 0.0
        %v4618 = vmax.f32 %v4614, 0.0
        %v4619 = vmax.f32 %v4615, 0.0
        %v4620 = vmax.f32 %v4616, 0.0
        %v4624 = vunpack.c.l.s4 1983009808
        %v4625 = vunpack.c.0.s8 %v4624
        %v4626 = vlaneseq
        %v4627 = vshrl.u32 %v4626, 7
        %v4628 = vsub.s32 %v4625, %v4627
        %v4629 = vrot.slane %v4617, %v4628
        %v4631 = vunpack.c.l.s4 1983009808
        %v4632 = vunpack.c.0.s8 %v4631
        %v4633 = vlaneseq
        %v4634 = vshrl.u32 %v4633, 7
        %v4635 = vsub.s32 %v4632, %v4634
        %v4636 = vrot.slane %v4619, %v4635
        %vm4637 = vcmask 1044484
        %v4638 = vsel %vm4637, %v4629, %v4629
        %vm4639 = vcmask 1046534
        %v4640 = vsel %vm4639, %v4629, %v4638
        %v4641 = vrot.slane %v4636, 7
        %vm4642 = vcmask 1041409
        %v4643 = vsel %vm4642, %v4641, %v4640
        %vm4644 = vcmask 1043459
        %v4645 = vsel %vm4644, %v4641, %v4643
        %vm4646 = vcmask 1045509
        %v4647 = vsel %vm4646, %v4641, %v4645
        %vm4648 = vcmask 1047559
        %v4649 = vsel %vm4648, %v4641, %v4647
        %vm4651 = vcmask 484352
        %4652 = vst.msk [vmem:[#allocation3] sm:$0x3] %vm4651, %v4649
        %v4653 = vrot.slane %v4629, 1
        %v4654 = vsel %vm4637, %v4653, %v4653
        %v4655 = vsel %vm4639, %v4653, %v4654
        %v4656 = vsel %vm4642, %v4636, %v4655
        %v4657 = vsel %vm4644, %v4636, %v4656
        %v4658 = vsel %vm4646, %v4636, %v4657
        %v4659 = vsel %vm4648, %v4636, %v4658
        %4660 = vrot.lane.b32.xlu0 %v4659, 60
        %v4661 = vpop.permute.xlu0 %4660
        %vm4663 = vcmask 976352
        %4664 = vst.msk [vmem:[#allocation3] sm:$0x3] %vm4663, %v4661
        %v4665 = vcombine.high %v4629, %v4629
        %v4666 = vcombine.high %v4636, %v4636
        %v4667 = vsel %vm4637, %v4665, %v4665
        %v4668 = vsel %vm4639, %v4665, %v4667
        %v4669 = vrot.slane %v4666, 7
        %v4670 = vsel %vm4642, %v4669, %v4668
        %v4671 = vsel %vm4644, %v4669, %v4670
        %v4672 = vsel %vm4646, %v4669, %v4671
        %v4673 = vsel %vm4648, %v4669, %v4672
        %4674 = vrot.lane.b32.xlu0 %v4673, 120
        %v4675 = vpop.permute.xlu0 %4674
        %v4676 = vrot.slane %v4675, 6
        %vm4677 = vcmask 982016
        %v4678 = vsel %vm4677, %v4676, %v4675
        %vm4680 = vcmask 1042368
        %vm4681 = vcmask 420866
        %vm4682 = vmor %vm4681, %vm4680
        %4683 = vst.msk [vmem:[#allocation3] sm:$0xf] %vm4682, %v4678
        %v4684 = vrot.slane %v4665, 1
        %v4685 = vsel %vm4637, %v4684, %v4684
        %v4686 = vsel %vm4639, %v4684, %v4685
        %v4687 = vsel %vm4642, %v4666, %v4686
        %v4688 = vsel %vm4644, %v4666, %v4687
        %v4689 = vsel %vm4646, %v4666, %v4688
        %v4690 = vsel %vm4648, %v4666, %v4689
        %4691 = vrot.lane.b32.xlu0 %v4690, 52
        %v4692 = vpop.permute.xlu0 %4691
        %vm4694 = vcmask 910752
        %4695 = vst.msk [vmem:[#allocation3 + $0x2] sm:$0x3] %vm4694, %v4692
        %v4696 = vcombine.high %v4617, %v4617
        %v4698 = vunpack.c.l.s4 1983009808
        %v4699 = vunpack.c.0.s8 %v4698
        %v4700 = vlaneseq
        %v4701 = vshrl.u32 %v4700, 7
        %v4702 = vsub.s32 %v4699, %v4701
        %v4703 = vrot.slane %v4696, %v4702
        %v4704 = vcombine.high %v4619, %v4619
        %v4706 = vunpack.c.l.s4 1983009808
        %v4707 = vunpack.c.0.s8 %v4706
        %v4708 = vlaneseq
        %v4709 = vshrl.u32 %v4708, 7
        %v4710 = vsub.s32 %v4707, %v4709
        %v4711 = vrot.slane %v4704, %v4710
        %v4712 = vsel %vm4637, %v4703, %v4703
        %v4713 = vsel %vm4639, %v4703, %v4712
        %v4714 = vrot.slane %v4711, 7
        %v4715 = vsel %vm4642, %v4714, %v4713
        %v4716 = vsel %vm4644, %v4714, %v4715
        %v4717 = vsel %vm4646, %v4714, %v4716
        %v4718 = vsel %vm4648, %v4714, %v4717
        %4719 = vrot.lane.b32.xlu0 %v4718, 112
        %v4720 = vpop.permute.xlu0 %4719
        %v4721 = vrot.slane %v4720, 6
        %vm4722 = vcmask 916480
        %v4723 = vsel %vm4722, %v4721, %v4720
        %vm4725 = vcmask 1042304
        %vm4726 = vcmask 355330
        %vm4727 = vmor %vm4726, %vm4725
        %4728 = vst.msk [vmem:[#allocation3 + $0x2] sm:$0xf] %vm4727, %v4723
        %v4729 = vrot.slane %v4703, 1
        %v4730 = vsel %vm4637, %v4729, %v4729
        %v4731 = vsel %vm4639, %v4729, %v4730
        %v4732 = vsel %vm4642, %v4711, %v4731
        %v4733 = vsel %vm4644, %v4711, %v4732
        %v4734 = vsel %vm4646, %v4711, %v4733
        %v4735 = vsel %vm4648, %v4711, %v4734
        %4736 = vrot.lane.b32.xlu0 %v4735, 44
        %v4737 = vpop.permute.xlu0 %4736
        %vm4739 = vcmask 845152
        %4740 = vst.msk [vmem:[#allocation3 + $0x4] sm:$0x3] %vm4739, %v4737
        %v4741 = vcombine.high %v4703, %v4703
        %v4742 = vcombine.high %v4711, %v4711
        %v4743 = vsel %vm4637, %v4741, %v4741
        %v4744 = vsel %vm4639, %v4741, %v4743
        %v4745 = vrot.slane %v4742, 7
        %v4746 = vsel %vm4642, %v4745, %v4744
        %v4747 = vsel %vm4644, %v4745, %v4746
        %v4748 = vsel %vm4646, %v4745, %v4747
        %v4749 = vsel %vm4648, %v4745, %v4748
        %4750 = vrot.lane.b32.xlu0 %v4749, 104
        %v4751 = vpop.permute.xlu0 %4750
        %v4752 = vrot.slane %v4751, 6
        %vm4753 = vcmask 850944
        %v4754 = vsel %vm4753, %v4752, %v4751
        %vm4756 = vcmask 1042240
        %vm4757 = vcmask 289794
        %vm4758 = vmor %vm4757, %vm4756
        %4759 = vst.msk [vmem:[#allocation3 + $0x4] sm:$0xf] %vm4758, %v4754
        %v4760 = vrot.slane %v4741, 1
        %v4761 = vsel %vm4637, %v4760, %v4760
        %v4762 = vsel %vm4639, %v4760, %v4761
        %v4763 = vsel %vm4642, %v4742, %v4762
        %v4764 = vsel %vm4644, %v4742, %v4763
        %v4765 = vsel %vm4646, %v4742, %v4764
        %v4766 = vsel %vm4648, %v4742, %v4765
        %4767 = vrot.lane.b32.xlu0 %v4766, 36
        %v4768 = vpop.permute.xlu0 %4767
        %vm4770 = vcmask 779552
        %4771 = vst.msk [vmem:[#allocation3 + $0x6] sm:$0x3] %vm4770, %v4768
        %v4775 = vunpack.c.l.s4 1983009808
        %v4776 = vunpack.c.0.s8 %v4775
        %v4777 = vlaneseq
        %v4778 = vshrl.u32 %v4777, 7
        %v4779 = vsub.s32 %v4776, %v4778
        %v4780 = vrot.slane %v4618, %v4779
        %v4782 = vunpack.c.l.s4 1983009808
        %v4783 = vunpack.c.0.s8 %v4782
        %v4784 = vlaneseq
        %v4785 = vshrl.u32 %v4784, 7
        %v4786 = vsub.s32 %v4783, %v4785
        %v4787 = vrot.slane %v4620, %v4786
        %v4788 = vsel %vm4637, %v4780, %v4780
        %v4789 = vsel %vm4639, %v4780, %v4788
        %v4790 = vrot.slane %v4787, 7
        %v4791 = vsel %vm4642, %v4790, %v4789
        %v4792 = vsel %vm4644, %v4790, %v4791
        %v4793 = vsel %vm4646, %v4790, %v4792
        %v4794 = vsel %vm4648, %v4790, %v4793
        %4795 = vrot.lane.b32.xlu0 %v4794, 96
        %v4796 = vpop.permute.xlu0 %4795
        %v4797 = vrot.slane %v4796, 6
        %vm4798 = vcmask 785408
        %v4799 = vsel %vm4798, %v4797, %v4796
        %vm4801 = vcmask 1042176
        %vm4802 = vcmask 224258
        %vm4803 = vmor %vm4802, %vm4801
        %4804 = vst.msk [vmem:[#allocation3 + $0x6] sm:$0xf] %vm4803, %v4799
        %v4805 = vrot.slane %v4780, 1
        %v4806 = vsel %vm4637, %v4805, %v4805
        %v4807 = vsel %vm4639, %v4805, %v4806
        %v4808 = vsel %vm4642, %v4787, %v4807
        %v4809 = vsel %vm4644, %v4787, %v4808
        %v4810 = vsel %vm4646, %v4787, %v4809
        %v4811 = vsel %vm4648, %v4787, %v4810
        %4812 = vrot.lane.b32.xlu0 %v4811, 28
        %v4813 = vpop.permute.xlu0 %4812
        %vm4815 = vcmask 713952
        %4816 = vst.msk [vmem:[#allocation3 + $0x8] sm:$0x3] %vm4815, %v4813
        %v4817 = vcombine.high %v4780, %v4780
        %v4818 = vcombine.high %v4787, %v4787
        %v4819 = vsel %vm4637, %v4817, %v4817
        %v4820 = vsel %vm4639, %v4817, %v4819
        %v4821 = vrot.slane %v4818, 7
        %v4822 = vsel %vm4642, %v4821, %v4820
        %v4823 = vsel %vm4644, %v4821, %v4822
        %v4824 = vsel %vm4646, %v4821, %v4823
        %v4825 = vsel %vm4648, %v4821, %v4824
        %4826 = vrot.lane.b32.xlu0 %v4825, 88
        %v4827 = vpop.permute.xlu0 %4826
        %v4828 = vrot.slane %v4827, 6
        %vm4829 = vcmask 719872
        %v4830 = vsel %vm4829, %v4828, %v4827
        %vm4832 = vcmask 1042112
        %vm4833 = vcmask 158722
        %vm4834 = vmor %vm4833, %vm4832
        %4835 = vst.msk [vmem:[#allocation3 + $0x8] sm:$0xf] %vm4834, %v4830
        %v4836 = vrot.slane %v4817, 1
        %v4837 = vsel %vm4637, %v4836, %v4836
        %v4838 = vsel %vm4639, %v4836, %v4837
        %v4839 = vsel %vm4642, %v4818, %v4838
        %v4840 = vsel %vm4644, %v4818, %v4839
        %v4841 = vsel %vm4646, %v4818, %v4840
        %v4842 = vsel %vm4648, %v4818, %v4841
        %4843 = vrot.lane.b32.xlu0 %v4842, 20
        %v4844 = vpop.permute.xlu0 %4843
        %vm4846 = vcmask 648352
        %4847 = vst.msk [vmem:[#allocation3 + $0xa] sm:$0x3] %vm4846, %v4844
        %v4848 = vcombine.high %v4618, %v4618
        %v4850 = vunpack.c.l.s4 1983009808
        %v4851 = vunpack.c.0.s8 %v4850
        %v4852 = vlaneseq
        %v4853 = vshrl.u32 %v4852, 7
        %v4854 = vsub.s32 %v4851, %v4853
        %v4855 = vrot.slane %v4848, %v4854
        %v4856 = vcombine.high %v4620, %v4620
        %v4858 = vunpack.c.l.s4 1983009808
        %v4859 = vunpack.c.0.s8 %v4858
        %v4860 = vlaneseq
        %v4861 = vshrl.u32 %v4860, 7
        %v4862 = vsub.s32 %v4859, %v4861
        %v4863 = vrot.slane %v4856, %v4862
        %v4864 = vsel %vm4637, %v4855, %v4855
        %v4865 = vsel %vm4639, %v4855, %v4864
        %v4866 = vrot.slane %v4863, 7
        %v4867 = vsel %vm4642, %v4866, %v4865
        %v4868 = vsel %vm4644, %v4866, %v4867
        %v4869 = vsel %vm4646, %v4866, %v4868
        %v4870 = vsel %vm4648, %v4866, %v4869
        %4871 = vrot.lane.b32.xlu0 %v4870, 80
        %v4872 = vpop.permute.xlu0 %4871
        %v4873 = vrot.slane %v4872, 6
        %vm4874 = vcmask 654336
        %v4875 = vsel %vm4874, %v4873, %v4872
        %vm4877 = vcmask 1042048
        %vm4878 = vcmask 93186
        %vm4879 = vmor %vm4878, %vm4877
        %4880 = vst.msk [vmem:[#allocation3 + $0xa] sm:$0xf] %vm4879, %v4875
        %v4881 = vrot.slane %v4855, 1
        %v4882 = vsel %vm4637, %v4881, %v4881
        %v4883 = vsel %vm4639, %v4881, %v4882
        %v4884 = vsel %vm4642, %v4863, %v4883
        %v4885 = vsel %vm4644, %v4863, %v4884
        %v4886 = vsel %vm4646, %v4863, %v4885
        %v4887 = vsel %vm4648, %v4863, %v4886
        %4888 = vrot.lane.b32.xlu0 %v4887, 12
        %v4889 = vpop.permute.xlu0 %4888
        %vm4891 = vcmask 582752
        %4892 = vst.msk [vmem:[#allocation3 + $0xc] sm:$0x3] %vm4891, %v4889
        %v4893 = vcombine.high %v4855, %v4855
        %v4894 = vcombine.high %v4863, %v4863
        %v4895 = vsel %vm4637, %v4893, %v4893
        %v4896 = vsel %vm4639, %v4893, %v4895
        %v4897 = vrot.slane %v4894, 7
        %v4898 = vsel %vm4642, %v4897, %v4896
        %v4899 = vsel %vm4644, %v4897, %v4898
        %v4900 = vsel %vm4646, %v4897, %v4899
        %v4901 = vsel %vm4648, %v4897, %v4900
        %4902 = vrot.lane.b32.xlu0 %v4901, 72
        %v4903 = vpop.permute.xlu0 %4902
        %v4904 = vrot.slane %v4903, 6
        %vm4905 = vcmask 588800
        %v4906 = vsel %vm4905, %v4904, %v4903
        %vm4908 = vcmask 1041984
        %vm4909 = vcmask 27650
        %vm4910 = vmor %vm4909, %vm4908
        %4911 = vst.msk [vmem:[#allocation3 + $0xc] sm:$0xf] %vm4910, %v4906
        %v4912 = vrot.slane %v4893, 1
        %v4913 = vsel %vm4637, %v4912, %v4912
        %v4914 = vsel %vm4639, %v4912, %v4913
        %v4915 = vsel %vm4642, %v4894, %v4914
        %v4916 = vsel %vm4644, %v4894, %v4915
        %v4917 = vsel %vm4646, %v4894, %v4916
        %v4918 = vsel %vm4648, %v4894, %v4917
        %4919 = vrot.lane.b32.xlu0 %v4918, 4
        %v4920 = vpop.permute.xlu0 %4919
        %vm4922 = vcmask 517152
        %4923 = vst.msk [vmem:[#allocation3 + $0xe] sm:$0x3] %vm4922, %v4920
        %v4924 = vld [vmem:[#allocation3] sm:$0xff]
        %v4925 = vld [vmem:[#allocation3 + $0x8] sm:$0xff]
        %v4928 = vcombine.high %v4924, %v4924
        %v4930 = vunpack.c.l.s4 1983009808
        %v4931 = vunpack.c.0.s8 %v4930
        %v4932 = vlaneseq
        %v4933 = vshrl.u32 %v4932, 7
        %v4934 = vsub.s32 %v4931, %v4933
        %v4935 = vrot.slane %v4924, %v4934
        %v4937 = vunpack.c.l.s4 1983009808
        %v4938 = vunpack.c.0.s8 %v4937
        %v4939 = vlaneseq
        %v4940 = vshrl.u32 %v4939, 7
        %v4941 = vsub.s32 %v4938, %v4940
        %v4942 = vrot.slane %v4928, %v4941
        %v4943 = vcombine.high %v4935, %v4935
        %v4944 = vcombine.high %v4942, %v4942
        %v4945 = vcombine.high %v4925, %v4925
        %v4947 = vunpack.c.l.s4 1983009808
        %v4948 = vunpack.c.0.s8 %v4947
        %v4949 = vlaneseq
        %v4950 = vshrl.u32 %v4949, 7
        %v4951 = vsub.s32 %v4948, %v4950
        %v4952 = vrot.slane %v4925, %v4951
        %v4954 = vunpack.c.l.s4 1983009808
        %v4955 = vunpack.c.0.s8 %v4954
        %v4956 = vlaneseq
        %v4957 = vshrl.u32 %v4956, 7
        %v4958 = vsub.s32 %v4955, %v4957
        %v4959 = vrot.slane %v4945, %v4958
        %v4960 = vcombine.high %v4952, %v4952
        %v4961 = vcombine.high %v4959, %v4959
        %v4970 = vpack.c.bf16 %v4935, %v4935
        %v4971 = vpack.c.bf16 %v4943, %v4943
        %v4972 = vpack.c.bf16 %v4942, %v4942
        %v4973 = vpack.c.bf16 %v4944, %v4944
        %v4974 = vpack.c.bf16 %v4952, %v4952
        %v4975 = vpack.c.bf16 %v4960, %v4960
        %v4976 = vpack.c.bf16 %v4959, %v4959
        %v4977 = vpack.c.bf16 %v4961, %v4961
        %v4978 = vld [vmem:[%s886] sm:$0xff]
        %v4979 = vld [vmem:[%s886 + $0x8] sm:$0xff]
        %v4980 = vld [vmem:[%s886 + $0x10] sm:$0xff]
        %v4981 = vld [vmem:[%s886 + $0x18] sm:$0xff]
        %v4982 = vld [vmem:[%s886 + $0x20] sm:$0xff]
        %v4983 = vld [vmem:[%s886 + $0x28] sm:$0xff]
        %v4984 = vld [vmem:[%s886 + $0x30] sm:$0xff]
        %v4985 = vld [vmem:[%s886 + $0x38] sm:$0xff]
        %v4986 = vld [vmem:[%s886 + $0x40] sm:$0xff]
        %v4987 = vld [vmem:[%s886 + $0x48] sm:$0xff]
        %v4988 = vld [vmem:[%s886 + $0x50] sm:$0xff]
        %v4989 = vld [vmem:[%s886 + $0x58] sm:$0xff]
        %v4990 = vld [vmem:[%s886 + $0x60] sm:$0xff]
        %v4991 = vld [vmem:[%s886 + $0x68] sm:$0xff]
        %v4992 = vld [vmem:[%s886 + $0x70] sm:$0xff]
        %v4993 = vld [vmem:[%s886 + $0x78] sm:$0xff]
        %v4994 = vld [vmem:[%s886 + $0x80] sm:$0xff]
        %v4995 = vld [vmem:[%s886 + $0x88] sm:$0xff]
        %v4996 = vld [vmem:[%s886 + $0x90] sm:$0xff]
        %v4997 = vld [vmem:[%s886 + $0x98] sm:$0xff]
        %v4998 = vld [vmem:[%s886 + $0xa0] sm:$0xff]
        %v4999 = vld [vmem:[%s886 + $0xa8] sm:$0xff]
        %v5000 = vld [vmem:[%s886 + $0xb0] sm:$0xff]
        %v5001 = vld [vmem:[%s886 + $0xb8] sm:$0xff]
        %v5002 = vld [vmem:[%s886 + $0xc0] sm:$0xff]
        %v5003 = vld [vmem:[%s886 + $0xc8] sm:$0xff]
        %v5004 = vld [vmem:[%s886 + $0xd0] sm:$0xff]
        %v5005 = vld [vmem:[%s886 + $0xd8] sm:$0xff]
        %v5006 = vld [vmem:[%s886 + $0xe0] sm:$0xff]
        %v5007 = vld [vmem:[%s886 + $0xe8] sm:$0xff]
        %v5008 = vld [vmem:[%s886 + $0xf0] sm:$0xff]
        %v5009 = vld [vmem:[%s886 + $0xf8] sm:$0xff]
        %v5010 = vld [vmem:[%s886 + $0x100] sm:$0xff]
        %v5011 = vld [vmem:[%s886 + $0x108] sm:$0xff]
        %v5012 = vld [vmem:[%s886 + $0x110] sm:$0xff]
        %v5013 = vld [vmem:[%s886 + $0x118] sm:$0xff]
        %v5014 = vld [vmem:[%s886 + $0x120] sm:$0xff]
        %v5015 = vld [vmem:[%s886 + $0x128] sm:$0xff]
        %v5016 = vld [vmem:[%s886 + $0x130] sm:$0xff]
        %v5017 = vld [vmem:[%s886 + $0x138] sm:$0xff]
        %v5018 = vld [vmem:[%s886 + $0x140] sm:$0xff]
        %v5019 = vld [vmem:[%s886 + $0x148] sm:$0xff]
        %v5020 = vld [vmem:[%s886 + $0x150] sm:$0xff]
        %v5021 = vld [vmem:[%s886 + $0x158] sm:$0xff]
        %v5022 = vld [vmem:[%s886 + $0x160] sm:$0xff]
        %v5023 = vld [vmem:[%s886 + $0x168] sm:$0xff]
        %v5024 = vld [vmem:[%s886 + $0x170] sm:$0xff]
        %v5025 = vld [vmem:[%s886 + $0x178] sm:$0xff]
        %v5026 = vld [vmem:[%s886 + $0x180] sm:$0xff]
        %v5027 = vld [vmem:[%s886 + $0x188] sm:$0xff]
        %v5028 = vld [vmem:[%s886 + $0x190] sm:$0xff]
        %v5029 = vld [vmem:[%s886 + $0x198] sm:$0xff]
        %v5030 = vld [vmem:[%s886 + $0x1a0] sm:$0xff]
        %v5031 = vld [vmem:[%s886 + $0x1a8] sm:$0xff]
        %v5032 = vld [vmem:[%s886 + $0x1b0] sm:$0xff]
        %v5033 = vld [vmem:[%s886 + $0x1b8] sm:$0xff]
        %v5034 = vld [vmem:[%s886 + $0x1c0] sm:$0xff]
        %v5035 = vld [vmem:[%s886 + $0x1c8] sm:$0xff]
        %v5036 = vld [vmem:[%s886 + $0x1d0] sm:$0xff]
        %v5037 = vld [vmem:[%s886 + $0x1d8] sm:$0xff]
        %v5038 = vld [vmem:[%s886 + $0x1e0] sm:$0xff]
        %v5039 = vld [vmem:[%s886 + $0x1e8] sm:$0xff]
        %v5040 = vld [vmem:[%s886 + $0x1f0] sm:$0xff]
        %v5041 = vld [vmem:[%s886 + $0x1f8] sm:$0xff]
        %v5042 = vld [vmem:[%s886 + $0x200] sm:$0xff]
        %v5043 = vld [vmem:[%s886 + $0x208] sm:$0xff]
        %v5044 = vld [vmem:[%s886 + $0x210] sm:$0xff]
        %v5045 = vld [vmem:[%s886 + $0x218] sm:$0xff]
        %v5046 = vld [vmem:[%s886 + $0x220] sm:$0xff]
        %v5047 = vld [vmem:[%s886 + $0x228] sm:$0xff]
        %v5048 = vld [vmem:[%s886 + $0x230] sm:$0xff]
        %v5049 = vld [vmem:[%s886 + $0x238] sm:$0xff]
        %v5050 = vld [vmem:[%s886 + $0x240] sm:$0xff]
        %v5051 = vld [vmem:[%s886 + $0x248] sm:$0xff]
        %v5052 = vld [vmem:[%s886 + $0x250] sm:$0xff]
        %v5053 = vld [vmem:[%s886 + $0x258] sm:$0xff]
        %v5054 = vld [vmem:[%s886 + $0x260] sm:$0xff]
        %v5055 = vld [vmem:[%s886 + $0x268] sm:$0xff]
        %v5056 = vld [vmem:[%s886 + $0x270] sm:$0xff]
        %v5057 = vld [vmem:[%s886 + $0x278] sm:$0xff]
        %v5058 = vld [vmem:[%s886 + $0x280] sm:$0xff]
        %v5059 = vld [vmem:[%s886 + $0x288] sm:$0xff]
        %v5060 = vld [vmem:[%s886 + $0x290] sm:$0xff]
        %v5061 = vld [vmem:[%s886 + $0x298] sm:$0xff]
        %v5062 = vld [vmem:[%s886 + $0x2a0] sm:$0xff]
        %v5063 = vld [vmem:[%s886 + $0x2a8] sm:$0xff]
        %v5064 = vld [vmem:[%s886 + $0x2b0] sm:$0xff]
        %v5065 = vld [vmem:[%s886 + $0x2b8] sm:$0xff]
        %v5066 = vld [vmem:[%s886 + $0x2c0] sm:$0xff]
        %v5067 = vld [vmem:[%s886 + $0x2c8] sm:$0xff]
        %v5068 = vld [vmem:[%s886 + $0x2d0] sm:$0xff]
        %v5069 = vld [vmem:[%s886 + $0x2d8] sm:$0xff]
        %v5070 = vld [vmem:[%s886 + $0x2e0] sm:$0xff]
        %v5071 = vld [vmem:[%s886 + $0x2e8] sm:$0xff]
        %v5072 = vld [vmem:[%s886 + $0x2f0] sm:$0xff]
        %v5073 = vld [vmem:[%s886 + $0x2f8] sm:$0xff]
        %v5074 = vld [vmem:[%s886 + $0x300] sm:$0xff]
        %v5075 = vld [vmem:[%s886 + $0x308] sm:$0xff]
        %v5076 = vld [vmem:[%s886 + $0x310] sm:$0xff]
        %v5077 = vld [vmem:[%s886 + $0x318] sm:$0xff]
        %v5078 = vld [vmem:[%s886 + $0x320] sm:$0xff]
        %v5079 = vld [vmem:[%s886 + $0x328] sm:$0xff]
        %v5080 = vld [vmem:[%s886 + $0x330] sm:$0xff]
        %v5081 = vld [vmem:[%s886 + $0x338] sm:$0xff]
        %v5082 = vld [vmem:[%s886 + $0x340] sm:$0xff]
        %v5083 = vld [vmem:[%s886 + $0x348] sm:$0xff]
        %v5084 = vld [vmem:[%s886 + $0x350] sm:$0xff]
        %v5085 = vld [vmem:[%s886 + $0x358] sm:$0xff]
        %v5086 = vld [vmem:[%s886 + $0x360] sm:$0xff]
        %v5087 = vld [vmem:[%s886 + $0x368] sm:$0xff]
        %v5088 = vld [vmem:[%s886 + $0x370] sm:$0xff]
        %v5089 = vld [vmem:[%s886 + $0x378] sm:$0xff]
        %v5090 = vld [vmem:[%s886 + $0x380] sm:$0xff]
        %v5091 = vld [vmem:[%s886 + $0x388] sm:$0xff]
        %v5092 = vld [vmem:[%s886 + $0x390] sm:$0xff]
        %v5093 = vld [vmem:[%s886 + $0x398] sm:$0xff]
        %v5094 = vld [vmem:[%s886 + $0x3a0] sm:$0xff]
        %v5095 = vld [vmem:[%s886 + $0x3a8] sm:$0xff]
        %v5096 = vld [vmem:[%s886 + $0x3b0] sm:$0xff]
        %v5097 = vld [vmem:[%s886 + $0x3b8] sm:$0xff]
        %v5098 = vld [vmem:[%s886 + $0x3c0] sm:$0xff]
        %v5099 = vld [vmem:[%s886 + $0x3c8] sm:$0xff]
        %v5100 = vld [vmem:[%s886 + $0x3d0] sm:$0xff]
        %v5101 = vld [vmem:[%s886 + $0x3d8] sm:$0xff]
        %v5102 = vld [vmem:[%s886 + $0x3e0] sm:$0xff]
        %v5103 = vld [vmem:[%s886 + $0x3e8] sm:$0xff]
        %v5104 = vld [vmem:[%s886 + $0x3f0] sm:$0xff]
        %v5105 = vld [vmem:[%s886 + $0x3f8] sm:$0xff]
        %v5106 = vld [vmem:[%s886 + $0x400] sm:$0xff]
        %v5107 = vld [vmem:[%s886 + $0x408] sm:$0xff]
        %v5108 = vld [vmem:[%s886 + $0x410] sm:$0xff]
        %v5109 = vld [vmem:[%s886 + $0x418] sm:$0xff]
        %v5110 = vld [vmem:[%s886 + $0x420] sm:$0xff]
        %v5111 = vld [vmem:[%s886 + $0x428] sm:$0xff]
        %v5112 = vld [vmem:[%s886 + $0x430] sm:$0xff]
        %v5113 = vld [vmem:[%s886 + $0x438] sm:$0xff]
        %v5114 = vld [vmem:[%s886 + $0x440] sm:$0xff]
        %v5115 = vld [vmem:[%s886 + $0x448] sm:$0xff]
        %v5116 = vld [vmem:[%s886 + $0x450] sm:$0xff]
        %v5117 = vld [vmem:[%s886 + $0x458] sm:$0xff]
        %v5118 = vld [vmem:[%s886 + $0x460] sm:$0xff]
        %v5119 = vld [vmem:[%s886 + $0x468] sm:$0xff]
        %v5120 = vld [vmem:[%s886 + $0x470] sm:$0xff]
        %v5121 = vld [vmem:[%s886 + $0x478] sm:$0xff]
        %v5122 = vld [vmem:[%s886 + $0x480] sm:$0xff]
        %v5123 = vld [vmem:[%s886 + $0x488] sm:$0xff]
        %v5124 = vld [vmem:[%s886 + $0x490] sm:$0xff]
        %v5125 = vld [vmem:[%s886 + $0x498] sm:$0xff]
        %v5126 = vld [vmem:[%s886 + $0x4a0] sm:$0xff]
        %v5127 = vld [vmem:[%s886 + $0x4a8] sm:$0xff]
        %v5128 = vld [vmem:[%s886 + $0x4b0] sm:$0xff]
        %v5129 = vld [vmem:[%s886 + $0x4b8] sm:$0xff]
        %v5130 = vld [vmem:[%s886 + $0x4c0] sm:$0xff]
        %v5131 = vld [vmem:[%s886 + $0x4c8] sm:$0xff]
        %v5132 = vld [vmem:[%s886 + $0x4d0] sm:$0xff]
        %v5133 = vld [vmem:[%s886 + $0x4d8] sm:$0xff]
        %v5134 = vld [vmem:[%s886 + $0x4e0] sm:$0xff]
        %v5135 = vld [vmem:[%s886 + $0x4e8] sm:$0xff]
        %v5136 = vld [vmem:[%s886 + $0x4f0] sm:$0xff]
        %v5137 = vld [vmem:[%s886 + $0x4f8] sm:$0xff]
        %v5138 = vld [vmem:[%s886 + $0x500] sm:$0xff]
        %v5139 = vld [vmem:[%s886 + $0x508] sm:$0xff]
        %v5140 = vld [vmem:[%s886 + $0x510] sm:$0xff]
        %v5141 = vld [vmem:[%s886 + $0x518] sm:$0xff]
        %v5142 = vld [vmem:[%s886 + $0x520] sm:$0xff]
        %v5143 = vld [vmem:[%s886 + $0x528] sm:$0xff]
        %v5144 = vld [vmem:[%s886 + $0x530] sm:$0xff]
        %v5145 = vld [vmem:[%s886 + $0x538] sm:$0xff]
        %v5146 = vld [vmem:[%s886 + $0x540] sm:$0xff]
        %v5147 = vld [vmem:[%s886 + $0x548] sm:$0xff]
        %v5148 = vld [vmem:[%s886 + $0x550] sm:$0xff]
        %v5149 = vld [vmem:[%s886 + $0x558] sm:$0xff]
        %v5150 = vld [vmem:[%s886 + $0x560] sm:$0xff]
        %v5151 = vld [vmem:[%s886 + $0x568] sm:$0xff]
        %v5152 = vld [vmem:[%s886 + $0x570] sm:$0xff]
        %v5153 = vld [vmem:[%s886 + $0x578] sm:$0xff]
        %v5154 = vld [vmem:[%s886 + $0x580] sm:$0xff]
        %v5155 = vld [vmem:[%s886 + $0x588] sm:$0xff]
        %v5156 = vld [vmem:[%s886 + $0x590] sm:$0xff]
        %v5157 = vld [vmem:[%s886 + $0x598] sm:$0xff]
        %v5158 = vld [vmem:[%s886 + $0x5a0] sm:$0xff]
        %v5159 = vld [vmem:[%s886 + $0x5a8] sm:$0xff]
        %v5160 = vld [vmem:[%s886 + $0x5b0] sm:$0xff]
        %v5161 = vld [vmem:[%s886 + $0x5b8] sm:$0xff]
        %v5162 = vld [vmem:[%s886 + $0x5c0] sm:$0xff]
        %v5163 = vld [vmem:[%s886 + $0x5c8] sm:$0xff]
        %v5164 = vld [vmem:[%s886 + $0x5d0] sm:$0xff]
        %v5165 = vld [vmem:[%s886 + $0x5d8] sm:$0xff]
        %v5166 = vld [vmem:[%s886 + $0x5e0] sm:$0xff]
        %v5167 = vld [vmem:[%s886 + $0x5e8] sm:$0xff]
        %v5168 = vld [vmem:[%s886 + $0x5f0] sm:$0xff]
        %v5169 = vld [vmem:[%s886 + $0x5f8] sm:$0xff]
        %v5170 = vld [vmem:[%s886 + $0x600] sm:$0xff]
        %v5171 = vld [vmem:[%s886 + $0x608] sm:$0xff]
        %v5172 = vld [vmem:[%s886 + $0x610] sm:$0xff]
        %v5173 = vld [vmem:[%s886 + $0x618] sm:$0xff]
        %v5174 = vld [vmem:[%s886 + $0x620] sm:$0xff]
        %v5175 = vld [vmem:[%s886 + $0x628] sm:$0xff]
        %v5176 = vld [vmem:[%s886 + $0x630] sm:$0xff]
        %v5177 = vld [vmem:[%s886 + $0x638] sm:$0xff]
        %v5178 = vld [vmem:[%s886 + $0x640] sm:$0xff]
        %v5179 = vld [vmem:[%s886 + $0x648] sm:$0xff]
        %v5180 = vld [vmem:[%s886 + $0x650] sm:$0xff]
        %v5181 = vld [vmem:[%s886 + $0x658] sm:$0xff]
        %v5182 = vld [vmem:[%s886 + $0x660] sm:$0xff]
        %v5183 = vld [vmem:[%s886 + $0x668] sm:$0xff]
        %v5184 = vld [vmem:[%s886 + $0x670] sm:$0xff]
        %v5185 = vld [vmem:[%s886 + $0x678] sm:$0xff]
        %v5186 = vld [vmem:[%s886 + $0x680] sm:$0xff]
        %v5187 = vld [vmem:[%s886 + $0x688] sm:$0xff]
        %v5188 = vld [vmem:[%s886 + $0x690] sm:$0xff]
        %v5189 = vld [vmem:[%s886 + $0x698] sm:$0xff]
        %v5190 = vld [vmem:[%s886 + $0x6a0] sm:$0xff]
        %v5191 = vld [vmem:[%s886 + $0x6a8] sm:$0xff]
        %v5192 = vld [vmem:[%s886 + $0x6b0] sm:$0xff]
        %v5193 = vld [vmem:[%s886 + $0x6b8] sm:$0xff]
        %v5194 = vld [vmem:[%s886 + $0x6c0] sm:$0xff]
        %v5195 = vld [vmem:[%s886 + $0x6c8] sm:$0xff]
        %v5196 = vld [vmem:[%s886 + $0x6d0] sm:$0xff]
        %v5197 = vld [vmem:[%s886 + $0x6d8] sm:$0xff]
        %v5198 = vld [vmem:[%s886 + $0x6e0] sm:$0xff]
        %v5199 = vld [vmem:[%s886 + $0x6e8] sm:$0xff]
        %v5200 = vld [vmem:[%s886 + $0x6f0] sm:$0xff]
        %v5201 = vld [vmem:[%s886 + $0x6f8] sm:$0xff]
        %v5202 = vld [vmem:[%s886 + $0x700] sm:$0xff]
        %v5203 = vld [vmem:[%s886 + $0x708] sm:$0xff]
        %v5204 = vld [vmem:[%s886 + $0x710] sm:$0xff]
        %v5205 = vld [vmem:[%s886 + $0x718] sm:$0xff]
        %v5206 = vld [vmem:[%s886 + $0x720] sm:$0xff]
        %v5207 = vld [vmem:[%s886 + $0x728] sm:$0xff]
        %v5208 = vld [vmem:[%s886 + $0x730] sm:$0xff]
        %v5209 = vld [vmem:[%s886 + $0x738] sm:$0xff]
        %v5210 = vld [vmem:[%s886 + $0x740] sm:$0xff]
        %v5211 = vld [vmem:[%s886 + $0x748] sm:$0xff]
        %v5212 = vld [vmem:[%s886 + $0x750] sm:$0xff]
        %v5213 = vld [vmem:[%s886 + $0x758] sm:$0xff]
        %v5214 = vld [vmem:[%s886 + $0x760] sm:$0xff]
        %v5215 = vld [vmem:[%s886 + $0x768] sm:$0xff]
        %v5216 = vld [vmem:[%s886 + $0x770] sm:$0xff]
        %v5217 = vld [vmem:[%s886 + $0x778] sm:$0xff]
        %v5218 = vld [vmem:[%s886 + $0x780] sm:$0xff]
        %v5219 = vld [vmem:[%s886 + $0x788] sm:$0xff]
        %v5220 = vld [vmem:[%s886 + $0x790] sm:$0xff]
        %v5221 = vld [vmem:[%s886 + $0x798] sm:$0xff]
        %v5222 = vld [vmem:[%s886 + $0x7a0] sm:$0xff]
        %v5223 = vld [vmem:[%s886 + $0x7a8] sm:$0xff]
        %v5224 = vld [vmem:[%s886 + $0x7b0] sm:$0xff]
        %v5225 = vld [vmem:[%s886 + $0x7b8] sm:$0xff]
        %v5226 = vld [vmem:[%s886 + $0x7c0] sm:$0xff]
        %v5227 = vld [vmem:[%s886 + $0x7c8] sm:$0xff]
        %v5228 = vld [vmem:[%s886 + $0x7d0] sm:$0xff]
        %v5229 = vld [vmem:[%s886 + $0x7d8] sm:$0xff]
        %v5230 = vld [vmem:[%s886 + $0x7e0] sm:$0xff]
        %v5231 = vld [vmem:[%s886 + $0x7e8] sm:$0xff]
        %v5232 = vld [vmem:[%s886 + $0x7f0] sm:$0xff]
        %v5233 = vld [vmem:[%s886 + $0x7f8] sm:$0xff]
        %v5234 = vld [vmem:[%s886 + $0x800] sm:$0xff]
        %v5235 = vld [vmem:[%s886 + $0x808] sm:$0xff]
        %v5236 = vld [vmem:[%s886 + $0x810] sm:$0xff]
        %v5237 = vld [vmem:[%s886 + $0x818] sm:$0xff]
        %v5238 = vld [vmem:[%s886 + $0x820] sm:$0xff]
        %v5239 = vld [vmem:[%s886 + $0x828] sm:$0xff]
        %v5240 = vld [vmem:[%s886 + $0x830] sm:$0xff]
        %v5241 = vld [vmem:[%s886 + $0x838] sm:$0xff]
        %v5242 = vld [vmem:[%s886 + $0x840] sm:$0xff]
        %v5243 = vld [vmem:[%s886 + $0x848] sm:$0xff]
        %v5244 = vld [vmem:[%s886 + $0x850] sm:$0xff]
        %v5245 = vld [vmem:[%s886 + $0x858] sm:$0xff]
        %v5246 = vld [vmem:[%s886 + $0x860] sm:$0xff]
        %v5247 = vld [vmem:[%s886 + $0x868] sm:$0xff]
        %v5248 = vld [vmem:[%s886 + $0x870] sm:$0xff]
        %v5249 = vld [vmem:[%s886 + $0x878] sm:$0xff]
        %v5250 = vld [vmem:[%s886 + $0x880] sm:$0xff]
        %v5251 = vld [vmem:[%s886 + $0x888] sm:$0xff]
        %v5252 = vld [vmem:[%s886 + $0x890] sm:$0xff]
        %v5253 = vld [vmem:[%s886 + $0x898] sm:$0xff]
        %v5254 = vld [vmem:[%s886 + $0x8a0] sm:$0xff]
        %v5255 = vld [vmem:[%s886 + $0x8a8] sm:$0xff]
        %v5256 = vld [vmem:[%s886 + $0x8b0] sm:$0xff]
        %v5257 = vld [vmem:[%s886 + $0x8b8] sm:$0xff]
        %v5258 = vld [vmem:[%s886 + $0x8c0] sm:$0xff]
        %v5259 = vld [vmem:[%s886 + $0x8c8] sm:$0xff]
        %v5260 = vld [vmem:[%s886 + $0x8d0] sm:$0xff]
        %v5261 = vld [vmem:[%s886 + $0x8d8] sm:$0xff]
        %v5262 = vld [vmem:[%s886 + $0x8e0] sm:$0xff]
        %v5263 = vld [vmem:[%s886 + $0x8e8] sm:$0xff]
        %v5264 = vld [vmem:[%s886 + $0x8f0] sm:$0xff]
        %v5265 = vld [vmem:[%s886 + $0x8f8] sm:$0xff]
        %v5266 = vld [vmem:[%s886 + $0x900] sm:$0xff]
        %v5267 = vld [vmem:[%s886 + $0x908] sm:$0xff]
        %v5268 = vld [vmem:[%s886 + $0x910] sm:$0xff]
        %v5269 = vld [vmem:[%s886 + $0x918] sm:$0xff]
        %v5270 = vld [vmem:[%s886 + $0x920] sm:$0xff]
        %v5271 = vld [vmem:[%s886 + $0x928] sm:$0xff]
        %v5272 = vld [vmem:[%s886 + $0x930] sm:$0xff]
        %v5273 = vld [vmem:[%s886 + $0x938] sm:$0xff]
        %v5274 = vld [vmem:[%s886 + $0x940] sm:$0xff]
        %v5275 = vld [vmem:[%s886 + $0x948] sm:$0xff]
        %v5276 = vld [vmem:[%s886 + $0x950] sm:$0xff]
        %v5277 = vld [vmem:[%s886 + $0x958] sm:$0xff]
        %v5278 = vld [vmem:[%s886 + $0x960] sm:$0xff]
        %v5279 = vld [vmem:[%s886 + $0x968] sm:$0xff]
        %v5280 = vld [vmem:[%s886 + $0x970] sm:$0xff]
        %v5281 = vld [vmem:[%s886 + $0x978] sm:$0xff]
        %v5282 = vld [vmem:[%s886 + $0x980] sm:$0xff]
        %v5283 = vld [vmem:[%s886 + $0x988] sm:$0xff]
        %v5284 = vld [vmem:[%s886 + $0x990] sm:$0xff]
        %v5285 = vld [vmem:[%s886 + $0x998] sm:$0xff]
        %v5286 = vld [vmem:[%s886 + $0x9a0] sm:$0xff]
        %v5287 = vld [vmem:[%s886 + $0x9a8] sm:$0xff]
        %v5288 = vld [vmem:[%s886 + $0x9b0] sm:$0xff]
        %v5289 = vld [vmem:[%s886 + $0x9b8] sm:$0xff]
        %v5290 = vld [vmem:[%s886 + $0x9c0] sm:$0xff]
        %v5291 = vld [vmem:[%s886 + $0x9c8] sm:$0xff]
        %v5292 = vld [vmem:[%s886 + $0x9d0] sm:$0xff]
        %v5293 = vld [vmem:[%s886 + $0x9d8] sm:$0xff]
        %v5294 = vld [vmem:[%s886 + $0x9e0] sm:$0xff]
        %v5295 = vld [vmem:[%s886 + $0x9e8] sm:$0xff]
        %v5296 = vld [vmem:[%s886 + $0x9f0] sm:$0xff]
        %v5297 = vld [vmem:[%s886 + $0x9f8] sm:$0xff]
        %v5298 = vld [vmem:[%s886 + $0xa00] sm:$0xff]
        %v5299 = vld [vmem:[%s886 + $0xa08] sm:$0xff]
        %v5300 = vld [vmem:[%s886 + $0xa10] sm:$0xff]
        %v5301 = vld [vmem:[%s886 + $0xa18] sm:$0xff]
        %v5302 = vld [vmem:[%s886 + $0xa20] sm:$0xff]
        %v5303 = vld [vmem:[%s886 + $0xa28] sm:$0xff]
        %v5304 = vld [vmem:[%s886 + $0xa30] sm:$0xff]
        %v5305 = vld [vmem:[%s886 + $0xa38] sm:$0xff]
        %v5306 = vld [vmem:[%s886 + $0xa40] sm:$0xff]
        %v5307 = vld [vmem:[%s886 + $0xa48] sm:$0xff]
        %v5308 = vld [vmem:[%s886 + $0xa50] sm:$0xff]
        %v5309 = vld [vmem:[%s886 + $0xa58] sm:$0xff]
        %v5310 = vld [vmem:[%s886 + $0xa60] sm:$0xff]
        %v5311 = vld [vmem:[%s886 + $0xa68] sm:$0xff]
        %v5312 = vld [vmem:[%s886 + $0xa70] sm:$0xff]
        %v5313 = vld [vmem:[%s886 + $0xa78] sm:$0xff]
        %v5314 = vld [vmem:[%s886 + $0xa80] sm:$0xff]
        %v5315 = vld [vmem:[%s886 + $0xa88] sm:$0xff]
        %v5316 = vld [vmem:[%s886 + $0xa90] sm:$0xff]
        %v5317 = vld [vmem:[%s886 + $0xa98] sm:$0xff]
        %v5318 = vld [vmem:[%s886 + $0xaa0] sm:$0xff]
        %v5319 = vld [vmem:[%s886 + $0xaa8] sm:$0xff]
        %v5320 = vld [vmem:[%s886 + $0xab0] sm:$0xff]
        %v5321 = vld [vmem:[%s886 + $0xab8] sm:$0xff]
        %v5322 = vld [vmem:[%s886 + $0xac0] sm:$0xff]
        %v5323 = vld [vmem:[%s886 + $0xac8] sm:$0xff]
        %v5324 = vld [vmem:[%s886 + $0xad0] sm:$0xff]
        %v5325 = vld [vmem:[%s886 + $0xad8] sm:$0xff]
        %v5326 = vld [vmem:[%s886 + $0xae0] sm:$0xff]
        %v5327 = vld [vmem:[%s886 + $0xae8] sm:$0xff]
        %v5328 = vld [vmem:[%s886 + $0xaf0] sm:$0xff]
        %v5329 = vld [vmem:[%s886 + $0xaf8] sm:$0xff]
        %v5330 = vld [vmem:[%s886 + $0xb00] sm:$0xff]
        %v5331 = vld [vmem:[%s886 + $0xb08] sm:$0xff]
        %v5332 = vld [vmem:[%s886 + $0xb10] sm:$0xff]
        %v5333 = vld [vmem:[%s886 + $0xb18] sm:$0xff]
        %v5334 = vld [vmem:[%s886 + $0xb20] sm:$0xff]
        %v5335 = vld [vmem:[%s886 + $0xb28] sm:$0xff]
        %v5336 = vld [vmem:[%s886 + $0xb30] sm:$0xff]
        %v5337 = vld [vmem:[%s886 + $0xb38] sm:$0xff]
        %v5338 = vld [vmem:[%s886 + $0xb40] sm:$0xff]
        %v5339 = vld [vmem:[%s886 + $0xb48] sm:$0xff]
        %v5340 = vld [vmem:[%s886 + $0xb50] sm:$0xff]
        %v5341 = vld [vmem:[%s886 + $0xb58] sm:$0xff]
        %v5342 = vld [vmem:[%s886 + $0xb60] sm:$0xff]
        %v5343 = vld [vmem:[%s886 + $0xb68] sm:$0xff]
        %v5344 = vld [vmem:[%s886 + $0xb70] sm:$0xff]
        %v5345 = vld [vmem:[%s886 + $0xb78] sm:$0xff]
        %v5346 = vld [vmem:[%s886 + $0xb80] sm:$0xff]
        %v5347 = vld [vmem:[%s886 + $0xb88] sm:$0xff]
        %v5348 = vld [vmem:[%s886 + $0xb90] sm:$0xff]
        %v5349 = vld [vmem:[%s886 + $0xb98] sm:$0xff]
        %v5350 = vld [vmem:[%s886 + $0xba0] sm:$0xff]
        %v5351 = vld [vmem:[%s886 + $0xba8] sm:$0xff]
        %v5352 = vld [vmem:[%s886 + $0xbb0] sm:$0xff]
        %v5353 = vld [vmem:[%s886 + $0xbb8] sm:$0xff]
        %v5354 = vld [vmem:[%s886 + $0xbc0] sm:$0xff]
        %v5355 = vld [vmem:[%s886 + $0xbc8] sm:$0xff]
        %v5356 = vld [vmem:[%s886 + $0xbd0] sm:$0xff]
        %v5357 = vld [vmem:[%s886 + $0xbd8] sm:$0xff]
        %v5358 = vld [vmem:[%s886 + $0xbe0] sm:$0xff]
        %v5359 = vld [vmem:[%s886 + $0xbe8] sm:$0xff]
        %v5360 = vld [vmem:[%s886 + $0xbf0] sm:$0xff]
        %v5361 = vld [vmem:[%s886 + $0xbf8] sm:$0xff]
        %v5362 = vld [vmem:[%s886 + $0xc00] sm:$0xff]
        %v5363 = vld [vmem:[%s886 + $0xc08] sm:$0xff]
        %v5364 = vld [vmem:[%s886 + $0xc10] sm:$0xff]
        %v5365 = vld [vmem:[%s886 + $0xc18] sm:$0xff]
        %v5366 = vld [vmem:[%s886 + $0xc20] sm:$0xff]
        %v5367 = vld [vmem:[%s886 + $0xc28] sm:$0xff]
        %v5368 = vld [vmem:[%s886 + $0xc30] sm:$0xff]
        %v5369 = vld [vmem:[%s886 + $0xc38] sm:$0xff]
        %v5370 = vld [vmem:[%s886 + $0xc40] sm:$0xff]
        %v5371 = vld [vmem:[%s886 + $0xc48] sm:$0xff]
        %v5372 = vld [vmem:[%s886 + $0xc50] sm:$0xff]
        %v5373 = vld [vmem:[%s886 + $0xc58] sm:$0xff]
        %v5374 = vld [vmem:[%s886 + $0xc60] sm:$0xff]
        %v5375 = vld [vmem:[%s886 + $0xc68] sm:$0xff]
        %v5376 = vld [vmem:[%s886 + $0xc70] sm:$0xff]
        %v5377 = vld [vmem:[%s886 + $0xc78] sm:$0xff]
        %v5378 = vld [vmem:[%s886 + $0xc80] sm:$0xff]
        %v5379 = vld [vmem:[%s886 + $0xc88] sm:$0xff]
        %v5380 = vld [vmem:[%s886 + $0xc90] sm:$0xff]
        %v5381 = vld [vmem:[%s886 + $0xc98] sm:$0xff]
        %v5382 = vld [vmem:[%s886 + $0xca0] sm:$0xff]
        %v5383 = vld [vmem:[%s886 + $0xca8] sm:$0xff]
        %v5384 = vld [vmem:[%s886 + $0xcb0] sm:$0xff]
        %v5385 = vld [vmem:[%s886 + $0xcb8] sm:$0xff]
        %v5386 = vld [vmem:[%s886 + $0xcc0] sm:$0xff]
        %v5387 = vld [vmem:[%s886 + $0xcc8] sm:$0xff]
        %v5388 = vld [vmem:[%s886 + $0xcd0] sm:$0xff]
        %v5389 = vld [vmem:[%s886 + $0xcd8] sm:$0xff]
        %v5390 = vld [vmem:[%s886 + $0xce0] sm:$0xff]
        %v5391 = vld [vmem:[%s886 + $0xce8] sm:$0xff]
        %v5392 = vld [vmem:[%s886 + $0xcf0] sm:$0xff]
        %v5393 = vld [vmem:[%s886 + $0xcf8] sm:$0xff]
        %v5394 = vld [vmem:[%s886 + $0xd00] sm:$0xff]
        %v5395 = vld [vmem:[%s886 + $0xd08] sm:$0xff]
        %v5396 = vld [vmem:[%s886 + $0xd10] sm:$0xff]
        %v5397 = vld [vmem:[%s886 + $0xd18] sm:$0xff]
        %v5398 = vld [vmem:[%s886 + $0xd20] sm:$0xff]
        %v5399 = vld [vmem:[%s886 + $0xd28] sm:$0xff]
        %v5400 = vld [vmem:[%s886 + $0xd30] sm:$0xff]
        %v5401 = vld [vmem:[%s886 + $0xd38] sm:$0xff]
        %v5402 = vld [vmem:[%s886 + $0xd40] sm:$0xff]
        %v5403 = vld [vmem:[%s886 + $0xd48] sm:$0xff]
        %v5404 = vld [vmem:[%s886 + $0xd50] sm:$0xff]
        %v5405 = vld [vmem:[%s886 + $0xd58] sm:$0xff]
        %v5406 = vld [vmem:[%s886 + $0xd60] sm:$0xff]
        %v5407 = vld [vmem:[%s886 + $0xd68] sm:$0xff]
        %v5408 = vld [vmem:[%s886 + $0xd70] sm:$0xff]
        %v5409 = vld [vmem:[%s886 + $0xd78] sm:$0xff]
        %v5410 = vld [vmem:[%s886 + $0xd80] sm:$0xff]
        %v5411 = vld [vmem:[%s886 + $0xd88] sm:$0xff]
        %v5412 = vld [vmem:[%s886 + $0xd90] sm:$0xff]
        %v5413 = vld [vmem:[%s886 + $0xd98] sm:$0xff]
        %v5414 = vld [vmem:[%s886 + $0xda0] sm:$0xff]
        %v5415 = vld [vmem:[%s886 + $0xda8] sm:$0xff]
        %v5416 = vld [vmem:[%s886 + $0xdb0] sm:$0xff]
        %v5417 = vld [vmem:[%s886 + $0xdb8] sm:$0xff]
        %v5418 = vld [vmem:[%s886 + $0xdc0] sm:$0xff]
        %v5419 = vld [vmem:[%s886 + $0xdc8] sm:$0xff]
        %v5420 = vld [vmem:[%s886 + $0xdd0] sm:$0xff]
        %v5421 = vld [vmem:[%s886 + $0xdd8] sm:$0xff]
        %v5422 = vld [vmem:[%s886 + $0xde0] sm:$0xff]
        %v5423 = vld [vmem:[%s886 + $0xde8] sm:$0xff]
        %v5424 = vld [vmem:[%s886 + $0xdf0] sm:$0xff]
        %v5425 = vld [vmem:[%s886 + $0xdf8] sm:$0xff]
        %v5426 = vld [vmem:[%s886 + $0xe00] sm:$0xff]
        %v5427 = vld [vmem:[%s886 + $0xe08] sm:$0xff]
        %v5428 = vld [vmem:[%s886 + $0xe10] sm:$0xff]
        %v5429 = vld [vmem:[%s886 + $0xe18] sm:$0xff]
        %v5430 = vld [vmem:[%s886 + $0xe20] sm:$0xff]
        %v5431 = vld [vmem:[%s886 + $0xe28] sm:$0xff]
        %v5432 = vld [vmem:[%s886 + $0xe30] sm:$0xff]
        %v5433 = vld [vmem:[%s886 + $0xe38] sm:$0xff]
        %v5434 = vld [vmem:[%s886 + $0xe40] sm:$0xff]
        %v5435 = vld [vmem:[%s886 + $0xe48] sm:$0xff]
        %v5436 = vld [vmem:[%s886 + $0xe50] sm:$0xff]
        %v5437 = vld [vmem:[%s886 + $0xe58] sm:$0xff]
        %v5438 = vld [vmem:[%s886 + $0xe60] sm:$0xff]
        %v5439 = vld [vmem:[%s886 + $0xe68] sm:$0xff]
        %v5440 = vld [vmem:[%s886 + $0xe70] sm:$0xff]
        %v5441 = vld [vmem:[%s886 + $0xe78] sm:$0xff]
        %v5442 = vld [vmem:[%s886 + $0xe80] sm:$0xff]
        %v5443 = vld [vmem:[%s886 + $0xe88] sm:$0xff]
        %v5444 = vld [vmem:[%s886 + $0xe90] sm:$0xff]
        %v5445 = vld [vmem:[%s886 + $0xe98] sm:$0xff]
        %v5446 = vld [vmem:[%s886 + $0xea0] sm:$0xff]
        %v5447 = vld [vmem:[%s886 + $0xea8] sm:$0xff]
        %v5448 = vld [vmem:[%s886 + $0xeb0] sm:$0xff]
        %v5449 = vld [vmem:[%s886 + $0xeb8] sm:$0xff]
        %v5450 = vld [vmem:[%s886 + $0xec0] sm:$0xff]
        %v5451 = vld [vmem:[%s886 + $0xec8] sm:$0xff]
        %v5452 = vld [vmem:[%s886 + $0xed0] sm:$0xff]
        %v5453 = vld [vmem:[%s886 + $0xed8] sm:$0xff]
        %v5454 = vld [vmem:[%s886 + $0xee0] sm:$0xff]
        %v5455 = vld [vmem:[%s886 + $0xee8] sm:$0xff]
        %v5456 = vld [vmem:[%s886 + $0xef0] sm:$0xff]
        %v5457 = vld [vmem:[%s886 + $0xef8] sm:$0xff]
        %v5458 = vld [vmem:[%s895] sm:$0xff]
        %v5460 = vlaneseq
        %v5461 = vshrl.u32 %v5460, 7
        %v5462 = vsub.s32 0, %v5461
        %v5463 = vrot.slane %v5458, %v5462
        %v5464 = vlaneseq
        %v5465 = vshrl.u32 %v5464, 7
        %v5466 = vsub.s32 1, %v5465
        %v5467 = vrot.slane %v5458, %v5466
        %v5468 = vlaneseq
        %v5469 = vshrl.u32 %v5468, 7
        %v5470 = vsub.s32 2, %v5469
        %v5471 = vrot.slane %v5458, %v5470
        %v5472 = vlaneseq
        %v5473 = vshrl.u32 %v5472, 7
        %v5474 = vsub.s32 3, %v5473
        %v5475 = vrot.slane %v5458, %v5474
        %v5476 = vlaneseq
        %v5477 = vshrl.u32 %v5476, 7
        %v5478 = vsub.s32 4, %v5477
        %v5479 = vrot.slane %v5458, %v5478
        %v5480 = vlaneseq
        %v5481 = vshrl.u32 %v5480, 7
        %v5482 = vsub.s32 5, %v5481
        %v5483 = vrot.slane %v5458, %v5482
        %v5484 = vlaneseq
        %v5485 = vshrl.u32 %v5484, 7
        %v5486 = vsub.s32 6, %v5485
        %v5487 = vrot.slane %v5458, %v5486
        %v5488 = vlaneseq
        %v5489 = vshrl.u32 %v5488, 7
        %v5490 = vsub.s32 7, %v5489
        %v5491 = vrot.slane %v5458, %v5490
        %v5980 = vunpack.c.l.b16 %v4978
        %v5981 = vunpack.c.h.b16 %v4978
        %v5982 = vunpack.c.l.b16 %v4979
        %v5983 = vunpack.c.h.b16 %v4979
        %v5984 = vunpack.c.l.b16 %v4980
        %v5985 = vunpack.c.h.b16 %v4980
        %v5986 = vunpack.c.l.b16 %v4981
        %v5987 = vunpack.c.h.b16 %v4981
        %v5988 = vunpack.c.l.b16 %v4982
        %v5989 = vunpack.c.h.b16 %v4982
        %v5990 = vunpack.c.l.b16 %v4983
        %v5991 = vunpack.c.h.b16 %v4983
        %v5992 = vunpack.c.l.b16 %v4984
        %v5993 = vunpack.c.h.b16 %v4984
        %v5994 = vunpack.c.l.b16 %v4985
        %v5995 = vunpack.c.h.b16 %v4985
        %v5996 = vunpack.c.l.b16 %v4986
        %v5997 = vunpack.c.h.b16 %v4986
        %v5998 = vunpack.c.l.b16 %v4987
        %v5999 = vunpack.c.h.b16 %v4987
        %v6000 = vunpack.c.l.b16 %v4988
        %v6001 = vunpack.c.h.b16 %v4988
        %v6002 = vunpack.c.l.b16 %v4989
        %v6003 = vunpack.c.h.b16 %v4989
        %v6004 = vunpack.c.l.b16 %v4990
        %v6005 = vunpack.c.h.b16 %v4990
        %v6006 = vunpack.c.l.b16 %v4991
        %v6007 = vunpack.c.h.b16 %v4991
        %v6008 = vunpack.c.l.b16 %v4992
        %v6009 = vunpack.c.h.b16 %v4992
        %v6010 = vunpack.c.l.b16 %v4993
        %v6011 = vunpack.c.h.b16 %v4993
        %v6012 = vunpack.c.l.b16 %v4994
        %v6013 = vunpack.c.h.b16 %v4994
        %v6014 = vunpack.c.l.b16 %v4995
        %v6015 = vunpack.c.h.b16 %v4995
        %v6016 = vunpack.c.l.b16 %v4996
        %v6017 = vunpack.c.h.b16 %v4996
        %v6018 = vunpack.c.l.b16 %v4997
        %v6019 = vunpack.c.h.b16 %v4997
        %v6020 = vunpack.c.l.b16 %v4998
        %v6021 = vunpack.c.h.b16 %v4998
        %v6022 = vunpack.c.l.b16 %v4999
        %v6023 = vunpack.c.h.b16 %v4999
        %v6024 = vunpack.c.l.b16 %v5000
        %v6025 = vunpack.c.h.b16 %v5000
        %v6026 = vunpack.c.l.b16 %v5001
        %v6027 = vunpack.c.h.b16 %v5001
        %v6028 = vunpack.c.l.b16 %v5002
        %v6029 = vunpack.c.h.b16 %v5002
        %v6030 = vunpack.c.l.b16 %v5003
        %v6031 = vunpack.c.h.b16 %v5003
        %v6032 = vunpack.c.l.b16 %v5004
        %v6033 = vunpack.c.h.b16 %v5004
        %v6034 = vunpack.c.l.b16 %v5005
        %v6035 = vunpack.c.h.b16 %v5005
        %v6036 = vunpack.c.l.b16 %v5006
        %v6037 = vunpack.c.h.b16 %v5006
        %v6038 = vunpack.c.l.b16 %v5007
        %v6039 = vunpack.c.h.b16 %v5007
        %v6040 = vunpack.c.l.b16 %v5008
        %v6041 = vunpack.c.h.b16 %v5008
        %v6042 = vunpack.c.l.b16 %v5009
        %v6043 = vunpack.c.h.b16 %v5009
        %v6044 = vunpack.c.l.b16 %v5010
        %v6045 = vunpack.c.h.b16 %v5010
        %v6046 = vunpack.c.l.b16 %v5011
        %v6047 = vunpack.c.h.b16 %v5011
        %v6048 = vunpack.c.l.b16 %v5012
        %v6049 = vunpack.c.h.b16 %v5012
        %v6050 = vunpack.c.l.b16 %v5013
        %v6051 = vunpack.c.h.b16 %v5013
        %v6052 = vunpack.c.l.b16 %v5014
        %v6053 = vunpack.c.h.b16 %v5014
        %v6054 = vunpack.c.l.b16 %v5015
        %v6055 = vunpack.c.h.b16 %v5015
        %v6056 = vunpack.c.l.b16 %v5016
        %v6057 = vunpack.c.h.b16 %v5016
        %v6058 = vunpack.c.l.b16 %v5017
        %v6059 = vunpack.c.h.b16 %v5017
        %v6060 = vunpack.c.l.b16 %v5018
        %v6061 = vunpack.c.h.b16 %v5018
        %v6062 = vunpack.c.l.b16 %v5019
        %v6063 = vunpack.c.h.b16 %v5019
        %v6064 = vunpack.c.l.b16 %v5020
        %v6065 = vunpack.c.h.b16 %v5020
        %v6066 = vunpack.c.l.b16 %v5021
        %v6067 = vunpack.c.h.b16 %v5021
        %v6068 = vunpack.c.l.b16 %v5022
        %v6069 = vunpack.c.h.b16 %v5022
        %v6070 = vunpack.c.l.b16 %v5023
        %v6071 = vunpack.c.h.b16 %v5023
        %v6072 = vunpack.c.l.b16 %v5024
        %v6073 = vunpack.c.h.b16 %v5024
        %v6074 = vunpack.c.l.b16 %v5025
        %v6075 = vunpack.c.h.b16 %v5025
        %v6076 = vunpack.c.l.b16 %v5026
        %v6077 = vunpack.c.h.b16 %v5026
        %v6078 = vunpack.c.l.b16 %v5027
        %v6079 = vunpack.c.h.b16 %v5027
        %v6080 = vunpack.c.l.b16 %v5028
        %v6081 = vunpack.c.h.b16 %v5028
        %v6082 = vunpack.c.l.b16 %v5029
        %v6083 = vunpack.c.h.b16 %v5029
        %v6084 = vunpack.c.l.b16 %v5030
        %v6085 = vunpack.c.h.b16 %v5030
        %v6086 = vunpack.c.l.b16 %v5031
        %v6087 = vunpack.c.h.b16 %v5031
        %v6088 = vunpack.c.l.b16 %v5032
        %v6089 = vunpack.c.h.b16 %v5032
        %v6090 = vunpack.c.l.b16 %v5033
        %v6091 = vunpack.c.h.b16 %v5033
        %v6092 = vunpack.c.l.b16 %v5034
        %v6093 = vunpack.c.h.b16 %v5034
        %v6094 = vunpack.c.l.b16 %v5035
        %v6095 = vunpack.c.h.b16 %v5035
        %v6096 = vunpack.c.l.b16 %v5036
        %v6097 = vunpack.c.h.b16 %v5036
        %v6098 = vunpack.c.l.b16 %v5037
        %v6099 = vunpack.c.h.b16 %v5037
        %v6100 = vunpack.c.l.b16 %v5038
        %v6101 = vunpack.c.h.b16 %v5038
        %v6102 = vunpack.c.l.b16 %v5039
        %v6103 = vunpack.c.h.b16 %v5039
        %v6104 = vunpack.c.l.b16 %v5040
        %v6105 = vunpack.c.h.b16 %v5040
        %v6106 = vunpack.c.l.b16 %v5041
        %v6107 = vunpack.c.h.b16 %v5041
        %v6108 = vunpack.c.l.b16 %v5042
        %v6109 = vunpack.c.h.b16 %v5042
        %v6110 = vunpack.c.l.b16 %v5043
        %v6111 = vunpack.c.h.b16 %v5043
        %v6112 = vunpack.c.l.b16 %v5044
        %v6113 = vunpack.c.h.b16 %v5044
        %v6114 = vunpack.c.l.b16 %v5045
        %v6115 = vunpack.c.h.b16 %v5045
        %v6116 = vunpack.c.l.b16 %v5046
        %v6117 = vunpack.c.h.b16 %v5046
        %v6118 = vunpack.c.l.b16 %v5047
        %v6119 = vunpack.c.h.b16 %v5047
        %v6120 = vunpack.c.l.b16 %v5048
        %v6121 = vunpack.c.h.b16 %v5048
        %v6122 = vunpack.c.l.b16 %v5049
        %v6123 = vunpack.c.h.b16 %v5049
        %v6124 = vunpack.c.l.b16 %v5050
        %v6125 = vunpack.c.h.b16 %v5050
        %v6126 = vunpack.c.l.b16 %v5051
        %v6127 = vunpack.c.h.b16 %v5051
        %v6128 = vunpack.c.l.b16 %v5052
        %v6129 = vunpack.c.h.b16 %v5052
        %v6130 = vunpack.c.l.b16 %v5053
        %v6131 = vunpack.c.h.b16 %v5053
        %v6132 = vunpack.c.l.b16 %v5054
        %v6133 = vunpack.c.h.b16 %v5054
        %v6134 = vunpack.c.l.b16 %v5055
        %v6135 = vunpack.c.h.b16 %v5055
        %v6136 = vunpack.c.l.b16 %v5056
        %v6137 = vunpack.c.h.b16 %v5056
        %v6138 = vunpack.c.l.b16 %v5057
        %v6139 = vunpack.c.h.b16 %v5057
        %v6140 = vunpack.c.l.b16 %v5058
        %v6141 = vunpack.c.h.b16 %v5058
        %v6142 = vunpack.c.l.b16 %v5059
        %v6143 = vunpack.c.h.b16 %v5059
        %v6144 = vunpack.c.l.b16 %v5060
        %v6145 = vunpack.c.h.b16 %v5060
        %v6146 = vunpack.c.l.b16 %v5061
        %v6147 = vunpack.c.h.b16 %v5061
        %v6148 = vunpack.c.l.b16 %v5062
        %v6149 = vunpack.c.h.b16 %v5062
        %v6150 = vunpack.c.l.b16 %v5063
        %v6151 = vunpack.c.h.b16 %v5063
        %v6152 = vunpack.c.l.b16 %v5064
        %v6153 = vunpack.c.h.b16 %v5064
        %v6154 = vunpack.c.l.b16 %v5065
        %v6155 = vunpack.c.h.b16 %v5065
        %v6156 = vunpack.c.l.b16 %v5066
        %v6157 = vunpack.c.h.b16 %v5066
        %v6158 = vunpack.c.l.b16 %v5067
        %v6159 = vunpack.c.h.b16 %v5067
        %v6160 = vunpack.c.l.b16 %v5068
        %v6161 = vunpack.c.h.b16 %v5068
        %v6162 = vunpack.c.l.b16 %v5069
        %v6163 = vunpack.c.h.b16 %v5069
        %v6164 = vunpack.c.l.b16 %v5070
        %v6165 = vunpack.c.h.b16 %v5070
        %v6166 = vunpack.c.l.b16 %v5071
        %v6167 = vunpack.c.h.b16 %v5071
        %v6168 = vunpack.c.l.b16 %v5072
        %v6169 = vunpack.c.h.b16 %v5072
        %v6170 = vunpack.c.l.b16 %v5073
        %v6171 = vunpack.c.h.b16 %v5073
        %v6172 = vunpack.c.l.b16 %v5074
        %v6173 = vunpack.c.h.b16 %v5074
        %v6174 = vunpack.c.l.b16 %v5075
        %v6175 = vunpack.c.h.b16 %v5075
        %v6176 = vunpack.c.l.b16 %v5076
        %v6177 = vunpack.c.h.b16 %v5076
        %v6178 = vunpack.c.l.b16 %v5077
        %v6179 = vunpack.c.h.b16 %v5077
        %v6180 = vunpack.c.l.b16 %v5078
        %v6181 = vunpack.c.h.b16 %v5078
        %v6182 = vunpack.c.l.b16 %v5079
        %v6183 = vunpack.c.h.b16 %v5079
        %v6184 = vunpack.c.l.b16 %v5080
        %v6185 = vunpack.c.h.b16 %v5080
        %v6186 = vunpack.c.l.b16 %v5081
        %v6187 = vunpack.c.h.b16 %v5081
        %v6188 = vunpack.c.l.b16 %v5082
        %v6189 = vunpack.c.h.b16 %v5082
        %v6190 = vunpack.c.l.b16 %v5083
        %v6191 = vunpack.c.h.b16 %v5083
        %v6192 = vunpack.c.l.b16 %v5084
        %v6193 = vunpack.c.h.b16 %v5084
        %v6194 = vunpack.c.l.b16 %v5085
        %v6195 = vunpack.c.h.b16 %v5085
        %v6196 = vunpack.c.l.b16 %v5086
        %v6197 = vunpack.c.h.b16 %v5086
        %v6198 = vunpack.c.l.b16 %v5087
        %v6199 = vunpack.c.h.b16 %v5087
        %v6200 = vunpack.c.l.b16 %v5088
        %v6201 = vunpack.c.h.b16 %v5088
        %v6202 = vunpack.c.l.b16 %v5089
        %v6203 = vunpack.c.h.b16 %v5089
        %v6204 = vunpack.c.l.b16 %v5090
        %v6205 = vunpack.c.h.b16 %v5090
        %v6206 = vunpack.c.l.b16 %v5091
        %v6207 = vunpack.c.h.b16 %v5091
        %v6208 = vunpack.c.l.b16 %v5092
        %v6209 = vunpack.c.h.b16 %v5092
        %v6210 = vunpack.c.l.b16 %v5093
        %v6211 = vunpack.c.h.b16 %v5093
        %v6212 = vunpack.c.l.b16 %v5094
        %v6213 = vunpack.c.h.b16 %v5094
        %v6214 = vunpack.c.l.b16 %v5095
        %v6215 = vunpack.c.h.b16 %v5095
        %v6216 = vunpack.c.l.b16 %v5096
        %v6217 = vunpack.c.h.b16 %v5096
        %v6218 = vunpack.c.l.b16 %v5097
        %v6219 = vunpack.c.h.b16 %v5097
        %v6220 = vunpack.c.l.b16 %v5098
        %v6221 = vunpack.c.h.b16 %v5098
        %v6222 = vunpack.c.l.b16 %v5099
        %v6223 = vunpack.c.h.b16 %v5099
        %v6224 = vunpack.c.l.b16 %v5100
        %v6225 = vunpack.c.h.b16 %v5100
        %v6226 = vunpack.c.l.b16 %v5101
        %v6227 = vunpack.c.h.b16 %v5101
        %v6228 = vunpack.c.l.b16 %v5102
        %v6229 = vunpack.c.h.b16 %v5102
        %v6230 = vunpack.c.l.b16 %v5103
        %v6231 = vunpack.c.h.b16 %v5103
        %v6232 = vunpack.c.l.b16 %v5104
        %v6233 = vunpack.c.h.b16 %v5104
        %v6234 = vunpack.c.l.b16 %v5105
        %v6235 = vunpack.c.h.b16 %v5105
        %v6236 = vunpack.c.l.b16 %v5106
        %v6237 = vunpack.c.h.b16 %v5106
        %v6238 = vunpack.c.l.b16 %v5107
        %v6239 = vunpack.c.h.b16 %v5107
        %v6240 = vunpack.c.l.b16 %v5108
        %v6241 = vunpack.c.h.b16 %v5108
        %v6242 = vunpack.c.l.b16 %v5109
        %v6243 = vunpack.c.h.b16 %v5109
        %v6244 = vunpack.c.l.b16 %v5110
        %v6245 = vunpack.c.h.b16 %v5110
        %v6246 = vunpack.c.l.b16 %v5111
        %v6247 = vunpack.c.h.b16 %v5111
        %v6248 = vunpack.c.l.b16 %v5112
        %v6249 = vunpack.c.h.b16 %v5112
        %v6250 = vunpack.c.l.b16 %v5113
        %v6251 = vunpack.c.h.b16 %v5113
        %v6252 = vunpack.c.l.b16 %v5114
        %v6253 = vunpack.c.h.b16 %v5114
        %v6254 = vunpack.c.l.b16 %v5115
        %v6255 = vunpack.c.h.b16 %v5115
        %v6256 = vunpack.c.l.b16 %v5116
        %v6257 = vunpack.c.h.b16 %v5116
        %v6258 = vunpack.c.l.b16 %v5117
        %v6259 = vunpack.c.h.b16 %v5117
        %v6260 = vunpack.c.l.b16 %v5118
        %v6261 = vunpack.c.h.b16 %v5118
        %v6262 = vunpack.c.l.b16 %v5119
        %v6263 = vunpack.c.h.b16 %v5119
        %v6264 = vunpack.c.l.b16 %v5120
        %v6265 = vunpack.c.h.b16 %v5120
        %v6266 = vunpack.c.l.b16 %v5121
        %v6267 = vunpack.c.h.b16 %v5121
        %v6268 = vunpack.c.l.b16 %v5122
        %v6269 = vunpack.c.h.b16 %v5122
        %v6270 = vunpack.c.l.b16 %v5123
        %v6271 = vunpack.c.h.b16 %v5123
        %v6272 = vunpack.c.l.b16 %v5124
        %v6273 = vunpack.c.h.b16 %v5124
        %v6274 = vunpack.c.l.b16 %v5125
        %v6275 = vunpack.c.h.b16 %v5125
        %v6276 = vunpack.c.l.b16 %v5126
        %v6277 = vunpack.c.h.b16 %v5126
        %v6278 = vunpack.c.l.b16 %v5127
        %v6279 = vunpack.c.h.b16 %v5127
        %v6280 = vunpack.c.l.b16 %v5128
        %v6281 = vunpack.c.h.b16 %v5128
        %v6282 = vunpack.c.l.b16 %v5129
        %v6283 = vunpack.c.h.b16 %v5129
        %v6284 = vunpack.c.l.b16 %v5130
        %v6285 = vunpack.c.h.b16 %v5130
        %v6286 = vunpack.c.l.b16 %v5131
        %v6287 = vunpack.c.h.b16 %v5131
        %v6288 = vunpack.c.l.b16 %v5132
        %v6289 = vunpack.c.h.b16 %v5132
        %v6290 = vunpack.c.l.b16 %v5133
        %v6291 = vunpack.c.h.b16 %v5133
        %v6292 = vunpack.c.l.b16 %v5134
        %v6293 = vunpack.c.h.b16 %v5134
        %v6294 = vunpack.c.l.b16 %v5135
        %v6295 = vunpack.c.h.b16 %v5135
        %v6296 = vunpack.c.l.b16 %v5136
        %v6297 = vunpack.c.h.b16 %v5136
        %v6298 = vunpack.c.l.b16 %v5137
        %v6299 = vunpack.c.h.b16 %v5137
        %v6300 = vunpack.c.l.b16 %v5138
        %v6301 = vunpack.c.h.b16 %v5138
        %v6302 = vunpack.c.l.b16 %v5139
        %v6303 = vunpack.c.h.b16 %v5139
        %v6304 = vunpack.c.l.b16 %v5140
        %v6305 = vunpack.c.h.b16 %v5140
        %v6306 = vunpack.c.l.b16 %v5141
        %v6307 = vunpack.c.h.b16 %v5141
        %v6308 = vunpack.c.l.b16 %v5142
        %v6309 = vunpack.c.h.b16 %v5142
        %v6310 = vunpack.c.l.b16 %v5143
        %v6311 = vunpack.c.h.b16 %v5143
        %v6312 = vunpack.c.l.b16 %v5144
        %v6313 = vunpack.c.h.b16 %v5144
        %v6314 = vunpack.c.l.b16 %v5145
        %v6315 = vunpack.c.h.b16 %v5145
        %v6316 = vunpack.c.l.b16 %v5146
        %v6317 = vunpack.c.h.b16 %v5146
        %v6318 = vunpack.c.l.b16 %v5147
        %v6319 = vunpack.c.h.b16 %v5147
        %v6320 = vunpack.c.l.b16 %v5148
        %v6321 = vunpack.c.h.b16 %v5148
        %v6322 = vunpack.c.l.b16 %v5149
        %v6323 = vunpack.c.h.b16 %v5149
        %v6324 = vunpack.c.l.b16 %v5150
        %v6325 = vunpack.c.h.b16 %v5150
        %v6326 = vunpack.c.l.b16 %v5151
        %v6327 = vunpack.c.h.b16 %v5151
        %v6328 = vunpack.c.l.b16 %v5152
        %v6329 = vunpack.c.h.b16 %v5152
        %v6330 = vunpack.c.l.b16 %v5153
        %v6331 = vunpack.c.h.b16 %v5153
        %v6332 = vunpack.c.l.b16 %v5154
        %v6333 = vunpack.c.h.b16 %v5154
        %v6334 = vunpack.c.l.b16 %v5155
        %v6335 = vunpack.c.h.b16 %v5155
        %v6336 = vunpack.c.l.b16 %v5156
        %v6337 = vunpack.c.h.b16 %v5156
        %v6338 = vunpack.c.l.b16 %v5157
        %v6339 = vunpack.c.h.b16 %v5157
        %v6340 = vunpack.c.l.b16 %v5158
        %v6341 = vunpack.c.h.b16 %v5158
        %v6342 = vunpack.c.l.b16 %v5159
        %v6343 = vunpack.c.h.b16 %v5159
        %v6344 = vunpack.c.l.b16 %v5160
        %v6345 = vunpack.c.h.b16 %v5160
        %v6346 = vunpack.c.l.b16 %v5161
        %v6347 = vunpack.c.h.b16 %v5161
        %v6348 = vunpack.c.l.b16 %v5162
        %v6349 = vunpack.c.h.b16 %v5162
        %v6350 = vunpack.c.l.b16 %v5163
        %v6351 = vunpack.c.h.b16 %v5163
        %v6352 = vunpack.c.l.b16 %v5164
        %v6353 = vunpack.c.h.b16 %v5164
        %v6354 = vunpack.c.l.b16 %v5165
        %v6355 = vunpack.c.h.b16 %v5165
        %v6356 = vunpack.c.l.b16 %v5166
        %v6357 = vunpack.c.h.b16 %v5166
        %v6358 = vunpack.c.l.b16 %v5167
        %v6359 = vunpack.c.h.b16 %v5167
        %v6360 = vunpack.c.l.b16 %v5168
        %v6361 = vunpack.c.h.b16 %v5168
        %v6362 = vunpack.c.l.b16 %v5169
        %v6363 = vunpack.c.h.b16 %v5169
        %v6364 = vunpack.c.l.b16 %v5170
        %v6365 = vunpack.c.h.b16 %v5170
        %v6366 = vunpack.c.l.b16 %v5171
        %v6367 = vunpack.c.h.b16 %v5171
        %v6368 = vunpack.c.l.b16 %v5172
        %v6369 = vunpack.c.h.b16 %v5172
        %v6370 = vunpack.c.l.b16 %v5173
        %v6371 = vunpack.c.h.b16 %v5173
        %v6372 = vunpack.c.l.b16 %v5174
        %v6373 = vunpack.c.h.b16 %v5174
        %v6374 = vunpack.c.l.b16 %v5175
        %v6375 = vunpack.c.h.b16 %v5175
        %v6376 = vunpack.c.l.b16 %v5176
        %v6377 = vunpack.c.h.b16 %v5176
        %v6378 = vunpack.c.l.b16 %v5177
        %v6379 = vunpack.c.h.b16 %v5177
        %v6380 = vunpack.c.l.b16 %v5178
        %v6381 = vunpack.c.h.b16 %v5178
        %v6382 = vunpack.c.l.b16 %v5179
        %v6383 = vunpack.c.h.b16 %v5179
        %v6384 = vunpack.c.l.b16 %v5180
        %v6385 = vunpack.c.h.b16 %v5180
        %v6386 = vunpack.c.l.b16 %v5181
        %v6387 = vunpack.c.h.b16 %v5181
        %v6388 = vunpack.c.l.b16 %v5182
        %v6389 = vunpack.c.h.b16 %v5182
        %v6390 = vunpack.c.l.b16 %v5183
        %v6391 = vunpack.c.h.b16 %v5183
        %v6392 = vunpack.c.l.b16 %v5184
        %v6393 = vunpack.c.h.b16 %v5184
        %v6394 = vunpack.c.l.b16 %v5185
        %v6395 = vunpack.c.h.b16 %v5185
        %v6396 = vunpack.c.l.b16 %v5186
        %v6397 = vunpack.c.h.b16 %v5186
        %v6398 = vunpack.c.l.b16 %v5187
        %v6399 = vunpack.c.h.b16 %v5187
        %v6400 = vunpack.c.l.b16 %v5188
        %v6401 = vunpack.c.h.b16 %v5188
        %v6402 = vunpack.c.l.b16 %v5189
        %v6403 = vunpack.c.h.b16 %v5189
        %v6404 = vunpack.c.l.b16 %v5190
        %v6405 = vunpack.c.h.b16 %v5190
        %v6406 = vunpack.c.l.b16 %v5191
        %v6407 = vunpack.c.h.b16 %v5191
        %v6408 = vunpack.c.l.b16 %v5192
        %v6409 = vunpack.c.h.b16 %v5192
        %v6410 = vunpack.c.l.b16 %v5193
        %v6411 = vunpack.c.h.b16 %v5193
        %v6412 = vunpack.c.l.b16 %v5194
        %v6413 = vunpack.c.h.b16 %v5194
        %v6414 = vunpack.c.l.b16 %v5195
        %v6415 = vunpack.c.h.b16 %v5195
        %v6416 = vunpack.c.l.b16 %v5196
        %v6417 = vunpack.c.h.b16 %v5196
        %v6418 = vunpack.c.l.b16 %v5197
        %v6419 = vunpack.c.h.b16 %v5197
        %v6420 = vunpack.c.l.b16 %v5198
        %v6421 = vunpack.c.h.b16 %v5198
        %v6422 = vunpack.c.l.b16 %v5199
        %v6423 = vunpack.c.h.b16 %v5199
        %v6424 = vunpack.c.l.b16 %v5200
        %v6425 = vunpack.c.h.b16 %v5200
        %v6426 = vunpack.c.l.b16 %v5201
        %v6427 = vunpack.c.h.b16 %v5201
        %v6428 = vunpack.c.l.b16 %v5202
        %v6429 = vunpack.c.h.b16 %v5202
        %v6430 = vunpack.c.l.b16 %v5203
        %v6431 = vunpack.c.h.b16 %v5203
        %v6432 = vunpack.c.l.b16 %v5204
        %v6433 = vunpack.c.h.b16 %v5204
        %v6434 = vunpack.c.l.b16 %v5205
        %v6435 = vunpack.c.h.b16 %v5205
        %v6436 = vunpack.c.l.b16 %v5206
        %v6437 = vunpack.c.h.b16 %v5206
        %v6438 = vunpack.c.l.b16 %v5207
        %v6439 = vunpack.c.h.b16 %v5207
        %v6440 = vunpack.c.l.b16 %v5208
        %v6441 = vunpack.c.h.b16 %v5208
        %v6442 = vunpack.c.l.b16 %v5209
        %v6443 = vunpack.c.h.b16 %v5209
        %v6444 = vunpack.c.l.b16 %v5210
        %v6445 = vunpack.c.h.b16 %v5210
        %v6446 = vunpack.c.l.b16 %v5211
        %v6447 = vunpack.c.h.b16 %v5211
        %v6448 = vunpack.c.l.b16 %v5212
        %v6449 = vunpack.c.h.b16 %v5212
        %v6450 = vunpack.c.l.b16 %v5213
        %v6451 = vunpack.c.h.b16 %v5213
        %v6452 = vunpack.c.l.b16 %v5214
        %v6453 = vunpack.c.h.b16 %v5214
        %v6454 = vunpack.c.l.b16 %v5215
        %v6455 = vunpack.c.h.b16 %v5215
        %v6456 = vunpack.c.l.b16 %v5216
        %v6457 = vunpack.c.h.b16 %v5216
        %v6458 = vunpack.c.l.b16 %v5217
        %v6459 = vunpack.c.h.b16 %v5217
        %v6460 = vunpack.c.l.b16 %v5218
        %v6461 = vunpack.c.h.b16 %v5218
        %v6462 = vunpack.c.l.b16 %v5219
        %v6463 = vunpack.c.h.b16 %v5219
        %v6464 = vunpack.c.l.b16 %v5220
        %v6465 = vunpack.c.h.b16 %v5220
        %v6466 = vunpack.c.l.b16 %v5221
        %v6467 = vunpack.c.h.b16 %v5221
        %v6468 = vunpack.c.l.b16 %v5222
        %v6469 = vunpack.c.h.b16 %v5222
        %v6470 = vunpack.c.l.b16 %v5223
        %v6471 = vunpack.c.h.b16 %v5223
        %v6472 = vunpack.c.l.b16 %v5224
        %v6473 = vunpack.c.h.b16 %v5224
        %v6474 = vunpack.c.l.b16 %v5225
        %v6475 = vunpack.c.h.b16 %v5225
        %v6476 = vunpack.c.l.b16 %v5226
        %v6477 = vunpack.c.h.b16 %v5226
        %v6478 = vunpack.c.l.b16 %v5227
        %v6479 = vunpack.c.h.b16 %v5227
        %v6480 = vunpack.c.l.b16 %v5228
        %v6481 = vunpack.c.h.b16 %v5228
        %v6482 = vunpack.c.l.b16 %v5229
        %v6483 = vunpack.c.h.b16 %v5229
        %v6484 = vunpack.c.l.b16 %v5230
        %v6485 = vunpack.c.h.b16 %v5230
        %v6486 = vunpack.c.l.b16 %v5231
        %v6487 = vunpack.c.h.b16 %v5231
        %v6488 = vunpack.c.l.b16 %v5232
        %v6489 = vunpack.c.h.b16 %v5232
        %v6490 = vunpack.c.l.b16 %v5233
        %v6491 = vunpack.c.h.b16 %v5233
        %v6492 = vunpack.c.l.b16 %v5234
        %v6493 = vunpack.c.h.b16 %v5234
        %v6494 = vunpack.c.l.b16 %v5235
        %v6495 = vunpack.c.h.b16 %v5235
        %v6496 = vunpack.c.l.b16 %v5236
        %v6497 = vunpack.c.h.b16 %v5236
        %v6498 = vunpack.c.l.b16 %v5237
        %v6499 = vunpack.c.h.b16 %v5237
        %v6500 = vunpack.c.l.b16 %v5238
        %v6501 = vunpack.c.h.b16 %v5238
        %v6502 = vunpack.c.l.b16 %v5239
        %v6503 = vunpack.c.h.b16 %v5239
        %v6504 = vunpack.c.l.b16 %v5240
        %v6505 = vunpack.c.h.b16 %v5240
        %v6506 = vunpack.c.l.b16 %v5241
        %v6507 = vunpack.c.h.b16 %v5241
        %v6508 = vunpack.c.l.b16 %v5242
        %v6509 = vunpack.c.h.b16 %v5242
        %v6510 = vunpack.c.l.b16 %v5243
        %v6511 = vunpack.c.h.b16 %v5243
        %v6512 = vunpack.c.l.b16 %v5244
        %v6513 = vunpack.c.h.b16 %v5244
        %v6514 = vunpack.c.l.b16 %v5245
        %v6515 = vunpack.c.h.b16 %v5245
        %v6516 = vunpack.c.l.b16 %v5246
        %v6517 = vunpack.c.h.b16 %v5246
        %v6518 = vunpack.c.l.b16 %v5247
        %v6519 = vunpack.c.h.b16 %v5247
        %v6520 = vunpack.c.l.b16 %v5248
        %v6521 = vunpack.c.h.b16 %v5248
        %v6522 = vunpack.c.l.b16 %v5249
        %v6523 = vunpack.c.h.b16 %v5249
        %v6524 = vunpack.c.l.b16 %v5250
        %v6525 = vunpack.c.h.b16 %v5250
        %v6526 = vunpack.c.l.b16 %v5251
        %v6527 = vunpack.c.h.b16 %v5251
        %v6528 = vunpack.c.l.b16 %v5252
        %v6529 = vunpack.c.h.b16 %v5252
        %v6530 = vunpack.c.l.b16 %v5253
        %v6531 = vunpack.c.h.b16 %v5253
        %v6532 = vunpack.c.l.b16 %v5254
        %v6533 = vunpack.c.h.b16 %v5254
        %v6534 = vunpack.c.l.b16 %v5255
        %v6535 = vunpack.c.h.b16 %v5255
        %v6536 = vunpack.c.l.b16 %v5256
        %v6537 = vunpack.c.h.b16 %v5256
        %v6538 = vunpack.c.l.b16 %v5257
        %v6539 = vunpack.c.h.b16 %v5257
        %v6540 = vunpack.c.l.b16 %v5258
        %v6541 = vunpack.c.h.b16 %v5258
        %v6542 = vunpack.c.l.b16 %v5259
        %v6543 = vunpack.c.h.b16 %v5259
        %v6544 = vunpack.c.l.b16 %v5260
        %v6545 = vunpack.c.h.b16 %v5260
        %v6546 = vunpack.c.l.b16 %v5261
        %v6547 = vunpack.c.h.b16 %v5261
        %v6548 = vunpack.c.l.b16 %v5262
        %v6549 = vunpack.c.h.b16 %v5262
        %v6550 = vunpack.c.l.b16 %v5263
        %v6551 = vunpack.c.h.b16 %v5263
        %v6552 = vunpack.c.l.b16 %v5264
        %v6553 = vunpack.c.h.b16 %v5264
        %v6554 = vunpack.c.l.b16 %v5265
        %v6555 = vunpack.c.h.b16 %v5265
        %v6556 = vunpack.c.l.b16 %v5266
        %v6557 = vunpack.c.h.b16 %v5266
        %v6558 = vunpack.c.l.b16 %v5267
        %v6559 = vunpack.c.h.b16 %v5267
        %v6560 = vunpack.c.l.b16 %v5268
        %v6561 = vunpack.c.h.b16 %v5268
        %v6562 = vunpack.c.l.b16 %v5269
        %v6563 = vunpack.c.h.b16 %v5269
        %v6564 = vunpack.c.l.b16 %v5270
        %v6565 = vunpack.c.h.b16 %v5270
        %v6566 = vunpack.c.l.b16 %v5271
        %v6567 = vunpack.c.h.b16 %v5271
        %v6568 = vunpack.c.l.b16 %v5272
        %v6569 = vunpack.c.h.b16 %v5272
        %v6570 = vunpack.c.l.b16 %v5273
        %v6571 = vunpack.c.h.b16 %v5273
        %v6572 = vunpack.c.l.b16 %v5274
        %v6573 = vunpack.c.h.b16 %v5274
        %v6574 = vunpack.c.l.b16 %v5275
        %v6575 = vunpack.c.h.b16 %v5275
        %v6576 = vunpack.c.l.b16 %v5276
        %v6577 = vunpack.c.h.b16 %v5276
        %v6578 = vunpack.c.l.b16 %v5277
        %v6579 = vunpack.c.h.b16 %v5277
        %v6580 = vunpack.c.l.b16 %v5278
        %v6581 = vunpack.c.h.b16 %v5278
        %v6582 = vunpack.c.l.b16 %v5279
        %v6583 = vunpack.c.h.b16 %v5279
        %v6584 = vunpack.c.l.b16 %v5280
        %v6585 = vunpack.c.h.b16 %v5280
        %v6586 = vunpack.c.l.b16 %v5281
        %v6587 = vunpack.c.h.b16 %v5281
        %v6588 = vunpack.c.l.b16 %v5282
        %v6589 = vunpack.c.h.b16 %v5282
        %v6590 = vunpack.c.l.b16 %v5283
        %v6591 = vunpack.c.h.b16 %v5283
        %v6592 = vunpack.c.l.b16 %v5284
        %v6593 = vunpack.c.h.b16 %v5284
        %v6594 = vunpack.c.l.b16 %v5285
        %v6595 = vunpack.c.h.b16 %v5285
        %v6596 = vunpack.c.l.b16 %v5286
        %v6597 = vunpack.c.h.b16 %v5286
        %v6598 = vunpack.c.l.b16 %v5287
        %v6599 = vunpack.c.h.b16 %v5287
        %v6600 = vunpack.c.l.b16 %v5288
        %v6601 = vunpack.c.h.b16 %v5288
        %v6602 = vunpack.c.l.b16 %v5289
        %v6603 = vunpack.c.h.b16 %v5289
        %v6604 = vunpack.c.l.b16 %v5290
        %v6605 = vunpack.c.h.b16 %v5290
        %v6606 = vunpack.c.l.b16 %v5291
        %v6607 = vunpack.c.h.b16 %v5291
        %v6608 = vunpack.c.l.b16 %v5292
        %v6609 = vunpack.c.h.b16 %v5292
        %v6610 = vunpack.c.l.b16 %v5293
        %v6611 = vunpack.c.h.b16 %v5293
        %v6612 = vunpack.c.l.b16 %v5294
        %v6613 = vunpack.c.h.b16 %v5294
        %v6614 = vunpack.c.l.b16 %v5295
        %v6615 = vunpack.c.h.b16 %v5295
        %v6616 = vunpack.c.l.b16 %v5296
        %v6617 = vunpack.c.h.b16 %v5296
        %v6618 = vunpack.c.l.b16 %v5297
        %v6619 = vunpack.c.h.b16 %v5297
        %v6620 = vunpack.c.l.b16 %v5298
        %v6621 = vunpack.c.h.b16 %v5298
        %v6622 = vunpack.c.l.b16 %v5299
        %v6623 = vunpack.c.h.b16 %v5299
        %v6624 = vunpack.c.l.b16 %v5300
        %v6625 = vunpack.c.h.b16 %v5300
        %v6626 = vunpack.c.l.b16 %v5301
        %v6627 = vunpack.c.h.b16 %v5301
        %v6628 = vunpack.c.l.b16 %v5302
        %v6629 = vunpack.c.h.b16 %v5302
        %v6630 = vunpack.c.l.b16 %v5303
        %v6631 = vunpack.c.h.b16 %v5303
        %v6632 = vunpack.c.l.b16 %v5304
        %v6633 = vunpack.c.h.b16 %v5304
        %v6634 = vunpack.c.l.b16 %v5305
        %v6635 = vunpack.c.h.b16 %v5305
        %v6636 = vunpack.c.l.b16 %v5306
        %v6637 = vunpack.c.h.b16 %v5306
        %v6638 = vunpack.c.l.b16 %v5307
        %v6639 = vunpack.c.h.b16 %v5307
        %v6640 = vunpack.c.l.b16 %v5308
        %v6641 = vunpack.c.h.b16 %v5308
        %v6642 = vunpack.c.l.b16 %v5309
        %v6643 = vunpack.c.h.b16 %v5309
        %v6644 = vunpack.c.l.b16 %v5310
        %v6645 = vunpack.c.h.b16 %v5310
        %v6646 = vunpack.c.l.b16 %v5311
        %v6647 = vunpack.c.h.b16 %v5311
        %v6648 = vunpack.c.l.b16 %v5312
        %v6649 = vunpack.c.h.b16 %v5312
        %v6650 = vunpack.c.l.b16 %v5313
        %v6651 = vunpack.c.h.b16 %v5313
        %v6652 = vunpack.c.l.b16 %v5314
        %v6653 = vunpack.c.h.b16 %v5314
        %v6654 = vunpack.c.l.b16 %v5315
        %v6655 = vunpack.c.h.b16 %v5315
        %v6656 = vunpack.c.l.b16 %v5316
        %v6657 = vunpack.c.h.b16 %v5316
        %v6658 = vunpack.c.l.b16 %v5317
        %v6659 = vunpack.c.h.b16 %v5317
        %v6660 = vunpack.c.l.b16 %v5318
        %v6661 = vunpack.c.h.b16 %v5318
        %v6662 = vunpack.c.l.b16 %v5319
        %v6663 = vunpack.c.h.b16 %v5319
        %v6664 = vunpack.c.l.b16 %v5320
        %v6665 = vunpack.c.h.b16 %v5320
        %v6666 = vunpack.c.l.b16 %v5321
        %v6667 = vunpack.c.h.b16 %v5321
        %v6668 = vunpack.c.l.b16 %v5322
        %v6669 = vunpack.c.h.b16 %v5322
        %v6670 = vunpack.c.l.b16 %v5323
        %v6671 = vunpack.c.h.b16 %v5323
        %v6672 = vunpack.c.l.b16 %v5324
        %v6673 = vunpack.c.h.b16 %v5324
        %v6674 = vunpack.c.l.b16 %v5325
        %v6675 = vunpack.c.h.b16 %v5325
        %v6676 = vunpack.c.l.b16 %v5326
        %v6677 = vunpack.c.h.b16 %v5326
        %v6678 = vunpack.c.l.b16 %v5327
        %v6679 = vunpack.c.h.b16 %v5327
        %v6680 = vunpack.c.l.b16 %v5328
        %v6681 = vunpack.c.h.b16 %v5328
        %v6682 = vunpack.c.l.b16 %v5329
        %v6683 = vunpack.c.h.b16 %v5329
        %v6684 = vunpack.c.l.b16 %v5330
        %v6685 = vunpack.c.h.b16 %v5330
        %v6686 = vunpack.c.l.b16 %v5331
        %v6687 = vunpack.c.h.b16 %v5331
        %v6688 = vunpack.c.l.b16 %v5332
        %v6689 = vunpack.c.h.b16 %v5332
        %v6690 = vunpack.c.l.b16 %v5333
        %v6691 = vunpack.c.h.b16 %v5333
        %v6692 = vunpack.c.l.b16 %v5334
        %v6693 = vunpack.c.h.b16 %v5334
        %v6694 = vunpack.c.l.b16 %v5335
        %v6695 = vunpack.c.h.b16 %v5335
        %v6696 = vunpack.c.l.b16 %v5336
        %v6697 = vunpack.c.h.b16 %v5336
        %v6698 = vunpack.c.l.b16 %v5337
        %v6699 = vunpack.c.h.b16 %v5337
        %v6700 = vunpack.c.l.b16 %v5338
        %v6701 = vunpack.c.h.b16 %v5338
        %v6702 = vunpack.c.l.b16 %v5339
        %v6703 = vunpack.c.h.b16 %v5339
        %v6704 = vunpack.c.l.b16 %v5340
        %v6705 = vunpack.c.h.b16 %v5340
        %v6706 = vunpack.c.l.b16 %v5341
        %v6707 = vunpack.c.h.b16 %v5341
        %v6708 = vunpack.c.l.b16 %v5342
        %v6709 = vunpack.c.h.b16 %v5342
        %v6710 = vunpack.c.l.b16 %v5343
        %v6711 = vunpack.c.h.b16 %v5343
        %v6712 = vunpack.c.l.b16 %v5344
        %v6713 = vunpack.c.h.b16 %v5344
        %v6714 = vunpack.c.l.b16 %v5345
        %v6715 = vunpack.c.h.b16 %v5345
        %v6716 = vunpack.c.l.b16 %v5346
        %v6717 = vunpack.c.h.b16 %v5346
        %v6718 = vunpack.c.l.b16 %v5347
        %v6719 = vunpack.c.h.b16 %v5347
        %v6720 = vunpack.c.l.b16 %v5348
        %v6721 = vunpack.c.h.b16 %v5348
        %v6722 = vunpack.c.l.b16 %v5349
        %v6723 = vunpack.c.h.b16 %v5349
        %v6724 = vunpack.c.l.b16 %v5350
        %v6725 = vunpack.c.h.b16 %v5350
        %v6726 = vunpack.c.l.b16 %v5351
        %v6727 = vunpack.c.h.b16 %v5351
        %v6728 = vunpack.c.l.b16 %v5352
        %v6729 = vunpack.c.h.b16 %v5352
        %v6730 = vunpack.c.l.b16 %v5353
        %v6731 = vunpack.c.h.b16 %v5353
        %v6732 = vunpack.c.l.b16 %v5354
        %v6733 = vunpack.c.h.b16 %v5354
        %v6734 = vunpack.c.l.b16 %v5355
        %v6735 = vunpack.c.h.b16 %v5355
        %v6736 = vunpack.c.l.b16 %v5356
        %v6737 = vunpack.c.h.b16 %v5356
        %v6738 = vunpack.c.l.b16 %v5357
        %v6739 = vunpack.c.h.b16 %v5357
        %v6740 = vunpack.c.l.b16 %v5358
        %v6741 = vunpack.c.h.b16 %v5358
        %v6742 = vunpack.c.l.b16 %v5359
        %v6743 = vunpack.c.h.b16 %v5359
        %v6744 = vunpack.c.l.b16 %v5360
        %v6745 = vunpack.c.h.b16 %v5360
        %v6746 = vunpack.c.l.b16 %v5361
        %v6747 = vunpack.c.h.b16 %v5361
        %v6748 = vunpack.c.l.b16 %v5362
        %v6749 = vunpack.c.h.b16 %v5362
        %v6750 = vunpack.c.l.b16 %v5363
        %v6751 = vunpack.c.h.b16 %v5363
        %v6752 = vunpack.c.l.b16 %v5364
        %v6753 = vunpack.c.h.b16 %v5364
        %v6754 = vunpack.c.l.b16 %v5365
        %v6755 = vunpack.c.h.b16 %v5365
        %v6756 = vunpack.c.l.b16 %v5366
        %v6757 = vunpack.c.h.b16 %v5366
        %v6758 = vunpack.c.l.b16 %v5367
        %v6759 = vunpack.c.h.b16 %v5367
        %v6760 = vunpack.c.l.b16 %v5368
        %v6761 = vunpack.c.h.b16 %v5368
        %v6762 = vunpack.c.l.b16 %v5369
        %v6763 = vunpack.c.h.b16 %v5369
        %v6764 = vunpack.c.l.b16 %v5370
        %v6765 = vunpack.c.h.b16 %v5370
        %v6766 = vunpack.c.l.b16 %v5371
        %v6767 = vunpack.c.h.b16 %v5371
        %v6768 = vunpack.c.l.b16 %v5372
        %v6769 = vunpack.c.h.b16 %v5372
        %v6770 = vunpack.c.l.b16 %v5373
        %v6771 = vunpack.c.h.b16 %v5373
        %v6772 = vunpack.c.l.b16 %v5374
        %v6773 = vunpack.c.h.b16 %v5374
        %v6774 = vunpack.c.l.b16 %v5375
        %v6775 = vunpack.c.h.b16 %v5375
        %v6776 = vunpack.c.l.b16 %v5376
        %v6777 = vunpack.c.h.b16 %v5376
        %v6778 = vunpack.c.l.b16 %v5377
        %v6779 = vunpack.c.h.b16 %v5377
        %v6780 = vunpack.c.l.b16 %v5378
        %v6781 = vunpack.c.h.b16 %v5378
        %v6782 = vunpack.c.l.b16 %v5379
        %v6783 = vunpack.c.h.b16 %v5379
        %v6784 = vunpack.c.l.b16 %v5380
        %v6785 = vunpack.c.h.b16 %v5380
        %v6786 = vunpack.c.l.b16 %v5381
        %v6787 = vunpack.c.h.b16 %v5381
        %v6788 = vunpack.c.l.b16 %v5382
        %v6789 = vunpack.c.h.b16 %v5382
        %v6790 = vunpack.c.l.b16 %v5383
        %v6791 = vunpack.c.h.b16 %v5383
        %v6792 = vunpack.c.l.b16 %v5384
        %v6793 = vunpack.c.h.b16 %v5384
        %v6794 = vunpack.c.l.b16 %v5385
        %v6795 = vunpack.c.h.b16 %v5385
        %v6796 = vunpack.c.l.b16 %v5386
        %v6797 = vunpack.c.h.b16 %v5386
        %v6798 = vunpack.c.l.b16 %v5387
        %v6799 = vunpack.c.h.b16 %v5387
        %v6800 = vunpack.c.l.b16 %v5388
        %v6801 = vunpack.c.h.b16 %v5388
        %v6802 = vunpack.c.l.b16 %v5389
        %v6803 = vunpack.c.h.b16 %v5389
        %v6804 = vunpack.c.l.b16 %v5390
        %v6805 = vunpack.c.h.b16 %v5390
        %v6806 = vunpack.c.l.b16 %v5391
        %v6807 = vunpack.c.h.b16 %v5391
        %v6808 = vunpack.c.l.b16 %v5392
        %v6809 = vunpack.c.h.b16 %v5392
        %v6810 = vunpack.c.l.b16 %v5393
        %v6811 = vunpack.c.h.b16 %v5393
        %v6812 = vunpack.c.l.b16 %v5394
        %v6813 = vunpack.c.h.b16 %v5394
        %v6814 = vunpack.c.l.b16 %v5395
        %v6815 = vunpack.c.h.b16 %v5395
        %v6816 = vunpack.c.l.b16 %v5396
        %v6817 = vunpack.c.h.b16 %v5396
        %v6818 = vunpack.c.l.b16 %v5397
        %v6819 = vunpack.c.h.b16 %v5397
        %v6820 = vunpack.c.l.b16 %v5398
        %v6821 = vunpack.c.h.b16 %v5398
        %v6822 = vunpack.c.l.b16 %v5399
        %v6823 = vunpack.c.h.b16 %v5399
        %v6824 = vunpack.c.l.b16 %v5400
        %v6825 = vunpack.c.h.b16 %v5400
        %v6826 = vunpack.c.l.b16 %v5401
        %v6827 = vunpack.c.h.b16 %v5401
        %v6828 = vunpack.c.l.b16 %v5402
        %v6829 = vunpack.c.h.b16 %v5402
        %v6830 = vunpack.c.l.b16 %v5403
        %v6831 = vunpack.c.h.b16 %v5403
        %v6832 = vunpack.c.l.b16 %v5404
        %v6833 = vunpack.c.h.b16 %v5404
        %v6834 = vunpack.c.l.b16 %v5405
        %v6835 = vunpack.c.h.b16 %v5405
        %v6836 = vunpack.c.l.b16 %v5406
        %v6837 = vunpack.c.h.b16 %v5406
        %v6838 = vunpack.c.l.b16 %v5407
        %v6839 = vunpack.c.h.b16 %v5407
        %v6840 = vunpack.c.l.b16 %v5408
        %v6841 = vunpack.c.h.b16 %v5408
        %v6842 = vunpack.c.l.b16 %v5409
        %v6843 = vunpack.c.h.b16 %v5409
        %v6844 = vunpack.c.l.b16 %v5410
        %v6845 = vunpack.c.h.b16 %v5410
        %v6846 = vunpack.c.l.b16 %v5411
        %v6847 = vunpack.c.h.b16 %v5411
        %v6848 = vunpack.c.l.b16 %v5412
        %v6849 = vunpack.c.h.b16 %v5412
        %v6850 = vunpack.c.l.b16 %v5413
        %v6851 = vunpack.c.h.b16 %v5413
        %v6852 = vunpack.c.l.b16 %v5414
        %v6853 = vunpack.c.h.b16 %v5414
        %v6854 = vunpack.c.l.b16 %v5415
        %v6855 = vunpack.c.h.b16 %v5415
        %v6856 = vunpack.c.l.b16 %v5416
        %v6857 = vunpack.c.h.b16 %v5416
        %v6858 = vunpack.c.l.b16 %v5417
        %v6859 = vunpack.c.h.b16 %v5417
        %v6860 = vunpack.c.l.b16 %v5418
        %v6861 = vunpack.c.h.b16 %v5418
        %v6862 = vunpack.c.l.b16 %v5419
        %v6863 = vunpack.c.h.b16 %v5419
        %v6864 = vunpack.c.l.b16 %v5420
        %v6865 = vunpack.c.h.b16 %v5420
        %v6866 = vunpack.c.l.b16 %v5421
        %v6867 = vunpack.c.h.b16 %v5421
        %v6868 = vunpack.c.l.b16 %v5422
        %v6869 = vunpack.c.h.b16 %v5422
        %v6870 = vunpack.c.l.b16 %v5423
        %v6871 = vunpack.c.h.b16 %v5423
        %v6872 = vunpack.c.l.b16 %v5424
        %v6873 = vunpack.c.h.b16 %v5424
        %v6874 = vunpack.c.l.b16 %v5425
        %v6875 = vunpack.c.h.b16 %v5425
        %v6876 = vunpack.c.l.b16 %v5426
        %v6877 = vunpack.c.h.b16 %v5426
        %v6878 = vunpack.c.l.b16 %v5427
        %v6879 = vunpack.c.h.b16 %v5427
        %v6880 = vunpack.c.l.b16 %v5428
        %v6881 = vunpack.c.h.b16 %v5428
        %v6882 = vunpack.c.l.b16 %v5429
        %v6883 = vunpack.c.h.b16 %v5429
        %v6884 = vunpack.c.l.b16 %v5430
        %v6885 = vunpack.c.h.b16 %v5430
        %v6886 = vunpack.c.l.b16 %v5431
        %v6887 = vunpack.c.h.b16 %v5431
        %v6888 = vunpack.c.l.b16 %v5432
        %v6889 = vunpack.c.h.b16 %v5432
        %v6890 = vunpack.c.l.b16 %v5433
        %v6891 = vunpack.c.h.b16 %v5433
        %v6892 = vunpack.c.l.b16 %v5434
        %v6893 = vunpack.c.h.b16 %v5434
        %v6894 = vunpack.c.l.b16 %v5435
        %v6895 = vunpack.c.h.b16 %v5435
        %v6896 = vunpack.c.l.b16 %v5436
        %v6897 = vunpack.c.h.b16 %v5436
        %v6898 = vunpack.c.l.b16 %v5437
        %v6899 = vunpack.c.h.b16 %v5437
        %v6900 = vunpack.c.l.b16 %v5438
        %v6901 = vunpack.c.h.b16 %v5438
        %v6902 = vunpack.c.l.b16 %v5439
        %v6903 = vunpack.c.h.b16 %v5439
        %v6904 = vunpack.c.l.b16 %v5440
        %v6905 = vunpack.c.h.b16 %v5440
        %v6906 = vunpack.c.l.b16 %v5441
        %v6907 = vunpack.c.h.b16 %v5441
        %v6908 = vunpack.c.l.b16 %v5442
        %v6909 = vunpack.c.h.b16 %v5442
        %v6910 = vunpack.c.l.b16 %v5443
        %v6911 = vunpack.c.h.b16 %v5443
        %v6912 = vunpack.c.l.b16 %v5444
        %v6913 = vunpack.c.h.b16 %v5444
        %v6914 = vunpack.c.l.b16 %v5445
        %v6915 = vunpack.c.h.b16 %v5445
        %v6916 = vunpack.c.l.b16 %v5446
        %v6917 = vunpack.c.h.b16 %v5446
        %v6918 = vunpack.c.l.b16 %v5447
        %v6919 = vunpack.c.h.b16 %v5447
        %v6920 = vunpack.c.l.b16 %v5448
        %v6921 = vunpack.c.h.b16 %v5448
        %v6922 = vunpack.c.l.b16 %v5449
        %v6923 = vunpack.c.h.b16 %v5449
        %v6924 = vunpack.c.l.b16 %v5450
        %v6925 = vunpack.c.h.b16 %v5450
        %v6926 = vunpack.c.l.b16 %v5451
        %v6927 = vunpack.c.h.b16 %v5451
        %v6928 = vunpack.c.l.b16 %v5452
        %v6929 = vunpack.c.h.b16 %v5452
        %v6930 = vunpack.c.l.b16 %v5453
        %v6931 = vunpack.c.h.b16 %v5453
        %v6932 = vunpack.c.l.b16 %v5454
        %v6933 = vunpack.c.h.b16 %v5454
        %v6934 = vunpack.c.l.b16 %v5455
        %v6935 = vunpack.c.h.b16 %v5455
        %v6936 = vunpack.c.l.b16 %v5456
        %v6937 = vunpack.c.h.b16 %v5456
        %v6938 = vunpack.c.l.b16 %v5457
        %v6939 = vunpack.c.h.b16 %v5457
        %v6940 = vpack.c.b16 %v5988, %v5980
        %v6941 = vpack.c.b16 %v5989, %v5981
        %v6942 = vpack.c.b16 %v5990, %v5982
        %v6943 = vpack.c.b16 %v5991, %v5983
        %v6944 = vpack.c.b16 %v5992, %v5984
        %v6945 = vpack.c.b16 %v5993, %v5985
        %v6946 = vpack.c.b16 %v5994, %v5986
        %v6947 = vpack.c.b16 %v5995, %v5987
        %v6948 = vpack.c.b16 %v6004, %v5996
        %v6949 = vpack.c.b16 %v6005, %v5997
        %v6950 = vpack.c.b16 %v6006, %v5998
        %v6951 = vpack.c.b16 %v6007, %v5999
        %v6952 = vpack.c.b16 %v6008, %v6000
        %v6953 = vpack.c.b16 %v6009, %v6001
        %v6954 = vpack.c.b16 %v6010, %v6002
        %v6955 = vpack.c.b16 %v6011, %v6003
        %v6956 = vpack.c.b16 %v6020, %v6012
        %v6957 = vpack.c.b16 %v6021, %v6013
        %v6958 = vpack.c.b16 %v6022, %v6014
        %v6959 = vpack.c.b16 %v6023, %v6015
        %v6960 = vpack.c.b16 %v6024, %v6016
        %v6961 = vpack.c.b16 %v6025, %v6017
        %v6962 = vpack.c.b16 %v6026, %v6018
        %v6963 = vpack.c.b16 %v6027, %v6019
        %v6964 = vpack.c.b16 %v6036, %v6028
        %v6965 = vpack.c.b16 %v6037, %v6029
        %v6966 = vpack.c.b16 %v6038, %v6030
        %v6967 = vpack.c.b16 %v6039, %v6031
        %v6968 = vpack.c.b16 %v6040, %v6032
        %v6969 = vpack.c.b16 %v6041, %v6033
        %v6970 = vpack.c.b16 %v6042, %v6034
        %v6971 = vpack.c.b16 %v6043, %v6035
        %v6972 = vpack.c.b16 %v6052, %v6044
        %v6973 = vpack.c.b16 %v6053, %v6045
        %v6974 = vpack.c.b16 %v6054, %v6046
        %v6975 = vpack.c.b16 %v6055, %v6047
        %v6976 = vpack.c.b16 %v6056, %v6048
        %v6977 = vpack.c.b16 %v6057, %v6049
        %v6978 = vpack.c.b16 %v6058, %v6050
        %v6979 = vpack.c.b16 %v6059, %v6051
        %v6980 = vpack.c.b16 %v6068, %v6060
        %v6981 = vpack.c.b16 %v6069, %v6061
        %v6982 = vpack.c.b16 %v6070, %v6062
        %v6983 = vpack.c.b16 %v6071, %v6063
        %v6984 = vpack.c.b16 %v6072, %v6064
        %v6985 = vpack.c.b16 %v6073, %v6065
        %v6986 = vpack.c.b16 %v6074, %v6066
        %v6987 = vpack.c.b16 %v6075, %v6067
        %v6988 = vpack.c.b16 %v6084, %v6076
        %v6989 = vpack.c.b16 %v6085, %v6077
        %v6990 = vpack.c.b16 %v6086, %v6078
        %v6991 = vpack.c.b16 %v6087, %v6079
        %v6992 = vpack.c.b16 %v6088, %v6080
        %v6993 = vpack.c.b16 %v6089, %v6081
        %v6994 = vpack.c.b16 %v6090, %v6082
        %v6995 = vpack.c.b16 %v6091, %v6083
        %v6996 = vpack.c.b16 %v6100, %v6092
        %v6997 = vpack.c.b16 %v6101, %v6093
        %v6998 = vpack.c.b16 %v6102, %v6094
        %v6999 = vpack.c.b16 %v6103, %v6095
        %v7000 = vpack.c.b16 %v6104, %v6096
        %v7001 = vpack.c.b16 %v6105, %v6097
        %v7002 = vpack.c.b16 %v6106, %v6098
        %v7003 = vpack.c.b16 %v6107, %v6099
        %v7004 = vpack.c.b16 %v6116, %v6108
        %v7005 = vpack.c.b16 %v6117, %v6109
        %v7006 = vpack.c.b16 %v6118, %v6110
        %v7007 = vpack.c.b16 %v6119, %v6111
        %v7008 = vpack.c.b16 %v6120, %v6112
        %v7009 = vpack.c.b16 %v6121, %v6113
        %v7010 = vpack.c.b16 %v6122, %v6114
        %v7011 = vpack.c.b16 %v6123, %v6115
        %v7012 = vpack.c.b16 %v6132, %v6124
        %v7013 = vpack.c.b16 %v6133, %v6125
        %v7014 = vpack.c.b16 %v6134, %v6126
        %v7015 = vpack.c.b16 %v6135, %v6127
        %v7016 = vpack.c.b16 %v6136, %v6128
        %v7017 = vpack.c.b16 %v6137, %v6129
        %v7018 = vpack.c.b16 %v6138, %v6130
        %v7019 = vpack.c.b16 %v6139, %v6131
        %v7020 = vpack.c.b16 %v6148, %v6140
        %v7021 = vpack.c.b16 %v6149, %v6141
        %v7022 = vpack.c.b16 %v6150, %v6142
        %v7023 = vpack.c.b16 %v6151, %v6143
        %v7024 = vpack.c.b16 %v6152, %v6144
        %v7025 = vpack.c.b16 %v6153, %v6145
        %v7026 = vpack.c.b16 %v6154, %v6146
        %v7027 = vpack.c.b16 %v6155, %v6147
        %v7028 = vpack.c.b16 %v6164, %v6156
        %v7029 = vpack.c.b16 %v6165, %v6157
        %v7030 = vpack.c.b16 %v6166, %v6158
        %v7031 = vpack.c.b16 %v6167, %v6159
        %v7032 = vpack.c.b16 %v6168, %v6160
        %v7033 = vpack.c.b16 %v6169, %v6161
        %v7034 = vpack.c.b16 %v6170, %v6162
        %v7035 = vpack.c.b16 %v6171, %v6163
        %v7036 = vpack.c.b16 %v6180, %v6172
        %v7037 = vpack.c.b16 %v6181, %v6173
        %v7038 = vpack.c.b16 %v6182, %v6174
        %v7039 = vpack.c.b16 %v6183, %v6175
        %v7040 = vpack.c.b16 %v6184, %v6176
        %v7041 = vpack.c.b16 %v6185, %v6177
        %v7042 = vpack.c.b16 %v6186, %v6178
        %v7043 = vpack.c.b16 %v6187, %v6179
        %v7044 = vpack.c.b16 %v6196, %v6188
        %v7045 = vpack.c.b16 %v6197, %v6189
        %v7046 = vpack.c.b16 %v6198, %v6190
        %v7047 = vpack.c.b16 %v6199, %v6191
        %v7048 = vpack.c.b16 %v6200, %v6192
        %v7049 = vpack.c.b16 %v6201, %v6193
        %v7050 = vpack.c.b16 %v6202, %v6194
        %v7051 = vpack.c.b16 %v6203, %v6195
        %v7052 = vpack.c.b16 %v6212, %v6204
        %v7053 = vpack.c.b16 %v6213, %v6205
        %v7054 = vpack.c.b16 %v6214, %v6206
        %v7055 = vpack.c.b16 %v6215, %v6207
        %v7056 = vpack.c.b16 %v6216, %v6208
        %v7057 = vpack.c.b16 %v6217, %v6209
        %v7058 = vpack.c.b16 %v6218, %v6210
        %v7059 = vpack.c.b16 %v6219, %v6211
        %v7060 = vpack.c.b16 %v6228, %v6220
        %v7061 = vpack.c.b16 %v6229, %v6221
        %v7062 = vpack.c.b16 %v6230, %v6222
        %v7063 = vpack.c.b16 %v6231, %v6223
        %v7064 = vpack.c.b16 %v6232, %v6224
        %v7065 = vpack.c.b16 %v6233, %v6225
        %v7066 = vpack.c.b16 %v6234, %v6226
        %v7067 = vpack.c.b16 %v6235, %v6227
        %v7068 = vpack.c.b16 %v6244, %v6236
        %v7069 = vpack.c.b16 %v6245, %v6237
        %v7070 = vpack.c.b16 %v6246, %v6238
        %v7071 = vpack.c.b16 %v6247, %v6239
        %v7072 = vpack.c.b16 %v6248, %v6240
        %v7073 = vpack.c.b16 %v6249, %v6241
        %v7074 = vpack.c.b16 %v6250, %v6242
        %v7075 = vpack.c.b16 %v6251, %v6243
        %v7076 = vpack.c.b16 %v6260, %v6252
        %v7077 = vpack.c.b16 %v6261, %v6253
        %v7078 = vpack.c.b16 %v6262, %v6254
        %v7079 = vpack.c.b16 %v6263, %v6255
        %v7080 = vpack.c.b16 %v6264, %v6256
        %v7081 = vpack.c.b16 %v6265, %v6257
        %v7082 = vpack.c.b16 %v6266, %v6258
        %v7083 = vpack.c.b16 %v6267, %v6259
        %v7084 = vpack.c.b16 %v6276, %v6268
        %v7085 = vpack.c.b16 %v6277, %v6269
        %v7086 = vpack.c.b16 %v6278, %v6270
        %v7087 = vpack.c.b16 %v6279, %v6271
        %v7088 = vpack.c.b16 %v6280, %v6272
        %v7089 = vpack.c.b16 %v6281, %v6273
        %v7090 = vpack.c.b16 %v6282, %v6274
        %v7091 = vpack.c.b16 %v6283, %v6275
        %v7092 = vpack.c.b16 %v6292, %v6284
        %v7093 = vpack.c.b16 %v6293, %v6285
        %v7094 = vpack.c.b16 %v6294, %v6286
        %v7095 = vpack.c.b16 %v6295, %v6287
        %v7096 = vpack.c.b16 %v6296, %v6288
        %v7097 = vpack.c.b16 %v6297, %v6289
        %v7098 = vpack.c.b16 %v6298, %v6290
        %v7099 = vpack.c.b16 %v6299, %v6291
        %v7100 = vpack.c.b16 %v6308, %v6300
        %v7101 = vpack.c.b16 %v6309, %v6301
        %v7102 = vpack.c.b16 %v6310, %v6302
        %v7103 = vpack.c.b16 %v6311, %v6303
        %v7104 = vpack.c.b16 %v6312, %v6304
        %v7105 = vpack.c.b16 %v6313, %v6305
        %v7106 = vpack.c.b16 %v6314, %v6306
        %v7107 = vpack.c.b16 %v6315, %v6307
        %v7108 = vpack.c.b16 %v6324, %v6316
        %v7109 = vpack.c.b16 %v6325, %v6317
        %v7110 = vpack.c.b16 %v6326, %v6318
        %v7111 = vpack.c.b16 %v6327, %v6319
        %v7112 = vpack.c.b16 %v6328, %v6320
        %v7113 = vpack.c.b16 %v6329, %v6321
        %v7114 = vpack.c.b16 %v6330, %v6322
        %v7115 = vpack.c.b16 %v6331, %v6323
        %v7116 = vpack.c.b16 %v6340, %v6332
        %v7117 = vpack.c.b16 %v6341, %v6333
        %v7118 = vpack.c.b16 %v6342, %v6334
        %v7119 = vpack.c.b16 %v6343, %v6335
        %v7120 = vpack.c.b16 %v6344, %v6336
        %v7121 = vpack.c.b16 %v6345, %v6337
        %v7122 = vpack.c.b16 %v6346, %v6338
        %v7123 = vpack.c.b16 %v6347, %v6339
        %v7124 = vpack.c.b16 %v6356, %v6348
        %v7125 = vpack.c.b16 %v6357, %v6349
        %v7126 = vpack.c.b16 %v6358, %v6350
        %v7127 = vpack.c.b16 %v6359, %v6351
        %v7128 = vpack.c.b16 %v6360, %v6352
        %v7129 = vpack.c.b16 %v6361, %v6353
        %v7130 = vpack.c.b16 %v6362, %v6354
        %v7131 = vpack.c.b16 %v6363, %v6355
        %v7132 = vpack.c.b16 %v6372, %v6364
        %v7133 = vpack.c.b16 %v6373, %v6365
        %v7134 = vpack.c.b16 %v6374, %v6366
        %v7135 = vpack.c.b16 %v6375, %v6367
        %v7136 = vpack.c.b16 %v6376, %v6368
        %v7137 = vpack.c.b16 %v6377, %v6369
        %v7138 = vpack.c.b16 %v6378, %v6370
        %v7139 = vpack.c.b16 %v6379, %v6371
        %v7140 = vpack.c.b16 %v6388, %v6380
        %v7141 = vpack.c.b16 %v6389, %v6381
        %v7142 = vpack.c.b16 %v6390, %v6382
        %v7143 = vpack.c.b16 %v6391, %v6383
        %v7144 = vpack.c.b16 %v6392, %v6384
        %v7145 = vpack.c.b16 %v6393, %v6385
        %v7146 = vpack.c.b16 %v6394, %v6386
        %v7147 = vpack.c.b16 %v6395, %v6387
        %v7148 = vpack.c.b16 %v6404, %v6396
        %v7149 = vpack.c.b16 %v6405, %v6397
        %v7150 = vpack.c.b16 %v6406, %v6398
        %v7151 = vpack.c.b16 %v6407, %v6399
        %v7152 = vpack.c.b16 %v6408, %v6400
        %v7153 = vpack.c.b16 %v6409, %v6401
        %v7154 = vpack.c.b16 %v6410, %v6402
        %v7155 = vpack.c.b16 %v6411, %v6403
        %v7156 = vpack.c.b16 %v6420, %v6412
        %v7157 = vpack.c.b16 %v6421, %v6413
        %v7158 = vpack.c.b16 %v6422, %v6414
        %v7159 = vpack.c.b16 %v6423, %v6415
        %v7160 = vpack.c.b16 %v6424, %v6416
        %v7161 = vpack.c.b16 %v6425, %v6417
        %v7162 = vpack.c.b16 %v6426, %v6418
        %v7163 = vpack.c.b16 %v6427, %v6419
        %v7164 = vpack.c.b16 %v6436, %v6428
        %v7165 = vpack.c.b16 %v6437, %v6429
        %v7166 = vpack.c.b16 %v6438, %v6430
        %v7167 = vpack.c.b16 %v6439, %v6431
        %v7168 = vpack.c.b16 %v6440, %v6432
        %v7169 = vpack.c.b16 %v6441, %v6433
        %v7170 = vpack.c.b16 %v6442, %v6434
        %v7171 = vpack.c.b16 %v6443, %v6435
        %v7172 = vpack.c.b16 %v6452, %v6444
        %v7173 = vpack.c.b16 %v6453, %v6445
        %v7174 = vpack.c.b16 %v6454, %v6446
        %v7175 = vpack.c.b16 %v6455, %v6447
        %v7176 = vpack.c.b16 %v6456, %v6448
        %v7177 = vpack.c.b16 %v6457, %v6449
        %v7178 = vpack.c.b16 %v6458, %v6450
        %v7179 = vpack.c.b16 %v6459, %v6451
        %v7180 = vpack.c.b16 %v6468, %v6460
        %v7181 = vpack.c.b16 %v6469, %v6461
        %v7182 = vpack.c.b16 %v6470, %v6462
        %v7183 = vpack.c.b16 %v6471, %v6463
        %v7184 = vpack.c.b16 %v6472, %v6464
        %v7185 = vpack.c.b16 %v6473, %v6465
        %v7186 = vpack.c.b16 %v6474, %v6466
        %v7187 = vpack.c.b16 %v6475, %v6467
        %v7188 = vpack.c.b16 %v6484, %v6476
        %v7189 = vpack.c.b16 %v6485, %v6477
        %v7190 = vpack.c.b16 %v6486, %v6478
        %v7191 = vpack.c.b16 %v6487, %v6479
        %v7192 = vpack.c.b16 %v6488, %v6480
        %v7193 = vpack.c.b16 %v6489, %v6481
        %v7194 = vpack.c.b16 %v6490, %v6482
        %v7195 = vpack.c.b16 %v6491, %v6483
        %v7196 = vpack.c.b16 %v6500, %v6492
        %v7197 = vpack.c.b16 %v6501, %v6493
        %v7198 = vpack.c.b16 %v6502, %v6494
        %v7199 = vpack.c.b16 %v6503, %v6495
        %v7200 = vpack.c.b16 %v6504, %v6496
        %v7201 = vpack.c.b16 %v6505, %v6497
        %v7202 = vpack.c.b16 %v6506, %v6498
        %v7203 = vpack.c.b16 %v6507, %v6499
        %v7204 = vpack.c.b16 %v6516, %v6508
        %v7205 = vpack.c.b16 %v6517, %v6509
        %v7206 = vpack.c.b16 %v6518, %v6510
        %v7207 = vpack.c.b16 %v6519, %v6511
        %v7208 = vpack.c.b16 %v6520, %v6512
        %v7209 = vpack.c.b16 %v6521, %v6513
        %v7210 = vpack.c.b16 %v6522, %v6514
        %v7211 = vpack.c.b16 %v6523, %v6515
        %v7212 = vpack.c.b16 %v6532, %v6524
        %v7213 = vpack.c.b16 %v6533, %v6525
        %v7214 = vpack.c.b16 %v6534, %v6526
        %v7215 = vpack.c.b16 %v6535, %v6527
        %v7216 = vpack.c.b16 %v6536, %v6528
        %v7217 = vpack.c.b16 %v6537, %v6529
        %v7218 = vpack.c.b16 %v6538, %v6530
        %v7219 = vpack.c.b16 %v6539, %v6531
        %v7220 = vpack.c.b16 %v6548, %v6540
        %v7221 = vpack.c.b16 %v6549, %v6541
        %v7222 = vpack.c.b16 %v6550, %v6542
        %v7223 = vpack.c.b16 %v6551, %v6543
        %v7224 = vpack.c.b16 %v6552, %v6544
        %v7225 = vpack.c.b16 %v6553, %v6545
        %v7226 = vpack.c.b16 %v6554, %v6546
        %v7227 = vpack.c.b16 %v6555, %v6547
        %v7228 = vpack.c.b16 %v6564, %v6556
        %v7229 = vpack.c.b16 %v6565, %v6557
        %v7230 = vpack.c.b16 %v6566, %v6558
        %v7231 = vpack.c.b16 %v6567, %v6559
        %v7232 = vpack.c.b16 %v6568, %v6560
        %v7233 = vpack.c.b16 %v6569, %v6561
        %v7234 = vpack.c.b16 %v6570, %v6562
        %v7235 = vpack.c.b16 %v6571, %v6563
        %v7236 = vpack.c.b16 %v6580, %v6572
        %v7237 = vpack.c.b16 %v6581, %v6573
        %v7238 = vpack.c.b16 %v6582, %v6574
        %v7239 = vpack.c.b16 %v6583, %v6575
        %v7240 = vpack.c.b16 %v6584, %v6576
        %v7241 = vpack.c.b16 %v6585, %v6577
        %v7242 = vpack.c.b16 %v6586, %v6578
        %v7243 = vpack.c.b16 %v6587, %v6579
        %v7244 = vpack.c.b16 %v6596, %v6588
        %v7245 = vpack.c.b16 %v6597, %v6589
        %v7246 = vpack.c.b16 %v6598, %v6590
        %v7247 = vpack.c.b16 %v6599, %v6591
        %v7248 = vpack.c.b16 %v6600, %v6592
        %v7249 = vpack.c.b16 %v6601, %v6593
        %v7250 = vpack.c.b16 %v6602, %v6594
        %v7251 = vpack.c.b16 %v6603, %v6595
        %v7252 = vpack.c.b16 %v6612, %v6604
        %v7253 = vpack.c.b16 %v6613, %v6605
        %v7254 = vpack.c.b16 %v6614, %v6606
        %v7255 = vpack.c.b16 %v6615, %v6607
        %v7256 = vpack.c.b16 %v6616, %v6608
        %v7257 = vpack.c.b16 %v6617, %v6609
        %v7258 = vpack.c.b16 %v6618, %v6610
        %v7259 = vpack.c.b16 %v6619, %v6611
        %v7260 = vpack.c.b16 %v6628, %v6620
        %v7261 = vpack.c.b16 %v6629, %v6621
        %v7262 = vpack.c.b16 %v6630, %v6622
        %v7263 = vpack.c.b16 %v6631, %v6623
        %v7264 = vpack.c.b16 %v6632, %v6624
        %v7265 = vpack.c.b16 %v6633, %v6625
        %v7266 = vpack.c.b16 %v6634, %v6626
        %v7267 = vpack.c.b16 %v6635, %v6627
        %v7268 = vpack.c.b16 %v6644, %v6636
        %v7269 = vpack.c.b16 %v6645, %v6637
        %v7270 = vpack.c.b16 %v6646, %v6638
        %v7271 = vpack.c.b16 %v6647, %v6639
        %v7272 = vpack.c.b16 %v6648, %v6640
        %v7273 = vpack.c.b16 %v6649, %v6641
        %v7274 = vpack.c.b16 %v6650, %v6642
        %v7275 = vpack.c.b16 %v6651, %v6643
        %v7276 = vpack.c.b16 %v6660, %v6652
        %v7277 = vpack.c.b16 %v6661, %v6653
        %v7278 = vpack.c.b16 %v6662, %v6654
        %v7279 = vpack.c.b16 %v6663, %v6655
        %v7280 = vpack.c.b16 %v6664, %v6656
        %v7281 = vpack.c.b16 %v6665, %v6657
        %v7282 = vpack.c.b16 %v6666, %v6658
        %v7283 = vpack.c.b16 %v6667, %v6659
        %v7284 = vpack.c.b16 %v6676, %v6668
        %v7285 = vpack.c.b16 %v6677, %v6669
        %v7286 = vpack.c.b16 %v6678, %v6670
        %v7287 = vpack.c.b16 %v6679, %v6671
        %v7288 = vpack.c.b16 %v6680, %v6672
        %v7289 = vpack.c.b16 %v6681, %v6673
        %v7290 = vpack.c.b16 %v6682, %v6674
        %v7291 = vpack.c.b16 %v6683, %v6675
        %v7292 = vpack.c.b16 %v6692, %v6684
        %v7293 = vpack.c.b16 %v6693, %v6685
        %v7294 = vpack.c.b16 %v6694, %v6686
        %v7295 = vpack.c.b16 %v6695, %v6687
        %v7296 = vpack.c.b16 %v6696, %v6688
        %v7297 = vpack.c.b16 %v6697, %v6689
        %v7298 = vpack.c.b16 %v6698, %v6690
        %v7299 = vpack.c.b16 %v6699, %v6691
        %v7300 = vpack.c.b16 %v6708, %v6700
        %v7301 = vpack.c.b16 %v6709, %v6701
        %v7302 = vpack.c.b16 %v6710, %v6702
        %v7303 = vpack.c.b16 %v6711, %v6703
        %v7304 = vpack.c.b16 %v6712, %v6704
        %v7305 = vpack.c.b16 %v6713, %v6705
        %v7306 = vpack.c.b16 %v6714, %v6706
        %v7307 = vpack.c.b16 %v6715, %v6707
        %v7308 = vpack.c.b16 %v6724, %v6716
        %v7309 = vpack.c.b16 %v6725, %v6717
        %v7310 = vpack.c.b16 %v6726, %v6718
        %v7311 = vpack.c.b16 %v6727, %v6719
        %v7312 = vpack.c.b16 %v6728, %v6720
        %v7313 = vpack.c.b16 %v6729, %v6721
        %v7314 = vpack.c.b16 %v6730, %v6722
        %v7315 = vpack.c.b16 %v6731, %v6723
        %v7316 = vpack.c.b16 %v6740, %v6732
        %v7317 = vpack.c.b16 %v6741, %v6733
        %v7318 = vpack.c.b16 %v6742, %v6734
        %v7319 = vpack.c.b16 %v6743, %v6735
        %v7320 = vpack.c.b16 %v6744, %v6736
        %v7321 = vpack.c.b16 %v6745, %v6737
        %v7322 = vpack.c.b16 %v6746, %v6738
        %v7323 = vpack.c.b16 %v6747, %v6739
        %v7324 = vpack.c.b16 %v6756, %v6748
        %v7325 = vpack.c.b16 %v6757, %v6749
        %v7326 = vpack.c.b16 %v6758, %v6750
        %v7327 = vpack.c.b16 %v6759, %v6751
        %v7328 = vpack.c.b16 %v6760, %v6752
        %v7329 = vpack.c.b16 %v6761, %v6753
        %v7330 = vpack.c.b16 %v6762, %v6754
        %v7331 = vpack.c.b16 %v6763, %v6755
        %v7332 = vpack.c.b16 %v6772, %v6764
        %v7333 = vpack.c.b16 %v6773, %v6765
        %v7334 = vpack.c.b16 %v6774, %v6766
        %v7335 = vpack.c.b16 %v6775, %v6767
        %v7336 = vpack.c.b16 %v6776, %v6768
        %v7337 = vpack.c.b16 %v6777, %v6769
        %v7338 = vpack.c.b16 %v6778, %v6770
        %v7339 = vpack.c.b16 %v6779, %v6771
        %v7340 = vpack.c.b16 %v6788, %v6780
        %v7341 = vpack.c.b16 %v6789, %v6781
        %v7342 = vpack.c.b16 %v6790, %v6782
        %v7343 = vpack.c.b16 %v6791, %v6783
        %v7344 = vpack.c.b16 %v6792, %v6784
        %v7345 = vpack.c.b16 %v6793, %v6785
        %v7346 = vpack.c.b16 %v6794, %v6786
        %v7347 = vpack.c.b16 %v6795, %v6787
        %v7348 = vpack.c.b16 %v6804, %v6796
        %v7349 = vpack.c.b16 %v6805, %v6797
        %v7350 = vpack.c.b16 %v6806, %v6798
        %v7351 = vpack.c.b16 %v6807, %v6799
        %v7352 = vpack.c.b16 %v6808, %v6800
        %v7353 = vpack.c.b16 %v6809, %v6801
        %v7354 = vpack.c.b16 %v6810, %v6802
        %v7355 = vpack.c.b16 %v6811, %v6803
        %v7356 = vpack.c.b16 %v6820, %v6812
        %v7357 = vpack.c.b16 %v6821, %v6813
        %v7358 = vpack.c.b16 %v6822, %v6814
        %v7359 = vpack.c.b16 %v6823, %v6815
        %v7360 = vpack.c.b16 %v6824, %v6816
        %v7361 = vpack.c.b16 %v6825, %v6817
        %v7362 = vpack.c.b16 %v6826, %v6818
        %v7363 = vpack.c.b16 %v6827, %v6819
        %v7364 = vpack.c.b16 %v6836, %v6828
        %v7365 = vpack.c.b16 %v6837, %v6829
        %v7366 = vpack.c.b16 %v6838, %v6830
        %v7367 = vpack.c.b16 %v6839, %v6831
        %v7368 = vpack.c.b16 %v6840, %v6832
        %v7369 = vpack.c.b16 %v6841, %v6833
        %v7370 = vpack.c.b16 %v6842, %v6834
        %v7371 = vpack.c.b16 %v6843, %v6835
        %v7372 = vpack.c.b16 %v6852, %v6844
        %v7373 = vpack.c.b16 %v6853, %v6845
        %v7374 = vpack.c.b16 %v6854, %v6846
        %v7375 = vpack.c.b16 %v6855, %v6847
        %v7376 = vpack.c.b16 %v6856, %v6848
        %v7377 = vpack.c.b16 %v6857, %v6849
        %v7378 = vpack.c.b16 %v6858, %v6850
        %v7379 = vpack.c.b16 %v6859, %v6851
        %v7380 = vpack.c.b16 %v6868, %v6860
        %v7381 = vpack.c.b16 %v6869, %v6861
        %v7382 = vpack.c.b16 %v6870, %v6862
        %v7383 = vpack.c.b16 %v6871, %v6863
        %v7384 = vpack.c.b16 %v6872, %v6864
        %v7385 = vpack.c.b16 %v6873, %v6865
        %v7386 = vpack.c.b16 %v6874, %v6866
        %v7387 = vpack.c.b16 %v6875, %v6867
        %v7388 = vpack.c.b16 %v6884, %v6876
        %v7389 = vpack.c.b16 %v6885, %v6877
        %v7390 = vpack.c.b16 %v6886, %v6878
        %v7391 = vpack.c.b16 %v6887, %v6879
        %v7392 = vpack.c.b16 %v6888, %v6880
        %v7393 = vpack.c.b16 %v6889, %v6881
        %v7394 = vpack.c.b16 %v6890, %v6882
        %v7395 = vpack.c.b16 %v6891, %v6883
        %v7396 = vpack.c.b16 %v6900, %v6892
        %v7397 = vpack.c.b16 %v6901, %v6893
        %v7398 = vpack.c.b16 %v6902, %v6894
        %v7399 = vpack.c.b16 %v6903, %v6895
        %v7400 = vpack.c.b16 %v6904, %v6896
        %v7401 = vpack.c.b16 %v6905, %v6897
        %v7402 = vpack.c.b16 %v6906, %v6898
        %v7403 = vpack.c.b16 %v6907, %v6899
        %v7404 = vpack.c.b16 %v6916, %v6908
        %v7405 = vpack.c.b16 %v6917, %v6909
        %v7406 = vpack.c.b16 %v6918, %v6910
        %v7407 = vpack.c.b16 %v6919, %v6911
        %v7408 = vpack.c.b16 %v6920, %v6912
        %v7409 = vpack.c.b16 %v6921, %v6913
        %v7410 = vpack.c.b16 %v6922, %v6914
        %v7411 = vpack.c.b16 %v6923, %v6915
        %v7412 = vpack.c.b16 %v6932, %v6924
        %v7413 = vpack.c.b16 %v6933, %v6925
        %v7414 = vpack.c.b16 %v6934, %v6926
        %v7415 = vpack.c.b16 %v6935, %v6927
        %v7416 = vpack.c.b16 %v6936, %v6928
        %v7417 = vpack.c.b16 %v6937, %v6929
        %v7418 = vpack.c.b16 %v6938, %v6930
        %v7419 = vpack.c.b16 %v6939, %v6931
        %vm7900 = vcmask 523264
        %v7902 = vsel %vm7900, %v4977, 0
        %7904 = vmatprep.subr.bf16.mxu0 %v6941
        %7905 = vmatpush1.bf16.msra.mxu0 %v6940
        %7906 = vmatprep.subr.bf16.mxu0 %v6949
        %7907 = vmatpush1.bf16.msra.mxu0 %v6948
        %7908 = vmatprep.subr.bf16.mxu0 %v6957
        %7909 = vmatpush1.bf16.msra.mxu0 %v6956
        %7910 = vmatprep.subr.bf16.mxu0 %v6965
        %7911 = vmatpush1.bf16.msra.mxu0 %v6964
        %7912 = vmatprep.subr.bf16.mxu0 %v6973
        %7913 = vmatpush1.bf16.msra.mxu0 %v6972
        %7914 = vmatprep.subr.bf16.mxu0 %v6981
        %7915 = vmatpush1.bf16.msra.mxu0 %v6980
        %7916 = vmatprep.subr.bf16.mxu0 %v6989
        %7917 = vmatpush1.bf16.msra.mxu0 %v6988
        %7918 = vmatprep.subr.bf16.mxu0 %v6997
        %7919 = vmatpush1.bf16.msra.mxu0 %v6996
        %7920 = vmatprep.subr.bf16.mxu0 %v7005
        %7921 = vmatpush1.bf16.msra.mxu0 %v7004
        %7922 = vmatprep.subr.bf16.mxu0 %v7013
        %7923 = vmatpush1.bf16.msra.mxu0 %v7012
        %7924 = vmatprep.subr.bf16.mxu0 %v7021
        %7925 = vmatpush1.bf16.msra.mxu0 %v7020
        %7926 = vmatprep.subr.bf16.mxu0 %v7029
        %7927 = vmatpush1.bf16.msra.mxu0 %v7028
        %7928 = vmatprep.subr.bf16.mxu0 %v7037
        %7929 = vmatpush1.bf16.msra.mxu0 %v7036
        %7930 = vmatprep.subr.bf16.mxu0 %v7045
        %7931 = vmatpush1.bf16.msra.mxu0 %v7044
        %7932 = vmatprep.subr.bf16.mxu0 %v7053
        %7933 = vmatpush1.bf16.msra.mxu0 %v7052
        %7934 = vmatprep.subr.bf16.mxu0 %v7061
        %7935 = vmatpush1.bf16.msra.mxu0 %v7060
        %7936 = vmatprep.mubr.bf16.mxu0 %v4971
        %7937 = vmatmul.mubr.bf16.gmra.mrb[0].mxu0 %v4970
        %v7938 = vpop.f32.mrb[0].mxu0
        %v7939 = vadd.f32 %v5463, %v7938
        %v7940 = vpop.f32.mrb[0].mxu0
        %v7941 = vadd.f32 %v5467, %v7940
        %v7942 = vpop.f32.mrb[0].mxu0
        %v7943 = vpop.f32.mrb[0].mxu0
        %7944 = vdwg.mxu0
        %7945 = vmatprep.subr.bf16.mxu0 %v7069
        %7946 = vmatpush1.bf16.msra.mxu0 %v7068
        %7947 = vmatprep.subr.bf16.mxu0 %v7077
        %7948 = vmatpush1.bf16.msra.mxu0 %v7076
        %7949 = vmatprep.subr.bf16.mxu0 %v7085
        %7950 = vmatpush1.bf16.msra.mxu0 %v7084
        %7951 = vmatprep.subr.bf16.mxu0 %v7093
        %7952 = vmatpush1.bf16.msra.mxu0 %v7092
        %7953 = vmatprep.subr.bf16.mxu0 %v7101
        %7954 = vmatpush1.bf16.msra.mxu0 %v7100
        %7955 = vmatprep.subr.bf16.mxu0 %v7109
        %7956 = vmatpush1.bf16.msra.mxu0 %v7108
        %7957 = vmatprep.subr.bf16.mxu0 %v7117
        %7958 = vmatpush1.bf16.msra.mxu0 %v7116
        %7959 = vmatprep.subr.bf16.mxu0 %v7125
        %7960 = vmatpush1.bf16.msra.mxu0 %v7124
        %7961 = vmatprep.subr.bf16.mxu0 %v7133
        %7962 = vmatpush1.bf16.msra.mxu0 %v7132
        %7963 = vmatprep.subr.bf16.mxu0 %v7141
        %7964 = vmatpush1.bf16.msra.mxu0 %v7140
        %7965 = vmatprep.subr.bf16.mxu0 %v7149
        %7966 = vmatpush1.bf16.msra.mxu0 %v7148
        %7967 = vmatprep.subr.bf16.mxu0 %v7157
        %7968 = vmatpush1.bf16.msra.mxu0 %v7156
        %7969 = vmatprep.subr.bf16.mxu0 %v7165
        %7970 = vmatpush1.bf16.msra.mxu0 %v7164
        %7971 = vmatprep.subr.bf16.mxu0 %v7173
        %7972 = vmatpush1.bf16.msra.mxu0 %v7172
        %7973 = vmatprep.subr.bf16.mxu0 %v7181
        %7974 = vmatpush1.bf16.msra.mxu0 %v7180
        %7975 = vmatprep.subr.bf16.mxu0 %v7189
        %7976 = vmatpush1.bf16.msra.mxu0 %v7188
        %7977 = vmatprep.mubr.bf16.mxu0 %v4973
        %7978 = vmatmul.mubr.bf16.gmra.mrb[0].mxu0 %v4972
        %v7979 = vpop.f32.mrb[0].mxu0
        %v7980 = vadd.f32 %v7939, %v7979
        %v7981 = vpop.f32.mrb[0].mxu0
        %v7982 = vadd.f32 %v7941, %v7981
        %v7983 = vpop.f32.mrb[0].mxu0
        %v7984 = vpop.f32.mrb[0].mxu0
        %7985 = vdwg.mxu0
        %7986 = vmatprep.subr.bf16.mxu0 %v7197
        %7987 = vmatpush1.bf16.msra.mxu0 %v7196
        %7988 = vmatprep.subr.bf16.mxu0 %v7205
        %7989 = vmatpush1.bf16.msra.mxu0 %v7204
        %7990 = vmatprep.subr.bf16.mxu0 %v7213
        %7991 = vmatpush1.bf16.msra.mxu0 %v7212
        %7992 = vmatprep.subr.bf16.mxu0 %v7221
        %7993 = vmatpush1.bf16.msra.mxu0 %v7220
        %7994 = vmatprep.subr.bf16.mxu0 %v7229
        %7995 = vmatpush1.bf16.msra.mxu0 %v7228
        %7996 = vmatprep.subr.bf16.mxu0 %v7237
        %7997 = vmatpush1.bf16.msra.mxu0 %v7236
        %7998 = vmatprep.subr.bf16.mxu0 %v7245
        %7999 = vmatpush1.bf16.msra.mxu0 %v7244
        %8000 = vmatprep.subr.bf16.mxu0 %v7253
        %8001 = vmatpush1.bf16.msra.mxu0 %v7252
        %8002 = vmatprep.subr.bf16.mxu0 %v7261
        %8003 = vmatpush1.bf16.msra.mxu0 %v7260
        %8004 = vmatprep.subr.bf16.mxu0 %v7269
        %8005 = vmatpush1.bf16.msra.mxu0 %v7268
        %8006 = vmatprep.subr.bf16.mxu0 %v7277
        %8007 = vmatpush1.bf16.msra.mxu0 %v7276
        %8008 = vmatprep.subr.bf16.mxu0 %v7285
        %8009 = vmatpush1.bf16.msra.mxu0 %v7284
        %8010 = vmatprep.subr.bf16.mxu0 %v7293
        %8011 = vmatpush1.bf16.msra.mxu0 %v7292
        %8012 = vmatprep.subr.bf16.mxu0 %v7301
        %8013 = vmatpush1.bf16.msra.mxu0 %v7300
        %8014 = vmatprep.subr.bf16.mxu0 %v7309
        %8015 = vmatpush1.bf16.msra.mxu0 %v7308
        %8016 = vmatprep.subr.bf16.mxu0 %v7317
        %8017 = vmatpush1.bf16.msra.mxu0 %v7316
        %8018 = vmatprep.mubr.bf16.mxu0 %v4975
        %8019 = vmatmul.mubr.bf16.gmra.mrb[0].mxu0 %v4974
        %v8020 = vpop.f32.mrb[0].mxu0
        %v8021 = vadd.f32 %v7980, %v8020
        %v8022 = vpop.f32.mrb[0].mxu0
        %v8023 = vadd.f32 %v7982, %v8022
        %v8024 = vpop.f32.mrb[0].mxu0
        %v8025 = vpop.f32.mrb[0].mxu0
        %8026 = vdwg.mxu0
        %8027 = vmatprep.subr.bf16.mxu0 %v7325
        %8028 = vmatpush1.bf16.msra.mxu0 %v7324
        %8029 = vmatprep.subr.bf16.mxu0 %v7333
        %8030 = vmatpush1.bf16.msra.mxu0 %v7332
        %8031 = vmatprep.subr.bf16.mxu0 %v7341
        %8032 = vmatpush1.bf16.msra.mxu0 %v7340
        %8033 = vmatprep.subr.bf16.mxu0 %v7349
        %8034 = vmatpush1.bf16.msra.mxu0 %v7348
        %8035 = vmatprep.subr.bf16.mxu0 %v7357
        %8036 = vmatpush1.bf16.msra.mxu0 %v7356
        %8037 = vmatprep.subr.bf16.mxu0 %v7365
        %8038 = vmatpush1.bf16.msra.mxu0 %v7364
        %8039 = vmatprep.subr.bf16.mxu0 %v7373
        %8040 = vmatpush1.bf16.msra.mxu0 %v7372
        %8041 = vmatprep.subr.bf16.mxu0 %v7381
        %8042 = vmatpush1.bf16.msra.mxu0 %v7380
        %8043 = vmatprep.subr.bf16.mxu0 %v7389
        %8044 = vmatpush1.bf16.msra.mxu0 %v7388
        %8045 = vmatprep.subr.bf16.mxu0 %v7397
        %8046 = vmatpush1.bf16.msra.mxu0 %v7396
        %8047 = vmatprep.subr.bf16.mxu0 %v7405
        %8048 = vmatpush1.bf16.msra.mxu0 %v7404
        %8049 = vmatprep.subr.bf16.mxu0 %v7413
        %8050 = vmatpush1.bf16.msra.mxu0 %v7412
        %8051 = vmatprep.subr.bf16.mxu0 0
        %8052 = vmatpush1.bf16.msra.mxu0 0
        %8053 = vmatprep.subr.bf16.mxu0 0
        %8054 = vmatpush1.bf16.msra.mxu0 0
        %8055 = vmatprep.subr.bf16.mxu0 0
        %8056 = vmatpush1.bf16.msra.mxu0 0
        %8057 = vmatprep.subr.bf16.mxu0 0
        %8058 = vmatpush1.bf16.msra.mxu0 0
        %8059 = vmatprep.mubr.bf16.mxu0 %v7902
        %8060 = vmatmul.mubr.bf16.gmra.mrb[0].mxu0 %v4976
        %v8061 = vpop.f32.mrb[0].mxu0
        %v8062 = vadd.f32 %v8021, %v8061
        %v8063 = vpop.f32.mrb[0].mxu0
        %v8064 = vadd.f32 %v8023, %v8063
        %v8065 = vpop.f32.mrb[0].mxu0
        %v8066 = vpop.f32.mrb[0].mxu0
        %8067 = vdwg.mxu0
        %8068 = vmatprep.subr.bf16.mxu0 %v6943
        %8069 = vmatpush1.bf16.msra.mxu0 %v6942
        %8070 = vmatprep.subr.bf16.mxu0 %v6951
        %8071 = vmatpush1.bf16.msra.mxu0 %v6950
        %8072 = vmatprep.subr.bf16.mxu0 %v6959
        %8073 = vmatpush1.bf16.msra.mxu0 %v6958
        %8074 = vmatprep.subr.bf16.mxu0 %v6967
        %8075 = vmatpush1.bf16.msra.mxu0 %v6966
        %8076 = vmatprep.subr.bf16.mxu0 %v6975
        %8077 = vmatpush1.bf16.msra.mxu0 %v6974
        %8078 = vmatprep.subr.bf16.mxu0 %v6983
        %8079 = vmatpush1.bf16.msra.mxu0 %v6982
        %8080 = vmatprep.subr.bf16.mxu0 %v6991
        %8081 = vmatpush1.bf16.msra.mxu0 %v6990
        %8082 = vmatprep.subr.bf16.mxu0 %v6999
        %8083 = vmatpush1.bf16.msra.mxu0 %v6998
        %8084 = vmatprep.subr.bf16.mxu0 %v7007
        %8085 = vmatpush1.bf16.msra.mxu0 %v7006
        %8086 = vmatprep.subr.bf16.mxu0 %v7015
        %8087 = vmatpush1.bf16.msra.mxu0 %v7014
        %8088 = vmatprep.subr.bf16.mxu0 %v7023
        %8089 = vmatpush1.bf16.msra.mxu0 %v7022
        %8090 = vmatprep.subr.bf16.mxu0 %v7031
        %8091 = vmatpush1.bf16.msra.mxu0 %v7030
        %8092 = vmatprep.subr.bf16.mxu0 %v7039
        %8093 = vmatpush1.bf16.msra.mxu0 %v7038
        %8094 = vmatprep.subr.bf16.mxu0 %v7047
        %8095 = vmatpush1.bf16.msra.mxu0 %v7046
        %8096 = vmatprep.subr.bf16.mxu0 %v7055
        %8097 = vmatpush1.bf16.msra.mxu0 %v7054
        %8098 = vmatprep.subr.bf16.mxu0 %v7063
        %8099 = vmatpush1.bf16.msra.mxu0 %v7062
        %8100 = vmatprep.mubr.bf16.mxu0 %v4971
        %8101 = vmatmul.mubr.bf16.gmra.mrb[0].mxu0 %v4970
        %v8102 = vpop.f32.mrb[0].mxu0
        %v8103 = vadd.f32 %v5471, %v8102
        %v8104 = vpop.f32.mrb[0].mxu0
        %v8105 = vadd.f32 %v5475, %v8104
        %v8106 = vpop.f32.mrb[0].mxu0
        %v8107 = vpop.f32.mrb[0].mxu0
        %8108 = vdwg.mxu0
        %8109 = vmatprep.subr.bf16.mxu0 %v7071
        %8110 = vmatpush1.bf16.msra.mxu0 %v7070
        %8111 = vmatprep.subr.bf16.mxu0 %v7079
        %8112 = vmatpush1.bf16.msra.mxu0 %v7078
        %8113 = vmatprep.subr.bf16.mxu0 %v7087
        %8114 = vmatpush1.bf16.msra.mxu0 %v7086
        %8115 = vmatprep.subr.bf16.mxu0 %v7095
        %8116 = vmatpush1.bf16.msra.mxu0 %v7094
        %8117 = vmatprep.subr.bf16.mxu0 %v7103
        %8118 = vmatpush1.bf16.msra.mxu0 %v7102
        %8119 = vmatprep.subr.bf16.mxu0 %v7111
        %8120 = vmatpush1.bf16.msra.mxu0 %v7110
        %8121 = vmatprep.subr.bf16.mxu0 %v7119
        %8122 = vmatpush1.bf16.msra.mxu0 %v7118
        %8123 = vmatprep.subr.bf16.mxu0 %v7127
        %8124 = vmatpush1.bf16.msra.mxu0 %v7126
        %8125 = vmatprep.subr.bf16.mxu0 %v7135
        %8126 = vmatpush1.bf16.msra.mxu0 %v7134
        %8127 = vmatprep.subr.bf16.mxu0 %v7143
        %8128 = vmatpush1.bf16.msra.mxu0 %v7142
        %8129 = vmatprep.subr.bf16.mxu0 %v7151
        %8130 = vmatpush1.bf16.msra.mxu0 %v7150
        %8131 = vmatprep.subr.bf16.mxu0 %v7159
        %8132 = vmatpush1.bf16.msra.mxu0 %v7158
        %8133 = vmatprep.subr.bf16.mxu0 %v7167
        %8134 = vmatpush1.bf16.msra.mxu0 %v7166
        %8135 = vmatprep.subr.bf16.mxu0 %v7175
        %8136 = vmatpush1.bf16.msra.mxu0 %v7174
        %8137 = vmatprep.subr.bf16.mxu0 %v7183
        %8138 = vmatpush1.bf16.msra.mxu0 %v7182
        %8139 = vmatprep.subr.bf16.mxu0 %v7191
        %8140 = vmatpush1.bf16.msra.mxu0 %v7190
        %8141 = vmatprep.mubr.bf16.mxu0 %v4973
        %8142 = vmatmul.mubr.bf16.gmra.mrb[0].mxu0 %v4972
        %v8143 = vpop.f32.mrb[0].mxu0
        %v8144 = vadd.f32 %v8103, %v8143
        %v8145 = vpop.f32.mrb[0].mxu0
        %v8146 = vadd.f32 %v8105, %v8145
        %v8147 = vpop.f32.mrb[0].mxu0
        %v8148 = vpop.f32.mrb[0].mxu0
        %8149 = vdwg.mxu0
        %8150 = vmatprep.subr.bf16.mxu0 %v7199
        %8151 = vmatpush1.bf16.msra.mxu0 %v7198
        %8152 = vmatprep.subr.bf16.mxu0 %v7207
        %8153 = vmatpush1.bf16.msra.mxu0 %v7206
        %8154 = vmatprep.subr.bf16.mxu0 %v7215
        %8155 = vmatpush1.bf16.msra.mxu0 %v7214
        %8156 = vmatprep.subr.bf16.mxu0 %v7223
        %8157 = vmatpush1.bf16.msra.mxu0 %v7222
        %8158 = vmatprep.subr.bf16.mxu0 %v7231
        %8159 = vmatpush1.bf16.msra.mxu0 %v7230
        %8160 = vmatprep.subr.bf16.mxu0 %v7239
        %8161 = vmatpush1.bf16.msra.mxu0 %v7238
        %8162 = vmatprep.subr.bf16.mxu0 %v7247
        %8163 = vmatpush1.bf16.msra.mxu0 %v7246
        %8164 = vmatprep.subr.bf16.mxu0 %v7255
        %8165 = vmatpush1.bf16.msra.mxu0 %v7254
        %8166 = vmatprep.subr.bf16.mxu0 %v7263
        %8167 = vmatpush1.bf16.msra.mxu0 %v7262
        %8168 = vmatprep.subr.bf16.mxu0 %v7271
        %8169 = vmatpush1.bf16.msra.mxu0 %v7270
        %8170 = vmatprep.subr.bf16.mxu0 %v7279
        %8171 = vmatpush1.bf16.msra.mxu0 %v7278
        %8172 = vmatprep.subr.bf16.mxu0 %v7287
        %8173 = vmatpush1.bf16.msra.mxu0 %v7286
        %8174 = vmatprep.subr.bf16.mxu0 %v7295
        %8175 = vmatpush1.bf16.msra.mxu0 %v7294
        %8176 = vmatprep.subr.bf16.mxu0 %v7303
        %8177 = vmatpush1.bf16.msra.mxu0 %v7302
        %8178 = vmatprep.subr.bf16.mxu0 %v7311
        %8179 = vmatpush1.bf16.msra.mxu0 %v7310
        %8180 = vmatprep.subr.bf16.mxu0 %v7319
        %8181 = vmatpush1.bf16.msra.mxu0 %v7318
        %8182 = vmatprep.mubr.bf16.mxu0 %v4975
        %8183 = vmatmul.mubr.bf16.gmra.mrb[0].mxu0 %v4974
        %v8184 = vpop.f32.mrb[0].mxu0
        %v8185 = vadd.f32 %v8144, %v8184
        %v8186 = vpop.f32.mrb[0].mxu0
        %v8187 = vadd.f32 %v8146, %v8186
        %v8188 = vpop.f32.mrb[0].mxu0
        %v8189 = vpop.f32.mrb[0].mxu0
        %8190 = vdwg.mxu0
        %8191 = vmatprep.subr.bf16.mxu0 %v7327
        %8192 = vmatpush1.bf16.msra.mxu0 %v7326
        %8193 = vmatprep.subr.bf16.mxu0 %v7335
        %8194 = vmatpush1.bf16.msra.mxu0 %v7334
        %8195 = vmatprep.subr.bf16.mxu0 %v7343
        %8196 = vmatpush1.bf16.msra.mxu0 %v7342
        %8197 = vmatprep.subr.bf16.mxu0 %v7351
        %8198 = vmatpush1.bf16.msra.mxu0 %v7350
        %8199 = vmatprep.subr.bf16.mxu0 %v7359
        %8200 = vmatpush1.bf16.msra.mxu0 %v7358
        %8201 = vmatprep.subr.bf16.mxu0 %v7367
        %8202 = vmatpush1.bf16.msra.mxu0 %v7366
        %8203 = vmatprep.subr.bf16.mxu0 %v7375
        %8204 = vmatpush1.bf16.msra.mxu0 %v7374
        %8205 = vmatprep.subr.bf16.mxu0 %v7383
        %8206 = vmatpush1.bf16.msra.mxu0 %v7382
        %8207 = vmatprep.subr.bf16.mxu0 %v7391
        %8208 = vmatpush1.bf16.msra.mxu0 %v7390
        %8209 = vmatprep.subr.bf16.mxu0 %v7399
        %8210 = vmatpush1.bf16.msra.mxu0 %v7398
        %8211 = vmatprep.subr.bf16.mxu0 %v7407
        %8212 = vmatpush1.bf16.msra.mxu0 %v7406
        %8213 = vmatprep.subr.bf16.mxu0 %v7415
        %8214 = vmatpush1.bf16.msra.mxu0 %v7414
        %8215 = vmatprep.subr.bf16.mxu0 0
        %8216 = vmatpush1.bf16.msra.mxu0 0
        %8217 = vmatprep.subr.bf16.mxu0 0
        %8218 = vmatpush1.bf16.msra.mxu0 0
        %8219 = vmatprep.subr.bf16.mxu0 0
        %8220 = vmatpush1.bf16.msra.mxu0 0
        %8221 = vmatprep.subr.bf16.mxu0 0
        %8222 = vmatpush1.bf16.msra.mxu0 0
        %8223 = vmatprep.mubr.bf16.mxu0 %v7902
        %8224 = vmatmul.mubr.bf16.gmra.mrb[0].mxu0 %v4976
        %v8225 = vpop.f32.mrb[0].mxu0
        %v8226 = vadd.f32 %v8185, %v8225
        %v8227 = vpop.f32.mrb[0].mxu0
        %v8228 = vadd.f32 %v8187, %v8227
        %v8229 = vpop.f32.mrb[0].mxu0
        %v8230 = vpop.f32.mrb[0].mxu0
        %8231 = vdwg.mxu0
        %8232 = vmatprep.subr.bf16.mxu0 %v6945
        %8233 = vmatpush1.bf16.msra.mxu0 %v6944
        %8234 = vmatprep.subr.bf16.mxu0 %v6953
        %8235 = vmatpush1.bf16.msra.mxu0 %v6952
        %8236 = vmatprep.subr.bf16.mxu0 %v6961
        %8237 = vmatpush1.bf16.msra.mxu0 %v6960
        %8238 = vmatprep.subr.bf16.mxu0 %v6969
        %8239 = vmatpush1.bf16.msra.mxu0 %v6968
        %8240 = vmatprep.subr.bf16.mxu0 %v6977
        %8241 = vmatpush1.bf16.msra.mxu0 %v6976
        %8242 = vmatprep.subr.bf16.mxu0 %v6985
        %8243 = vmatpush1.bf16.msra.mxu0 %v6984
        %8244 = vmatprep.subr.bf16.mxu0 %v6993
        %8245 = vmatpush1.bf16.msra.mxu0 %v6992
        %8246 = vmatprep.subr.bf16.mxu0 %v7001
        %8247 = vmatpush1.bf16.msra.mxu0 %v7000
        %8248 = vmatprep.subr.bf16.mxu0 %v7009
        %8249 = vmatpush1.bf16.msra.mxu0 %v7008
        %8250 = vmatprep.subr.bf16.mxu0 %v7017
        %8251 = vmatpush1.bf16.msra.mxu0 %v7016
        %8252 = vmatprep.subr.bf16.mxu0 %v7025
        %8253 = vmatpush1.bf16.msra.mxu0 %v7024
        %8254 = vmatprep.subr.bf16.mxu0 %v7033
        %8255 = vmatpush1.bf16.msra.mxu0 %v7032
        %8256 = vmatprep.subr.bf16.mxu0 %v7041
        %8257 = vmatpush1.bf16.msra.mxu0 %v7040
        %8258 = vmatprep.subr.bf16.mxu0 %v7049
        %8259 = vmatpush1.bf16.msra.mxu0 %v7048
        %8260 = vmatprep.subr.bf16.mxu0 %v7057
        %8261 = vmatpush1.bf16.msra.mxu0 %v7056
        %8262 = vmatprep.subr.bf16.mxu0 %v7065
        %8263 = vmatpush1.bf16.msra.mxu0 %v7064
        %8264 = vmatprep.mubr.bf16.mxu0 %v4971
        %8265 = vmatmul.mubr.bf16.gmra.mrb[0].mxu0 %v4970
        %v8266 = vpop.f32.mrb[0].mxu0
        %v8267 = vadd.f32 %v5479, %v8266
        %v8268 = vpop.f32.mrb[0].mxu0
        %v8269 = vadd.f32 %v5483, %v8268
        %v8270 = vpop.f32.mrb[0].mxu0
        %v8271 = vpop.f32.mrb[0].mxu0
        %8272 = vdwg.mxu0
        %8273 = vmatprep.subr.bf16.mxu0 %v7073
        %8274 = vmatpush1.bf16.msra.mxu0 %v7072
        %8275 = vmatprep.subr.bf16.mxu0 %v7081
        %8276 = vmatpush1.bf16.msra.mxu0 %v7080
        %8277 = vmatprep.subr.bf16.mxu0 %v7089
        %8278 = vmatpush1.bf16.msra.mxu0 %v7088
        %8279 = vmatprep.subr.bf16.mxu0 %v7097
        %8280 = vmatpush1.bf16.msra.mxu0 %v7096
        %8281 = vmatprep.subr.bf16.mxu0 %v7105
        %8282 = vmatpush1.bf16.msra.mxu0 %v7104
        %8283 = vmatprep.subr.bf16.mxu0 %v7113
        %8284 = vmatpush1.bf16.msra.mxu0 %v7112
        %8285 = vmatprep.subr.bf16.mxu0 %v7121
        %8286 = vmatpush1.bf16.msra.mxu0 %v7120
        %8287 = vmatprep.subr.bf16.mxu0 %v7129
        %8288 = vmatpush1.bf16.msra.mxu0 %v7128
        %8289 = vmatprep.subr.bf16.mxu0 %v7137
        %8290 = vmatpush1.bf16.msra.mxu0 %v7136
        %8291 = vmatprep.subr.bf16.mxu0 %v7145
        %8292 = vmatpush1.bf16.msra.mxu0 %v7144
        %8293 = vmatprep.subr.bf16.mxu0 %v7153
        %8294 = vmatpush1.bf16.msra.mxu0 %v7152
        %8295 = vmatprep.subr.bf16.mxu0 %v7161
        %8296 = vmatpush1.bf16.msra.mxu0 %v7160
        %8297 = vmatprep.subr.bf16.mxu0 %v7169
        %8298 = vmatpush1.bf16.msra.mxu0 %v7168
        %8299 = vmatprep.subr.bf16.mxu0 %v7177
        %8300 = vmatpush1.bf16.msra.mxu0 %v7176
        %8301 = vmatprep.subr.bf16.mxu0 %v7185
        %8302 = vmatpush1.bf16.msra.mxu0 %v7184
        %8303 = vmatprep.subr.bf16.mxu0 %v7193
        %8304 = vmatpush1.bf16.msra.mxu0 %v7192
        %8305 = vmatprep.mubr.bf16.mxu0 %v4973
        %8306 = vmatmul.mubr.bf16.gmra.mrb[0].mxu0 %v4972
        %v8307 = vpop.f32.mrb[0].mxu0
        %v8308 = vadd.f32 %v8267, %v8307
        %v8309 = vpop.f32.mrb[0].mxu0
        %v8310 = vadd.f32 %v8269, %v8309
        %v8311 = vpop.f32.mrb[0].mxu0
        %v8312 = vpop.f32.mrb[0].mxu0
        %8313 = vdwg.mxu0
        %8314 = vmatprep.subr.bf16.mxu0 %v7201
        %8315 = vmatpush1.bf16.msra.mxu0 %v7200
        %8316 = vmatprep.subr.bf16.mxu0 %v7209
        %8317 = vmatpush1.bf16.msra.mxu0 %v7208
        %8318 = vmatprep.subr.bf16.mxu0 %v7217
        %8319 = vmatpush1.bf16.msra.mxu0 %v7216
        %8320 = vmatprep.subr.bf16.mxu0 %v7225
        %8321 = vmatpush1.bf16.msra.mxu0 %v7224
        %8322 = vmatprep.subr.bf16.mxu0 %v7233
        %8323 = vmatpush1.bf16.msra.mxu0 %v7232
        %8324 = vmatprep.subr.bf16.mxu0 %v7241
        %8325 = vmatpush1.bf16.msra.mxu0 %v7240
        %8326 = vmatprep.subr.bf16.mxu0 %v7249
        %8327 = vmatpush1.bf16.msra.mxu0 %v7248
        %8328 = vmatprep.subr.bf16.mxu0 %v7257
        %8329 = vmatpush1.bf16.msra.mxu0 %v7256
        %8330 = vmatprep.subr.bf16.mxu0 %v7265
        %8331 = vmatpush1.bf16.msra.mxu0 %v7264
        %8332 = vmatprep.subr.bf16.mxu0 %v7273
        %8333 = vmatpush1.bf16.msra.mxu0 %v7272
        %8334 = vmatprep.subr.bf16.mxu0 %v7281
        %8335 = vmatpush1.bf16.msra.mxu0 %v7280
        %8336 = vmatprep.subr.bf16.mxu0 %v7289
        %8337 = vmatpush1.bf16.msra.mxu0 %v7288
        %8338 = vmatprep.subr.bf16.mxu0 %v7297
        %8339 = vmatpush1.bf16.msra.mxu0 %v7296
        %8340 = vmatprep.subr.bf16.mxu0 %v7305
        %8341 = vmatpush1.bf16.msra.mxu0 %v7304
        %8342 = vmatprep.subr.bf16.mxu0 %v7313
        %8343 = vmatpush1.bf16.msra.mxu0 %v7312
        %8344 = vmatprep.subr.bf16.mxu0 %v7321
        %8345 = vmatpush1.bf16.msra.mxu0 %v7320
        %8346 = vmatprep.mubr.bf16.mxu0 %v4975
        %8347 = vmatmul.mubr.bf16.gmra.mrb[0].mxu0 %v4974
        %v8348 = vpop.f32.mrb[0].mxu0
        %v8349 = vadd.f32 %v8308, %v8348
        %v8350 = vpop.f32.mrb[0].mxu0
        %v8351 = vadd.f32 %v8310, %v8350
        %v8352 = vpop.f32.mrb[0].mxu0
        %v8353 = vpop.f32.mrb[0].mxu0
        %8354 = vdwg.mxu0
        %8355 = vmatprep.subr.bf16.mxu0 %v7329
        %8356 = vmatpush1.bf16.msra.mxu0 %v7328
        %8357 = vmatprep.subr.bf16.mxu0 %v7337
        %8358 = vmatpush1.bf16.msra.mxu0 %v7336
        %8359 = vmatprep.subr.bf16.mxu0 %v7345
        %8360 = vmatpush1.bf16.msra.mxu0 %v7344
        %8361 = vmatprep.subr.bf16.mxu0 %v7353
        %8362 = vmatpush1.bf16.msra.mxu0 %v7352
        %8363 = vmatprep.subr.bf16.mxu0 %v7361
        %8364 = vmatpush1.bf16.msra.mxu0 %v7360
        %8365 = vmatprep.subr.bf16.mxu0 %v7369
        %8366 = vmatpush1.bf16.msra.mxu0 %v7368
        %8367 = vmatprep.subr.bf16.mxu0 %v7377
        %8368 = vmatpush1.bf16.msra.mxu0 %v7376
        %8369 = vmatprep.subr.bf16.mxu0 %v7385
        %8370 = vmatpush1.bf16.msra.mxu0 %v7384
        %8371 = vmatprep.subr.bf16.mxu0 %v7393
        %8372 = vmatpush1.bf16.msra.mxu0 %v7392
        %8373 = vmatprep.subr.bf16.mxu0 %v7401
        %8374 = vmatpush1.bf16.msra.mxu0 %v7400
        %8375 = vmatprep.subr.bf16.mxu0 %v7409
        %8376 = vmatpush1.bf16.msra.mxu0 %v7408
        %8377 = vmatprep.subr.bf16.mxu0 %v7417
        %8378 = vmatpush1.bf16.msra.mxu0 %v7416
        %8379 = vmatprep.subr.bf16.mxu0 0
        %8380 = vmatpush1.bf16.msra.mxu0 0
        %8381 = vmatprep.subr.bf16.mxu0 0
        %8382 = vmatpush1.bf16.msra.mxu0 0
        %8383 = vmatprep.subr.bf16.mxu0 0
        %8384 = vmatpush1.bf16.msra.mxu0 0
        %8385 = vmatprep.subr.bf16.mxu0 0
        %8386 = vmatpush1.bf16.msra.mxu0 0
        %8387 = vmatprep.mubr.bf16.mxu0 %v7902
        %8388 = vmatmul.mubr.bf16.gmra.mrb[0].mxu0 %v4976
        %v8389 = vpop.f32.mrb[0].mxu0
        %v8390 = vadd.f32 %v8349, %v8389
        %v8391 = vpop.f32.mrb[0].mxu0
        %v8392 = vadd.f32 %v8351, %v8391
        %v8393 = vpop.f32.mrb[0].mxu0
        %v8394 = vpop.f32.mrb[0].mxu0
        %8395 = vdwg.mxu0
        %8396 = vmatprep.subr.bf16.mxu0 %v6947
        %8397 = vmatpush1.bf16.msra.mxu0 %v6946
        %8398 = vmatprep.subr.bf16.mxu0 %v6955
        %8399 = vmatpush1.bf16.msra.mxu0 %v6954
        %8400 = vmatprep.subr.bf16.mxu0 %v6963
        %8401 = vmatpush1.bf16.msra.mxu0 %v6962
        %8402 = vmatprep.subr.bf16.mxu0 %v6971
        %8403 = vmatpush1.bf16.msra.mxu0 %v6970
        %8404 = vmatprep.subr.bf16.mxu0 %v6979
        %8405 = vmatpush1.bf16.msra.mxu0 %v6978
        %8406 = vmatprep.subr.bf16.mxu0 %v6987
        %8407 = vmatpush1.bf16.msra.mxu0 %v6986
        %8408 = vmatprep.subr.bf16.mxu0 %v6995
        %8409 = vmatpush1.bf16.msra.mxu0 %v6994
        %8410 = vmatprep.subr.bf16.mxu0 %v7003
        %8411 = vmatpush1.bf16.msra.mxu0 %v7002
        %8412 = vmatprep.subr.bf16.mxu0 %v7011
        %8413 = vmatpush1.bf16.msra.mxu0 %v7010
        %8414 = vmatprep.subr.bf16.mxu0 %v7019
        %8415 = vmatpush1.bf16.msra.mxu0 %v7018
        %8416 = vmatprep.subr.bf16.mxu0 %v7027
        %8417 = vmatpush1.bf16.msra.mxu0 %v7026
        %8418 = vmatprep.subr.bf16.mxu0 %v7035
        %8419 = vmatpush1.bf16.msra.mxu0 %v7034
        %8420 = vmatprep.subr.bf16.mxu0 %v7043
        %8421 = vmatpush1.bf16.msra.mxu0 %v7042
        %8422 = vmatprep.subr.bf16.mxu0 %v7051
        %8423 = vmatpush1.bf16.msra.mxu0 %v7050
        %8424 = vmatprep.subr.bf16.mxu0 %v7059
        %8425 = vmatpush1.bf16.msra.mxu0 %v7058
        %8426 = vmatprep.subr.bf16.mxu0 %v7067
        %8427 = vmatpush1.bf16.msra.mxu0 %v7066
        %8428 = vmatprep.mubr.bf16.mxu0 %v4971
        %8429 = vmatmul.mubr.bf16.gmra.mrb[0].mxu0 %v4970
        %v8430 = vpop.f32.mrb[0].mxu0
        %v8431 = vadd.f32 %v5487, %v8430
        %v8432 = vpop.f32.mrb[0].mxu0
        %v8433 = vadd.f32 %v5491, %v8432
        %v8434 = vpop.f32.mrb[0].mxu0
        %v8435 = vpop.f32.mrb[0].mxu0
        %8436 = vdwg.mxu0
        %8437 = vmatprep.subr.bf16.mxu0 %v7075
        %8438 = vmatpush1.bf16.msra.mxu0 %v7074
        %8439 = vmatprep.subr.bf16.mxu0 %v7083
        %8440 = vmatpush1.bf16.msra.mxu0 %v7082
        %8441 = vmatprep.subr.bf16.mxu0 %v7091
        %8442 = vmatpush1.bf16.msra.mxu0 %v7090
        %8443 = vmatprep.subr.bf16.mxu0 %v7099
        %8444 = vmatpush1.bf16.msra.mxu0 %v7098
        %8445 = vmatprep.subr.bf16.mxu0 %v7107
        %8446 = vmatpush1.bf16.msra.mxu0 %v7106
        %8447 = vmatprep.subr.bf16.mxu0 %v7115
        %8448 = vmatpush1.bf16.msra.mxu0 %v7114
        %8449 = vmatprep.subr.bf16.mxu0 %v7123
        %8450 = vmatpush1.bf16.msra.mxu0 %v7122
        %8451 = vmatprep.subr.bf16.mxu0 %v7131
        %8452 = vmatpush1.bf16.msra.mxu0 %v7130
        %8453 = vmatprep.subr.bf16.mxu0 %v7139
        %8454 = vmatpush1.bf16.msra.mxu0 %v7138
        %8455 = vmatprep.subr.bf16.mxu0 %v7147
        %8456 = vmatpush1.bf16.msra.mxu0 %v7146
        %8457 = vmatprep.subr.bf16.mxu0 %v7155
        %8458 = vmatpush1.bf16.msra.mxu0 %v7154
        %8459 = vmatprep.subr.bf16.mxu0 %v7163
        %8460 = vmatpush1.bf16.msra.mxu0 %v7162
        %8461 = vmatprep.subr.bf16.mxu0 %v7171
        %8462 = vmatpush1.bf16.msra.mxu0 %v7170
        %8463 = vmatprep.subr.bf16.mxu0 %v7179
        %8464 = vmatpush1.bf16.msra.mxu0 %v7178
        %8465 = vmatprep.subr.bf16.mxu0 %v7187
        %8466 = vmatpush1.bf16.msra.mxu0 %v7186
        %8467 = vmatprep.subr.bf16.mxu0 %v7195
        %8468 = vmatpush1.bf16.msra.mxu0 %v7194
        %8469 = vmatprep.mubr.bf16.mxu0 %v4973
        %8470 = vmatmul.mubr.bf16.gmra.mrb[0].mxu0 %v4972
        %v8471 = vpop.f32.mrb[0].mxu0
        %v8472 = vadd.f32 %v8431, %v8471
        %v8473 = vpop.f32.mrb[0].mxu0
        %v8474 = vadd.f32 %v8433, %v8473
        %v8475 = vpop.f32.mrb[0].mxu0
        %v8476 = vpop.f32.mrb[0].mxu0
        %8477 = vdwg.mxu0
        %8478 = vmatprep.subr.bf16.mxu0 %v7203
        %8479 = vmatpush1.bf16.msra.mxu0 %v7202
        %8480 = vmatprep.subr.bf16.mxu0 %v7211
        %8481 = vmatpush1.bf16.msra.mxu0 %v7210
        %8482 = vmatprep.subr.bf16.mxu0 %v7219
        %8483 = vmatpush1.bf16.msra.mxu0 %v7218
        %8484 = vmatprep.subr.bf16.mxu0 %v7227
        %8485 = vmatpush1.bf16.msra.mxu0 %v7226
        %8486 = vmatprep.subr.bf16.mxu0 %v7235
        %8487 = vmatpush1.bf16.msra.mxu0 %v7234
        %8488 = vmatprep.subr.bf16.mxu0 %v7243
        %8489 = vmatpush1.bf16.msra.mxu0 %v7242
        %8490 = vmatprep.subr.bf16.mxu0 %v7251
        %8491 = vmatpush1.bf16.msra.mxu0 %v7250
        %8492 = vmatprep.subr.bf16.mxu0 %v7259
        %8493 = vmatpush1.bf16.msra.mxu0 %v7258
        %8494 = vmatprep.subr.bf16.mxu0 %v7267
        %8495 = vmatpush1.bf16.msra.mxu0 %v7266
        %8496 = vmatprep.subr.bf16.mxu0 %v7275
        %8497 = vmatpush1.bf16.msra.mxu0 %v7274
        %8498 = vmatprep.subr.bf16.mxu0 %v7283
        %8499 = vmatpush1.bf16.msra.mxu0 %v7282
        %8500 = vmatprep.subr.bf16.mxu0 %v7291
        %8501 = vmatpush1.bf16.msra.mxu0 %v7290
        %8502 = vmatprep.subr.bf16.mxu0 %v7299
        %8503 = vmatpush1.bf16.msra.mxu0 %v7298
        %8504 = vmatprep.subr.bf16.mxu0 %v7307
        %8505 = vmatpush1.bf16.msra.mxu0 %v7306
        %8506 = vmatprep.subr.bf16.mxu0 %v7315
        %8507 = vmatpush1.bf16.msra.mxu0 %v7314
        %8508 = vmatprep.subr.bf16.mxu0 %v7323
        %8509 = vmatpush1.bf16.msra.mxu0 %v7322
        %8510 = vmatprep.mubr.bf16.mxu0 %v4975
        %8511 = vmatmul.mubr.bf16.gmra.mrb[0].mxu0 %v4974
        %v8512 = vpop.f32.mrb[0].mxu0
        %v8513 = vadd.f32 %v8472, %v8512
        %v8514 = vpop.f32.mrb[0].mxu0
        %v8515 = vadd.f32 %v8474, %v8514
        %v8516 = vpop.f32.mrb[0].mxu0
        %v8517 = vpop.f32.mrb[0].mxu0
        %8518 = vdwg.mxu0
        %8519 = vmatprep.subr.bf16.mxu0 %v7331
        %8520 = vmatpush1.bf16.msra.mxu0 %v7330
        %8521 = vmatprep.subr.bf16.mxu0 %v7339
        %8522 = vmatpush1.bf16.msra.mxu0 %v7338
        %8523 = vmatprep.subr.bf16.mxu0 %v7347
        %8524 = vmatpush1.bf16.msra.mxu0 %v7346
        %8525 = vmatprep.subr.bf16.mxu0 %v7355
        %8526 = vmatpush1.bf16.msra.mxu0 %v7354
        %8527 = vmatprep.subr.bf16.mxu0 %v7363
        %8528 = vmatpush1.bf16.msra.mxu0 %v7362
        %8529 = vmatprep.subr.bf16.mxu0 %v7371
        %8530 = vmatpush1.bf16.msra.mxu0 %v7370
        %8531 = vmatprep.subr.bf16.mxu0 %v7379
        %8532 = vmatpush1.bf16.msra.mxu0 %v7378
        %8533 = vmatprep.subr.bf16.mxu0 %v7387
        %8534 = vmatpush1.bf16.msra.mxu0 %v7386
        %8535 = vmatprep.subr.bf16.mxu0 %v7395
        %8536 = vmatpush1.bf16.msra.mxu0 %v7394
        %8537 = vmatprep.subr.bf16.mxu0 %v7403
        %8538 = vmatpush1.bf16.msra.mxu0 %v7402
        %8539 = vmatprep.subr.bf16.mxu0 %v7411
        %8540 = vmatpush1.bf16.msra.mxu0 %v7410
        %8541 = vmatprep.subr.bf16.mxu0 %v7419
        %8542 = vmatpush1.bf16.msra.mxu0 %v7418
        %8543 = vmatprep.subr.bf16.mxu0 0
        %8544 = vmatpush1.bf16.msra.mxu0 0
        %8545 = vmatprep.subr.bf16.mxu0 0
        %8546 = vmatpush1.bf16.msra.mxu0 0
        %8547 = vmatprep.subr.bf16.mxu0 0
        %8548 = vmatpush1.bf16.msra.mxu0 0
        %8549 = vmatprep.subr.bf16.mxu0 0
        %8550 = vmatpush1.bf16.msra.mxu0 0
        %8551 = vmatprep.mubr.bf16.mxu0 %v7902
        %8552 = vmatmul.mubr.bf16.gmra.mrb[0].mxu0 %v4976
        %v8553 = vpop.f32.mrb[0].mxu0
        %v8554 = vadd.f32 %v8513, %v8553
        %v8555 = vpop.f32.mrb[0].mxu0
        %v8556 = vadd.f32 %v8515, %v8555
        %v8557 = vpop.f32.mrb[0].mxu0
        %v8558 = vpop.f32.mrb[0].mxu0
        %8559 = vdwg.mxu0
        %v8560 = vmax.f32 %v8062, 0.0
        %v8561 = vmax.f32 %v8064, 0.0
        %v8562 = vmax.f32 %v8226, 0.0
        %v8563 = vmax.f32 %v8228, 0.0
        %v8564 = vmax.f32 %v8390, 0.0
        %v8565 = vmax.f32 %v8392, 0.0
        %v8566 = vmax.f32 %v8554, 0.0
        %v8567 = vmax.f32 %v8556, 0.0
        %v8568 = vld [vmem:[%s904] sm:$0xff]
        %v8569 = vld [vmem:[%s904 + $0x8] sm:$0xff]
        %v8570 = vld [vmem:[%s904 + $0x10] sm:$0xff]
        %v8571 = vld [vmem:[%s904 + $0x18] sm:$0xff]
        %v8572 = vld [vmem:[%s904 + $0x20] sm:$0xff]
        %v8573 = vld [vmem:[%s904 + $0x28] sm:$0xff]
        %v8574 = vld [vmem:[%s904 + $0x30] sm:$0xff]
        %v8575 = vld [vmem:[%s904 + $0x38] sm:$0xff]
        %v8576 = vld [vmem:[%s904 + $0x40] sm:$0xff]
        %v8577 = vld [vmem:[%s904 + $0x48] sm:$0xff]
        %v8578 = vld [vmem:[%s904 + $0x50] sm:$0xff]
        %v8579 = vld [vmem:[%s904 + $0x58] sm:$0xff]
        %v8580 = vld [vmem:[%s904 + $0x60] sm:$0xff]
        %v8581 = vld [vmem:[%s904 + $0x68] sm:$0xff]
        %v8582 = vld [vmem:[%s904 + $0x70] sm:$0xff]
        %v8583 = vld [vmem:[%s904 + $0x78] sm:$0xff]
        %v8584 = vld [vmem:[%s904 + $0x80] sm:$0xff]
        %v8585 = vld [vmem:[%s904 + $0x88] sm:$0xff]
        %v8586 = vld [vmem:[%s904 + $0x90] sm:$0xff]
        %v8587 = vld [vmem:[%s904 + $0x98] sm:$0xff]
        %v8588 = vld [vmem:[%s904 + $0xa0] sm:$0xff]
        %v8589 = vld [vmem:[%s904 + $0xa8] sm:$0xff]
        %v8590 = vld [vmem:[%s904 + $0xb0] sm:$0xff]
        %v8591 = vld [vmem:[%s904 + $0xb8] sm:$0xff]
        %v8592 = vld [vmem:[%s904 + $0xc0] sm:$0xff]
        %v8593 = vld [vmem:[%s904 + $0xc8] sm:$0xff]
        %v8594 = vld [vmem:[%s904 + $0xd0] sm:$0xff]
        %v8595 = vld [vmem:[%s904 + $0xd8] sm:$0xff]
        %v8596 = vld [vmem:[%s904 + $0xe0] sm:$0xff]
        %v8597 = vld [vmem:[%s904 + $0xe8] sm:$0xff]
        %v8598 = vld [vmem:[%s904 + $0xf0] sm:$0xff]
        %v8599 = vld [vmem:[%s904 + $0xf8] sm:$0xff]
        %v8600 = vld [vmem:[%s904 + $0x100] sm:$0xff]
        %v8601 = vld [vmem:[%s904 + $0x108] sm:$0xff]
        %v8602 = vld [vmem:[%s904 + $0x110] sm:$0xff]
        %v8603 = vld [vmem:[%s904 + $0x118] sm:$0xff]
        %v8604 = vld [vmem:[%s904 + $0x120] sm:$0xff]
        %v8605 = vld [vmem:[%s904 + $0x128] sm:$0xff]
        %v8606 = vld [vmem:[%s904 + $0x130] sm:$0xff]
        %v8607 = vld [vmem:[%s904 + $0x138] sm:$0xff]
        %v8608 = vld [vmem:[%s904 + $0x140] sm:$0xff]
        %v8609 = vld [vmem:[%s904 + $0x148] sm:$0xff]
        %v8610 = vld [vmem:[%s904 + $0x150] sm:$0xff]
        %v8611 = vld [vmem:[%s904 + $0x158] sm:$0xff]
        %v8612 = vld [vmem:[%s904 + $0x160] sm:$0xff]
        %v8613 = vld [vmem:[%s904 + $0x168] sm:$0xff]
        %v8614 = vld [vmem:[%s904 + $0x170] sm:$0xff]
        %v8615 = vld [vmem:[%s904 + $0x178] sm:$0xff]
        %v8616 = vld [vmem:[%s904 + $0x180] sm:$0xff]
        %v8617 = vld [vmem:[%s904 + $0x188] sm:$0xff]
        %v8618 = vld [vmem:[%s904 + $0x190] sm:$0xff]
        %v8619 = vld [vmem:[%s904 + $0x198] sm:$0xff]
        %v8620 = vld [vmem:[%s904 + $0x1a0] sm:$0xff]
        %v8621 = vld [vmem:[%s904 + $0x1a8] sm:$0xff]
        %v8622 = vld [vmem:[%s904 + $0x1b0] sm:$0xff]
        %v8623 = vld [vmem:[%s904 + $0x1b8] sm:$0xff]
        %v8624 = vld [vmem:[%s904 + $0x1c0] sm:$0xff]
        %v8625 = vld [vmem:[%s904 + $0x1c8] sm:$0xff]
        %v8626 = vld [vmem:[%s904 + $0x1d0] sm:$0xff]
        %v8627 = vld [vmem:[%s904 + $0x1d8] sm:$0xff]
        %v8628 = vld [vmem:[%s904 + $0x1e0] sm:$0xff]
        %v8629 = vld [vmem:[%s904 + $0x1e8] sm:$0xff]
        %v8630 = vld [vmem:[%s904 + $0x1f0] sm:$0xff]
        %v8631 = vld [vmem:[%s904 + $0x1f8] sm:$0xff]
        %v8632 = vld [vmem:[%s904 + $0x200] sm:$0xff]
        %v8633 = vld [vmem:[%s904 + $0x208] sm:$0xff]
        %v8634 = vld [vmem:[%s904 + $0x210] sm:$0xff]
        %v8635 = vld [vmem:[%s904 + $0x218] sm:$0xff]
        %v8636 = vld [vmem:[%s904 + $0x220] sm:$0xff]
        %v8637 = vld [vmem:[%s904 + $0x228] sm:$0xff]
        %v8638 = vld [vmem:[%s904 + $0x230] sm:$0xff]
        %v8639 = vld [vmem:[%s904 + $0x238] sm:$0xff]
        %v8640 = vld [vmem:[%s904 + $0x240] sm:$0xff]
        %v8641 = vld [vmem:[%s904 + $0x248] sm:$0xff]
        %v8642 = vld [vmem:[%s904 + $0x250] sm:$0xff]
        %v8643 = vld [vmem:[%s904 + $0x258] sm:$0xff]
        %v8644 = vld [vmem:[%s904 + $0x260] sm:$0xff]
        %v8645 = vld [vmem:[%s904 + $0x268] sm:$0xff]
        %v8646 = vld [vmem:[%s904 + $0x270] sm:$0xff]
        %v8647 = vld [vmem:[%s904 + $0x278] sm:$0xff]
        %v8648 = vld [vmem:[%s904 + $0x280] sm:$0xff]
        %v8649 = vld [vmem:[%s904 + $0x288] sm:$0xff]
        %v8650 = vld [vmem:[%s904 + $0x290] sm:$0xff]
        %v8651 = vld [vmem:[%s904 + $0x298] sm:$0xff]
        %v8652 = vld [vmem:[%s904 + $0x2a0] sm:$0xff]
        %v8653 = vld [vmem:[%s904 + $0x2a8] sm:$0xff]
        %v8654 = vld [vmem:[%s904 + $0x2b0] sm:$0xff]
        %v8655 = vld [vmem:[%s904 + $0x2b8] sm:$0xff]
        %v8656 = vld [vmem:[%s904 + $0x2c0] sm:$0xff]
        %v8657 = vld [vmem:[%s904 + $0x2c8] sm:$0xff]
        %v8658 = vld [vmem:[%s904 + $0x2d0] sm:$0xff]
        %v8659 = vld [vmem:[%s904 + $0x2d8] sm:$0xff]
        %v8660 = vld [vmem:[%s904 + $0x2e0] sm:$0xff]
        %v8661 = vld [vmem:[%s904 + $0x2e8] sm:$0xff]
        %v8662 = vld [vmem:[%s904 + $0x2f0] sm:$0xff]
        %v8663 = vld [vmem:[%s904 + $0x2f8] sm:$0xff]
        %v8664 = vld [vmem:[%s904 + $0x300] sm:$0xff]
        %v8665 = vld [vmem:[%s904 + $0x308] sm:$0xff]
        %v8666 = vld [vmem:[%s904 + $0x310] sm:$0xff]
        %v8667 = vld [vmem:[%s904 + $0x318] sm:$0xff]
        %v8668 = vld [vmem:[%s904 + $0x320] sm:$0xff]
        %v8669 = vld [vmem:[%s904 + $0x328] sm:$0xff]
        %v8670 = vld [vmem:[%s904 + $0x330] sm:$0xff]
        %v8671 = vld [vmem:[%s904 + $0x338] sm:$0xff]
        %v8672 = vld [vmem:[%s904 + $0x340] sm:$0xff]
        %v8673 = vld [vmem:[%s904 + $0x348] sm:$0xff]
        %v8674 = vld [vmem:[%s904 + $0x350] sm:$0xff]
        %v8675 = vld [vmem:[%s904 + $0x358] sm:$0xff]
        %v8676 = vld [vmem:[%s904 + $0x360] sm:$0xff]
        %v8677 = vld [vmem:[%s904 + $0x368] sm:$0xff]
        %v8678 = vld [vmem:[%s904 + $0x370] sm:$0xff]
        %v8679 = vld [vmem:[%s904 + $0x378] sm:$0xff]
        %v8680 = vld [vmem:[%s904 + $0x380] sm:$0xff]
        %v8681 = vld [vmem:[%s904 + $0x388] sm:$0xff]
        %v8682 = vld [vmem:[%s904 + $0x390] sm:$0xff]
        %v8683 = vld [vmem:[%s904 + $0x398] sm:$0xff]
        %v8684 = vld [vmem:[%s904 + $0x3a0] sm:$0xff]
        %v8685 = vld [vmem:[%s904 + $0x3a8] sm:$0xff]
        %v8686 = vld [vmem:[%s904 + $0x3b0] sm:$0xff]
        %v8687 = vld [vmem:[%s904 + $0x3b8] sm:$0xff]
        %v8688 = vld [vmem:[%s904 + $0x3c0] sm:$0xff]
        %v8689 = vld [vmem:[%s904 + $0x3c8] sm:$0xff]
        %v8690 = vld [vmem:[%s904 + $0x3d0] sm:$0xff]
        %v8691 = vld [vmem:[%s904 + $0x3d8] sm:$0xff]
        %v8692 = vld [vmem:[%s904 + $0x3e0] sm:$0xff]
        %v8693 = vld [vmem:[%s904 + $0x3e8] sm:$0xff]
        %v8694 = vld [vmem:[%s904 + $0x3f0] sm:$0xff]
        %v8695 = vld [vmem:[%s904 + $0x3f8] sm:$0xff]
        %v8696 = vld [vmem:[%s912] sm:$0x1]
        %v8698 = vlaneseq
        %v8699 = vshrl.u32 %v8698, 7
        %v8700 = vsub.s32 0, %v8699
        %v8701 = vrot.slane %v8696, %v8700
        %8703 = vmatprep.subr.mxu0 0.0
        %8704 = vmatpush1.msra.mxu0 %v8568
        %8705 = vmatprep.subr.mxu0 0.0
        %8706 = vmatpush1.msra.mxu0 %v8569
        %8707 = vmatprep.subr.mxu0 0.0
        %8708 = vmatpush1.msra.mxu0 %v8570
        %8709 = vmatprep.subr.mxu0 0.0
        %8710 = vmatpush1.msra.mxu0 %v8571
        %8711 = vmatprep.subr.mxu0 0.0
        %8712 = vmatpush1.msra.mxu0 %v8572
        %8713 = vmatprep.subr.mxu0 0.0
        %8714 = vmatpush1.msra.mxu0 %v8573
        %8715 = vmatprep.subr.mxu0 0.0
        %8716 = vmatpush1.msra.mxu0 %v8574
        %8717 = vmatprep.subr.mxu0 0.0
        %8718 = vmatpush1.msra.mxu0 %v8575
        %8719 = vmatprep.subr.mxu0 0.0
        %8720 = vmatpush1.msra.mxu0 %v8576
        %8721 = vmatprep.subr.mxu0 0.0
        %8722 = vmatpush1.msra.mxu0 %v8577
        %8723 = vmatprep.subr.mxu0 0.0
        %8724 = vmatpush1.msra.mxu0 %v8578
        %8725 = vmatprep.subr.mxu0 0.0
        %8726 = vmatpush1.msra.mxu0 %v8579
        %8727 = vmatprep.subr.mxu0 0.0
        %8728 = vmatpush1.msra.mxu0 %v8580
        %8729 = vmatprep.subr.mxu0 0.0
        %8730 = vmatpush1.msra.mxu0 %v8581
        %8731 = vmatprep.subr.mxu0 0.0
        %8732 = vmatpush1.msra.mxu0 %v8582
        %8733 = vmatprep.subr.mxu0 0.0
        %8734 = vmatpush1.msra.mxu0 %v8583
        %8735 = vmatprep.subr.mxu0 0.0
        %8736 = vmatpush1.msra.mxu0 %v8584
        %8737 = vmatprep.subr.mxu0 0.0
        %8738 = vmatpush1.msra.mxu0 %v8585
        %8739 = vmatprep.subr.mxu0 0.0
        %8740 = vmatpush1.msra.mxu0 %v8586
        %8741 = vmatprep.subr.mxu0 0.0
        %8742 = vmatpush1.msra.mxu0 %v8587
        %8743 = vmatprep.subr.mxu0 0.0
        %8744 = vmatpush1.msra.mxu0 %v8588
        %8745 = vmatprep.subr.mxu0 0.0
        %8746 = vmatpush1.msra.mxu0 %v8589
        %8747 = vmatprep.subr.mxu0 0.0
        %8748 = vmatpush1.msra.mxu0 %v8590
        %8749 = vmatprep.subr.mxu0 0.0
        %8750 = vmatpush1.msra.mxu0 %v8591
        %8751 = vmatprep.subr.mxu0 0.0
        %8752 = vmatpush1.msra.mxu0 %v8592
        %8753 = vmatprep.subr.mxu0 0.0
        %8754 = vmatpush1.msra.mxu0 %v8593
        %8755 = vmatprep.subr.mxu0 0.0
        %8756 = vmatpush1.msra.mxu0 %v8594
        %8757 = vmatprep.subr.mxu0 0.0
        %8758 = vmatpush1.msra.mxu0 %v8595
        %8759 = vmatprep.subr.mxu0 0.0
        %8760 = vmatpush1.msra.mxu0 %v8596
        %8761 = vmatprep.subr.mxu0 0.0
        %8762 = vmatpush1.msra.mxu0 %v8597
        %8763 = vmatprep.subr.mxu0 0.0
        %8764 = vmatpush1.msra.mxu0 %v8598
        %8765 = vmatprep.subr.mxu0 0.0
        %8766 = vmatpush1.msra.mxu0 %v8599
        %8767 = vmatprep.mubr.f32.mxu0 %v8561
        %8768 = vmatmul.mubr.f32.gmra.mrb[0].mxu0 %v8560
        %v8769 = vpop.f32.mrb[0].mxu0
        %v8770 = vadd.f32 %v8701, %v8769
        %v8771 = vpop.f32.mrb[0].mxu0
        %8772 = vdwg.mxu0
        %8773 = vmatprep.subr.mxu0 0.0
        %8774 = vmatpush1.msra.mxu0 %v8600
        %8775 = vmatprep.subr.mxu0 0.0
        %8776 = vmatpush1.msra.mxu0 %v8601
        %8777 = vmatprep.subr.mxu0 0.0
        %8778 = vmatpush1.msra.mxu0 %v8602
        %8779 = vmatprep.subr.mxu0 0.0
        %8780 = vmatpush1.msra.mxu0 %v8603
        %8781 = vmatprep.subr.mxu0 0.0
        %8782 = vmatpush1.msra.mxu0 %v8604
        %8783 = vmatprep.subr.mxu0 0.0
        %8784 = vmatpush1.msra.mxu0 %v8605
        %8785 = vmatprep.subr.mxu0 0.0
        %8786 = vmatpush1.msra.mxu0 %v8606
        %8787 = vmatprep.subr.mxu0 0.0
        %8788 = vmatpush1.msra.mxu0 %v8607
        %8789 = vmatprep.subr.mxu0 0.0
        %8790 = vmatpush1.msra.mxu0 %v8608
        %8791 = vmatprep.subr.mxu0 0.0
        %8792 = vmatpush1.msra.mxu0 %v8609
        %8793 = vmatprep.subr.mxu0 0.0
        %8794 = vmatpush1.msra.mxu0 %v8610
        %8795 = vmatprep.subr.mxu0 0.0
        %8796 = vmatpush1.msra.mxu0 %v8611
        %8797 = vmatprep.subr.mxu0 0.0
        %8798 = vmatpush1.msra.mxu0 %v8612
        %8799 = vmatprep.subr.mxu0 0.0
        %8800 = vmatpush1.msra.mxu0 %v8613
        %8801 = vmatprep.subr.mxu0 0.0
        %8802 = vmatpush1.msra.mxu0 %v8614
        %8803 = vmatprep.subr.mxu0 0.0
        %8804 = vmatpush1.msra.mxu0 %v8615
        %8805 = vmatprep.subr.mxu0 0.0
        %8806 = vmatpush1.msra.mxu0 %v8616
        %8807 = vmatprep.subr.mxu0 0.0
        %8808 = vmatpush1.msra.mxu0 %v8617
        %8809 = vmatprep.subr.mxu0 0.0
        %8810 = vmatpush1.msra.mxu0 %v8618
        %8811 = vmatprep.subr.mxu0 0.0
        %8812 = vmatpush1.msra.mxu0 %v8619
        %8813 = vmatprep.subr.mxu0 0.0
        %8814 = vmatpush1.msra.mxu0 %v8620
        %8815 = vmatprep.subr.mxu0 0.0
        %8816 = vmatpush1.msra.mxu0 %v8621
        %8817 = vmatprep.subr.mxu0 0.0
        %8818 = vmatpush1.msra.mxu0 %v8622
        %8819 = vmatprep.subr.mxu0 0.0
        %8820 = vmatpush1.msra.mxu0 %v8623
        %8821 = vmatprep.subr.mxu0 0.0
        %8822 = vmatpush1.msra.mxu0 %v8624
        %8823 = vmatprep.subr.mxu0 0.0
        %8824 = vmatpush1.msra.mxu0 %v8625
        %8825 = vmatprep.subr.mxu0 0.0
        %8826 = vmatpush1.msra.mxu0 %v8626
        %8827 = vmatprep.subr.mxu0 0.0
        %8828 = vmatpush1.msra.mxu0 %v8627
        %8829 = vmatprep.subr.mxu0 0.0
        %8830 = vmatpush1.msra.mxu0 %v8628
        %8831 = vmatprep.subr.mxu0 0.0
        %8832 = vmatpush1.msra.mxu0 %v8629
        %8833 = vmatprep.subr.mxu0 0.0
        %8834 = vmatpush1.msra.mxu0 %v8630
        %8835 = vmatprep.subr.mxu0 0.0
        %8836 = vmatpush1.msra.mxu0 %v8631
        %8837 = vmatprep.mubr.f32.mxu0 %v8563
        %8838 = vmatmul.mubr.f32.gmra.mrb[0].mxu0 %v8562
        %v8839 = vpop.f32.mrb[0].mxu0
        %v8840 = vadd.f32 %v8770, %v8839
        %v8841 = vpop.f32.mrb[0].mxu0
        %8842 = vdwg.mxu0
        %8843 = vmatprep.subr.mxu0 0.0
        %8844 = vmatpush1.msra.mxu0 %v8632
        %8845 = vmatprep.subr.mxu0 0.0
        %8846 = vmatpush1.msra.mxu0 %v8633
        %8847 = vmatprep.subr.mxu0 0.0
        %8848 = vmatpush1.msra.mxu0 %v8634
        %8849 = vmatprep.subr.mxu0 0.0
        %8850 = vmatpush1.msra.mxu0 %v8635
        %8851 = vmatprep.subr.mxu0 0.0
        %8852 = vmatpush1.msra.mxu0 %v8636
        %8853 = vmatprep.subr.mxu0 0.0
        %8854 = vmatpush1.msra.mxu0 %v8637
        %8855 = vmatprep.subr.mxu0 0.0
        %8856 = vmatpush1.msra.mxu0 %v8638
        %8857 = vmatprep.subr.mxu0 0.0
        %8858 = vmatpush1.msra.mxu0 %v8639
        %8859 = vmatprep.subr.mxu0 0.0
        %8860 = vmatpush1.msra.mxu0 %v8640
        %8861 = vmatprep.subr.mxu0 0.0
        %8862 = vmatpush1.msra.mxu0 %v8641
        %8863 = vmatprep.subr.mxu0 0.0
        %8864 = vmatpush1.msra.mxu0 %v8642
        %8865 = vmatprep.subr.mxu0 0.0
        %8866 = vmatpush1.msra.mxu0 %v8643
        %8867 = vmatprep.subr.mxu0 0.0
        %8868 = vmatpush1.msra.mxu0 %v8644
        %8869 = vmatprep.subr.mxu0 0.0
        %8870 = vmatpush1.msra.mxu0 %v8645
        %8871 = vmatprep.subr.mxu0 0.0
        %8872 = vmatpush1.msra.mxu0 %v8646
        %8873 = vmatprep.subr.mxu0 0.0
        %8874 = vmatpush1.msra.mxu0 %v8647
        %8875 = vmatprep.subr.mxu0 0.0
        %8876 = vmatpush1.msra.mxu0 %v8648
        %8877 = vmatprep.subr.mxu0 0.0
        %8878 = vmatpush1.msra.mxu0 %v8649
        %8879 = vmatprep.subr.mxu0 0.0
        %8880 = vmatpush1.msra.mxu0 %v8650
        %8881 = vmatprep.subr.mxu0 0.0
        %8882 = vmatpush1.msra.mxu0 %v8651
        %8883 = vmatprep.subr.mxu0 0.0
        %8884 = vmatpush1.msra.mxu0 %v8652
        %8885 = vmatprep.subr.mxu0 0.0
        %8886 = vmatpush1.msra.mxu0 %v8653
        %8887 = vmatprep.subr.mxu0 0.0
        %8888 = vmatpush1.msra.mxu0 %v8654
        %8889 = vmatprep.subr.mxu0 0.0
        %8890 = vmatpush1.msra.mxu0 %v8655
        %8891 = vmatprep.subr.mxu0 0.0
        %8892 = vmatpush1.msra.mxu0 %v8656
        %8893 = vmatprep.subr.mxu0 0.0
        %8894 = vmatpush1.msra.mxu0 %v8657
        %8895 = vmatprep.subr.mxu0 0.0
        %8896 = vmatpush1.msra.mxu0 %v8658
        %8897 = vmatprep.subr.mxu0 0.0
        %8898 = vmatpush1.msra.mxu0 %v8659
        %8899 = vmatprep.subr.mxu0 0.0
        %8900 = vmatpush1.msra.mxu0 %v8660
        %8901 = vmatprep.subr.mxu0 0.0
        %8902 = vmatpush1.msra.mxu0 %v8661
        %8903 = vmatprep.subr.mxu0 0.0
        %8904 = vmatpush1.msra.mxu0 %v8662
        %8905 = vmatprep.subr.mxu0 0.0
        %8906 = vmatpush1.msra.mxu0 %v8663
        %8907 = vmatprep.mubr.f32.mxu0 %v8565
        %8908 = vmatmul.mubr.f32.gmra.mrb[0].mxu0 %v8564
        %v8909 = vpop.f32.mrb[0].mxu0
        %v8910 = vadd.f32 %v8840, %v8909
        %v8911 = vpop.f32.mrb[0].mxu0
        %8912 = vdwg.mxu0
        %8913 = vmatprep.subr.mxu0 0.0
        %8914 = vmatpush1.msra.mxu0 %v8664
        %8915 = vmatprep.subr.mxu0 0.0
        %8916 = vmatpush1.msra.mxu0 %v8665
        %8917 = vmatprep.subr.mxu0 0.0
        %8918 = vmatpush1.msra.mxu0 %v8666
        %8919 = vmatprep.subr.mxu0 0.0
        %8920 = vmatpush1.msra.mxu0 %v8667
        %8921 = vmatprep.subr.mxu0 0.0
        %8922 = vmatpush1.msra.mxu0 %v8668
        %8923 = vmatprep.subr.mxu0 0.0
        %8924 = vmatpush1.msra.mxu0 %v8669
        %8925 = vmatprep.subr.mxu0 0.0
        %8926 = vmatpush1.msra.mxu0 %v8670
        %8927 = vmatprep.subr.mxu0 0.0
        %8928 = vmatpush1.msra.mxu0 %v8671
        %8929 = vmatprep.subr.mxu0 0.0
        %8930 = vmatpush1.msra.mxu0 %v8672
        %8931 = vmatprep.subr.mxu0 0.0
        %8932 = vmatpush1.msra.mxu0 %v8673
        %8933 = vmatprep.subr.mxu0 0.0
        %8934 = vmatpush1.msra.mxu0 %v8674
        %8935 = vmatprep.subr.mxu0 0.0
        %8936 = vmatpush1.msra.mxu0 %v8675
        %8937 = vmatprep.subr.mxu0 0.0
        %8938 = vmatpush1.msra.mxu0 %v8676
        %8939 = vmatprep.subr.mxu0 0.0
        %8940 = vmatpush1.msra.mxu0 %v8677
        %8941 = vmatprep.subr.mxu0 0.0
        %8942 = vmatpush1.msra.mxu0 %v8678
        %8943 = vmatprep.subr.mxu0 0.0
        %8944 = vmatpush1.msra.mxu0 %v8679
        %8945 = vmatprep.subr.mxu0 0.0
        %8946 = vmatpush1.msra.mxu0 %v8680
        %8947 = vmatprep.subr.mxu0 0.0
        %8948 = vmatpush1.msra.mxu0 %v8681
        %8949 = vmatprep.subr.mxu0 0.0
        %8950 = vmatpush1.msra.mxu0 %v8682
        %8951 = vmatprep.subr.mxu0 0.0
        %8952 = vmatpush1.msra.mxu0 %v8683
        %8953 = vmatprep.subr.mxu0 0.0
        %8954 = vmatpush1.msra.mxu0 %v8684
        %8955 = vmatprep.subr.mxu0 0.0
        %8956 = vmatpush1.msra.mxu0 %v8685
        %8957 = vmatprep.subr.mxu0 0.0
        %8958 = vmatpush1.msra.mxu0 %v8686
        %8959 = vmatprep.subr.mxu0 0.0
        %8960 = vmatpush1.msra.mxu0 %v8687
        %8961 = vmatprep.subr.mxu0 0.0
        %8962 = vmatpush1.msra.mxu0 %v8688
        %8963 = vmatprep.subr.mxu0 0.0
        %8964 = vmatpush1.msra.mxu0 %v8689
        %8965 = vmatprep.subr.mxu0 0.0
        %8966 = vmatpush1.msra.mxu0 %v8690
        %8967 = vmatprep.subr.mxu0 0.0
        %8968 = vmatpush1.msra.mxu0 %v8691
        %8969 = vmatprep.subr.mxu0 0.0
        %8970 = vmatpush1.msra.mxu0 %v8692
        %8971 = vmatprep.subr.mxu0 0.0
        %8972 = vmatpush1.msra.mxu0 %v8693
        %8973 = vmatprep.subr.mxu0 0.0
        %8974 = vmatpush1.msra.mxu0 %v8694
        %8975 = vmatprep.subr.mxu0 0.0
        %8976 = vmatpush1.msra.mxu0 %v8695
        %8977 = vmatprep.mubr.f32.mxu0 %v8567
        %8978 = vmatmul.mubr.f32.gmra.mrb[0].mxu0 %v8566
        %v8979 = vpop.f32.mrb[0].mxu0
        %v8980 = vadd.f32 %v8910, %v8979
        %v8981 = vpop.f32.mrb[0].mxu0
        %8982 = vdwg.mxu0
        %8983 = vst [vmem:[%s1072] sm:$0x3] %v8980
        %p8984 = scmp.lt.s32.totalorder %s53, 1
        %s8985 = scalar_select %p8984, %s53, 1
        %p8986 = scmp.lt.s32.totalorder %s54, 0
        %s8987 = scalar_select %p8986, %s54, 0
        %s8988 = sadd.s32 %s8987, %s8985
        %s8989 = smul.addr %s8988, 2
        %s8990 = scalar_lea.vmem %s17, %s8989
        // Predicated region
        $region137: #{s2p_state_forward.1} parent=87 // pred_check
          %p8991 = pneg %p523
        $region138: #{s2p_state_forward.1} parent=87 // pred_check_branch
          %8993 = sbr.rel (%p8991) target = $region140
        $region139: #{s2p_state_forward.1} parent=87 // pred_region
          _
        $region140: #{s2p_state_forward.1} parent=87 // pred_fallthru
          _
      $region88: #{s2p_state_forward.1} parent=5 // pred_fallthru
        _
      %p8994 = scmp.le.s32.totalorder 2, %s44
      // Predicated region
      $region141: #{s2p_state_forward.1} parent=5 // pred_check
        %p8995 = pneg %p8994
      $region142: #{s2p_state_forward.1} parent=5 // pred_check_branch
        %8997 = sbr.rel (%p8995) target = $region144
      $region143: #{s2p_state_forward.1} parent=5 // pred_region
        %s8998 = ssub.s32 %s44, 2
        // Predicated region
        $region145: #{s2p_state_forward.1} parent=143 // pred_check
          %p8999 = pneg %p529
        $region146: #{s2p_state_forward.1} parent=143 // pred_check_branch
          %9001 = sbr.rel (%p8999) target = $region148
        $region147: #{s2p_state_forward.1} parent=143 // pred_region
          %p9002 = scmp.lt.s32.totalorder %s55, 1
          %s9003 = scalar_select %p9002, %s55, 1
          %p9004 = scmp.lt.s32.totalorder %s56, 0
          %s9005 = scalar_select %p9004, %s56, 0
          %s9006 = sadd.s32 %s9005, %s9003
          %s9007 = smul.addr %s9006, 2
          %s9008 = scalar_lea.vmem %s17, %s9007
        $region148: #{s2p_state_forward.1} parent=143 // pred_fallthru
          _
      $region144: #{s2p_state_forward.1} parent=5 // pred_fallthru
        _
    $region6: #{s2p_state_forward.1} parent=1 // loop_footer
      %s48 = sadd.s32 1, %s44
    $region7: #{s2p_state_forward.1} parent=1 // loop_footer_branch
      %43 = sbr.rel target = $region3
    $region8: #{s2p_state_forward.1} parent=1 // loop_exit
      _
    %9009 = vsyncpa [#allocation5], 1
    %s9010 = scalar_lea.sflag [#allocation5], 1
    %9011 = vsyncpa %s9010, 1
    %9012 = vsyncpa [#allocation7], 1
    %s9013 = scalar_lea.sflag [#allocation7], 1
    %9014 = vsyncpa %s9013, 1
    %9015 = vsyncpa [#allocation10], 1
    %s9016 = scalar_lea.sflag [#allocation10], 1
    %9017 = vsyncpa %s9016, 1
    %9018 = vsyncpa [#allocation13], 1
    %s9019 = scalar_lea.sflag [#allocation13], 1
    %9020 = vsyncpa %s9019, 1
    %9021 = vsyncpa [#allocation16], 1
    %s9022 = scalar_lea.sflag [#allocation16], 1
    %9023 = vsyncpa %s9022, 1
    %9024 = vsyncpa [#allocation19], 1
    %s9025 = scalar_lea.sflag [#allocation19], 1
    %9026 = vsyncpa %s9025, 1
    %9027 = vsyncpa [#allocation22], 1
    %s9028 = scalar_lea.sflag [#allocation22], 1
    %9029 = vsyncpa %s9028, 1

</llo_original>
